<compile_context>
chip_gen: v7x
topology: tpu7x:2x2x1
jax: 0.10.0
libtpu: 0.0.40
codegen_flags: <defaults>
</compile_context>

<pallas_src>
import functools

import jax
import jax.numpy as jnp
from jax import lax
from jax.experimental import pallas as pl
from jax.experimental.pallas import tpu as pltpu

CP1 = 32   # conv1 output channels padded 20 -> 32
CP2 = 64   # conv2 output channels padded 50 -> 64


def _round_up(n, m):
    return ((n + m - 1) // m) * m


# ------------------------------ fused kernel -------------------------------

def _net_kernel(x_ref, w1_ref, b1_ref, w2_ref, b2_ref,
                fw1_ref, fb1_ref, fw2_ref, fb2_ref,
                o_ref, p1_ref, p2_ref, *, tb):
    """Whole forward for one batch tile, resident in VMEM.

    x_ref  : (tb, 28, 28) f32
    w1_ref : (140, 24*CP1) bf16   banded conv1 weight, rows=(ki, w_in), cols=(wo, co)
    b1_ref : (1, 24*CP1) f32
    w2_ref : (5, 12*CP1, 8*CP2) bf16  banded conv2 weights, rows=(w_in, ci), cols=(wo, co)
    b2_ref : (1, 8*CP2) f32
    fw1_ref: (16*CP2, 512) bf16   fc1 (rows ordered (h, w, c_pad))
    fb1_ref: (1, 512) f32
    fw2_ref: (512, NOP) bf16      fc2 (padded out cols)
    fb2_ref: (1, NOP) f32         pad cols = -1e30
    o_ref  : (tb, NOP) f32        softmax probabilities
    p1_ref : (tb, 12, 12*CP1) f32 scratch (pooled conv1 activation)
    p2_ref : (tb, 4, 4*CP2)  f32 scratch (pooled conv2 activation)
    """
    # ---------------- conv1 + bias + relu : one K=140 MXU matmul ----------------
    x = x_ref[...]                                               # (tb, 28, 28) f32
    xs = jnp.concatenate([x[:, k:k + 24, :] for k in range(5)], axis=-1)  # (tb,24,140)
    xs = xs.reshape(tb * 24, 140).astype(jnp.bfloat16)
    a1 = jnp.dot(xs, w1_ref[...], preferred_element_type=jnp.float32)     # (tb*24, 768)
    a1 = jnp.maximum(a1 + b1_ref[...], 0.0)

    # ---------------- fused 2x2/2 max-pool #1 (stays in VMEM) -------------------
    a1 = a1.reshape(tb, 24, 24 * CP1)                            # rows=(b,ho), cols=(wo,co)
    hp = jnp.concatenate(
        [jnp.maximum(a1[:, 2 * q:2 * q + 1, :], a1[:, 2 * q + 1:2 * q + 2, :])
         for q in range(12)], axis=1)                            # (tb, 12, 24*CP1)
    p1 = jnp.concatenate(
        [jnp.maximum(hp[:, :, (2 * q) * CP1:(2 * q + 1) * CP1],
                     hp[:, :, (2 * q + 1) * CP1:(2 * q + 2) * CP1])
         for q in range(12)], axis=-1)                           # (tb, 12, 12*CP1)
    p1_ref[...] = p1

    # ---------------- conv2 + bias + relu : 5 banded matmuls, K=384 -------------
    acc2 = None
    for ki in range(5):
        xs2 = p1_ref[:, ki:ki + 8, :].reshape(tb * 8, 12 * CP1).astype(jnp.bfloat16)
        part = jnp.dot(xs2, w2_ref[ki], preferred_element_type=jnp.float32)
        acc2 = part if acc2 is None else acc2 + part             # (tb*8, 8*CP2)
    a2 = jnp.maximum(acc2 + b2_ref[...], 0.0)

    # ---------------- fused 2x2/2 max-pool #2 -----------------------------------
    a2 = a2.reshape(tb, 8, 8 * CP2)
    hp2 = jnp.concatenate(
        [jnp.maximum(a2[:, 2 * q:2 * q + 1, :], a2[:, 2 * q + 1:2 * q + 2, :])
         for q in range(4)], axis=1)                             # (tb, 4, 8*CP2)
    p2 = jnp.concatenate(
        [jnp.maximum(hp2[:, :, (2 * q) * CP2:(2 * q + 1) * CP2],
                     hp2[:, :, (2 * q + 1) * CP2:(2 * q + 2) * CP2])
         for q in range(4)], axis=-1)                            # (tb, 4, 4*CP2)
    p2_ref[...] = p2

    # ---------------- fc1 + relu + fc2 + softmax --------------------------------
    feat = jnp.concatenate([p2_ref[:, r, :] for r in range(4)], axis=-1)  # (tb, 16*CP2)
    feat = feat.astype(jnp.bfloat16)
    h = jnp.dot(feat, fw1_ref[...], preferred_element_type=jnp.float32) + fb1_ref[...]
    h = jnp.maximum(h, 0.0).astype(jnp.bfloat16)                 # (tb, 512)
    logits = jnp.dot(h, fw2_ref[...], preferred_element_type=jnp.float32) + fb2_ref[...]
    m = jnp.max(logits, axis=-1, keepdims=True)
    e = jnp.exp(logits - m)
    o_ref[...] = (e / jnp.sum(e, axis=-1, keepdims=True)).astype(o_ref.dtype)


def _net_call(x, prep, tb):
    bp = x.shape[0]
    n1p = prep["fc1_w"].shape[1]
    nop = prep["fc2_w"].shape[1]
    kernel = functools.partial(_net_kernel, tb=tb)
    return pl.pallas_call(
        kernel,
        out_shape=jax.ShapeDtypeStruct((bp, nop), jnp.float32),
        grid=(bp // tb,),
        in_specs=[
            pl.BlockSpec((tb, 28, 28), lambda i: (i, 0, 0)),
            pl.BlockSpec((5 * 28, 24 * CP1), lambda i: (0, 0)),
            pl.BlockSpec((1, 24 * CP1), lambda i: (0, 0)),
            pl.BlockSpec((5, 12 * CP1, 8 * CP2), lambda i: (0, 0, 0)),
            pl.BlockSpec((1, 8 * CP2), lambda i: (0, 0)),
            pl.BlockSpec((16 * CP2, n1p), lambda i: (0, 0)),
            pl.BlockSpec((1, n1p), lambda i: (0, 0)),
            pl.BlockSpec((n1p, nop), lambda i: (0, 0)),
            pl.BlockSpec((1, nop), lambda i: (0, 0)),
        ],
        out_specs=pl.BlockSpec((tb, nop), lambda i: (i, 0)),
        scratch_shapes=[
            pltpu.VMEM((tb, 12, 12 * CP1), jnp.float32),
            pltpu.VMEM((tb, 4, 4 * CP2), jnp.float32),
        ],
        compiler_params=pltpu.CompilerParams(
            dimension_semantics=("parallel",),
            vmem_limit_bytes=48 * 1024 * 1024),
    )(x, prep["conv1_w"], prep["conv1_b"], prep["conv2_w"], prep["conv2_b"],
      prep["fc1_w"], prep["fc1_b"], prep["fc2_w"], prep["fc2_b"])


# ---------------------- one-time parameter preprocessing --------------------

def prepare_params(params):
    f32, bf16 = jnp.float32, jnp.bfloat16

    # conv1 -> banded matmul weight (5*28, 24*CP1):
    #   W[ki*28 + w, wo*CP1 + co] = conv1_w[co, 0, ki, w - wo] if 0 <= w-wo < 5.
    w1 = params["conv1_w"].astype(f32)            # (20, 1, 5, 5)
    b1 = params["conv1_b"].astype(f32)
    c1 = w1.shape[0]
    taps1 = jnp.zeros((5, 5, CP1), f32).at[:, :, :c1].set(
        jnp.transpose(w1[:, 0], (1, 2, 0)))       # (ki, kj, co)
    W1 = jnp.zeros((5, 28, 24, CP1), f32)
    for kj in range(5):
        band = jnp.zeros((28, 24), f32).at[kj + jnp.arange(24), jnp.arange(24)].set(1.0)
        W1 = W1 + band[None, :, :, None] * taps1[:, kj][:, None, None, :]
    conv1_w = W1.reshape(5 * 28, 24 * CP1).astype(bf16)
    conv1_b = jnp.tile(jnp.zeros((CP1,), f32).at[:c1].set(b1), 24).reshape(1, 24 * CP1)

    # conv2 -> 5 banded weights (12*CP1, 8*CP2):
    #   W[ki][w*CP1 + ci, wo*CP2 + co] = conv2_w[co, ci, ki, w - wo] if 0 <= w-wo < 5.
    w2 = params["conv2_w"].astype(f32)            # (50, 20, 5, 5)
    b2 = params["conv2_b"].astype(f32)
    c2o, c2i = w2.shape[0], w2.shape[1]
    taps2 = jnp.zeros((5, 5, CP1, CP2), f32).at[:, :, :c2i, :c2o].set(
        jnp.transpose(w2, (2, 3, 1, 0)))          # (ki, kj, ci, co)
    W2 = jnp.zeros((5, 12, CP1, 8, CP2), f32)
    for kj in range(5):
        band = jnp.zeros((12, 8), f32).at[kj + jnp.arange(8), jnp.arange(8)].set(1.0)
        W2 = W2 + band[None, :, None, :, None] * taps2[:, kj][:, None, :, None, :]
    conv2_w = W2.reshape(5, 12 * CP1, 8 * CP2).astype(bf16)
    conv2_b = jnp.tile(jnp.zeros((CP2,), f32).at[:c2o].set(b2), 8).reshape(1, 8 * CP2)

    # fc1: rows reordered from torch (c, h, w) flatten to our (h, w, c_pad) flatten;
    # columns padded 500 -> 512.
    fw1 = params["fc1_w"].astype(f32)             # (800, 500), row = c*16 + h*4 + w
    fb1 = params["fc1_b"].astype(f32)
    n1 = fw1.shape[1]
    n1p = _round_up(n1, 128)
    fw1r = jnp.transpose(fw1.reshape(c2o, 4, 4, n1), (1, 2, 0, 3))   # (h, w, c, n)
    fc1_w = (jnp.zeros((4, 4, CP2, n1p), f32).at[:, :, :c2o, :n1].set(fw1r)
             .reshape(16 * CP2, n1p).astype(bf16))
    fc1_b = jnp.zeros((1, n1p), f32).at[0, :n1].set(fb1)

    # fc2: rows padded 500->512 (zeros), cols padded index->128; padded bias
    # columns get -1e30 (f32 logits) so they vanish under the fused softmax.
    fw2 = params["fc2_w"].astype(f32)             # (500, index)
    fb2 = params["fc2_b"].astype(f32)
    no = fw2.shape[1]
    nop = _round_up(no, 128)
    fc2_w = jnp.zeros((n1p, nop), f32).at[:n1, :no].set(fw2).astype(bf16)
    fc2_b = jnp.full((1, nop), -1e30, f32).at[0, :no].set(fb2)

    return {
        "conv1_w": conv1_w, "conv1_b": conv1_b,
        "conv2_w": conv2_w, "conv2_b": conv2_b,
        "fc1_w": fc1_w, "fc1_b": fc1_b,
        "fc2_w": fc2_w, "fc2_b": fc2_b,
    }


# --------------------------------- forward ---------------------------------

def net_forward(prep, x_nchw, *, index):
    B = x_nchw.shape[0]
    if B > 8:
        tb = 32 if B > 32 else (16 if B > 16 else 8)   # >=2 grid steps (v7x megacore)
    else:
        tb = B                                          # tiny batch: single step
    bp = _round_up(B, tb)
    x = x_nchw[:, 0, :, :].astype(jnp.float32)          # (B, 28, 28)
    if bp != B:
        x = jnp.pad(x, ((0, bp - B), (0, 0), (0, 0)))
    probs = _net_call(x, prep, tb)                       # (bp, 128) f32
    return probs[:B, :index]


# ------------------------------ pure-JAX reference --------------------------

def net_reference(params, x_nchw, *, index):
    f32 = jnp.float32
    B = x_nchw.shape[0]
    x = x_nchw.astype(f32)
    y = lax.conv_general_dilated(x, params["conv1_w"].astype(f32), (1, 1), "VALID",
                                 dimension_numbers=("NCHW", "OIHW", "NCHW"))
    y = jnp.maximum(y + params["conv1_b"][None, :, None, None], 0.0)
    y = y.reshape(B, 20, 12, 2, 12, 2).max(axis=(3, 5))
    y = lax.conv_general_dilated(y, params["conv2_w"].astype(f32), (1, 1), "VALID",
                                 dimension_numbers=("NCHW", "OIHW", "NCHW"))
    y = jnp.maximum(y + params["conv2_b"][None, :, None, None], 0.0)
    y = y.reshape(B, 50, 4, 2, 4, 2).max(axis=(3, 5))
    f = y.reshape(B, 4 * 4 * 50)
    h = jnp.maximum(f @ params["fc1_w"] + params["fc1_b"], 0.0)
    logits = h @ params["fc2_w"] + params["fc2_b"]
    return jax.nn.softmax(logits, axis=1)[:, :index]


# ------------------------------ initialization ------------------------------

def init_params(key, index=10):
    """Deterministic PyTorch-default-style (uniform +/- 1/sqrt(fan_in)) init."""
    ks = jax.random.split(key, 8)

    def u(k, shape, fan_in):
        bound = 1.0 / jnp.sqrt(jnp.float32(fan_in))
        return jax.random.uniform(k, shape, jnp.float32, -bound, bound)

    return {
        "conv1_w": u(ks[0], (20, 1, 5, 5), 1 * 5 * 5),
        "conv1_b": u(ks[1], (20,), 1 * 5 * 5),
        "conv2_w": u(ks[2], (50, 20, 5, 5), 20 * 5 * 5),
        "conv2_b": u(ks[3], (50,), 20 * 5 * 5),
        # fc weights stored as (in_features, out_features) for x @ W
        "fc1_w": u(ks[4], (4 * 4 * 50, 500), 4 * 4 * 50),
        "fc1_b": u(ks[5], (500,), 4 * 4 * 50),
        "fc2_w": u(ks[6], (500, index), 500),
        "fc2_b": u(ks[7], (index,), 500),
    }


if __name__ == "__main__":
    key = jax.random.PRNGKey(0)
    pkey, xkey = jax.random.split(key)
    index = 10
    params = init_params(pkey, index=index)
    prep = prepare_params(params)   # one-time weight repack / pad (hoisted)

    # The fc1 layer (4*4*50 inputs) implies a 28x28 single-channel input.
    x = jax.random.normal(xkey, (2, 1, 28, 28), jnp.float32)

    fwd = jax.jit(functools.partial(net_forward, index=index))
    out = jax.block_until_ready(fwd(prep, x))

    ref = net_reference(params, x, index=index)
    assert out.shape == (2, index)
    assert bool(jnp.all(jnp.isfinite(out)))
    assert bool(jnp.allclose(jnp.sum(out, axis=1), 1.0, atol=2e-3))
    # bf16 matmuls vs f32 reference => loose tolerance
    assert bool(jnp.allclose(out, ref, atol=5e-2)), float(jnp.max(jnp.abs(out - ref)))
    print("KERNEL_OK")
</pallas_src>

<mosaic_0001>
module attributes {stable_mosaic.version = 11 : i64} {
  func.func @_net_kernel(%arg0: i32, %arg1: memref<2x28x28xf32, #tpu.memory_space<vmem>>, %arg2: memref<140x768xbf16, #tpu.memory_space<vmem>>, %arg3: memref<1x768xf32, #tpu.memory_space<vmem>>, %arg4: memref<5x384x512xbf16, #tpu.memory_space<vmem>>, %arg5: memref<1x512xf32, #tpu.memory_space<vmem>>, %arg6: memref<1024x512xbf16, #tpu.memory_space<vmem>>, %arg7: memref<1x512xf32, #tpu.memory_space<vmem>>, %arg8: memref<512x128xbf16, #tpu.memory_space<vmem>>, %arg9: memref<1x128xf32, #tpu.memory_space<vmem>>, %arg10: memref<2x128xf32, #tpu.memory_space<vmem>>, %arg11: memref<2x12x384xf32, #tpu.memory_space<vmem>>, %arg12: memref<2x4x256xf32, #tpu.memory_space<vmem>>) attributes {dimension_semantics = [#tpu.dimension_semantics<parallel>], iteration_bounds = array<i64: 1>, scalar_prefetch = 0 : i64, scratch_operands = 2 : i64, tpu.core_type = #tpu.core_type<tc>, window_params = [{transform_indices = @transform_0, window_bounds = array<i64: 2, 28, 28>}, {pipeline_mode = #tpu.pipeline_mode<synchronous>, transform_indices = @transform_1, window_bounds = array<i64: 140, 768>}, {pipeline_mode = #tpu.pipeline_mode<synchronous>, transform_indices = @transform_2, window_bounds = array<i64: 1, 768>}, {pipeline_mode = #tpu.pipeline_mode<synchronous>, transform_indices = @transform_3, window_bounds = array<i64: 5, 384, 512>}, {pipeline_mode = #tpu.pipeline_mode<synchronous>, transform_indices = @transform_4, window_bounds = array<i64: 1, 512>}, {pipeline_mode = #tpu.pipeline_mode<synchronous>, transform_indices = @transform_5, window_bounds = array<i64: 1024, 512>}, {pipeline_mode = #tpu.pipeline_mode<synchronous>, transform_indices = @transform_6, window_bounds = array<i64: 1, 512>}, {pipeline_mode = #tpu.pipeline_mode<synchronous>, transform_indices = @transform_7, window_bounds = array<i64: 512, 128>}, {pipeline_mode = #tpu.pipeline_mode<synchronous>, transform_indices = @transform_8, window_bounds = array<i64: 1, 128>}, {transform_indices = @transform_9, window_bounds = array<i64: 2, 128>}]} {
    %c0 = arith.constant 0 : index
    %c0_0 = arith.constant 0 : index
    %c0_1 = arith.constant 0 : index
    %0 = vector.load %arg1[%c0, %c0_0, %c0_1] : memref<2x28x28xf32, #tpu.memory_space<vmem>>, vector<2x28x28xf32>
    %1 = vector.extract_strided_slice %0 {offsets = [0, 0, 0], sizes = [2, 24, 28], strides = [1, 1, 1]} : vector<2x28x28xf32> to vector<2x24x28xf32>
    %2 = vector.extract_strided_slice %0 {offsets = [0, 1, 0], sizes = [2, 24, 28], strides = [1, 1, 1]} : vector<2x28x28xf32> to vector<2x24x28xf32>
    %3 = vector.extract_strided_slice %0 {offsets = [0, 2, 0], sizes = [2, 24, 28], strides = [1, 1, 1]} : vector<2x28x28xf32> to vector<2x24x28xf32>
    %4 = vector.extract_strided_slice %0 {offsets = [0, 3, 0], sizes = [2, 24, 28], strides = [1, 1, 1]} : vector<2x28x28xf32> to vector<2x24x28xf32>
    %5 = vector.extract_strided_slice %0 {offsets = [0, 4, 0], sizes = [2, 24, 28], strides = [1, 1, 1]} : vector<2x28x28xf32> to vector<2x24x28xf32>
    %6 = tpu.concatenate %1, %2, %3, %4, %5 in 2 : vector<2x24x28xf32>, vector<2x24x28xf32>, vector<2x24x28xf32>, vector<2x24x28xf32>, vector<2x24x28xf32> -> vector<2x24x140xf32>
    %7 = vector.shape_cast %6 : vector<2x24x140xf32> to vector<48x140xf32>
    %8 = arith.truncf %7 : vector<48x140xf32> to vector<48x140xbf16>
    %c0_2 = arith.constant 0 : index
    %c0_3 = arith.constant 0 : index
    %9 = vector.load %arg2[%c0_2, %c0_3] : memref<140x768xbf16, #tpu.memory_space<vmem>>, vector<140x768xbf16>
    %cst = arith.constant dense<0.000000e+00> : vector<48x768xf32>
    %10 = tpu.matmul %8, %9, %cst {dimension_numbers = #tpu.dot_dimension_numbers<[1], [0], [0], [1], [0, 0, 1, 1], [], []>} : vector<48x140xbf16>, vector<140x768xbf16>, vector<48x768xf32> -> vector<48x768xf32>
    %c0_4 = arith.constant 0 : index
    %c0_5 = arith.constant 0 : index
    %11 = vector.load %arg3[%c0_4, %c0_5] : memref<1x768xf32, #tpu.memory_space<vmem>>, vector<1x768xf32>
    %12 = vector.broadcast %11 : vector<1x768xf32> to vector<48x768xf32>
    %13 = arith.addf %10, %12 : vector<48x768xf32>
    %cst_6 = arith.constant 0.000000e+00 : f32
    %14 = vector.broadcast %cst_6 : f32 to vector<48x768xf32>
    %15 = arith.maximumf %13, %14 : vector<48x768xf32>
    %16 = vector.shape_cast %15 : vector<48x768xf32> to vector<2x24x768xf32>
    %17 = vector.extract_strided_slice %16 {offsets = [0, 0, 0], sizes = [2, 1, 768], strides = [1, 1, 1]} : vector<2x24x768xf32> to vector<2x1x768xf32>
    %18 = vector.extract_strided_slice %16 {offsets = [0, 1, 0], sizes = [2, 1, 768], strides = [1, 1, 1]} : vector<2x24x768xf32> to vector<2x1x768xf32>
    %19 = arith.maximumf %17, %18 : vector<2x1x768xf32>
    %20 = vector.extract_strided_slice %16 {offsets = [0, 2, 0], sizes = [2, 1, 768], strides = [1, 1, 1]} : vector<2x24x768xf32> to vector<2x1x768xf32>
    %21 = vector.extract_strided_slice %16 {offsets = [0, 3, 0], sizes = [2, 1, 768], strides = [1, 1, 1]} : vector<2x24x768xf32> to vector<2x1x768xf32>
    %22 = arith.maximumf %20, %21 : vector<2x1x768xf32>
    %23 = vector.extract_strided_slice %16 {offsets = [0, 4, 0], sizes = [2, 1, 768], strides = [1, 1, 1]} : vector<2x24x768xf32> to vector<2x1x768xf32>
    %24 = vector.extract_strided_slice %16 {offsets = [0, 5, 0], sizes = [2, 1, 768], strides = [1, 1, 1]} : vector<2x24x768xf32> to vector<2x1x768xf32>
    %25 = arith.maximumf %23, %24 : vector<2x1x768xf32>
    %26 = vector.extract_strided_slice %16 {offsets = [0, 6, 0], sizes = [2, 1, 768], strides = [1, 1, 1]} : vector<2x24x768xf32> to vector<2x1x768xf32>
    %27 = vector.extract_strided_slice %16 {offsets = [0, 7, 0], sizes = [2, 1, 768], strides = [1, 1, 1]} : vector<2x24x768xf32> to vector<2x1x768xf32>
    %28 = arith.maximumf %26, %27 : vector<2x1x768xf32>
    %29 = vector.extract_strided_slice %16 {offsets = [0, 8, 0], sizes = [2, 1, 768], strides = [1, 1, 1]} : vector<2x24x768xf32> to vector<2x1x768xf32>
    %30 = vector.extract_strided_slice %16 {offsets = [0, 9, 0], sizes = [2, 1, 768], strides = [1, 1, 1]} : vector<2x24x768xf32> to vector<2x1x768xf32>
    %31 = arith.maximumf %29, %30 : vector<2x1x768xf32>
    %32 = vector.extract_strided_slice %16 {offsets = [0, 10, 0], sizes = [2, 1, 768], strides = [1, 1, 1]} : vector<2x24x768xf32> to vector<2x1x768xf32>
    %33 = vector.extract_strided_slice %16 {offsets = [0, 11, 0], sizes = [2, 1, 768], strides = [1, 1, 1]} : vector<2x24x768xf32> to vector<2x1x768xf32>
    %34 = arith.maximumf %32, %33 : vector<2x1x768xf32>
    %35 = vector.extract_strided_slice %16 {offsets = [0, 12, 0], sizes = [2, 1, 768], strides = [1, 1, 1]} : vector<2x24x768xf32> to vector<2x1x768xf32>
    %36 = vector.extract_strided_slice %16 {offsets = [0, 13, 0], sizes = [2, 1, 768], strides = [1, 1, 1]} : vector<2x24x768xf32> to vector<2x1x768xf32>
    %37 = arith.maximumf %35, %36 : vector<2x1x768xf32>
    %38 = vector.extract_strided_slice %16 {offsets = [0, 14, 0], sizes = [2, 1, 768], strides = [1, 1, 1]} : vector<2x24x768xf32> to vector<2x1x768xf32>
    %39 = vector.extract_strided_slice %16 {offsets = [0, 15, 0], sizes = [2, 1, 768], strides = [1, 1, 1]} : vector<2x24x768xf32> to vector<2x1x768xf32>
    %40 = arith.maximumf %38, %39 : vector<2x1x768xf32>
    %41 = vector.extract_strided_slice %16 {offsets = [0, 16, 0], sizes = [2, 1, 768], strides = [1, 1, 1]} : vector<2x24x768xf32> to vector<2x1x768xf32>
    %42 = vector.extract_strided_slice %16 {offsets = [0, 17, 0], sizes = [2, 1, 768], strides = [1, 1, 1]} : vector<2x24x768xf32> to vector<2x1x768xf32>
    %43 = arith.maximumf %41, %42 : vector<2x1x768xf32>
    %44 = vector.extract_strided_slice %16 {offsets = [0, 18, 0], sizes = [2, 1, 768], strides = [1, 1, 1]} : vector<2x24x768xf32> to vector<2x1x768xf32>
    %45 = vector.extract_strided_slice %16 {offsets = [0, 19, 0], sizes = [2, 1, 768], strides = [1, 1, 1]} : vector<2x24x768xf32> to vector<2x1x768xf32>
    %46 = arith.maximumf %44, %45 : vector<2x1x768xf32>
    %47 = vector.extract_strided_slice %16 {offsets = [0, 20, 0], sizes = [2, 1, 768], strides = [1, 1, 1]} : vector<2x24x768xf32> to vector<2x1x768xf32>
    %48 = vector.extract_strided_slice %16 {offsets = [0, 21, 0], sizes = [2, 1, 768], strides = [1, 1, 1]} : vector<2x24x768xf32> to vector<2x1x768xf32>
    %49 = arith.maximumf %47, %48 : vector<2x1x768xf32>
    %50 = vector.extract_strided_slice %16 {offsets = [0, 22, 0], sizes = [2, 1, 768], strides = [1, 1, 1]} : vector<2x24x768xf32> to vector<2x1x768xf32>
    %51 = vector.extract_strided_slice %16 {offsets = [0, 23, 0], sizes = [2, 1, 768], strides = [1, 1, 1]} : vector<2x24x768xf32> to vector<2x1x768xf32>
    %52 = arith.maximumf %50, %51 : vector<2x1x768xf32>
    %53 = tpu.concatenate %19, %22, %25, %28, %31, %34, %37, %40, %43, %46, %49, %52 in 1 : vector<2x1x768xf32>, vector<2x1x768xf32>, vector<2x1x768xf32>, vector<2x1x768xf32>, vector<2x1x768xf32>, vector<2x1x768xf32>, vector<2x1x768xf32>, vector<2x1x768xf32>, vector<2x1x768xf32>, vector<2x1x768xf32>, vector<2x1x768xf32>, vector<2x1x768xf32> -> vector<2x12x768xf32>
    %54 = vector.extract_strided_slice %53 {offsets = [0, 0, 0], sizes = [2, 12, 32], strides = [1, 1, 1]} : vector<2x12x768xf32> to vector<2x12x32xf32>
    %55 = vector.extract_strided_slice %53 {offsets = [0, 0, 32], sizes = [2, 12, 32], strides = [1, 1, 1]} : vector<2x12x768xf32> to vector<2x12x32xf32>
    %56 = arith.maximumf %54, %55 : vector<2x12x32xf32>
    %57 = vector.extract_strided_slice %53 {offsets = [0, 0, 64], sizes = [2, 12, 32], strides = [1, 1, 1]} : vector<2x12x768xf32> to vector<2x12x32xf32>
    %58 = vector.extract_strided_slice %53 {offsets = [0, 0, 96], sizes = [2, 12, 32], strides = [1, 1, 1]} : vector<2x12x768xf32> to vector<2x12x32xf32>
    %59 = arith.maximumf %57, %58 : vector<2x12x32xf32>
    %60 = vector.extract_strided_slice %53 {offsets = [0, 0, 128], sizes = [2, 12, 32], strides = [1, 1, 1]} : vector<2x12x768xf32> to vector<2x12x32xf32>
    %61 = vector.extract_strided_slice %53 {offsets = [0, 0, 160], sizes = [2, 12, 32], strides = [1, 1, 1]} : vector<2x12x768xf32> to vector<2x12x32xf32>
    %62 = arith.maximumf %60, %61 : vector<2x12x32xf32>
    %63 = vector.extract_strided_slice %53 {offsets = [0, 0, 192], sizes = [2, 12, 32], strides = [1, 1, 1]} : vector<2x12x768xf32> to vector<2x12x32xf32>
    %64 = vector.extract_strided_slice %53 {offsets = [0, 0, 224], sizes = [2, 12, 32], strides = [1, 1, 1]} : vector<2x12x768xf32> to vector<2x12x32xf32>
    %65 = arith.maximumf %63, %64 : vector<2x12x32xf32>
    %66 = vector.extract_strided_slice %53 {offsets = [0, 0, 256], sizes = [2, 12, 32], strides = [1, 1, 1]} : vector<2x12x768xf32> to vector<2x12x32xf32>
    %67 = vector.extract_strided_slice %53 {offsets = [0, 0, 288], sizes = [2, 12, 32], strides = [1, 1, 1]} : vector<2x12x768xf32> to vector<2x12x32xf32>
    %68 = arith.maximumf %66, %67 : vector<2x12x32xf32>
    %69 = vector.extract_strided_slice %53 {offsets = [0, 0, 320], sizes = [2, 12, 32], strides = [1, 1, 1]} : vector<2x12x768xf32> to vector<2x12x32xf32>
    %70 = vector.extract_strided_slice %53 {offsets = [0, 0, 352], sizes = [2, 12, 32], strides = [1, 1, 1]} : vector<2x12x768xf32> to vector<2x12x32xf32>
    %71 = arith.maximumf %69, %70 : vector<2x12x32xf32>
    %72 = vector.extract_strided_slice %53 {offsets = [0, 0, 384], sizes = [2, 12, 32], strides = [1, 1, 1]} : vector<2x12x768xf32> to vector<2x12x32xf32>
    %73 = vector.extract_strided_slice %53 {offsets = [0, 0, 416], sizes = [2, 12, 32], strides = [1, 1, 1]} : vector<2x12x768xf32> to vector<2x12x32xf32>
    %74 = arith.maximumf %72, %73 : vector<2x12x32xf32>
    %75 = vector.extract_strided_slice %53 {offsets = [0, 0, 448], sizes = [2, 12, 32], strides = [1, 1, 1]} : vector<2x12x768xf32> to vector<2x12x32xf32>
    %76 = vector.extract_strided_slice %53 {offsets = [0, 0, 480], sizes = [2, 12, 32], strides = [1, 1, 1]} : vector<2x12x768xf32> to vector<2x12x32xf32>
    %77 = arith.maximumf %75, %76 : vector<2x12x32xf32>
    %78 = vector.extract_strided_slice %53 {offsets = [0, 0, 512], sizes = [2, 12, 32], strides = [1, 1, 1]} : vector<2x12x768xf32> to vector<2x12x32xf32>
    %79 = vector.extract_strided_slice %53 {offsets = [0, 0, 544], sizes = [2, 12, 32], strides = [1, 1, 1]} : vector<2x12x768xf32> to vector<2x12x32xf32>
    %80 = arith.maximumf %78, %79 : vector<2x12x32xf32>
    %81 = vector.extract_strided_slice %53 {offsets = [0, 0, 576], sizes = [2, 12, 32], strides = [1, 1, 1]} : vector<2x12x768xf32> to vector<2x12x32xf32>
    %82 = vector.extract_strided_slice %53 {offsets = [0, 0, 608], sizes = [2, 12, 32], strides = [1, 1, 1]} : vector<2x12x768xf32> to vector<2x12x32xf32>
    %83 = arith.maximumf %81, %82 : vector<2x12x32xf32>
    %84 = vector.extract_strided_slice %53 {offsets = [0, 0, 640], sizes = [2, 12, 32], strides = [1, 1, 1]} : vector<2x12x768xf32> to vector<2x12x32xf32>
    %85 = vector.extract_strided_slice %53 {offsets = [0, 0, 672], sizes = [2, 12, 32], strides = [1, 1, 1]} : vector<2x12x768xf32> to vector<2x12x32xf32>
    %86 = arith.maximumf %84, %85 : vector<2x12x32xf32>
    %87 = vector.extract_strided_slice %53 {offsets = [0, 0, 704], sizes = [2, 12, 32], strides = [1, 1, 1]} : vector<2x12x768xf32> to vector<2x12x32xf32>
    %88 = vector.extract_strided_slice %53 {offsets = [0, 0, 736], sizes = [2, 12, 32], strides = [1, 1, 1]} : vector<2x12x768xf32> to vector<2x12x32xf32>
    %89 = arith.maximumf %87, %88 : vector<2x12x32xf32>
    %90 = tpu.concatenate %56, %59, %62, %65, %68, %71, %74, %77, %80, %83, %86, %89 in 2 : vector<2x12x32xf32>, vector<2x12x32xf32>, vector<2x12x32xf32>, vector<2x12x32xf32>, vector<2x12x32xf32>, vector<2x12x32xf32>, vector<2x12x32xf32>, vector<2x12x32xf32>, vector<2x12x32xf32>, vector<2x12x32xf32>, vector<2x12x32xf32>, vector<2x12x32xf32> -> vector<2x12x384xf32>
    %c0_7 = arith.constant 0 : index
    %c0_8 = arith.constant 0 : index
    %c0_9 = arith.constant 0 : index
    %91 = vector.load %arg11[%c0_7, %c0_8, %c0_9] : memref<2x12x384xf32, #tpu.memory_space<vmem>>, vector<2x12x384xf32>
    tpu.vector_store %arg11[%c0_7, %c0_8, %c0_9], %90 {strides = array<i32>} : memref<2x12x384xf32, #tpu.memory_space<vmem>>, vector<2x12x384xf32>,
    %c0_10 = arith.constant 0 : index
    %c0_11 = arith.constant 0 : index
    %c0_12 = arith.constant 0 : index
    %92 = vector.load %arg11[%c0_10, %c0_11, %c0_12] : memref<2x12x384xf32, #tpu.memory_space<vmem>>, vector<2x8x384xf32>
    %93 = vector.shape_cast %92 : vector<2x8x384xf32> to vector<16x384xf32>
    %94 = arith.truncf %93 : vector<16x384xf32> to vector<16x384xbf16>
    %c0_13 = arith.constant 0 : index
    %c0_14 = arith.constant 0 : index
    %c0_15 = arith.constant 0 : index
    %95 = vector.load %arg4[%c0_13, %c0_14, %c0_15] : memref<5x384x512xbf16, #tpu.memory_space<vmem>>, vector<1x384x512xbf16>
    %96 = vector.shape_cast %95 : vector<1x384x512xbf16> to vector<384x512xbf16>
    %cst_16 = arith.constant dense<0.000000e+00> : vector<16x512xf32>
    %97 = tpu.matmul %94, %96, %cst_16 {dimension_numbers = #tpu.dot_dimension_numbers<[1], [0], [0], [1], [0, 0, 1, 1], [], []>} : vector<16x384xbf16>, vector<384x512xbf16>, vector<16x512xf32> -> vector<16x512xf32>
    %c0_17 = arith.constant 0 : index
    %c1 = arith.constant 1 : index
    %c0_18 = arith.constant 0 : index
    %98 = vector.load %arg11[%c0_17, %c1, %c0_18] : memref<2x12x384xf32, #tpu.memory_space<vmem>>, vector<2x8x384xf32>
    %99 = vector.shape_cast %98 : vector<2x8x384xf32> to vector<16x384xf32>
    %100 = arith.truncf %99 : vector<16x384xf32> to vector<16x384xbf16>
    %c1_19 = arith.constant 1 : index
    %c0_20 = arith.constant 0 : index
    %c0_21 = arith.constant 0 : index
    %101 = vector.load %arg4[%c1_19, %c0_20, %c0_21] : memref<5x384x512xbf16, #tpu.memory_space<vmem>>, vector<1x384x512xbf16>
    %102 = vector.shape_cast %101 : vector<1x384x512xbf16> to vector<384x512xbf16>
    %cst_22 = arith.constant dense<0.000000e+00> : vector<16x512xf32>
    %103 = tpu.matmul %100, %102, %cst_22 {dimension_numbers = #tpu.dot_dimension_numbers<[1], [0], [0], [1], [0, 0, 1, 1], [], []>} : vector<16x384xbf16>, vector<384x512xbf16>, vector<16x512xf32> -> vector<16x512xf32>
    %104 = arith.addf %97, %103 : vector<16x512xf32>
    %c0_23 = arith.constant 0 : index
    %c2 = arith.constant 2 : index
    %c0_24 = arith.constant 0 : index
    %105 = vector.load %arg11[%c0_23, %c2, %c0_24] : memref<2x12x384xf32, #tpu.memory_space<vmem>>, vector<2x8x384xf32>
    %106 = vector.shape_cast %105 : vector<2x8x384xf32> to vector<16x384xf32>
    %107 = arith.truncf %106 : vector<16x384xf32> to vector<16x384xbf16>
    %c2_25 = arith.constant 2 : index
    %c0_26 = arith.constant 0 : index
    %c0_27 = arith.constant 0 : index
    %108 = vector.load %arg4[%c2_25, %c0_26, %c0_27] : memref<5x384x512xbf16, #tpu.memory_space<vmem>>, vector<1x384x512xbf16>
    %109 = vector.shape_cast %108 : vector<1x384x512xbf16> to vector<384x512xbf16>
    %cst_28 = arith.constant dense<0.000000e+00> : vector<16x512xf32>
    %110 = tpu.matmul %107, %109, %cst_28 {dimension_numbers = #tpu.dot_dimension_numbers<[1], [0], [0], [1], [0, 0, 1, 1], [], []>} : vector<16x384xbf16>, vector<384x512xbf16>, vector<16x512xf32> -> vector<16x512xf32>
    %111 = arith.addf %104, %110 : vector<16x512xf32>
    %c0_29 = arith.constant 0 : index
    %c3 = arith.constant 3 : index
    %c0_30 = arith.constant 0 : index
    %112 = vector.load %arg11[%c0_29, %c3, %c0_30] : memref<2x12x384xf32, #tpu.memory_space<vmem>>, vector<2x8x384xf32>
    %113 = vector.shape_cast %112 : vector<2x8x384xf32> to vector<16x384xf32>
    %114 = arith.truncf %113 : vector<16x384xf32> to vector<16x384xbf16>
    %c3_31 = arith.constant 3 : index
    %c0_32 = arith.constant 0 : index
    %c0_33 = arith.constant 0 : index
    %115 = vector.load %arg4[%c3_31, %c0_32, %c0_33] : memref<5x384x512xbf16, #tpu.memory_space<vmem>>, vector<1x384x512xbf16>
    %116 = vector.shape_cast %115 : vector<1x384x512xbf16> to vector<384x512xbf16>
    %cst_34 = arith.constant dense<0.000000e+00> : vector<16x512xf32>
    %117 = tpu.matmul %114, %116, %cst_34 {dimension_numbers = #tpu.dot_dimension_numbers<[1], [0], [0], [1], [0, 0, 1, 1], [], []>} : vector<16x384xbf16>, vector<384x512xbf16>, vector<16x512xf32> -> vector<16x512xf32>
    %118 = arith.addf %111, %117 : vector<16x512xf32>
    %c0_35 = arith.constant 0 : index
    %c4 = arith.constant 4 : index
    %c0_36 = arith.constant 0 : index
    %119 = vector.load %arg11[%c0_35, %c4, %c0_36] : memref<2x12x384xf32, #tpu.memory_space<vmem>>, vector<2x8x384xf32>
    %120 = vector.shape_cast %119 : vector<2x8x384xf32> to vector<16x384xf32>
    %121 = arith.truncf %120 : vector<16x384xf32> to vector<16x384xbf16>
    %c4_37 = arith.constant 4 : index
    %c0_38 = arith.constant 0 : index
    %c0_39 = arith.constant 0 : index
    %122 = vector.load %arg4[%c4_37, %c0_38, %c0_39] : memref<5x384x512xbf16, #tpu.memory_space<vmem>>, vector<1x384x512xbf16>
    %123 = vector.shape_cast %122 : vector<1x384x512xbf16> to vector<384x512xbf16>
    %cst_40 = arith.constant dense<0.000000e+00> : vector<16x512xf32>
    %124 = tpu.matmul %121, %123, %cst_40 {dimension_numbers = #tpu.dot_dimension_numbers<[1], [0], [0], [1], [0, 0, 1, 1], [], []>} : vector<16x384xbf16>, vector<384x512xbf16>, vector<16x512xf32> -> vector<16x512xf32>
    %125 = arith.addf %118, %124 : vector<16x512xf32>
    %c0_41 = arith.constant 0 : index
    %c0_42 = arith.constant 0 : index
    %126 = vector.load %arg5[%c0_41, %c0_42] : memref<1x512xf32, #tpu.memory_space<vmem>>, vector<1x512xf32>
    %127 = vector.broadcast %126 : vector<1x512xf32> to vector<16x512xf32>
    %128 = arith.addf %125, %127 : vector<16x512xf32>
    %cst_43 = arith.constant 0.000000e+00 : f32
    %129 = vector.broadcast %cst_43 : f32 to vector<16x512xf32>
    %130 = arith.maximumf %128, %129 : vector<16x512xf32>
    %131 = vector.shape_cast %130 : vector<16x512xf32> to vector<2x8x512xf32>
    %132 = vector.extract_strided_slice %131 {offsets = [0, 0, 0], sizes = [2, 1, 512], strides = [1, 1, 1]} : vector<2x8x512xf32> to vector<2x1x512xf32>
    %133 = vector.extract_strided_slice %131 {offsets = [0, 1, 0], sizes = [2, 1, 512], strides = [1, 1, 1]} : vector<2x8x512xf32> to vector<2x1x512xf32>
    %134 = arith.maximumf %132, %133 : vector<2x1x512xf32>
    %135 = vector.extract_strided_slice %131 {offsets = [0, 2, 0], sizes = [2, 1, 512], strides = [1, 1, 1]} : vector<2x8x512xf32> to vector<2x1x512xf32>
    %136 = vector.extract_strided_slice %131 {offsets = [0, 3, 0], sizes = [2, 1, 512], strides = [1, 1, 1]} : vector<2x8x512xf32> to vector<2x1x512xf32>
    %137 = arith.maximumf %135, %136 : vector<2x1x512xf32>
    %138 = vector.extract_strided_slice %131 {offsets = [0, 4, 0], sizes = [2, 1, 512], strides = [1, 1, 1]} : vector<2x8x512xf32> to vector<2x1x512xf32>
    %139 = vector.extract_strided_slice %131 {offsets = [0, 5, 0], sizes = [2, 1, 512], strides = [1, 1, 1]} : vector<2x8x512xf32> to vector<2x1x512xf32>
    %140 = arith.maximumf %138, %139 : vector<2x1x512xf32>
    %141 = vector.extract_strided_slice %131 {offsets = [0, 6, 0], sizes = [2, 1, 512], strides = [1, 1, 1]} : vector<2x8x512xf32> to vector<2x1x512xf32>
    %142 = vector.extract_strided_slice %131 {offsets = [0, 7, 0], sizes = [2, 1, 512], strides = [1, 1, 1]} : vector<2x8x512xf32> to vector<2x1x512xf32>
    %143 = arith.maximumf %141, %142 : vector<2x1x512xf32>
    %144 = tpu.concatenate %134, %137, %140, %143 in 1 : vector<2x1x512xf32>, vector<2x1x512xf32>, vector<2x1x512xf32>, vector<2x1x512xf32> -> vector<2x4x512xf32>
    %145 = vector.extract_strided_slice %144 {offsets = [0, 0, 0], sizes = [2, 4, 64], strides = [1, 1, 1]} : vector<2x4x512xf32> to vector<2x4x64xf32>
    %146 = vector.extract_strided_slice %144 {offsets = [0, 0, 64], sizes = [2, 4, 64], strides = [1, 1, 1]} : vector<2x4x512xf32> to vector<2x4x64xf32>
    %147 = arith.maximumf %145, %146 : vector<2x4x64xf32>
    %148 = vector.extract_strided_slice %144 {offsets = [0, 0, 128], sizes = [2, 4, 64], strides = [1, 1, 1]} : vector<2x4x512xf32> to vector<2x4x64xf32>
    %149 = vector.extract_strided_slice %144 {offsets = [0, 0, 192], sizes = [2, 4, 64], strides = [1, 1, 1]} : vector<2x4x512xf32> to vector<2x4x64xf32>
    %150 = arith.maximumf %148, %149 : vector<2x4x64xf32>
    %151 = vector.extract_strided_slice %144 {offsets = [0, 0, 256], sizes = [2, 4, 64], strides = [1, 1, 1]} : vector<2x4x512xf32> to vector<2x4x64xf32>
    %152 = vector.extract_strided_slice %144 {offsets = [0, 0, 320], sizes = [2, 4, 64], strides = [1, 1, 1]} : vector<2x4x512xf32> to vector<2x4x64xf32>
    %153 = arith.maximumf %151, %152 : vector<2x4x64xf32>
    %154 = vector.extract_strided_slice %144 {offsets = [0, 0, 384], sizes = [2, 4, 64], strides = [1, 1, 1]} : vector<2x4x512xf32> to vector<2x4x64xf32>
    %155 = vector.extract_strided_slice %144 {offsets = [0, 0, 448], sizes = [2, 4, 64], strides = [1, 1, 1]} : vector<2x4x512xf32> to vector<2x4x64xf32>
    %156 = arith.maximumf %154, %155 : vector<2x4x64xf32>
    %157 = tpu.concatenate %147, %150, %153, %156 in 2 : vector<2x4x64xf32>, vector<2x4x64xf32>, vector<2x4x64xf32>, vector<2x4x64xf32> -> vector<2x4x256xf32>
    %c0_44 = arith.constant 0 : index
    %c0_45 = arith.constant 0 : index
    %c0_46 = arith.constant 0 : index
    %158 = vector.load %arg12[%c0_44, %c0_45, %c0_46] : memref<2x4x256xf32, #tpu.memory_space<vmem>>, vector<2x4x256xf32>
    tpu.vector_store %arg12[%c0_44, %c0_45, %c0_46], %157 {strides = array<i32>} : memref<2x4x256xf32, #tpu.memory_space<vmem>>, vector<2x4x256xf32>,
    %c0_47 = arith.constant 0 : index
    %c0_48 = arith.constant 0 : index
    %c0_49 = arith.constant 0 : index
    %159 = vector.load %arg12[%c0_47, %c0_48, %c0_49] : memref<2x4x256xf32, #tpu.memory_space<vmem>>, vector<2x1x256xf32>
    %160 = vector.shape_cast %159 : vector<2x1x256xf32> to vector<2x256xf32>
    %c0_50 = arith.constant 0 : index
    %c1_51 = arith.constant 1 : index
    %c0_52 = arith.constant 0 : index
    %161 = vector.load %arg12[%c0_50, %c1_51, %c0_52] : memref<2x4x256xf32, #tpu.memory_space<vmem>>, vector<2x1x256xf32>
    %162 = vector.shape_cast %161 : vector<2x1x256xf32> to vector<2x256xf32>
    %c0_53 = arith.constant 0 : index
    %c2_54 = arith.constant 2 : index
    %c0_55 = arith.constant 0 : index
    %163 = vector.load %arg12[%c0_53, %c2_54, %c0_55] : memref<2x4x256xf32, #tpu.memory_space<vmem>>, vector<2x1x256xf32>
    %164 = vector.shape_cast %163 : vector<2x1x256xf32> to vector<2x256xf32>
    %c0_56 = arith.constant 0 : index
    %c3_57 = arith.constant 3 : index
    %c0_58 = arith.constant 0 : index
    %165 = vector.load %arg12[%c0_56, %c3_57, %c0_58] : memref<2x4x256xf32, #tpu.memory_space<vmem>>, vector<2x1x256xf32>
    %166 = vector.shape_cast %165 : vector<2x1x256xf32> to vector<2x256xf32>
    %167 = tpu.concatenate %160, %162, %164, %166 in 1 : vector<2x256xf32>, vector<2x256xf32>, vector<2x256xf32>, vector<2x256xf32> -> vector<2x1024xf32>
    %168 = arith.truncf %167 : vector<2x1024xf32> to vector<2x1024xbf16>
    %c0_59 = arith.constant 0 : index
    %c0_60 = arith.constant 0 : index
    %169 = vector.load %arg6[%c0_59, %c0_60] : memref<1024x512xbf16, #tpu.memory_space<vmem>>, vector<1024x512xbf16>
    %cst_61 = arith.constant dense<0.000000e+00> : vector<2x512xf32>
    %170 = tpu.matmul %168, %169, %cst_61 {dimension_numbers = #tpu.dot_dimension_numbers<[1], [0], [0], [1], [0, 0, 1, 1], [], []>} : vector<2x1024xbf16>, vector<1024x512xbf16>, vector<2x512xf32> -> vector<2x512xf32>
    %c0_62 = arith.constant 0 : index
    %c0_63 = arith.constant 0 : index
    %171 = vector.load %arg7[%c0_62, %c0_63] : memref<1x512xf32, #tpu.memory_space<vmem>>, vector<1x512xf32>
    %172 = vector.broadcast %171 : vector<1x512xf32> to vector<2x512xf32>
    %173 = arith.addf %170, %172 : vector<2x512xf32>
    %cst_64 = arith.constant 0.000000e+00 : f32
    %174 = vector.broadcast %cst_64 : f32 to vector<2x512xf32>
    %175 = arith.maximumf %173, %174 : vector<2x512xf32>
    %176 = arith.truncf %175 : vector<2x512xf32> to vector<2x512xbf16>
    %c0_65 = arith.constant 0 : index
    %c0_66 = arith.constant 0 : index
    %177 = vector.load %arg8[%c0_65, %c0_66] : memref<512x128xbf16, #tpu.memory_space<vmem>>, vector<512x128xbf16>
    %cst_67 = arith.constant dense<0.000000e+00> : vector<2x128xf32>
    %178 = tpu.matmul %176, %177, %cst_67 {dimension_numbers = #tpu.dot_dimension_numbers<[1], [0], [0], [1], [0, 0, 1, 1], [], []>} : vector<2x512xbf16>, vector<512x128xbf16>, vector<2x128xf32> -> vector<2x128xf32>
    %c0_68 = arith.constant 0 : index
    %c0_69 = arith.constant 0 : index
    %179 = vector.load %arg9[%c0_68, %c0_69] : memref<1x128xf32, #tpu.memory_space<vmem>>, vector<1x128xf32>
    %180 = vector.broadcast %179 : vector<1x128xf32> to vector<2x128xf32>
    %181 = arith.addf %178, %180 : vector<2x128xf32>
    %cst_70 = arith.constant dense<0xFF800000> : vector<2xf32>
    %182 = vector.multi_reduction <maximumf>, %181, %cst_70 [1] : vector<2x128xf32> to vector<2xf32>
    %183 = vector.shape_cast %182 : vector<2xf32> to vector<2x1xf32>
    %184 = vector.broadcast %183 : vector<2x1xf32> to vector<2x128xf32>
    %185 = arith.subf %181, %184 : vector<2x128xf32>
    %186 = math.exp %185 : vector<2x128xf32>
    %cst_71 = arith.constant dense<0.000000e+00> : vector<2xf32>
    %187 = vector.multi_reduction <add>, %186, %cst_71 [1] : vector<2x128xf32> to vector<2xf32>
    %188 = vector.shape_cast %187 : vector<2xf32> to vector<2x1xf32>
    %189 = vector.broadcast %188 : vector<2x1xf32> to vector<2x128xf32>
    %190 = arith.divf %186, %189 : vector<2x128xf32>
    %c0_72 = arith.constant 0 : index
    %c0_73 = arith.constant 0 : index
    %191 = vector.load %arg10[%c0_72, %c0_73] : memref<2x128xf32, #tpu.memory_space<vmem>>, vector<2x128xf32>
    tpu.vector_store %arg10[%c0_72, %c0_73], %190 {strides = array<i32>} : memref<2x128xf32, #tpu.memory_space<vmem>>, vector<2x128xf32>,
    return
  }
  func.func @transform_0(%arg0: i32) -> (i32, i32, i32) {
    %c0_i32 = arith.constant 0 : i32
    %c0_i32_0 = arith.constant 0 : i32
    %c0_i32_1 = arith.constant 0 : i32
    return %arg0, %c0_i32, %c0_i32_0 : i32, i32, i32
  }
  func.func @transform_1(%arg0: i32) -> (i32, i32) {
    %c0_i32 = arith.constant 0 : i32
    %c0_i32_0 = arith.constant 0 : i32
    %c0_i32_1 = arith.constant 0 : i32
    return %c0_i32, %c0_i32_0 : i32, i32
  }
  func.func @transform_2(%arg0: i32) -> (i32, i32) {
    %c0_i32 = arith.constant 0 : i32
    %c0_i32_0 = arith.constant 0 : i32
    %c0_i32_1 = arith.constant 0 : i32
    return %c0_i32, %c0_i32_0 : i32, i32
  }
  func.func @transform_3(%arg0: i32) -> (i32, i32, i32) {
    %c0_i32 = arith.constant 0 : i32
    %c0_i32_0 = arith.constant 0 : i32
    %c0_i32_1 = arith.constant 0 : i32
    %c0_i32_2 = arith.constant 0 : i32
    return %c0_i32, %c0_i32_0, %c0_i32_1 : i32, i32, i32
  }
  func.func @transform_4(%arg0: i32) -> (i32, i32) {
    %c0_i32 = arith.constant 0 : i32
    %c0_i32_0 = arith.constant 0 : i32
    %c0_i32_1 = arith.constant 0 : i32
    return %c0_i32, %c0_i32_0 : i32, i32
  }
  func.func @transform_5(%arg0: i32) -> (i32, i32) {
    %c0_i32 = arith.constant 0 : i32
    %c0_i32_0 = arith.constant 0 : i32
    %c0_i32_1 = arith.constant 0 : i32
    return %c0_i32, %c0_i32_0 : i32, i32
  }
  func.func @transform_6(%arg0: i32) -> (i32, i32) {
    %c0_i32 = arith.constant 0 : i32
    %c0_i32_0 = arith.constant 0 : i32
    %c0_i32_1 = arith.constant 0 : i32
    return %c0_i32, %c0_i32_0 : i32, i32
  }
  func.func @transform_7(%arg0: i32) -> (i32, i32) {
    %c0_i32 = arith.constant 0 : i32
    %c0_i32_0 = arith.constant 0 : i32
    %c0_i32_1 = arith.constant 0 : i32
    return %c0_i32, %c0_i32_0 : i32, i32
  }
  func.func @transform_8(%arg0: i32) -> (i32, i32) {
    %c0_i32 = arith.constant 0 : i32
    %c0_i32_0 = arith.constant 0 : i32
    %c0_i32_1 = arith.constant 0 : i32
    return %c0_i32, %c0_i32_0 : i32, i32
  }
  func.func @transform_9(%arg0: i32) -> (i32, i32) {
    %c0_i32 = arith.constant 0 : i32
    %c0_i32_0 = arith.constant 0 : i32
    return %arg0, %c0_i32 : i32, i32
  }
}

</mosaic_0001>

<llo_original>
// kernel: net_forward.1
$region0: #{net_forward.1}
  #allocation0 [shape = 'u32[]', space=smem, size = 0x4, offset = 0x4, fixed_abs, tag = 'smem constant byte address 0x4 - core index']
  #allocation1 [shape = 'u32[144,128]{1,0:T(1,128)}', space=vmem, size = 0x12000, scoped, tag = 'internal scratch']
  #allocation2 [shape = 'f32[2,12,384]{2,1,0:T(8,128)}', space=vmem, size = 0xc000, scoped, tag = 'scratch operand']
  #allocation3 [shape = 'f32[2,4,256]{2,1,0:T(4,128)}', space=vmem, size = 0x2000, scoped, tag = 'scratch operand']
  %s0 = inlined_call_operand.vmem [shape: f32[2,28,28], index: 0, kind: input, shape index: {}]
  %s1 = inlined_call_operand.hbm [shape: bf16[140,768], index: 1, kind: input, shape index: {}]
  %s2 = inlined_call_operand.hbm [shape: f32[1,768], index: 2, kind: input, shape index: {}]
  %s3 = inlined_call_operand.hbm [shape: bf16[5,384,512], index: 3, kind: input, shape index: {}]
  %s4 = inlined_call_operand.hbm [shape: f32[1,512], index: 4, kind: input, shape index: {}]
  %s5 = inlined_call_operand.hbm [shape: bf16[1024,512], index: 5, kind: input, shape index: {}]
  %s6 = inlined_call_operand.hbm [shape: f32[1,512], index: 6, kind: input, shape index: {}]
  %s7 = inlined_call_operand.hbm [shape: bf16[512,128], index: 7, kind: input, shape index: {}]
  %s8 = inlined_call_operand.hbm [shape: f32[1,128], index: 8, kind: input, shape index: {}]
  %s9 = inlined_call_operand.hbm [shape: f32[2,128], index: 9, kind: output, shape index: {}]
  %s10 = sld [smem:[#allocation0]]
  $region78: #{net_forward.1} parent=0
    _
  %s12 = ssub.s32 1, %s10
  %s13 = scalar_select 0, %s12, %s10
  $region1: #{net_forward.1} parent=0
    #allocation4 [shape = 'u8[221184]{0}', space=vmem, size = 0x36000, scoped, tag = 'input window, operand 1, single buffered']
    #allocation5 [shape = 's32[1]{0}', space=sflag, size = 0x4, scoped, tag = 'scoped memory for net_forward.1']
    #allocation6 [shape = 's32[1]{0}', space=sflag, size = 0x4, scoped, tag = 'scoped memory for net_forward.1']
    #allocation7 [shape = 'u8[3072]{0}', space=vmem, size = 0xc00, scoped, tag = 'input window, operand 2, single buffered']
    #allocation8 [shape = 's32[1]{0}', space=sflag, size = 0x4, scoped, tag = 'scoped memory for net_forward.1']
    #allocation9 [shape = 'u8[1966080]{0}', space=vmem, size = 0x1e0000, scoped, tag = 'input window, operand 3, single buffered']
    #allocation10 [shape = 'u8[2048]{0}', space=vmem, size = 0x800, scoped, tag = 'input window, operand 4, single buffered']
    #allocation11 [shape = 's32[1]{0}', space=sflag, size = 0x4, scoped, tag = 'scoped memory for net_forward.1']
    #allocation12 [shape = 'u8[1048576]{0}', space=vmem, size = 0x100000, scoped, tag = 'input window, operand 5, single buffered']
    #allocation13 [shape = 'u8[2048]{0}', space=vmem, size = 0x800, scoped, tag = 'input window, operand 6, single buffered']
    #allocation14 [shape = 's32[1]{0}', space=sflag, size = 0x4, scoped, tag = 'scoped memory for net_forward.1']
    #allocation15 [shape = 'u8[131072]{0}', space=vmem, size = 0x20000, scoped, tag = 'input window, operand 7, single buffered']
    #allocation16 [shape = 'u8[512]{0}', space=vmem, size = 0x400, scoped, tag = 'input window, operand 8, single buffered']
    #allocation17 [shape = 's32[1]{0}', space=sflag, size = 0x4, scoped, tag = 'scoped memory for net_forward.1']
    #allocation18 [shape = 'u8[1024]{0}', space=vmem, size = 0x400, scoped, tag = 'output window, operand 0, single buffered']
    %14 = vsyncpa [#allocation5], 0
    %15 = vsyncpa [#allocation8], 0
    %16 = vsyncpa [#allocation11], 0
    %17 = vsyncpa [#allocation14], 0
    %18 = vsyncpa [#allocation17], 0
    %19 = vsyncpa [#allocation6], 0
    // Predicated region
    $region2: #{net_forward.1} parent=1 // pred_check
      _
    $region3: #{net_forward.1} parent=1 // pred_check_branch
      %21 = sbr.rel (0) target = $region5
    $region4: #{net_forward.1} parent=1 // pred_region
      _
    $region5: #{net_forward.1} parent=1 // pred_fallthru
      _
    // Predicated region
    $region6: #{net_forward.1} parent=1 // pred_check
      _
    $region7: #{net_forward.1} parent=1 // pred_check_branch
      %23 = sbr.rel (0) target = $region9
    $region8: #{net_forward.1} parent=1 // pred_region
      %s25 = ssub.s32 6912, 6912
      %26 = vsyncadd [#allocation5], %s25
      %s27 = sshll.u32 [#allocation4], 4
      %s28 = int_to_ptr.vmem [resolvable:$true] %s27
      %33 = dma.hbm_to_vmem [thread:$0]  %s1, 6912, %s28, [#allocation5], 384, 384, 24
    $region9: #{net_forward.1} parent=1 // pred_fallthru
      _
    // Predicated region
    $region10: #{net_forward.1} parent=1 // pred_check
      _
    $region11: #{net_forward.1} parent=1 // pred_check_branch
      %35 = sbr.rel (0) target = $region13
    $region12: #{net_forward.1} parent=1 // pred_region
      %s37 = ssub.s32 96, 96
      %38 = vsyncadd [#allocation8], %s37
      %s40 = sshll.u32 [#allocation7], 4
      %s41 = int_to_ptr.vmem [resolvable:$true] %s40
      %43 = dma.hbm_to_vmem [thread:$0]  %s2, 96, %s41, [#allocation8]
    $region13: #{net_forward.1} parent=1 // pred_fallthru
      _
    // Predicated region
    $region14: #{net_forward.1} parent=1 // pred_check
      _
    $region15: #{net_forward.1} parent=1 // pred_check_branch
      %45 = sbr.rel (0) target = $region17
    $region16: #{net_forward.1} parent=1 // pred_region
      %s47 = ssub.s32 61440, 61440
      %48 = vsyncadd [#allocation8], %s47
      %s49 = sshll.u32 [#allocation9], 4
      %s50 = int_to_ptr.vmem [resolvable:$true] %s49
      %55 = dma.hbm_to_vmem [thread:$0]  %s3, 61440, %s50, [#allocation8], 256, 256, 16
    $region17: #{net_forward.1} parent=1 // pred_fallthru
      _
    // Predicated region
    $region18: #{net_forward.1} parent=1 // pred_check
      _
    $region19: #{net_forward.1} parent=1 // pred_check_branch
      %57 = sbr.rel (0) target = $region21
    $region20: #{net_forward.1} parent=1 // pred_region
      %s59 = ssub.s32 64, 64
      %60 = vsyncadd [#allocation11], %s59
      %s62 = sshll.u32 [#allocation10], 4
      %s63 = int_to_ptr.vmem [resolvable:$true] %s62
      %65 = dma.hbm_to_vmem [thread:$0]  %s4, 64, %s63, [#allocation11]
    $region21: #{net_forward.1} parent=1 // pred_fallthru
      _
    // Predicated region
    $region22: #{net_forward.1} parent=1 // pred_check
      _
    $region23: #{net_forward.1} parent=1 // pred_check_branch
      %67 = sbr.rel (0) target = $region25
    $region24: #{net_forward.1} parent=1 // pred_region
      %s69 = ssub.s32 32768, 32768
      %70 = vsyncadd [#allocation11], %s69
      %s71 = sshll.u32 [#allocation12], 4
      %s72 = int_to_ptr.vmem [resolvable:$true] %s71
      %77 = dma.hbm_to_vmem [thread:$0]  %s5, 32768, %s72, [#allocation11], 256, 256, 16
    $region25: #{net_forward.1} parent=1 // pred_fallthru
      _
    // Predicated region
    $region26: #{net_forward.1} parent=1 // pred_check
      _
    $region27: #{net_forward.1} parent=1 // pred_check_branch
      %79 = sbr.rel (0) target = $region29
    $region28: #{net_forward.1} parent=1 // pred_region
      %s81 = ssub.s32 64, 64
      %82 = vsyncadd [#allocation14], %s81
      %s84 = sshll.u32 [#allocation13], 4
      %s85 = int_to_ptr.vmem [resolvable:$true] %s84
      %87 = dma.hbm_to_vmem [thread:$0]  %s6, 64, %s85, [#allocation14]
    $region29: #{net_forward.1} parent=1 // pred_fallthru
      _
    // Predicated region
    $region30: #{net_forward.1} parent=1 // pred_check
      _
    $region31: #{net_forward.1} parent=1 // pred_check_branch
      %89 = sbr.rel (0) target = $region33
    $region32: #{net_forward.1} parent=1 // pred_region
      %s91 = ssub.s32 4096, 4096
      %92 = vsyncadd [#allocation14], %s91
      %s93 = sshll.u32 [#allocation15], 4
      %s94 = int_to_ptr.vmem [resolvable:$true] %s93
      %99 = dma.hbm_to_vmem [thread:$0]  %s7, 4096, %s94, [#allocation14], 64, 64, 4
    $region33: #{net_forward.1} parent=1 // pred_fallthru
      _
    // Predicated region
    $region34: #{net_forward.1} parent=1 // pred_check
      _
    $region35: #{net_forward.1} parent=1 // pred_check_branch
      %101 = sbr.rel (0) target = $region37
    $region36: #{net_forward.1} parent=1 // pred_region
      %s103 = ssub.s32 16, 16
      %104 = vsyncadd [#allocation17], %s103
      %s106 = sshll.u32 [#allocation16], 4
      %s107 = int_to_ptr.vmem [resolvable:$true] %s106
      %109 = dma.hbm_to_vmem [thread:$0]  %s8, 16, %s107, [#allocation17]
    $region37: #{net_forward.1} parent=1 // pred_fallthru
      _
    // Predicated region
    $region38: #{net_forward.1} parent=1 // pred_check
      _
    $region39: #{net_forward.1} parent=1 // pred_check_branch
      %111 = sbr.rel (0) target = $region41
    $region40: #{net_forward.1} parent=1 // pred_region
      %112 = dma.done [#allocation5], 6912
    $region41: #{net_forward.1} parent=1 // pred_fallthru
      _
    // Predicated region
    $region42: #{net_forward.1} parent=1 // pred_check
      _
    $region43: #{net_forward.1} parent=1 // pred_check_branch
      %114 = sbr.rel (0) target = $region45
    $region44: #{net_forward.1} parent=1 // pred_region
      %115 = dma.done [#allocation8], 96
    $region45: #{net_forward.1} parent=1 // pred_fallthru
      _
    // Predicated region
    $region46: #{net_forward.1} parent=1 // pred_check
      _
    $region47: #{net_forward.1} parent=1 // pred_check_branch
      %117 = sbr.rel (0) target = $region49
    $region48: #{net_forward.1} parent=1 // pred_region
      %118 = dma.done [#allocation8], 61440
    $region49: #{net_forward.1} parent=1 // pred_fallthru
      _
    // Predicated region
    $region50: #{net_forward.1} parent=1 // pred_check
      _
    $region51: #{net_forward.1} parent=1 // pred_check_branch
      %120 = sbr.rel (0) target = $region53
    $region52: #{net_forward.1} parent=1 // pred_region
      %121 = dma.done [#allocation11], 64
    $region53: #{net_forward.1} parent=1 // pred_fallthru
      _
    // Predicated region
    $region54: #{net_forward.1} parent=1 // pred_check
      _
    $region55: #{net_forward.1} parent=1 // pred_check_branch
      %123 = sbr.rel (0) target = $region57
    $region56: #{net_forward.1} parent=1 // pred_region
      %124 = dma.done [#allocation11], 32768
    $region57: #{net_forward.1} parent=1 // pred_fallthru
      _
    // Predicated region
    $region58: #{net_forward.1} parent=1 // pred_check
      _
    $region59: #{net_forward.1} parent=1 // pred_check_branch
      %126 = sbr.rel (0) target = $region61
    $region60: #{net_forward.1} parent=1 // pred_region
      %127 = dma.done [#allocation14], 64
    $region61: #{net_forward.1} parent=1 // pred_fallthru
      _
    // Predicated region
    $region62: #{net_forward.1} parent=1 // pred_check
      _
    $region63: #{net_forward.1} parent=1 // pred_check_branch
      %129 = sbr.rel (0) target = $region65
    $region64: #{net_forward.1} parent=1 // pred_region
      %130 = dma.done [#allocation14], 4096
    $region65: #{net_forward.1} parent=1 // pred_fallthru
      _
    // Predicated region
    $region66: #{net_forward.1} parent=1 // pred_check
      _
    $region67: #{net_forward.1} parent=1 // pred_check_branch
      %132 = sbr.rel (0) target = $region69
    $region68: #{net_forward.1} parent=1 // pred_region
      %133 = dma.done [#allocation17], 16
    $region69: #{net_forward.1} parent=1 // pred_fallthru
      _
    %v135 = vld [vmem:[%s0] sm:$0xff]
    %v136 = vld [vmem:[%s0 + $0x8] sm:$0xff]
    %v137 = vld [vmem:[%s0 + $0x10] sm:$0xff]
    %v138 = vld [vmem:[%s0 + $0x18] sm:$0xf]
    %v139 = vld [vmem:[%s0 + $0x20] sm:$0xff]
    %v140 = vld [vmem:[%s0 + $0x28] sm:$0xff]
    %v141 = vld [vmem:[%s0 + $0x30] sm:$0xff]
    %v142 = vld [vmem:[%s0 + $0x38] sm:$0xf]
    %vm151 = vcmask 1046528
    %v152 = vrot.slane %v135, 1
    %v153 = vrot.slane %v136, 1
    %v154 = vsel %vm151, %v152, %v153
    %v155 = vrot.slane %v137, 1
    %v156 = vsel %vm151, %v153, %v155
    %v157 = vrot.slane %v138, 1
    %v158 = vsel %vm151, %v155, %v157
    %v159 = vrot.slane %v139, 1
    %v160 = vrot.slane %v140, 1
    %v161 = vsel %vm151, %v159, %v160
    %v162 = vrot.slane %v141, 1
    %v163 = vsel %vm151, %v160, %v162
    %v164 = vrot.slane %v142, 1
    %v165 = vsel %vm151, %v162, %v164
    %166 = vrot.lane.b32.xlu0 %v154, 28
    %v167 = vpop.permute.xlu0 %166
    %168 = vrot.lane.b32.xlu0 %v156, 28
    %v169 = vpop.permute.xlu0 %168
    %170 = vrot.lane.b32.xlu0 %v158, 28
    %v171 = vpop.permute.xlu0 %170
    %172 = vrot.lane.b32.xlu0 %v161, 28
    %v173 = vpop.permute.xlu0 %172
    %174 = vrot.lane.b32.xlu0 %v163, 28
    %v175 = vpop.permute.xlu0 %174
    %176 = vrot.lane.b32.xlu0 %v165, 28
    %v177 = vpop.permute.xlu0 %176
    %vm184 = vcmask 1045504
    %v185 = vrot.slane %v135, 2
    %v186 = vrot.slane %v136, 2
    %v187 = vsel %vm184, %v185, %v186
    %v188 = vrot.slane %v137, 2
    %v189 = vsel %vm184, %v186, %v188
    %v190 = vrot.slane %v138, 2
    %v191 = vsel %vm184, %v188, %v190
    %v192 = vrot.slane %v139, 2
    %v193 = vrot.slane %v140, 2
    %v194 = vsel %vm184, %v192, %v193
    %v195 = vrot.slane %v141, 2
    %v196 = vsel %vm184, %v193, %v195
    %v197 = vrot.slane %v142, 2
    %v198 = vsel %vm184, %v195, %v197
    %199 = vrot.lane.b32.xlu0 %v187, 56
    %v200 = vpop.permute.xlu0 %199
    %201 = vrot.lane.b32.xlu0 %v189, 56
    %v202 = vpop.permute.xlu0 %201
    %203 = vrot.lane.b32.xlu0 %v191, 56
    %v204 = vpop.permute.xlu0 %203
    %205 = vrot.lane.b32.xlu0 %v194, 56
    %v206 = vpop.permute.xlu0 %205
    %207 = vrot.lane.b32.xlu0 %v196, 56
    %v208 = vpop.permute.xlu0 %207
    %209 = vrot.lane.b32.xlu0 %v198, 56
    %v210 = vpop.permute.xlu0 %209
    %vm217 = vcmask 1044480
    %v218 = vrot.slane %v135, 3
    %v219 = vrot.slane %v136, 3
    %v220 = vsel %vm217, %v218, %v219
    %v221 = vrot.slane %v137, 3
    %v222 = vsel %vm217, %v219, %v221
    %v223 = vrot.slane %v138, 3
    %v224 = vsel %vm217, %v221, %v223
    %v225 = vrot.slane %v139, 3
    %v226 = vrot.slane %v140, 3
    %v227 = vsel %vm217, %v225, %v226
    %v228 = vrot.slane %v141, 3
    %v229 = vsel %vm217, %v226, %v228
    %v230 = vrot.slane %v142, 3
    %v231 = vsel %vm217, %v228, %v230
    %232 = vrot.lane.b32.xlu0 %v220, 84
    %v233 = vpop.permute.xlu0 %232
    %234 = vrot.lane.b32.xlu0 %v222, 84
    %v235 = vpop.permute.xlu0 %234
    %236 = vrot.lane.b32.xlu0 %v224, 84
    %v237 = vpop.permute.xlu0 %236
    %238 = vrot.lane.b32.xlu0 %v227, 84
    %v239 = vpop.permute.xlu0 %238
    %240 = vrot.lane.b32.xlu0 %v229, 84
    %v241 = vpop.permute.xlu0 %240
    %242 = vrot.lane.b32.xlu0 %v231, 84
    %v243 = vpop.permute.xlu0 %242
    %vm250 = vcmask 1043456
    %v251 = vrot.slane %v135, 4
    %v252 = vrot.slane %v136, 4
    %v253 = vsel %vm250, %v251, %v252
    %v254 = vrot.slane %v137, 4
    %v255 = vsel %vm250, %v252, %v254
    %v256 = vrot.slane %v138, 4
    %v257 = vsel %vm250, %v254, %v256
    %v258 = vrot.slane %v139, 4
    %v259 = vrot.slane %v140, 4
    %v260 = vsel %vm250, %v258, %v259
    %v261 = vrot.slane %v141, 4
    %v262 = vsel %vm250, %v259, %v261
    %v263 = vrot.slane %v142, 4
    %v264 = vsel %vm250, %v261, %v263
    %265 = vrot.lane.b32.xlu0 %v253, 112
    %v266 = vpop.permute.xlu0 %265
    %267 = vrot.lane.b32.xlu0 %v255, 112
    %v268 = vpop.permute.xlu0 %267
    %269 = vrot.lane.b32.xlu0 %v257, 112
    %v270 = vpop.permute.xlu0 %269
    %271 = vrot.lane.b32.xlu0 %v260, 112
    %v272 = vpop.permute.xlu0 %271
    %273 = vrot.lane.b32.xlu0 %v262, 112
    %v274 = vpop.permute.xlu0 %273
    %275 = vrot.lane.b32.xlu0 %v264, 112
    %v276 = vpop.permute.xlu0 %275
    %vm283 = vcmask 228352
    %v284 = vsel %vm283, %v135, %v167
    %v285 = vsel %vm283, %v136, %v169
    %v286 = vsel %vm283, %v137, %v171
    %v287 = vsel %vm283, %v139, %v173
    %v288 = vsel %vm283, %v140, %v175
    %v289 = vsel %vm283, %v141, %v177
    %vm290 = vcmask 457728
    %v291 = vsel %vm290, %v284, %v200
    %v292 = vsel %vm290, %v285, %v202
    %v293 = vsel %vm290, %v286, %v204
    %v294 = vsel %vm290, %v287, %v206
    %v295 = vsel %vm290, %v288, %v208
    %v296 = vsel %vm290, %v289, %v210
    %vm297 = vcmask 687104
    %v298 = vsel %vm297, %v291, %v233
    %v299 = vsel %vm297, %v292, %v235
    %v300 = vsel %vm297, %v293, %v237
    %v301 = vsel %vm297, %v294, %v239
    %v302 = vsel %vm297, %v295, %v241
    %v303 = vsel %vm297, %v296, %v243
    %vm304 = vcmask 916480
    %v305 = vsel %vm304, %v298, %v266
    %v306 = vsel %vm304, %v299, %v268
    %v307 = vsel %vm304, %v300, %v270
    %v308 = vsel %vm304, %v301, %v272
    %v309 = vsel %vm304, %v302, %v274
    %v310 = vsel %vm304, %v303, %v276
    %v311 = vpack.c.bf16 %v306, %v305
    %v312 = vpack.c.bf16 %v268, %v266
    %v313 = vpack.c.bf16 %v308, %v307
    %v314 = vpack.c.bf16 %v272, %v270
    %v315 = vpack.c.bf16 %v310, %v309
    %v316 = vpack.c.bf16 %v276, %v274
    %v317 = vld [vmem:[#allocation4] sm:$0xff]
    %v318 = vld [vmem:[#allocation4 + $0x8] sm:$0xff]
    %v319 = vld [vmem:[#allocation4 + $0x10] sm:$0xff]
    %v320 = vld [vmem:[#allocation4 + $0x18] sm:$0xff]
    %v321 = vld [vmem:[#allocation4 + $0x20] sm:$0xff]
    %v322 = vld [vmem:[#allocation4 + $0x28] sm:$0xff]
    %v323 = vld [vmem:[#allocation4 + $0x30] sm:$0xff]
    %v324 = vld [vmem:[#allocation4 + $0x38] sm:$0xff]
    %v325 = vld [vmem:[#allocation4 + $0x40] sm:$0xff]
    %v326 = vld [vmem:[#allocation4 + $0x48] sm:$0xff]
    %v327 = vld [vmem:[#allocation4 + $0x50] sm:$0xff]
    %v328 = vld [vmem:[#allocation4 + $0x58] sm:$0xff]
    %v329 = vld [vmem:[#allocation4 + $0x60] sm:$0xff]
    %v330 = vld [vmem:[#allocation4 + $0x68] sm:$0xff]
    %v331 = vld [vmem:[#allocation4 + $0x70] sm:$0xff]
    %v332 = vld [vmem:[#allocation4 + $0x78] sm:$0xff]
    %v333 = vld [vmem:[#allocation4 + $0x80] sm:$0xff]
    %v334 = vld [vmem:[#allocation4 + $0x88] sm:$0xff]
    %v335 = vld [vmem:[#allocation4 + $0x90] sm:$0xff]
    %v336 = vld [vmem:[#allocation4 + $0x98] sm:$0xff]
    %v337 = vld [vmem:[#allocation4 + $0xa0] sm:$0xff]
    %v338 = vld [vmem:[#allocation4 + $0xa8] sm:$0xff]
    %v339 = vld [vmem:[#allocation4 + $0xb0] sm:$0xff]
    %v340 = vld [vmem:[#allocation4 + $0xb8] sm:$0xff]
    %v341 = vld [vmem:[#allocation4 + $0xc0] sm:$0xff]
    %v342 = vld [vmem:[#allocation4 + $0xc8] sm:$0xff]
    %v343 = vld [vmem:[#allocation4 + $0xd0] sm:$0xff]
    %v344 = vld [vmem:[#allocation4 + $0xd8] sm:$0xff]
    %v345 = vld [vmem:[#allocation4 + $0xe0] sm:$0xff]
    %v346 = vld [vmem:[#allocation4 + $0xe8] sm:$0xff]
    %v347 = vld [vmem:[#allocation4 + $0xf0] sm:$0xff]
    %v348 = vld [vmem:[#allocation4 + $0xf8] sm:$0xff]
    %v349 = vld [vmem:[#allocation4 + $0x100] sm:$0xff]
    %v350 = vld [vmem:[#allocation4 + $0x108] sm:$0xff]
    %v351 = vld [vmem:[#allocation4 + $0x110] sm:$0xff]
    %v352 = vld [vmem:[#allocation4 + $0x118] sm:$0xff]
    %v353 = vld [vmem:[#allocation4 + $0x120] sm:$0xff]
    %v354 = vld [vmem:[#allocation4 + $0x128] sm:$0xff]
    %v355 = vld [vmem:[#allocation4 + $0x130] sm:$0xff]
    %v356 = vld [vmem:[#allocation4 + $0x138] sm:$0xff]
    %v357 = vld [vmem:[#allocation4 + $0x140] sm:$0xff]
    %v358 = vld [vmem:[#allocation4 + $0x148] sm:$0xff]
    %v359 = vld [vmem:[#allocation4 + $0x150] sm:$0xff]
    %v360 = vld [vmem:[#allocation4 + $0x158] sm:$0xff]
    %v361 = vld [vmem:[#allocation4 + $0x160] sm:$0xff]
    %v362 = vld [vmem:[#allocation4 + $0x168] sm:$0xff]
    %v363 = vld [vmem:[#allocation4 + $0x170] sm:$0xff]
    %v364 = vld [vmem:[#allocation4 + $0x178] sm:$0xff]
    %v365 = vld [vmem:[#allocation4 + $0x180] sm:$0xff]
    %v366 = vld [vmem:[#allocation4 + $0x188] sm:$0xff]
    %v367 = vld [vmem:[#allocation4 + $0x190] sm:$0xff]
    %v368 = vld [vmem:[#allocation4 + $0x198] sm:$0x33]
    %v369 = vld [vmem:[#allocation4 + $0x1a0] sm:$0x33]
    %v370 = vld [vmem:[#allocation4 + $0x1a8] sm:$0x33]
    %v371 = vld [vmem:[#allocation7] sm:$0x3f]
    %v373 = vlaneseq
    %v374 = vshrl.u32 %v373, 7
    %v375 = vsub.s32 0, %v374
    %v376 = vrot.slane %v371, %v375
    %v377 = vlaneseq
    %v378 = vshrl.u32 %v377, 7
    %v379 = vsub.s32 1, %v378
    %v380 = vrot.slane %v371, %v379
    %v381 = vlaneseq
    %v382 = vshrl.u32 %v381, 7
    %v383 = vsub.s32 2, %v382
    %v384 = vrot.slane %v371, %v383
    %v385 = vlaneseq
    %v386 = vshrl.u32 %v385, 7
    %v387 = vsub.s32 3, %v386
    %v388 = vrot.slane %v371, %v387
    %v389 = vlaneseq
    %v390 = vshrl.u32 %v389, 7
    %v391 = vsub.s32 4, %v390
    %v392 = vrot.slane %v371, %v391
    %v393 = vlaneseq
    %v394 = vshrl.u32 %v393, 7
    %v395 = vsub.s32 5, %v394
    %v396 = vrot.slane %v371, %v395
    %v457 = vunpack.c.l.b16 %v317
    %v458 = vunpack.c.h.b16 %v317
    %v459 = vunpack.c.l.b16 %v318
    %v460 = vunpack.c.h.b16 %v318
    %v461 = vunpack.c.l.b16 %v319
    %v462 = vunpack.c.h.b16 %v319
    %v463 = vunpack.c.l.b16 %v320
    %v464 = vunpack.c.h.b16 %v320
    %v465 = vunpack.c.l.b16 %v321
    %v466 = vunpack.c.h.b16 %v321
    %v467 = vunpack.c.l.b16 %v322
    %v468 = vunpack.c.h.b16 %v322
    %v469 = vunpack.c.l.b16 %v323
    %v470 = vunpack.c.h.b16 %v323
    %v471 = vunpack.c.l.b16 %v324
    %v472 = vunpack.c.h.b16 %v324
    %v473 = vunpack.c.l.b16 %v325
    %v474 = vunpack.c.h.b16 %v325
    %v475 = vunpack.c.l.b16 %v326
    %v476 = vunpack.c.h.b16 %v326
    %v477 = vunpack.c.l.b16 %v327
    %v478 = vunpack.c.h.b16 %v327
    %v479 = vunpack.c.l.b16 %v328
    %v480 = vunpack.c.h.b16 %v328
    %v481 = vunpack.c.l.b16 %v329
    %v482 = vunpack.c.h.b16 %v329
    %v483 = vunpack.c.l.b16 %v330
    %v484 = vunpack.c.h.b16 %v330
    %v485 = vunpack.c.l.b16 %v331
    %v486 = vunpack.c.h.b16 %v331
    %v487 = vunpack.c.l.b16 %v332
    %v488 = vunpack.c.h.b16 %v332
    %v489 = vunpack.c.l.b16 %v333
    %v490 = vunpack.c.h.b16 %v333
    %v491 = vunpack.c.l.b16 %v334
    %v492 = vunpack.c.h.b16 %v334
    %v493 = vunpack.c.l.b16 %v335
    %v494 = vunpack.c.h.b16 %v335
    %v495 = vunpack.c.l.b16 %v336
    %v496 = vunpack.c.h.b16 %v336
    %v497 = vunpack.c.l.b16 %v337
    %v498 = vunpack.c.h.b16 %v337
    %v499 = vunpack.c.l.b16 %v338
    %v500 = vunpack.c.h.b16 %v338
    %v501 = vunpack.c.l.b16 %v339
    %v502 = vunpack.c.h.b16 %v339
    %v503 = vunpack.c.l.b16 %v340
    %v504 = vunpack.c.h.b16 %v340
    %v505 = vunpack.c.l.b16 %v341
    %v506 = vunpack.c.h.b16 %v341
    %v507 = vunpack.c.l.b16 %v342
    %v508 = vunpack.c.h.b16 %v342
    %v509 = vunpack.c.l.b16 %v343
    %v510 = vunpack.c.h.b16 %v343
    %v511 = vunpack.c.l.b16 %v344
    %v512 = vunpack.c.h.b16 %v344
    %v513 = vunpack.c.l.b16 %v345
    %v514 = vunpack.c.h.b16 %v345
    %v515 = vunpack.c.l.b16 %v346
    %v516 = vunpack.c.h.b16 %v346
    %v517 = vunpack.c.l.b16 %v347
    %v518 = vunpack.c.h.b16 %v347
    %v519 = vunpack.c.l.b16 %v348
    %v520 = vunpack.c.h.b16 %v348
    %v521 = vunpack.c.l.b16 %v349
    %v522 = vunpack.c.h.b16 %v349
    %v523 = vunpack.c.l.b16 %v350
    %v524 = vunpack.c.h.b16 %v350
    %v525 = vunpack.c.l.b16 %v351
    %v526 = vunpack.c.h.b16 %v351
    %v527 = vunpack.c.l.b16 %v352
    %v528 = vunpack.c.h.b16 %v352
    %v529 = vunpack.c.l.b16 %v353
    %v530 = vunpack.c.h.b16 %v353
    %v531 = vunpack.c.l.b16 %v354
    %v532 = vunpack.c.h.b16 %v354
    %v533 = vunpack.c.l.b16 %v355
    %v534 = vunpack.c.h.b16 %v355
    %v535 = vunpack.c.l.b16 %v356
    %v536 = vunpack.c.h.b16 %v356
    %v537 = vunpack.c.l.b16 %v357
    %v538 = vunpack.c.h.b16 %v357
    %v539 = vunpack.c.l.b16 %v358
    %v540 = vunpack.c.h.b16 %v358
    %v541 = vunpack.c.l.b16 %v359
    %v542 = vunpack.c.h.b16 %v359
    %v543 = vunpack.c.l.b16 %v360
    %v544 = vunpack.c.h.b16 %v360
    %v545 = vunpack.c.l.b16 %v361
    %v546 = vunpack.c.h.b16 %v361
    %v547 = vunpack.c.l.b16 %v362
    %v548 = vunpack.c.h.b16 %v362
    %v549 = vunpack.c.l.b16 %v363
    %v550 = vunpack.c.h.b16 %v363
    %v551 = vunpack.c.l.b16 %v364
    %v552 = vunpack.c.h.b16 %v364
    %v553 = vunpack.c.l.b16 %v365
    %v554 = vunpack.c.h.b16 %v365
    %v555 = vunpack.c.l.b16 %v366
    %v556 = vunpack.c.h.b16 %v366
    %v557 = vunpack.c.l.b16 %v367
    %v558 = vunpack.c.h.b16 %v367
    %v559 = vunpack.c.l.b16 %v368
    %v560 = vunpack.c.h.b16 %v368
    %v561 = vunpack.c.l.b16 %v369
    %v562 = vunpack.c.h.b16 %v369
    %v563 = vunpack.c.l.b16 %v370
    %v564 = vunpack.c.h.b16 %v370
    %v565 = vpack.c.b16 %v463, %v457
    %v566 = vpack.c.b16 %v464, %v458
    %v567 = vpack.c.b16 %v465, %v459
    %v568 = vpack.c.b16 %v466, %v460
    %v569 = vpack.c.b16 %v467, %v461
    %v570 = vpack.c.b16 %v468, %v462
    %v571 = vpack.c.b16 %v475, %v469
    %v572 = vpack.c.b16 %v476, %v470
    %v573 = vpack.c.b16 %v477, %v471
    %v574 = vpack.c.b16 %v478, %v472
    %v575 = vpack.c.b16 %v479, %v473
    %v576 = vpack.c.b16 %v480, %v474
    %v577 = vpack.c.b16 %v487, %v481
    %v578 = vpack.c.b16 %v488, %v482
    %v579 = vpack.c.b16 %v489, %v483
    %v580 = vpack.c.b16 %v490, %v484
    %v581 = vpack.c.b16 %v491, %v485
    %v582 = vpack.c.b16 %v492, %v486
    %v583 = vpack.c.b16 %v499, %v493
    %v584 = vpack.c.b16 %v500, %v494
    %v585 = vpack.c.b16 %v501, %v495
    %v586 = vpack.c.b16 %v502, %v496
    %v587 = vpack.c.b16 %v503, %v497
    %v588 = vpack.c.b16 %v504, %v498
    %v589 = vpack.c.b16 %v511, %v505
    %v590 = vpack.c.b16 %v512, %v506
    %v591 = vpack.c.b16 %v513, %v507
    %v592 = vpack.c.b16 %v514, %v508
    %v593 = vpack.c.b16 %v515, %v509
    %v594 = vpack.c.b16 %v516, %v510
    %v595 = vpack.c.b16 %v523, %v517
    %v596 = vpack.c.b16 %v524, %v518
    %v597 = vpack.c.b16 %v525, %v519
    %v598 = vpack.c.b16 %v526, %v520
    %v599 = vpack.c.b16 %v527, %v521
    %v600 = vpack.c.b16 %v528, %v522
    %v601 = vpack.c.b16 %v535, %v529
    %v602 = vpack.c.b16 %v536, %v530
    %v603 = vpack.c.b16 %v537, %v531
    %v604 = vpack.c.b16 %v538, %v532
    %v605 = vpack.c.b16 %v539, %v533
    %v606 = vpack.c.b16 %v540, %v534
    %v607 = vpack.c.b16 %v547, %v541
    %v608 = vpack.c.b16 %v548, %v542
    %v609 = vpack.c.b16 %v549, %v543
    %v610 = vpack.c.b16 %v550, %v544
    %v611 = vpack.c.b16 %v551, %v545
    %v612 = vpack.c.b16 %v552, %v546
    %v613 = vpack.c.b16 %v559, %v553
    %v614 = vpack.c.b16 %v560, %v554
    %v615 = vpack.c.b16 %v561, %v555
    %v616 = vpack.c.b16 %v562, %v556
    %v617 = vpack.c.b16 %v563, %v557
    %v618 = vpack.c.b16 %v564, %v558
    %vm667 = vcmask 97280
    %v669 = vsel %vm667, %v312, 0
    %v672 = vsel %vm667, %v314, 0
    %v675 = vsel %vm667, %v316, 0
    %v678 = vsel %vm184, %v613, 0
    %v681 = vsel %vm184, %v614, 0
    %v684 = vsel %vm184, %v615, 0
    %v687 = vsel %vm184, %v616, 0
    %v690 = vsel %vm184, %v617, 0
    %v693 = vsel %vm184, %v618, 0
    %695 = vmatprep.subr.bf16.mxu0 %v566
    %696 = vmatpush1.bf16.msra.mxu0 %v565
    %697 = vmatprep.subr.bf16.mxu0 %v572
    %698 = vmatpush1.bf16.msra.mxu0 %v571
    %699 = vmatprep.subr.bf16.mxu0 %v578
    %700 = vmatpush1.bf16.msra.mxu0 %v577
    %701 = vmatprep.subr.bf16.mxu0 %v584
    %702 = vmatpush1.bf16.msra.mxu0 %v583
    %703 = vmatprep.subr.bf16.mxu0 %v590
    %704 = vmatpush1.bf16.msra.mxu0 %v589
    %705 = vmatprep.subr.bf16.mxu0 %v596
    %706 = vmatpush1.bf16.msra.mxu0 %v595
    %707 = vmatprep.subr.bf16.mxu0 %v602
    %708 = vmatpush1.bf16.msra.mxu0 %v601
    %709 = vmatprep.subr.bf16.mxu0 %v608
    %710 = vmatpush1.bf16.msra.mxu0 %v607
    %711 = vmatprep.subr.bf16.mxu0 %v681
    %712 = vmatpush1.bf16.msra.mxu0 %v678
    %713 = vmatprep.subr.bf16.mxu0 0
    %714 = vmatpush1.bf16.msra.mxu0 0
    %715 = vmatprep.subr.bf16.mxu0 0
    %716 = vmatpush1.bf16.msra.mxu0 0
    %717 = vmatprep.subr.bf16.mxu0 0
    %718 = vmatpush1.bf16.msra.mxu0 0
    %719 = vmatprep.subr.bf16.mxu0 0
    %720 = vmatpush1.bf16.msra.mxu0 0
    %721 = vmatprep.subr.bf16.mxu0 0
    %722 = vmatpush1.bf16.msra.mxu0 0
    %723 = vmatprep.subr.bf16.mxu0 0
    %724 = vmatpush1.bf16.msra.mxu0 0
    %725 = vmatprep.subr.bf16.mxu0 0
    %726 = vmatpush1.bf16.msra.mxu0 0
    %727 = vmatprep.mubr.bf16.mxu0 %v669
    %728 = vmatmul.mubr.bf16.gmra.mrb[0].mxu0 %v311
    %v729 = vpop.f32.mrb[0].mxu0
    %v730 = vadd.f32 %v376, %v729
    %v731 = vpop.f32.mrb[0].mxu0
    %v732 = vadd.f32 %v380, %v731
    %v733 = vpop.f32.mrb[0].mxu0
    %v734 = vadd.f32 %v376, %v733
    %v735 = vpop.f32.mrb[0].mxu0
    %v736 = vadd.f32 %v380, %v735
    %737 = vmatprep.mubr.bf16.mxu0 %v672
    %738 = vmatmul.mubr.bf16.gmra.mrb[0].mxu0 %v313
    %v739 = vpop.f32.mrb[0].mxu0
    %v740 = vadd.f32 %v376, %v739
    %v741 = vpop.f32.mrb[0].mxu0
    %v742 = vadd.f32 %v380, %v741
    %v743 = vpop.f32.mrb[0].mxu0
    %v744 = vadd.f32 %v376, %v743
    %v745 = vpop.f32.mrb[0].mxu0
    %v746 = vadd.f32 %v380, %v745
    %747 = vmatprep.mubr.bf16.mxu0 %v675
    %748 = vmatmul.mubr.bf16.gmra.mrb[0].mxu0 %v315
    %v749 = vpop.f32.mrb[0].mxu0
    %v750 = vadd.f32 %v376, %v749
    %v751 = vpop.f32.mrb[0].mxu0
    %v752 = vadd.f32 %v380, %v751
    %v753 = vpop.f32.mrb[0].mxu0
    %v754 = vadd.f32 %v376, %v753
    %v755 = vpop.f32.mrb[0].mxu0
    %v756 = vadd.f32 %v380, %v755
    %757 = vdwg.mxu0
    %758 = vmatprep.subr.bf16.mxu0 %v568
    %759 = vmatpush1.bf16.msra.mxu0 %v567
    %760 = vmatprep.subr.bf16.mxu0 %v574
    %761 = vmatpush1.bf16.msra.mxu0 %v573
    %762 = vmatprep.subr.bf16.mxu0 %v580
    %763 = vmatpush1.bf16.msra.mxu0 %v579
    %764 = vmatprep.subr.bf16.mxu0 %v586
    %765 = vmatpush1.bf16.msra.mxu0 %v585
    %766 = vmatprep.subr.bf16.mxu0 %v592
    %767 = vmatpush1.bf16.msra.mxu0 %v591
    %768 = vmatprep.subr.bf16.mxu0 %v598
    %769 = vmatpush1.bf16.msra.mxu0 %v597
    %770 = vmatprep.subr.bf16.mxu0 %v604
    %771 = vmatpush1.bf16.msra.mxu0 %v603
    %772 = vmatprep.subr.bf16.mxu0 %v610
    %773 = vmatpush1.bf16.msra.mxu0 %v609
    %774 = vmatprep.subr.bf16.mxu0 %v687
    %775 = vmatpush1.bf16.msra.mxu0 %v684
    %776 = vmatprep.subr.bf16.mxu0 0
    %777 = vmatpush1.bf16.msra.mxu0 0
    %778 = vmatprep.subr.bf16.mxu0 0
    %779 = vmatpush1.bf16.msra.mxu0 0
    %780 = vmatprep.subr.bf16.mxu0 0
    %781 = vmatpush1.bf16.msra.mxu0 0
    %782 = vmatprep.subr.bf16.mxu0 0
    %783 = vmatpush1.bf16.msra.mxu0 0
    %784 = vmatprep.subr.bf16.mxu0 0
    %785 = vmatpush1.bf16.msra.mxu0 0
    %786 = vmatprep.subr.bf16.mxu0 0
    %787 = vmatpush1.bf16.msra.mxu0 0
    %788 = vmatprep.subr.bf16.mxu0 0
    %789 = vmatpush1.bf16.msra.mxu0 0
    %790 = vmatprep.mubr.bf16.mxu0 %v669
    %791 = vmatmul.mubr.bf16.gmra.mrb[0].mxu0 %v311
    %v792 = vpop.f32.mrb[0].mxu0
    %v793 = vadd.f32 %v384, %v792
    %v794 = vpop.f32.mrb[0].mxu0
    %v795 = vadd.f32 %v388, %v794
    %v796 = vpop.f32.mrb[0].mxu0
    %v797 = vadd.f32 %v384, %v796
    %v798 = vpop.f32.mrb[0].mxu0
    %v799 = vadd.f32 %v388, %v798
    %800 = vmatprep.mubr.bf16.mxu0 %v672
    %801 = vmatmul.mubr.bf16.gmra.mrb[0].mxu0 %v313
    %v802 = vpop.f32.mrb[0].mxu0
    %v803 = vadd.f32 %v384, %v802
    %v804 = vpop.f32.mrb[0].mxu0
    %v805 = vadd.f32 %v388, %v804
    %v806 = vpop.f32.mrb[0].mxu0
    %v807 = vadd.f32 %v384, %v806
    %v808 = vpop.f32.mrb[0].mxu0
    %v809 = vadd.f32 %v388, %v808
    %810 = vmatprep.mubr.bf16.mxu0 %v675
    %811 = vmatmul.mubr.bf16.gmra.mrb[0].mxu0 %v315
    %v812 = vpop.f32.mrb[0].mxu0
    %v813 = vadd.f32 %v384, %v812
    %v814 = vpop.f32.mrb[0].mxu0
    %v815 = vadd.f32 %v388, %v814
    %v816 = vpop.f32.mrb[0].mxu0
    %v817 = vadd.f32 %v384, %v816
    %v818 = vpop.f32.mrb[0].mxu0
    %v819 = vadd.f32 %v388, %v818
    %820 = vdwg.mxu0
    %821 = vmatprep.subr.bf16.mxu0 %v570
    %822 = vmatpush1.bf16.msra.mxu0 %v569
    %823 = vmatprep.subr.bf16.mxu0 %v576
    %824 = vmatpush1.bf16.msra.mxu0 %v575
    %825 = vmatprep.subr.bf16.mxu0 %v582
    %826 = vmatpush1.bf16.msra.mxu0 %v581
    %827 = vmatprep.subr.bf16.mxu0 %v588
    %828 = vmatpush1.bf16.msra.mxu0 %v587
    %829 = vmatprep.subr.bf16.mxu0 %v594
    %830 = vmatpush1.bf16.msra.mxu0 %v593
    %831 = vmatprep.subr.bf16.mxu0 %v600
    %832 = vmatpush1.bf16.msra.mxu0 %v599
    %833 = vmatprep.subr.bf16.mxu0 %v606
    %834 = vmatpush1.bf16.msra.mxu0 %v605
    %835 = vmatprep.subr.bf16.mxu0 %v612
    %836 = vmatpush1.bf16.msra.mxu0 %v611
    %837 = vmatprep.subr.bf16.mxu0 %v693
    %838 = vmatpush1.bf16.msra.mxu0 %v690
    %839 = vmatprep.subr.bf16.mxu0 0
    %840 = vmatpush1.bf16.msra.mxu0 0
    %841 = vmatprep.subr.bf16.mxu0 0
    %842 = vmatpush1.bf16.msra.mxu0 0
    %843 = vmatprep.subr.bf16.mxu0 0
    %844 = vmatpush1.bf16.msra.mxu0 0
    %845 = vmatprep.subr.bf16.mxu0 0
    %846 = vmatpush1.bf16.msra.mxu0 0
    %847 = vmatprep.subr.bf16.mxu0 0
    %848 = vmatpush1.bf16.msra.mxu0 0
    %849 = vmatprep.subr.bf16.mxu0 0
    %850 = vmatpush1.bf16.msra.mxu0 0
    %851 = vmatprep.subr.bf16.mxu0 0
    %852 = vmatpush1.bf16.msra.mxu0 0
    %853 = vmatprep.mubr.bf16.mxu0 %v669
    %854 = vmatmul.mubr.bf16.gmra.mrb[0].mxu0 %v311
    %v855 = vpop.f32.mrb[0].mxu0
    %v856 = vadd.f32 %v392, %v855
    %v857 = vpop.f32.mrb[0].mxu0
    %v858 = vadd.f32 %v396, %v857
    %v859 = vpop.f32.mrb[0].mxu0
    %v860 = vadd.f32 %v392, %v859
    %v861 = vpop.f32.mrb[0].mxu0
    %v862 = vadd.f32 %v396, %v861
    %863 = vmatprep.mubr.bf16.mxu0 %v672
    %864 = vmatmul.mubr.bf16.gmra.mrb[0].mxu0 %v313
    %v865 = vpop.f32.mrb[0].mxu0
    %v866 = vadd.f32 %v392, %v865
    %v867 = vpop.f32.mrb[0].mxu0
    %v868 = vadd.f32 %v396, %v867
    %v869 = vpop.f32.mrb[0].mxu0
    %v870 = vadd.f32 %v392, %v869
    %v871 = vpop.f32.mrb[0].mxu0
    %v872 = vadd.f32 %v396, %v871
    %873 = vmatprep.mubr.bf16.mxu0 %v675
    %874 = vmatmul.mubr.bf16.gmra.mrb[0].mxu0 %v315
    %v875 = vpop.f32.mrb[0].mxu0
    %v876 = vadd.f32 %v392, %v875
    %v877 = vpop.f32.mrb[0].mxu0
    %v878 = vadd.f32 %v396, %v877
    %v879 = vpop.f32.mrb[0].mxu0
    %v880 = vadd.f32 %v392, %v879
    %v881 = vpop.f32.mrb[0].mxu0
    %v882 = vadd.f32 %v396, %v881
    %883 = vdwg.mxu0
    %v884 = vmax.f32 %v730, 0.0
    %v885 = vmax.f32 %v732, 0.0
    %v886 = vmax.f32 %v793, 0.0
    %v887 = vmax.f32 %v795, 0.0
    %v888 = vmax.f32 %v856, 0.0
    %v889 = vmax.f32 %v858, 0.0
    %v890 = vmax.f32 %v734, 0.0
    %v891 = vmax.f32 %v736, 0.0
    %v892 = vmax.f32 %v797, 0.0
    %v893 = vmax.f32 %v799, 0.0
    %v894 = vmax.f32 %v860, 0.0
    %v895 = vmax.f32 %v862, 0.0
    %v896 = vmax.f32 %v740, 0.0
    %v897 = vmax.f32 %v742, 0.0
    %v898 = vmax.f32 %v803, 0.0
    %v899 = vmax.f32 %v805, 0.0
    %v900 = vmax.f32 %v866, 0.0
    %v901 = vmax.f32 %v868, 0.0
    %v902 = vmax.f32 %v744, 0.0
    %v903 = vmax.f32 %v746, 0.0
    %v904 = vmax.f32 %v807, 0.0
    %v905 = vmax.f32 %v809, 0.0
    %v906 = vmax.f32 %v870, 0.0
    %v907 = vmax.f32 %v872, 0.0
    %v908 = vmax.f32 %v750, 0.0
    %v909 = vmax.f32 %v752, 0.0
    %v910 = vmax.f32 %v813, 0.0
    %v911 = vmax.f32 %v815, 0.0
    %v912 = vmax.f32 %v876, 0.0
    %v913 = vmax.f32 %v878, 0.0
    %v914 = vmax.f32 %v754, 0.0
    %v915 = vmax.f32 %v756, 0.0
    %v916 = vmax.f32 %v817, 0.0
    %v917 = vmax.f32 %v819, 0.0
    %v918 = vmax.f32 %v880, 0.0
    %v919 = vmax.f32 %v882, 0.0
    %v932 = vrot.slane %v884, 1
    %v933 = vrot.slane %v885, 1
    %v934 = vrot.slane %v886, 1
    %v935 = vrot.slane %v887, 1
    %v936 = vrot.slane %v888, 1
    %v937 = vrot.slane %v889, 1
    %v938 = vrot.slane %v902, 1
    %v939 = vrot.slane %v903, 1
    %v940 = vrot.slane %v904, 1
    %v941 = vrot.slane %v905, 1
    %v942 = vrot.slane %v906, 1
    %v943 = vrot.slane %v907, 1
    %v956 = vmax.f32 %v884, %v932
    %v957 = vmax.f32 %v885, %v933
    %v958 = vmax.f32 %v886, %v934
    %v959 = vmax.f32 %v887, %v935
    %v960 = vmax.f32 %v888, %v936
    %v961 = vmax.f32 %v889, %v937
    %v962 = vmax.f32 %v902, %v938
    %v963 = vmax.f32 %v903, %v939
    %v964 = vmax.f32 %v904, %v940
    %v965 = vmax.f32 %v905, %v941
    %v966 = vmax.f32 %v906, %v942
    %v967 = vmax.f32 %v907, %v943
    %v980 = vrot.slane %v890, 1
    %v981 = vrot.slane %v891, 1
    %v982 = vrot.slane %v892, 1
    %v983 = vrot.slane %v893, 1
    %v984 = vrot.slane %v894, 1
    %v985 = vrot.slane %v895, 1
    %v986 = vrot.slane %v908, 1
    %v987 = vrot.slane %v909, 1
    %v988 = vrot.slane %v910, 1
    %v989 = vrot.slane %v911, 1
    %v990 = vrot.slane %v912, 1
    %v991 = vrot.slane %v913, 1
    %v1004 = vmax.f32 %v890, %v980
    %v1005 = vmax.f32 %v891, %v981
    %v1006 = vmax.f32 %v892, %v982
    %v1007 = vmax.f32 %v893, %v983
    %v1008 = vmax.f32 %v894, %v984
    %v1009 = vmax.f32 %v895, %v985
    %v1010 = vmax.f32 %v908, %v986
    %v1011 = vmax.f32 %v909, %v987
    %v1012 = vmax.f32 %v910, %v988
    %v1013 = vmax.f32 %v911, %v989
    %v1014 = vmax.f32 %v912, %v990
    %v1015 = vmax.f32 %v913, %v991
    %v1028 = vrot.slane %v896, 1
    %v1029 = vrot.slane %v897, 1
    %v1030 = vrot.slane %v898, 1
    %v1031 = vrot.slane %v899, 1
    %v1032 = vrot.slane %v900, 1
    %v1033 = vrot.slane %v901, 1
    %v1034 = vrot.slane %v914, 1
    %v1035 = vrot.slane %v915, 1
    %v1036 = vrot.slane %v916, 1
    %v1037 = vrot.slane %v917, 1
    %v1038 = vrot.slane %v918, 1
    %v1039 = vrot.slane %v919, 1
    %v1052 = vmax.f32 %v896, %v1028
    %v1053 = vmax.f32 %v897, %v1029
    %v1054 = vmax.f32 %v898, %v1030
    %v1055 = vmax.f32 %v899, %v1031
    %v1056 = vmax.f32 %v900, %v1032
    %v1057 = vmax.f32 %v901, %v1033
    %v1058 = vmax.f32 %v914, %v1034
    %v1059 = vmax.f32 %v915, %v1035
    %v1060 = vmax.f32 %v916, %v1036
    %v1061 = vmax.f32 %v917, %v1037
    %v1062 = vmax.f32 %v918, %v1038
    %v1063 = vmax.f32 %v919, %v1039
    %v1076 = vrot.slane %v956, 1
    %v1077 = vrot.slane %v957, 1
    %v1078 = vrot.slane %v958, 1
    %v1079 = vrot.slane %v959, 1
    %v1080 = vrot.slane %v960, 1
    %v1081 = vrot.slane %v961, 1
    %v1082 = vrot.slane %v962, 1
    %v1083 = vrot.slane %v963, 1
    %v1084 = vrot.slane %v964, 1
    %v1085 = vrot.slane %v965, 1
    %v1086 = vrot.slane %v966, 1
    %v1087 = vrot.slane %v967, 1
    %v1100 = vrot.slane %v956, 2
    %v1101 = vrot.slane %v957, 2
    %v1102 = vrot.slane %v958, 2
    %v1103 = vrot.slane %v959, 2
    %v1104 = vrot.slane %v960, 2
    %v1105 = vrot.slane %v961, 2
    %v1106 = vrot.slane %v962, 2
    %v1107 = vrot.slane %v963, 2
    %v1108 = vrot.slane %v964, 2
    %v1109 = vrot.slane %v965, 2
    %v1110 = vrot.slane %v966, 2
    %v1111 = vrot.slane %v967, 2
    %v1124 = vrot.slane %v956, 3
    %v1125 = vrot.slane %v957, 3
    %v1126 = vrot.slane %v958, 3
    %v1127 = vrot.slane %v959, 3
    %v1128 = vrot.slane %v960, 3
    %v1129 = vrot.slane %v961, 3
    %v1130 = vrot.slane %v962, 3
    %v1131 = vrot.slane %v963, 3
    %v1132 = vrot.slane %v964, 3
    %v1133 = vrot.slane %v965, 3
    %v1134 = vrot.slane %v966, 3
    %v1135 = vrot.slane %v967, 3
    %v1160 = vrot.slane %v1004, 4
    %v1161 = vrot.slane %v1005, 4
    %v1162 = vrot.slane %v1006, 4
    %v1163 = vrot.slane %v1007, 4
    %v1164 = vrot.slane %v1008, 4
    %v1165 = vrot.slane %v1009, 4
    %v1166 = vrot.slane %v1010, 4
    %v1167 = vrot.slane %v1011, 4
    %v1168 = vrot.slane %v1012, 4
    %v1169 = vrot.slane %v1013, 4
    %v1170 = vrot.slane %v1014, 4
    %v1171 = vrot.slane %v1015, 4
    %v1184 = vrot.slane %v1004, 5
    %v1185 = vrot.slane %v1005, 5
    %v1186 = vrot.slane %v1006, 5
    %v1187 = vrot.slane %v1007, 5
    %v1188 = vrot.slane %v1008, 5
    %v1189 = vrot.slane %v1009, 5
    %v1190 = vrot.slane %v1010, 5
    %v1191 = vrot.slane %v1011, 5
    %v1192 = vrot.slane %v1012, 5
    %v1193 = vrot.slane %v1013, 5
    %v1194 = vrot.slane %v1014, 5
    %v1195 = vrot.slane %v1015, 5
    %v1208 = vrot.slane %v1004, 6
    %v1209 = vrot.slane %v1005, 6
    %v1210 = vrot.slane %v1006, 6
    %v1211 = vrot.slane %v1007, 6
    %v1212 = vrot.slane %v1008, 6
    %v1213 = vrot.slane %v1009, 6
    %v1214 = vrot.slane %v1010, 6
    %v1215 = vrot.slane %v1011, 6
    %v1216 = vrot.slane %v1012, 6
    %v1217 = vrot.slane %v1013, 6
    %v1218 = vrot.slane %v1014, 6
    %v1219 = vrot.slane %v1015, 6
    %v1232 = vrot.slane %v1004, 7
    %v1233 = vrot.slane %v1005, 7
    %v1234 = vrot.slane %v1006, 7
    %v1235 = vrot.slane %v1007, 7
    %v1236 = vrot.slane %v1008, 7
    %v1237 = vrot.slane %v1009, 7
    %v1238 = vrot.slane %v1010, 7
    %v1239 = vrot.slane %v1011, 7
    %v1240 = vrot.slane %v1012, 7
    %v1241 = vrot.slane %v1013, 7
    %v1242 = vrot.slane %v1014, 7
    %v1243 = vrot.slane %v1015, 7
    %v1268 = vrot.slane %v1052, 1
    %v1269 = vrot.slane %v1053, 1
    %v1270 = vrot.slane %v1054, 1
    %v1271 = vrot.slane %v1055, 1
    %v1272 = vrot.slane %v1056, 1
    %v1273 = vrot.slane %v1057, 1
    %v1274 = vrot.slane %v1058, 1
    %v1275 = vrot.slane %v1059, 1
    %v1276 = vrot.slane %v1060, 1
    %v1277 = vrot.slane %v1061, 1
    %v1278 = vrot.slane %v1062, 1
    %v1279 = vrot.slane %v1063, 1
    %v1292 = vrot.slane %v1052, 2
    %v1293 = vrot.slane %v1053, 2
    %v1294 = vrot.slane %v1054, 2
    %v1295 = vrot.slane %v1055, 2
    %v1296 = vrot.slane %v1056, 2
    %v1297 = vrot.slane %v1057, 2
    %v1298 = vrot.slane %v1058, 2
    %v1299 = vrot.slane %v1059, 2
    %v1300 = vrot.slane %v1060, 2
    %v1301 = vrot.slane %v1061, 2
    %v1302 = vrot.slane %v1062, 2
    %v1303 = vrot.slane %v1063, 2
    %v1316 = vrot.slane %v1052, 3
    %v1317 = vrot.slane %v1053, 3
    %v1318 = vrot.slane %v1054, 3
    %v1319 = vrot.slane %v1055, 3
    %v1320 = vrot.slane %v1056, 3
    %v1321 = vrot.slane %v1057, 3
    %v1322 = vrot.slane %v1058, 3
    %v1323 = vrot.slane %v1059, 3
    %v1324 = vrot.slane %v1060, 3
    %v1325 = vrot.slane %v1061, 3
    %v1326 = vrot.slane %v1062, 3
    %v1327 = vrot.slane %v1063, 3
    %vm1340 = vcmask 1040384
    %v1341 = vsel %vm1340, %v956, %v1076
    %v1342 = vsel %vm1340, %v957, %v1077
    %v1343 = vsel %vm1340, %v958, %v1078
    %v1344 = vsel %vm1340, %v959, %v1079
    %v1345 = vsel %vm1340, %v960, %v1080
    %v1346 = vsel %vm1340, %v961, %v1081
    %v1347 = vsel %vm1340, %v962, %v1082
    %v1348 = vsel %vm1340, %v963, %v1083
    %v1349 = vsel %vm1340, %v964, %v1084
    %v1350 = vsel %vm1340, %v965, %v1085
    %v1351 = vsel %vm1340, %v966, %v1086
    %v1352 = vsel %vm1340, %v967, %v1087
    %vm1353 = vcmask 1041408
    %v1354 = vsel %vm1353, %v1341, %v1100
    %v1355 = vsel %vm1353, %v1342, %v1101
    %v1356 = vsel %vm1353, %v1343, %v1102
    %v1357 = vsel %vm1353, %v1344, %v1103
    %v1358 = vsel %vm1353, %v1345, %v1104
    %v1359 = vsel %vm1353, %v1346, %v1105
    %v1360 = vsel %vm1353, %v1347, %v1106
    %v1361 = vsel %vm1353, %v1348, %v1107
    %v1362 = vsel %vm1353, %v1349, %v1108
    %v1363 = vsel %vm1353, %v1350, %v1109
    %v1364 = vsel %vm1353, %v1351, %v1110
    %v1365 = vsel %vm1353, %v1352, %v1111
    %vm1366 = vcmask 1042432
    %v1367 = vsel %vm1366, %v1354, %v1124
    %v1368 = vsel %vm1366, %v1355, %v1125
    %v1369 = vsel %vm1366, %v1356, %v1126
    %v1370 = vsel %vm1366, %v1357, %v1127
    %v1371 = vsel %vm1366, %v1358, %v1128
    %v1372 = vsel %vm1366, %v1359, %v1129
    %v1373 = vsel %vm1366, %v1360, %v1130
    %v1374 = vsel %vm1366, %v1361, %v1131
    %v1375 = vsel %vm1366, %v1362, %v1132
    %v1376 = vsel %vm1366, %v1363, %v1133
    %v1377 = vsel %vm1366, %v1364, %v1134
    %v1378 = vsel %vm1366, %v1365, %v1135
    %v1379 = vsel %vm250, %v1367, %v1160
    %v1380 = vsel %vm250, %v1368, %v1161
    %v1381 = vsel %vm250, %v1369, %v1162
    %v1382 = vsel %vm250, %v1370, %v1163
    %v1383 = vsel %vm250, %v1371, %v1164
    %v1384 = vsel %vm250, %v1372, %v1165
    %v1385 = vsel %vm250, %v1373, %v1166
    %v1386 = vsel %vm250, %v1374, %v1167
    %v1387 = vsel %vm250, %v1375, %v1168
    %v1388 = vsel %vm250, %v1376, %v1169
    %v1389 = vsel %vm250, %v1377, %v1170
    %v1390 = vsel %vm250, %v1378, %v1171
    %v1391 = vsel %vm217, %v1379, %v1184
    %v1392 = vsel %vm217, %v1380, %v1185
    %v1393 = vsel %vm217, %v1381, %v1186
    %v1394 = vsel %vm217, %v1382, %v1187
    %v1395 = vsel %vm217, %v1383, %v1188
    %v1396 = vsel %vm217, %v1384, %v1189
    %v1397 = vsel %vm217, %v1385, %v1190
    %v1398 = vsel %vm217, %v1386, %v1191
    %v1399 = vsel %vm217, %v1387, %v1192
    %v1400 = vsel %vm217, %v1388, %v1193
    %v1401 = vsel %vm217, %v1389, %v1194
    %v1402 = vsel %vm217, %v1390, %v1195
    %v1403 = vsel %vm184, %v1391, %v1208
    %v1404 = vsel %vm184, %v1392, %v1209
    %v1405 = vsel %vm184, %v1393, %v1210
    %v1406 = vsel %vm184, %v1394, %v1211
    %v1407 = vsel %vm184, %v1395, %v1212
    %v1408 = vsel %vm184, %v1396, %v1213
    %v1409 = vsel %vm184, %v1397, %v1214
    %v1410 = vsel %vm184, %v1398, %v1215
    %v1411 = vsel %vm184, %v1399, %v1216
    %v1412 = vsel %vm184, %v1400, %v1217
    %v1413 = vsel %vm184, %v1401, %v1218
    %v1414 = vsel %vm184, %v1402, %v1219
    %v1415 = vsel %vm151, %v1403, %v1232
    %v1416 = vsel %vm151, %v1404, %v1233
    %v1417 = vsel %vm151, %v1405, %v1234
    %v1418 = vsel %vm151, %v1406, %v1235
    %v1419 = vsel %vm151, %v1407, %v1236
    %v1420 = vsel %vm151, %v1408, %v1237
    %v1421 = vsel %vm151, %v1409, %v1238
    %v1422 = vsel %vm151, %v1410, %v1239
    %v1423 = vsel %vm151, %v1411, %v1240
    %v1424 = vsel %vm151, %v1412, %v1241
    %v1425 = vsel %vm151, %v1413, %v1242
    %v1426 = vsel %vm151, %v1414, %v1243
    %v1427 = vsel %vm1340, %v1052, %v1268
    %v1428 = vsel %vm1340, %v1053, %v1269
    %v1429 = vsel %vm1340, %v1054, %v1270
    %v1430 = vsel %vm1340, %v1055, %v1271
    %v1431 = vsel %vm1340, %v1056, %v1272
    %v1432 = vsel %vm1340, %v1057, %v1273
    %v1433 = vsel %vm1340, %v1058, %v1274
    %v1434 = vsel %vm1340, %v1059, %v1275
    %v1435 = vsel %vm1340, %v1060, %v1276
    %v1436 = vsel %vm1340, %v1061, %v1277
    %v1437 = vsel %vm1340, %v1062, %v1278
    %v1438 = vsel %vm1340, %v1063, %v1279
    %v1439 = vsel %vm1353, %v1427, %v1292
    %v1440 = vsel %vm1353, %v1428, %v1293
    %v1441 = vsel %vm1353, %v1429, %v1294
    %v1442 = vsel %vm1353, %v1430, %v1295
    %v1443 = vsel %vm1353, %v1431, %v1296
    %v1444 = vsel %vm1353, %v1432, %v1297
    %v1445 = vsel %vm1353, %v1433, %v1298
    %v1446 = vsel %vm1353, %v1434, %v1299
    %v1447 = vsel %vm1353, %v1435, %v1300
    %v1448 = vsel %vm1353, %v1436, %v1301
    %v1449 = vsel %vm1353, %v1437, %v1302
    %v1450 = vsel %vm1353, %v1438, %v1303
    %v1451 = vsel %vm1366, %v1439, %v1316
    %v1452 = vsel %vm1366, %v1440, %v1317
    %v1453 = vsel %vm1366, %v1441, %v1318
    %v1454 = vsel %vm1366, %v1442, %v1319
    %v1455 = vsel %vm1366, %v1443, %v1320
    %v1456 = vsel %vm1366, %v1444, %v1321
    %v1457 = vsel %vm1366, %v1445, %v1322
    %v1458 = vsel %vm1366, %v1446, %v1323
    %v1459 = vsel %vm1366, %v1447, %v1324
    %v1460 = vsel %vm1366, %v1448, %v1325
    %v1461 = vsel %vm1366, %v1449, %v1326
    %v1462 = vsel %vm1366, %v1450, %v1327
    %1467 = vrot.lane.b32.xlu0 %v1415, 96
    %v1468 = vpop.permute.xlu0 %1467
    %1469 = vrot.lane.b32.xlu0 %v1451, 96
    %v1470 = vpop.permute.xlu0 %1469
    %1471 = vrot.lane.b32.xlu0 %v1421, 96
    %v1472 = vpop.permute.xlu0 %1471
    %1473 = vrot.lane.b32.xlu0 %v1457, 96
    %v1474 = vpop.permute.xlu0 %1473
    %v1479 = vmax.f32 %v1415, %v1468
    %v1480 = vmax.f32 %v1451, %v1470
    %v1481 = vmax.f32 %v1421, %v1472
    %v1482 = vmax.f32 %v1457, %v1474
    %1487 = vrot.lane.b32.xlu0 %v1416, 96
    %v1488 = vpop.permute.xlu0 %1487
    %1489 = vrot.lane.b32.xlu0 %v1452, 96
    %v1490 = vpop.permute.xlu0 %1489
    %1491 = vrot.lane.b32.xlu0 %v1422, 96
    %v1492 = vpop.permute.xlu0 %1491
    %1493 = vrot.lane.b32.xlu0 %v1458, 96
    %v1494 = vpop.permute.xlu0 %1493
    %v1499 = vmax.f32 %v1416, %v1488
    %v1500 = vmax.f32 %v1452, %v1490
    %v1501 = vmax.f32 %v1422, %v1492
    %v1502 = vmax.f32 %v1458, %v1494
    %1507 = vrot.lane.b32.xlu0 %v1417, 96
    %v1508 = vpop.permute.xlu0 %1507
    %1509 = vrot.lane.b32.xlu0 %v1453, 96
    %v1510 = vpop.permute.xlu0 %1509
    %1511 = vrot.lane.b32.xlu0 %v1423, 96
    %v1512 = vpop.permute.xlu0 %1511
    %1513 = vrot.lane.b32.xlu0 %v1459, 96
    %v1514 = vpop.permute.xlu0 %1513
    %v1519 = vmax.f32 %v1417, %v1508
    %v1520 = vmax.f32 %v1453, %v1510
    %v1521 = vmax.f32 %v1423, %v1512
    %v1522 = vmax.f32 %v1459, %v1514
    %1527 = vrot.lane.b32.xlu0 %v1418, 96
    %v1528 = vpop.permute.xlu0 %1527
    %1529 = vrot.lane.b32.xlu0 %v1454, 96
    %v1530 = vpop.permute.xlu0 %1529
    %1531 = vrot.lane.b32.xlu0 %v1424, 96
    %v1532 = vpop.permute.xlu0 %1531
    %1533 = vrot.lane.b32.xlu0 %v1460, 96
    %v1534 = vpop.permute.xlu0 %1533
    %v1539 = vmax.f32 %v1418, %v1528
    %v1540 = vmax.f32 %v1454, %v1530
    %v1541 = vmax.f32 %v1424, %v1532
    %v1542 = vmax.f32 %v1460, %v1534
    %1547 = vrot.lane.b32.xlu0 %v1419, 96
    %v1548 = vpop.permute.xlu0 %1547
    %1549 = vrot.lane.b32.xlu0 %v1455, 96
    %v1550 = vpop.permute.xlu0 %1549
    %1551 = vrot.lane.b32.xlu0 %v1425, 96
    %v1552 = vpop.permute.xlu0 %1551
    %1553 = vrot.lane.b32.xlu0 %v1461, 96
    %v1554 = vpop.permute.xlu0 %1553
    %v1559 = vmax.f32 %v1419, %v1548
    %v1560 = vmax.f32 %v1455, %v1550
    %v1561 = vmax.f32 %v1425, %v1552
    %v1562 = vmax.f32 %v1461, %v1554
    %1567 = vrot.lane.b32.xlu0 %v1420, 96
    %v1568 = vpop.permute.xlu0 %1567
    %1569 = vrot.lane.b32.xlu0 %v1456, 96
    %v1570 = vpop.permute.xlu0 %1569
    %1571 = vrot.lane.b32.xlu0 %v1426, 96
    %v1572 = vpop.permute.xlu0 %1571
    %1573 = vrot.lane.b32.xlu0 %v1462, 96
    %v1574 = vpop.permute.xlu0 %1573
    %v1579 = vmax.f32 %v1420, %v1568
    %v1580 = vmax.f32 %v1456, %v1570
    %v1581 = vmax.f32 %v1426, %v1572
    %v1582 = vmax.f32 %v1462, %v1574
    %1587 = vrot.lane.b32.xlu0 %v1479, 96
    %v1588 = vpop.permute.xlu0 %1587
    %1589 = vrot.lane.b32.xlu0 %v1480, 96
    %v1590 = vpop.permute.xlu0 %1589
    %1591 = vrot.lane.b32.xlu0 %v1481, 96
    %v1592 = vpop.permute.xlu0 %1591
    %1593 = vrot.lane.b32.xlu0 %v1482, 96
    %v1594 = vpop.permute.xlu0 %1593
    %1603 = vrot.lane.b32.xlu0 %v1499, 64
    %v1604 = vpop.permute.xlu0 %1603
    %1605 = vrot.lane.b32.xlu0 %v1500, 64
    %v1606 = vpop.permute.xlu0 %1605
    %1607 = vrot.lane.b32.xlu0 %v1501, 64
    %v1608 = vpop.permute.xlu0 %1607
    %1609 = vrot.lane.b32.xlu0 %v1502, 64
    %v1610 = vpop.permute.xlu0 %1609
    %1615 = vrot.lane.b32.xlu0 %v1499, 32
    %v1616 = vpop.permute.xlu0 %1615
    %1617 = vrot.lane.b32.xlu0 %v1500, 32
    %v1618 = vpop.permute.xlu0 %1617
    %1619 = vrot.lane.b32.xlu0 %v1501, 32
    %v1620 = vpop.permute.xlu0 %1619
    %1621 = vrot.lane.b32.xlu0 %v1502, 32
    %v1622 = vpop.permute.xlu0 %1621
    %1631 = vrot.lane.b32.xlu0 %v1519, 96
    %v1632 = vpop.permute.xlu0 %1631
    %1633 = vrot.lane.b32.xlu0 %v1520, 96
    %v1634 = vpop.permute.xlu0 %1633
    %1635 = vrot.lane.b32.xlu0 %v1521, 96
    %v1636 = vpop.permute.xlu0 %1635
    %1637 = vrot.lane.b32.xlu0 %v1522, 96
    %v1638 = vpop.permute.xlu0 %1637
    %1647 = vrot.lane.b32.xlu0 %v1539, 64
    %v1648 = vpop.permute.xlu0 %1647
    %1649 = vrot.lane.b32.xlu0 %v1540, 64
    %v1650 = vpop.permute.xlu0 %1649
    %1651 = vrot.lane.b32.xlu0 %v1541, 64
    %v1652 = vpop.permute.xlu0 %1651
    %1653 = vrot.lane.b32.xlu0 %v1542, 64
    %v1654 = vpop.permute.xlu0 %1653
    %1659 = vrot.lane.b32.xlu0 %v1539, 32
    %v1660 = vpop.permute.xlu0 %1659
    %1661 = vrot.lane.b32.xlu0 %v1540, 32
    %v1662 = vpop.permute.xlu0 %1661
    %1663 = vrot.lane.b32.xlu0 %v1541, 32
    %v1664 = vpop.permute.xlu0 %1663
    %1665 = vrot.lane.b32.xlu0 %v1542, 32
    %v1666 = vpop.permute.xlu0 %1665
    %1675 = vrot.lane.b32.xlu0 %v1559, 96
    %v1676 = vpop.permute.xlu0 %1675
    %1677 = vrot.lane.b32.xlu0 %v1560, 96
    %v1678 = vpop.permute.xlu0 %1677
    %1679 = vrot.lane.b32.xlu0 %v1561, 96
    %v1680 = vpop.permute.xlu0 %1679
    %1681 = vrot.lane.b32.xlu0 %v1562, 96
    %v1682 = vpop.permute.xlu0 %1681
    %1691 = vrot.lane.b32.xlu0 %v1579, 64
    %v1692 = vpop.permute.xlu0 %1691
    %1693 = vrot.lane.b32.xlu0 %v1580, 64
    %v1694 = vpop.permute.xlu0 %1693
    %1695 = vrot.lane.b32.xlu0 %v1581, 64
    %v1696 = vpop.permute.xlu0 %1695
    %1697 = vrot.lane.b32.xlu0 %v1582, 64
    %v1698 = vpop.permute.xlu0 %1697
    %1703 = vrot.lane.b32.xlu0 %v1579, 32
    %v1704 = vpop.permute.xlu0 %1703
    %1705 = vrot.lane.b32.xlu0 %v1580, 32
    %v1706 = vpop.permute.xlu0 %1705
    %1707 = vrot.lane.b32.xlu0 %v1581, 32
    %v1708 = vpop.permute.xlu0 %1707
    %1709 = vrot.lane.b32.xlu0 %v1582, 32
    %v1710 = vpop.permute.xlu0 %1709
    %vm1715 = vcmask 261120
    %v1716 = vsel %vm1715, %v1479, %v1588
    %v1717 = vsel %vm1715, %v1480, %v1590
    %v1718 = vsel %vm1715, %v1481, %v1592
    %v1719 = vsel %vm1715, %v1482, %v1594
    %vm1720 = vcmask 523264
    %v1721 = vsel %vm1720, %v1716, %v1604
    %v1722 = vsel %vm1720, %v1717, %v1606
    %v1723 = vsel %vm1720, %v1718, %v1608
    %v1724 = vsel %vm1720, %v1719, %v1610
    %vm1725 = vcmask 785408
    %v1726 = vsel %vm1725, %v1721, %v1616
    %v1727 = vsel %vm1725, %v1722, %v1618
    %v1728 = vsel %vm1725, %v1723, %v1620
    %v1729 = vsel %vm1725, %v1724, %v1622
    %v1730 = vsel %vm1715, %v1519, %v1632
    %v1731 = vsel %vm1715, %v1520, %v1634
    %v1732 = vsel %vm1715, %v1521, %v1636
    %v1733 = vsel %vm1715, %v1522, %v1638
    %v1734 = vsel %vm1720, %v1730, %v1648
    %v1735 = vsel %vm1720, %v1731, %v1650
    %v1736 = vsel %vm1720, %v1732, %v1652
    %v1737 = vsel %vm1720, %v1733, %v1654
    %v1738 = vsel %vm1725, %v1734, %v1660
    %v1739 = vsel %vm1725, %v1735, %v1662
    %v1740 = vsel %vm1725, %v1736, %v1664
    %v1741 = vsel %vm1725, %v1737, %v1666
    %v1742 = vsel %vm1715, %v1559, %v1676
    %v1743 = vsel %vm1715, %v1560, %v1678
    %v1744 = vsel %vm1715, %v1561, %v1680
    %v1745 = vsel %vm1715, %v1562, %v1682
    %v1746 = vsel %vm1720, %v1742, %v1692
    %v1747 = vsel %vm1720, %v1743, %v1694
    %v1748 = vsel %vm1720, %v1744, %v1696
    %v1749 = vsel %vm1720, %v1745, %v1698
    %v1750 = vsel %vm1725, %v1746, %v1704
    %v1751 = vsel %vm1725, %v1747, %v1706
    %v1752 = vsel %vm1725, %v1748, %v1708
    %v1753 = vsel %vm1725, %v1749, %v1710
    %1754 = vst [vmem:[#allocation2] sm:$0xff] %v1726
    %1755 = vst [vmem:[#allocation2 + $0x8] sm:$0xff] %v1738
    %1756 = vst [vmem:[#allocation2 + $0x10] sm:$0xff] %v1750
    %1757 = vst [vmem:[#allocation2 + $0x18] sm:$0xf] %v1727
    %1758 = vst [vmem:[#allocation2 + $0x20] sm:$0xf] %v1739
    %1759 = vst [vmem:[#allocation2 + $0x28] sm:$0xf] %v1751
    %1760 = vst [vmem:[#allocation2 + $0x30] sm:$0xff] %v1728
    %1761 = vst [vmem:[#allocation2 + $0x38] sm:$0xff] %v1740
    %1762 = vst [vmem:[#allocation2 + $0x40] sm:$0xff] %v1752
    %1763 = vst [vmem:[#allocation2 + $0x48] sm:$0xf] %v1729
    %1764 = vst [vmem:[#allocation2 + $0x50] sm:$0xf] %v1741
    %1765 = vst [vmem:[#allocation2 + $0x58] sm:$0xf] %v1753
    %v1766 = vld [vmem:[#allocation2] sm:$0xff]
    %v1767 = vld [vmem:[#allocation2 + $0x8] sm:$0xff]
    %v1768 = vld [vmem:[#allocation2 + $0x10] sm:$0xff]
    %v1769 = vld [vmem:[#allocation2 + $0x30] sm:$0xff]
    %v1770 = vld [vmem:[#allocation2 + $0x38] sm:$0xff]
    %v1771 = vld [vmem:[#allocation2 + $0x40] sm:$0xff]
    %v1772 = vpack.c.bf16 %v1769, %v1766
    %v1773 = vpack.c.bf16 %v1770, %v1767
    %v1774 = vpack.c.bf16 %v1771, %v1768
    %v1775 = vld [vmem:[#allocation9] sm:$0xff]
    %v1776 = vld [vmem:[#allocation9 + $0x8] sm:$0xff]
    %v1777 = vld [vmem:[#allocation9 + $0x10] sm:$0xff]
    %v1778 = vld [vmem:[#allocation9 + $0x18] sm:$0xff]
    %v1779 = vld [vmem:[#allocation9 + $0x20] sm:$0xff]
    %v1780 = vld [vmem:[#allocation9 + $0x28] sm:$0xff]
    %v1781 = vld [vmem:[#allocation9 + $0x30] sm:$0xff]
    %v1782 = vld [vmem:[#allocation9 + $0x38] sm:$0xff]
    %v1783 = vld [vmem:[#allocation9 + $0x40] sm:$0xff]
    %v1784 = vld [vmem:[#allocation9 + $0x48] sm:$0xff]
    %v1785 = vld [vmem:[#allocation9 + $0x50] sm:$0xff]
    %v1786 = vld [vmem:[#allocation9 + $0x58] sm:$0xff]
    %v1787 = vld [vmem:[#allocation9 + $0x60] sm:$0xff]
    %v1788 = vld [vmem:[#allocation9 + $0x68] sm:$0xff]
    %v1789 = vld [vmem:[#allocation9 + $0x70] sm:$0xff]
    %v1790 = vld [vmem:[#allocation9 + $0x78] sm:$0xff]
    %v1791 = vld [vmem:[#allocation9 + $0x80] sm:$0xff]
    %v1792 = vld [vmem:[#allocation9 + $0x88] sm:$0xff]
    %v1793 = vld [vmem:[#allocation9 + $0x90] sm:$0xff]
    %v1794 = vld [vmem:[#allocation9 + $0x98] sm:$0xff]
    %v1795 = vld [vmem:[#allocation9 + $0xa0] sm:$0xff]
    %v1796 = vld [vmem:[#allocation9 + $0xa8] sm:$0xff]
    %v1797 = vld [vmem:[#allocation9 + $0xb0] sm:$0xff]
    %v1798 = vld [vmem:[#allocation9 + $0xb8] sm:$0xff]
    %v1799 = vld [vmem:[#allocation9 + $0xc0] sm:$0xff]
    %v1800 = vld [vmem:[#allocation9 + $0xc8] sm:$0xff]
    %v1801 = vld [vmem:[#allocation9 + $0xd0] sm:$0xff]
    %v1802 = vld [vmem:[#allocation9 + $0xd8] sm:$0xff]
    %v1803 = vld [vmem:[#allocation9 + $0xe0] sm:$0xff]
    %v1804 = vld [vmem:[#allocation9 + $0xe8] sm:$0xff]
    %v1805 = vld [vmem:[#allocation9 + $0xf0] sm:$0xff]
    %v1806 = vld [vmem:[#allocation9 + $0xf8] sm:$0xff]
    %v1807 = vld [vmem:[#allocation9 + $0x100] sm:$0xff]
    %v1808 = vld [vmem:[#allocation9 + $0x108] sm:$0xff]
    %v1809 = vld [vmem:[#allocation9 + $0x110] sm:$0xff]
    %v1810 = vld [vmem:[#allocation9 + $0x118] sm:$0xff]
    %v1811 = vld [vmem:[#allocation9 + $0x120] sm:$0xff]
    %v1812 = vld [vmem:[#allocation9 + $0x128] sm:$0xff]
    %v1813 = vld [vmem:[#allocation9 + $0x130] sm:$0xff]
    %v1814 = vld [vmem:[#allocation9 + $0x138] sm:$0xff]
    %v1815 = vld [vmem:[#allocation9 + $0x140] sm:$0xff]
    %v1816 = vld [vmem:[#allocation9 + $0x148] sm:$0xff]
    %v1817 = vld [vmem:[#allocation9 + $0x150] sm:$0xff]
    %v1818 = vld [vmem:[#allocation9 + $0x158] sm:$0xff]
    %v1819 = vld [vmem:[#allocation9 + $0x160] sm:$0xff]
    %v1820 = vld [vmem:[#allocation9 + $0x168] sm:$0xff]
    %v1821 = vld [vmem:[#allocation9 + $0x170] sm:$0xff]
    %v1822 = vld [vmem:[#allocation9 + $0x178] sm:$0xff]
    %v1823 = vld [vmem:[#allocation9 + $0x180] sm:$0xff]
    %v1824 = vld [vmem:[#allocation9 + $0x188] sm:$0xff]
    %v1825 = vld [vmem:[#allocation9 + $0x190] sm:$0xff]
    %v1826 = vld [vmem:[#allocation9 + $0x198] sm:$0xff]
    %v1827 = vld [vmem:[#allocation9 + $0x1a0] sm:$0xff]
    %v1828 = vld [vmem:[#allocation9 + $0x1a8] sm:$0xff]
    %v1829 = vld [vmem:[#allocation9 + $0x1b0] sm:$0xff]
    %v1830 = vld [vmem:[#allocation9 + $0x1b8] sm:$0xff]
    %v1831 = vld [vmem:[#allocation9 + $0x1c0] sm:$0xff]
    %v1832 = vld [vmem:[#allocation9 + $0x1c8] sm:$0xff]
    %v1833 = vld [vmem:[#allocation9 + $0x1d0] sm:$0xff]
    %v1834 = vld [vmem:[#allocation9 + $0x1d8] sm:$0xff]
    %v1835 = vld [vmem:[#allocation9 + $0x1e0] sm:$0xff]
    %v1836 = vld [vmem:[#allocation9 + $0x1e8] sm:$0xff]
    %v1837 = vld [vmem:[#allocation9 + $0x1f0] sm:$0xff]
    %v1838 = vld [vmem:[#allocation9 + $0x1f8] sm:$0xff]
    %v1839 = vld [vmem:[#allocation9 + $0x200] sm:$0xff]
    %v1840 = vld [vmem:[#allocation9 + $0x208] sm:$0xff]
    %v1841 = vld [vmem:[#allocation9 + $0x210] sm:$0xff]
    %v1842 = vld [vmem:[#allocation9 + $0x218] sm:$0xff]
    %v1843 = vld [vmem:[#allocation9 + $0x220] sm:$0xff]
    %v1844 = vld [vmem:[#allocation9 + $0x228] sm:$0xff]
    %v1845 = vld [vmem:[#allocation9 + $0x230] sm:$0xff]
    %v1846 = vld [vmem:[#allocation9 + $0x238] sm:$0xff]
    %v1847 = vld [vmem:[#allocation9 + $0x240] sm:$0xff]
    %v1848 = vld [vmem:[#allocation9 + $0x248] sm:$0xff]
    %v1849 = vld [vmem:[#allocation9 + $0x250] sm:$0xff]
    %v1850 = vld [vmem:[#allocation9 + $0x258] sm:$0xff]
    %v1851 = vld [vmem:[#allocation9 + $0x260] sm:$0xff]
    %v1852 = vld [vmem:[#allocation9 + $0x268] sm:$0xff]
    %v1853 = vld [vmem:[#allocation9 + $0x270] sm:$0xff]
    %v1854 = vld [vmem:[#allocation9 + $0x278] sm:$0xff]
    %v1855 = vld [vmem:[#allocation9 + $0x280] sm:$0xff]
    %v1856 = vld [vmem:[#allocation9 + $0x288] sm:$0xff]
    %v1857 = vld [vmem:[#allocation9 + $0x290] sm:$0xff]
    %v1858 = vld [vmem:[#allocation9 + $0x298] sm:$0xff]
    %v1859 = vld [vmem:[#allocation9 + $0x2a0] sm:$0xff]
    %v1860 = vld [vmem:[#allocation9 + $0x2a8] sm:$0xff]
    %v1861 = vld [vmem:[#allocation9 + $0x2b0] sm:$0xff]
    %v1862 = vld [vmem:[#allocation9 + $0x2b8] sm:$0xff]
    %v1863 = vld [vmem:[#allocation9 + $0x2c0] sm:$0xff]
    %v1864 = vld [vmem:[#allocation9 + $0x2c8] sm:$0xff]
    %v1865 = vld [vmem:[#allocation9 + $0x2d0] sm:$0xff]
    %v1866 = vld [vmem:[#allocation9 + $0x2d8] sm:$0xff]
    %v1867 = vld [vmem:[#allocation9 + $0x2e0] sm:$0xff]
    %v1868 = vld [vmem:[#allocation9 + $0x2e8] sm:$0xff]
    %v1869 = vld [vmem:[#allocation9 + $0x2f0] sm:$0xff]
    %v1870 = vld [vmem:[#allocation9 + $0x2f8] sm:$0xff]
    %v1871 = vld [vmem:[#allocation2] sm:$0xfe]
    %v1872 = vld [vmem:[#allocation2 + $0x8] sm:$0xfe]
    %v1873 = vld [vmem:[#allocation2 + $0x10] sm:$0xfe]
    %v1874 = vld [vmem:[#allocation2 + $0x18] sm:$0x1]
    %v1875 = vld [vmem:[#allocation2 + $0x20] sm:$0x1]
    %v1876 = vld [vmem:[#allocation2 + $0x28] sm:$0x1]
    %v1877 = vld [vmem:[#allocation2 + $0x30] sm:$0xfe]
    %v1878 = vld [vmem:[#allocation2 + $0x38] sm:$0xfe]
    %v1879 = vld [vmem:[#allocation2 + $0x40] sm:$0xfe]
    %v1880 = vld [vmem:[#allocation2 + $0x48] sm:$0x1]
    %v1881 = vld [vmem:[#allocation2 + $0x50] sm:$0x1]
    %v1882 = vld [vmem:[#allocation2 + $0x58] sm:$0x1]
    %v1895 = vrot.slane %v1871, 1
    %v1896 = vrot.slane %v1874, 1
    %v1897 = vsel %vm151, %v1895, %v1896
    %v1898 = vrot.slane %v1872, 1
    %v1899 = vrot.slane %v1875, 1
    %v1900 = vsel %vm151, %v1898, %v1899
    %v1901 = vrot.slane %v1873, 1
    %v1902 = vrot.slane %v1876, 1
    %v1903 = vsel %vm151, %v1901, %v1902
    %v1904 = vrot.slane %v1877, 1
    %v1905 = vrot.slane %v1880, 1
    %v1906 = vsel %vm151, %v1904, %v1905
    %v1907 = vrot.slane %v1878, 1
    %v1908 = vrot.slane %v1881, 1
    %v1909 = vsel %vm151, %v1907, %v1908
    %v1910 = vrot.slane %v1879, 1
    %v1911 = vrot.slane %v1882, 1
    %v1912 = vsel %vm151, %v1910, %v1911
    %v1919 = vpack.c.bf16 %v1906, %v1897
    %v1920 = vpack.c.bf16 %v1909, %v1900
    %v1921 = vpack.c.bf16 %v1912, %v1903
    %s1922 = scalar_lea.vmem [#allocation9], 768
    %v1923 = vld [vmem:[%s1922] sm:$0xff]
    %v1924 = vld [vmem:[%s1922 + $0x8] sm:$0xff]
    %v1925 = vld [vmem:[%s1922 + $0x10] sm:$0xff]
    %v1926 = vld [vmem:[%s1922 + $0x18] sm:$0xff]
    %v1927 = vld [vmem:[%s1922 + $0x20] sm:$0xff]
    %v1928 = vld [vmem:[%s1922 + $0x28] sm:$0xff]
    %v1929 = vld [vmem:[%s1922 + $0x30] sm:$0xff]
    %v1930 = vld [vmem:[%s1922 + $0x38] sm:$0xff]
    %v1931 = vld [vmem:[%s1922 + $0x40] sm:$0xff]
    %v1932 = vld [vmem:[%s1922 + $0x48] sm:$0xff]
    %v1933 = vld [vmem:[%s1922 + $0x50] sm:$0xff]
    %v1934 = vld [vmem:[%s1922 + $0x58] sm:$0xff]
    %v1935 = vld [vmem:[%s1922 + $0x60] sm:$0xff]
    %v1936 = vld [vmem:[%s1922 + $0x68] sm:$0xff]
    %v1937 = vld [vmem:[%s1922 + $0x70] sm:$0xff]
    %v1938 = vld [vmem:[%s1922 + $0x78] sm:$0xff]
    %v1939 = vld [vmem:[%s1922 + $0x80] sm:$0xff]
    %v1940 = vld [vmem:[%s1922 + $0x88] sm:$0xff]
    %v1941 = vld [vmem:[%s1922 + $0x90] sm:$0xff]
    %v1942 = vld [vmem:[%s1922 + $0x98] sm:$0xff]
    %v1943 = vld [vmem:[%s1922 + $0xa0] sm:$0xff]
    %v1944 = vld [vmem:[%s1922 + $0xa8] sm:$0xff]
    %v1945 = vld [vmem:[%s1922 + $0xb0] sm:$0xff]
    %v1946 = vld [vmem:[%s1922 + $0xb8] sm:$0xff]
    %v1947 = vld [vmem:[%s1922 + $0xc0] sm:$0xff]
    %v1948 = vld [vmem:[%s1922 + $0xc8] sm:$0xff]
    %v1949 = vld [vmem:[%s1922 + $0xd0] sm:$0xff]
    %v1950 = vld [vmem:[%s1922 + $0xd8] sm:$0xff]
    %v1951 = vld [vmem:[%s1922 + $0xe0] sm:$0xff]
    %v1952 = vld [vmem:[%s1922 + $0xe8] sm:$0xff]
    %v1953 = vld [vmem:[%s1922 + $0xf0] sm:$0xff]
    %v1954 = vld [vmem:[%s1922 + $0xf8] sm:$0xff]
    %v1955 = vld [vmem:[%s1922 + $0x100] sm:$0xff]
    %v1956 = vld [vmem:[%s1922 + $0x108] sm:$0xff]
    %v1957 = vld [vmem:[%s1922 + $0x110] sm:$0xff]
    %v1958 = vld [vmem:[%s1922 + $0x118] sm:$0xff]
    %v1959 = vld [vmem:[%s1922 + $0x120] sm:$0xff]
    %v1960 = vld [vmem:[%s1922 + $0x128] sm:$0xff]
    %v1961 = vld [vmem:[%s1922 + $0x130] sm:$0xff]
    %v1962 = vld [vmem:[%s1922 + $0x138] sm:$0xff]
    %v1963 = vld [vmem:[%s1922 + $0x140] sm:$0xff]
    %v1964 = vld [vmem:[%s1922 + $0x148] sm:$0xff]
    %v1965 = vld [vmem:[%s1922 + $0x150] sm:$0xff]
    %v1966 = vld [vmem:[%s1922 + $0x158] sm:$0xff]
    %v1967 = vld [vmem:[%s1922 + $0x160] sm:$0xff]
    %v1968 = vld [vmem:[%s1922 + $0x168] sm:$0xff]
    %v1969 = vld [vmem:[%s1922 + $0x170] sm:$0xff]
    %v1970 = vld [vmem:[%s1922 + $0x178] sm:$0xff]
    %v1971 = vld [vmem:[%s1922 + $0x180] sm:$0xff]
    %v1972 = vld [vmem:[%s1922 + $0x188] sm:$0xff]
    %v1973 = vld [vmem:[%s1922 + $0x190] sm:$0xff]
    %v1974 = vld [vmem:[%s1922 + $0x198] sm:$0xff]
    %v1975 = vld [vmem:[%s1922 + $0x1a0] sm:$0xff]
    %v1976 = vld [vmem:[%s1922 + $0x1a8] sm:$0xff]
    %v1977 = vld [vmem:[%s1922 + $0x1b0] sm:$0xff]
    %v1978 = vld [vmem:[%s1922 + $0x1b8] sm:$0xff]
    %v1979 = vld [vmem:[%s1922 + $0x1c0] sm:$0xff]
    %v1980 = vld [vmem:[%s1922 + $0x1c8] sm:$0xff]
    %v1981 = vld [vmem:[%s1922 + $0x1d0] sm:$0xff]
    %v1982 = vld [vmem:[%s1922 + $0x1d8] sm:$0xff]
    %v1983 = vld [vmem:[%s1922 + $0x1e0] sm:$0xff]
    %v1984 = vld [vmem:[%s1922 + $0x1e8] sm:$0xff]
    %v1985 = vld [vmem:[%s1922 + $0x1f0] sm:$0xff]
    %v1986 = vld [vmem:[%s1922 + $0x1f8] sm:$0xff]
    %v1987 = vld [vmem:[%s1922 + $0x200] sm:$0xff]
    %v1988 = vld [vmem:[%s1922 + $0x208] sm:$0xff]
    %v1989 = vld [vmem:[%s1922 + $0x210] sm:$0xff]
    %v1990 = vld [vmem:[%s1922 + $0x218] sm:$0xff]
    %v1991 = vld [vmem:[%s1922 + $0x220] sm:$0xff]
    %v1992 = vld [vmem:[%s1922 + $0x228] sm:$0xff]
    %v1993 = vld [vmem:[%s1922 + $0x230] sm:$0xff]
    %v1994 = vld [vmem:[%s1922 + $0x238] sm:$0xff]
    %v1995 = vld [vmem:[%s1922 + $0x240] sm:$0xff]
    %v1996 = vld [vmem:[%s1922 + $0x248] sm:$0xff]
    %v1997 = vld [vmem:[%s1922 + $0x250] sm:$0xff]
    %v1998 = vld [vmem:[%s1922 + $0x258] sm:$0xff]
    %v1999 = vld [vmem:[%s1922 + $0x260] sm:$0xff]
    %v2000 = vld [vmem:[%s1922 + $0x268] sm:$0xff]
    %v2001 = vld [vmem:[%s1922 + $0x270] sm:$0xff]
    %v2002 = vld [vmem:[%s1922 + $0x278] sm:$0xff]
    %v2003 = vld [vmem:[%s1922 + $0x280] sm:$0xff]
    %v2004 = vld [vmem:[%s1922 + $0x288] sm:$0xff]
    %v2005 = vld [vmem:[%s1922 + $0x290] sm:$0xff]
    %v2006 = vld [vmem:[%s1922 + $0x298] sm:$0xff]
    %v2007 = vld [vmem:[%s1922 + $0x2a0] sm:$0xff]
    %v2008 = vld [vmem:[%s1922 + $0x2a8] sm:$0xff]
    %v2009 = vld [vmem:[%s1922 + $0x2b0] sm:$0xff]
    %v2010 = vld [vmem:[%s1922 + $0x2b8] sm:$0xff]
    %v2011 = vld [vmem:[%s1922 + $0x2c0] sm:$0xff]
    %v2012 = vld [vmem:[%s1922 + $0x2c8] sm:$0xff]
    %v2013 = vld [vmem:[%s1922 + $0x2d0] sm:$0xff]
    %v2014 = vld [vmem:[%s1922 + $0x2d8] sm:$0xff]
    %v2015 = vld [vmem:[%s1922 + $0x2e0] sm:$0xff]
    %v2016 = vld [vmem:[%s1922 + $0x2e8] sm:$0xff]
    %v2017 = vld [vmem:[%s1922 + $0x2f0] sm:$0xff]
    %v2018 = vld [vmem:[%s1922 + $0x2f8] sm:$0xff]
    %v2115 = vunpack.c.l.b16 %v1923
    %v2116 = vunpack.c.h.b16 %v1923
    %v2117 = vunpack.c.l.b16 %v1924
    %v2118 = vunpack.c.h.b16 %v1924
    %v2119 = vunpack.c.l.b16 %v1925
    %v2120 = vunpack.c.h.b16 %v1925
    %v2121 = vunpack.c.l.b16 %v1926
    %v2122 = vunpack.c.h.b16 %v1926
    %v2123 = vunpack.c.l.b16 %v1927
    %v2124 = vunpack.c.h.b16 %v1927
    %v2125 = vunpack.c.l.b16 %v1928
    %v2126 = vunpack.c.h.b16 %v1928
    %v2127 = vunpack.c.l.b16 %v1929
    %v2128 = vunpack.c.h.b16 %v1929
    %v2129 = vunpack.c.l.b16 %v1930
    %v2130 = vunpack.c.h.b16 %v1930
    %v2131 = vunpack.c.l.b16 %v1931
    %v2132 = vunpack.c.h.b16 %v1931
    %v2133 = vunpack.c.l.b16 %v1932
    %v2134 = vunpack.c.h.b16 %v1932
    %v2135 = vunpack.c.l.b16 %v1933
    %v2136 = vunpack.c.h.b16 %v1933
    %v2137 = vunpack.c.l.b16 %v1934
    %v2138 = vunpack.c.h.b16 %v1934
    %v2139 = vunpack.c.l.b16 %v1935
    %v2140 = vunpack.c.h.b16 %v1935
    %v2141 = vunpack.c.l.b16 %v1936
    %v2142 = vunpack.c.h.b16 %v1936
    %v2143 = vunpack.c.l.b16 %v1937
    %v2144 = vunpack.c.h.b16 %v1937
    %v2145 = vunpack.c.l.b16 %v1938
    %v2146 = vunpack.c.h.b16 %v1938
    %v2147 = vunpack.c.l.b16 %v1939
    %v2148 = vunpack.c.h.b16 %v1939
    %v2149 = vunpack.c.l.b16 %v1940
    %v2150 = vunpack.c.h.b16 %v1940
    %v2151 = vunpack.c.l.b16 %v1941
    %v2152 = vunpack.c.h.b16 %v1941
    %v2153 = vunpack.c.l.b16 %v1942
    %v2154 = vunpack.c.h.b16 %v1942
    %v2155 = vunpack.c.l.b16 %v1943
    %v2156 = vunpack.c.h.b16 %v1943
    %v2157 = vunpack.c.l.b16 %v1944
    %v2158 = vunpack.c.h.b16 %v1944
    %v2159 = vunpack.c.l.b16 %v1945
    %v2160 = vunpack.c.h.b16 %v1945
    %v2161 = vunpack.c.l.b16 %v1946
    %v2162 = vunpack.c.h.b16 %v1946
    %v2163 = vunpack.c.l.b16 %v1947
    %v2164 = vunpack.c.h.b16 %v1947
    %v2165 = vunpack.c.l.b16 %v1948
    %v2166 = vunpack.c.h.b16 %v1948
    %v2167 = vunpack.c.l.b16 %v1949
    %v2168 = vunpack.c.h.b16 %v1949
    %v2169 = vunpack.c.l.b16 %v1950
    %v2170 = vunpack.c.h.b16 %v1950
    %v2171 = vunpack.c.l.b16 %v1951
    %v2172 = vunpack.c.h.b16 %v1951
    %v2173 = vunpack.c.l.b16 %v1952
    %v2174 = vunpack.c.h.b16 %v1952
    %v2175 = vunpack.c.l.b16 %v1953
    %v2176 = vunpack.c.h.b16 %v1953
    %v2177 = vunpack.c.l.b16 %v1954
    %v2178 = vunpack.c.h.b16 %v1954
    %v2179 = vunpack.c.l.b16 %v1955
    %v2180 = vunpack.c.h.b16 %v1955
    %v2181 = vunpack.c.l.b16 %v1956
    %v2182 = vunpack.c.h.b16 %v1956
    %v2183 = vunpack.c.l.b16 %v1957
    %v2184 = vunpack.c.h.b16 %v1957
    %v2185 = vunpack.c.l.b16 %v1958
    %v2186 = vunpack.c.h.b16 %v1958
    %v2187 = vunpack.c.l.b16 %v1959
    %v2188 = vunpack.c.h.b16 %v1959
    %v2189 = vunpack.c.l.b16 %v1960
    %v2190 = vunpack.c.h.b16 %v1960
    %v2191 = vunpack.c.l.b16 %v1961
    %v2192 = vunpack.c.h.b16 %v1961
    %v2193 = vunpack.c.l.b16 %v1962
    %v2194 = vunpack.c.h.b16 %v1962
    %v2195 = vunpack.c.l.b16 %v1963
    %v2196 = vunpack.c.h.b16 %v1963
    %v2197 = vunpack.c.l.b16 %v1964
    %v2198 = vunpack.c.h.b16 %v1964
    %v2199 = vunpack.c.l.b16 %v1965
    %v2200 = vunpack.c.h.b16 %v1965
    %v2201 = vunpack.c.l.b16 %v1966
    %v2202 = vunpack.c.h.b16 %v1966
    %v2203 = vunpack.c.l.b16 %v1967
    %v2204 = vunpack.c.h.b16 %v1967
    %v2205 = vunpack.c.l.b16 %v1968
    %v2206 = vunpack.c.h.b16 %v1968
    %v2207 = vunpack.c.l.b16 %v1969
    %v2208 = vunpack.c.h.b16 %v1969
    %v2209 = vunpack.c.l.b16 %v1970
    %v2210 = vunpack.c.h.b16 %v1970
    %v2211 = vunpack.c.l.b16 %v1971
    %v2212 = vunpack.c.h.b16 %v1971
    %v2213 = vunpack.c.l.b16 %v1972
    %v2214 = vunpack.c.h.b16 %v1972
    %v2215 = vunpack.c.l.b16 %v1973
    %v2216 = vunpack.c.h.b16 %v1973
    %v2217 = vunpack.c.l.b16 %v1974
    %v2218 = vunpack.c.h.b16 %v1974
    %v2219 = vunpack.c.l.b16 %v1975
    %v2220 = vunpack.c.h.b16 %v1975
    %v2221 = vunpack.c.l.b16 %v1976
    %v2222 = vunpack.c.h.b16 %v1976
    %v2223 = vunpack.c.l.b16 %v1977
    %v2224 = vunpack.c.h.b16 %v1977
    %v2225 = vunpack.c.l.b16 %v1978
    %v2226 = vunpack.c.h.b16 %v1978
    %v2227 = vunpack.c.l.b16 %v1979
    %v2228 = vunpack.c.h.b16 %v1979
    %v2229 = vunpack.c.l.b16 %v1980
    %v2230 = vunpack.c.h.b16 %v1980
    %v2231 = vunpack.c.l.b16 %v1981
    %v2232 = vunpack.c.h.b16 %v1981
    %v2233 = vunpack.c.l.b16 %v1982
    %v2234 = vunpack.c.h.b16 %v1982
    %v2235 = vunpack.c.l.b16 %v1983
    %v2236 = vunpack.c.h.b16 %v1983
    %v2237 = vunpack.c.l.b16 %v1984
    %v2238 = vunpack.c.h.b16 %v1984
    %v2239 = vunpack.c.l.b16 %v1985
    %v2240 = vunpack.c.h.b16 %v1985
    %v2241 = vunpack.c.l.b16 %v1986
    %v2242 = vunpack.c.h.b16 %v1986
    %v2243 = vunpack.c.l.b16 %v1987
    %v2244 = vunpack.c.h.b16 %v1987
    %v2245 = vunpack.c.l.b16 %v1988
    %v2246 = vunpack.c.h.b16 %v1988
    %v2247 = vunpack.c.l.b16 %v1989
    %v2248 = vunpack.c.h.b16 %v1989
    %v2249 = vunpack.c.l.b16 %v1990
    %v2250 = vunpack.c.h.b16 %v1990
    %v2251 = vunpack.c.l.b16 %v1991
    %v2252 = vunpack.c.h.b16 %v1991
    %v2253 = vunpack.c.l.b16 %v1992
    %v2254 = vunpack.c.h.b16 %v1992
    %v2255 = vunpack.c.l.b16 %v1993
    %v2256 = vunpack.c.h.b16 %v1993
    %v2257 = vunpack.c.l.b16 %v1994
    %v2258 = vunpack.c.h.b16 %v1994
    %v2259 = vunpack.c.l.b16 %v1995
    %v2260 = vunpack.c.h.b16 %v1995
    %v2261 = vunpack.c.l.b16 %v1996
    %v2262 = vunpack.c.h.b16 %v1996
    %v2263 = vunpack.c.l.b16 %v1997
    %v2264 = vunpack.c.h.b16 %v1997
    %v2265 = vunpack.c.l.b16 %v1998
    %v2266 = vunpack.c.h.b16 %v1998
    %v2267 = vunpack.c.l.b16 %v1999
    %v2268 = vunpack.c.h.b16 %v1999
    %v2269 = vunpack.c.l.b16 %v2000
    %v2270 = vunpack.c.h.b16 %v2000
    %v2271 = vunpack.c.l.b16 %v2001
    %v2272 = vunpack.c.h.b16 %v2001
    %v2273 = vunpack.c.l.b16 %v2002
    %v2274 = vunpack.c.h.b16 %v2002
    %v2275 = vunpack.c.l.b16 %v2003
    %v2276 = vunpack.c.h.b16 %v2003
    %v2277 = vunpack.c.l.b16 %v2004
    %v2278 = vunpack.c.h.b16 %v2004
    %v2279 = vunpack.c.l.b16 %v2005
    %v2280 = vunpack.c.h.b16 %v2005
    %v2281 = vunpack.c.l.b16 %v2006
    %v2282 = vunpack.c.h.b16 %v2006
    %v2283 = vunpack.c.l.b16 %v2007
    %v2284 = vunpack.c.h.b16 %v2007
    %v2285 = vunpack.c.l.b16 %v2008
    %v2286 = vunpack.c.h.b16 %v2008
    %v2287 = vunpack.c.l.b16 %v2009
    %v2288 = vunpack.c.h.b16 %v2009
    %v2289 = vunpack.c.l.b16 %v2010
    %v2290 = vunpack.c.h.b16 %v2010
    %v2291 = vunpack.c.l.b16 %v2011
    %v2292 = vunpack.c.h.b16 %v2011
    %v2293 = vunpack.c.l.b16 %v2012
    %v2294 = vunpack.c.h.b16 %v2012
    %v2295 = vunpack.c.l.b16 %v2013
    %v2296 = vunpack.c.h.b16 %v2013
    %v2297 = vunpack.c.l.b16 %v2014
    %v2298 = vunpack.c.h.b16 %v2014
    %v2299 = vunpack.c.l.b16 %v2015
    %v2300 = vunpack.c.h.b16 %v2015
    %v2301 = vunpack.c.l.b16 %v2016
    %v2302 = vunpack.c.h.b16 %v2016
    %v2303 = vunpack.c.l.b16 %v2017
    %v2304 = vunpack.c.h.b16 %v2017
    %v2305 = vunpack.c.l.b16 %v2018
    %v2306 = vunpack.c.h.b16 %v2018
    %v2307 = vpack.c.b16 %v2119, %v2115
    %v2308 = vpack.c.b16 %v2120, %v2116
    %v2309 = vpack.c.b16 %v2121, %v2117
    %v2310 = vpack.c.b16 %v2122, %v2118
    %v2311 = vpack.c.b16 %v2127, %v2123
    %v2312 = vpack.c.b16 %v2128, %v2124
    %v2313 = vpack.c.b16 %v2129, %v2125
    %v2314 = vpack.c.b16 %v2130, %v2126
    %v2315 = vpack.c.b16 %v2135, %v2131
    %v2316 = vpack.c.b16 %v2136, %v2132
    %v2317 = vpack.c.b16 %v2137, %v2133
    %v2318 = vpack.c.b16 %v2138, %v2134
    %v2319 = vpack.c.b16 %v2143, %v2139
    %v2320 = vpack.c.b16 %v2144, %v2140
    %v2321 = vpack.c.b16 %v2145, %v2141
    %v2322 = vpack.c.b16 %v2146, %v2142
    %v2323 = vpack.c.b16 %v2151, %v2147
    %v2324 = vpack.c.b16 %v2152, %v2148
    %v2325 = vpack.c.b16 %v2153, %v2149
    %v2326 = vpack.c.b16 %v2154, %v2150
    %v2327 = vpack.c.b16 %v2159, %v2155
    %v2328 = vpack.c.b16 %v2160, %v2156
    %v2329 = vpack.c.b16 %v2161, %v2157
    %v2330 = vpack.c.b16 %v2162, %v2158
    %v2331 = vpack.c.b16 %v2167, %v2163
    %v2332 = vpack.c.b16 %v2168, %v2164
    %v2333 = vpack.c.b16 %v2169, %v2165
    %v2334 = vpack.c.b16 %v2170, %v2166
    %v2335 = vpack.c.b16 %v2175, %v2171
    %v2336 = vpack.c.b16 %v2176, %v2172
    %v2337 = vpack.c.b16 %v2177, %v2173
    %v2338 = vpack.c.b16 %v2178, %v2174
    %v2339 = vpack.c.b16 %v2183, %v2179
    %v2340 = vpack.c.b16 %v2184, %v2180
    %v2341 = vpack.c.b16 %v2185, %v2181
    %v2342 = vpack.c.b16 %v2186, %v2182
    %v2343 = vpack.c.b16 %v2191, %v2187
    %v2344 = vpack.c.b16 %v2192, %v2188
    %v2345 = vpack.c.b16 %v2193, %v2189
    %v2346 = vpack.c.b16 %v2194, %v2190
    %v2347 = vpack.c.b16 %v2199, %v2195
    %v2348 = vpack.c.b16 %v2200, %v2196
    %v2349 = vpack.c.b16 %v2201, %v2197
    %v2350 = vpack.c.b16 %v2202, %v2198
    %v2351 = vpack.c.b16 %v2207, %v2203
    %v2352 = vpack.c.b16 %v2208, %v2204
    %v2353 = vpack.c.b16 %v2209, %v2205
    %v2354 = vpack.c.b16 %v2210, %v2206
    %v2355 = vpack.c.b16 %v2215, %v2211
    %v2356 = vpack.c.b16 %v2216, %v2212
    %v2357 = vpack.c.b16 %v2217, %v2213
    %v2358 = vpack.c.b16 %v2218, %v2214
    %v2359 = vpack.c.b16 %v2223, %v2219
    %v2360 = vpack.c.b16 %v2224, %v2220
    %v2361 = vpack.c.b16 %v2225, %v2221
    %v2362 = vpack.c.b16 %v2226, %v2222
    %v2363 = vpack.c.b16 %v2231, %v2227
    %v2364 = vpack.c.b16 %v2232, %v2228
    %v2365 = vpack.c.b16 %v2233, %v2229
    %v2366 = vpack.c.b16 %v2234, %v2230
    %v2367 = vpack.c.b16 %v2239, %v2235
    %v2368 = vpack.c.b16 %v2240, %v2236
    %v2369 = vpack.c.b16 %v2241, %v2237
    %v2370 = vpack.c.b16 %v2242, %v2238
    %v2371 = vpack.c.b16 %v2247, %v2243
    %v2372 = vpack.c.b16 %v2248, %v2244
    %v2373 = vpack.c.b16 %v2249, %v2245
    %v2374 = vpack.c.b16 %v2250, %v2246
    %v2375 = vpack.c.b16 %v2255, %v2251
    %v2376 = vpack.c.b16 %v2256, %v2252
    %v2377 = vpack.c.b16 %v2257, %v2253
    %v2378 = vpack.c.b16 %v2258, %v2254
    %v2379 = vpack.c.b16 %v2263, %v2259
    %v2380 = vpack.c.b16 %v2264, %v2260
    %v2381 = vpack.c.b16 %v2265, %v2261
    %v2382 = vpack.c.b16 %v2266, %v2262
    %v2383 = vpack.c.b16 %v2271, %v2267
    %v2384 = vpack.c.b16 %v2272, %v2268
    %v2385 = vpack.c.b16 %v2273, %v2269
    %v2386 = vpack.c.b16 %v2274, %v2270
    %v2387 = vpack.c.b16 %v2279, %v2275
    %v2388 = vpack.c.b16 %v2280, %v2276
    %v2389 = vpack.c.b16 %v2281, %v2277
    %v2390 = vpack.c.b16 %v2282, %v2278
    %v2391 = vpack.c.b16 %v2287, %v2283
    %v2392 = vpack.c.b16 %v2288, %v2284
    %v2393 = vpack.c.b16 %v2289, %v2285
    %v2394 = vpack.c.b16 %v2290, %v2286
    %v2395 = vpack.c.b16 %v2295, %v2291
    %v2396 = vpack.c.b16 %v2296, %v2292
    %v2397 = vpack.c.b16 %v2297, %v2293
    %v2398 = vpack.c.b16 %v2298, %v2294
    %v2399 = vpack.c.b16 %v2303, %v2299
    %v2400 = vpack.c.b16 %v2304, %v2300
    %v2401 = vpack.c.b16 %v2305, %v2301
    %v2402 = vpack.c.b16 %v2306, %v2302
    %2499 = vmatprep.subr.bf16.mxu0 %v2308
    %2500 = vmatpush1.bf16.msra.mxu0 %v2307
    %2501 = vmatprep.subr.bf16.mxu0 %v2312
    %2502 = vmatpush1.bf16.msra.mxu0 %v2311
    %2503 = vmatprep.subr.bf16.mxu0 %v2316
    %2504 = vmatpush1.bf16.msra.mxu0 %v2315
    %2505 = vmatprep.subr.bf16.mxu0 %v2320
    %2506 = vmatpush1.bf16.msra.mxu0 %v2319
    %2507 = vmatprep.subr.bf16.mxu0 %v2324
    %2508 = vmatpush1.bf16.msra.mxu0 %v2323
    %2509 = vmatprep.subr.bf16.mxu0 %v2328
    %2510 = vmatpush1.bf16.msra.mxu0 %v2327
    %2511 = vmatprep.subr.bf16.mxu0 %v2332
    %2512 = vmatpush1.bf16.msra.mxu0 %v2331
    %2513 = vmatprep.subr.bf16.mxu0 %v2336
    %2514 = vmatpush1.bf16.msra.mxu0 %v2335
    %2515 = vmatprep.subr.bf16.mxu0 %v2340
    %2516 = vmatpush1.bf16.msra.mxu0 %v2339
    %2517 = vmatprep.subr.bf16.mxu0 %v2344
    %2518 = vmatpush1.bf16.msra.mxu0 %v2343
    %2519 = vmatprep.subr.bf16.mxu0 %v2348
    %2520 = vmatpush1.bf16.msra.mxu0 %v2347
    %2521 = vmatprep.subr.bf16.mxu0 %v2352
    %2522 = vmatpush1.bf16.msra.mxu0 %v2351
    %2523 = vmatprep.subr.bf16.mxu0 %v2356
    %2524 = vmatpush1.bf16.msra.mxu0 %v2355
    %2525 = vmatprep.subr.bf16.mxu0 %v2360
    %2526 = vmatpush1.bf16.msra.mxu0 %v2359
    %2527 = vmatprep.subr.bf16.mxu0 %v2364
    %2528 = vmatpush1.bf16.msra.mxu0 %v2363
    %2529 = vmatprep.subr.bf16.mxu0 %v2368
    %2530 = vmatpush1.bf16.msra.mxu0 %v2367
    %2531 = vmatprep.mubr.bf16.mxu0 %v1920
    %2532 = vmatmul.mubr.bf16.gmra.mrb[0].mxu0 %v1919
    %v2533 = vpop.f32.mrb[0].mxu0
    %v2534 = vadd.f32 0.0, %v2533
    %v2535 = vpop.f32.mrb[0].mxu0
    %v2536 = vadd.f32 0.0, %v2535
    %v2537 = vpop.f32.mrb[0].mxu0
    %v2538 = vadd.f32 0.0, %v2537
    %v2539 = vpop.f32.mrb[0].mxu0
    %v2540 = vadd.f32 0.0, %v2539
    %2541 = vdwg.mxu0
    %2542 = vmatprep.subr.bf16.mxu0 %v2372
    %2543 = vmatpush1.bf16.msra.mxu0 %v2371
    %2544 = vmatprep.subr.bf16.mxu0 %v2376
    %2545 = vmatpush1.bf16.msra.mxu0 %v2375
    %2546 = vmatprep.subr.bf16.mxu0 %v2380
    %2547 = vmatpush1.bf16.msra.mxu0 %v2379
    %2548 = vmatprep.subr.bf16.mxu0 %v2384
    %2549 = vmatpush1.bf16.msra.mxu0 %v2383
    %2550 = vmatprep.subr.bf16.mxu0 %v2388
    %2551 = vmatpush1.bf16.msra.mxu0 %v2387
    %2552 = vmatprep.subr.bf16.mxu0 %v2392
    %2553 = vmatpush1.bf16.msra.mxu0 %v2391
    %2554 = vmatprep.subr.bf16.mxu0 %v2396
    %2555 = vmatpush1.bf16.msra.mxu0 %v2395
    %2556 = vmatprep.subr.bf16.mxu0 %v2400
    %2557 = vmatpush1.bf16.msra.mxu0 %v2399
    %2558 = vmatprep.subr.bf16.mxu0 0
    %2559 = vmatpush1.bf16.msra.mxu0 0
    %2560 = vmatprep.subr.bf16.mxu0 0
    %2561 = vmatpush1.bf16.msra.mxu0 0
    %2562 = vmatprep.subr.bf16.mxu0 0
    %2563 = vmatpush1.bf16.msra.mxu0 0
    %2564 = vmatprep.subr.bf16.mxu0 0
    %2565 = vmatpush1.bf16.msra.mxu0 0
    %2566 = vmatprep.subr.bf16.mxu0 0
    %2567 = vmatpush1.bf16.msra.mxu0 0
    %2568 = vmatprep.subr.bf16.mxu0 0
    %2569 = vmatpush1.bf16.msra.mxu0 0
    %2570 = vmatprep.subr.bf16.mxu0 0
    %2571 = vmatpush1.bf16.msra.mxu0 0
    %2572 = vmatprep.subr.bf16.mxu0 0
    %2573 = vmatpush1.bf16.msra.mxu0 0
    %2574 = vmatprep.mubr.bf16.mxu0 0
    %2575 = vmatmul.mubr.bf16.gmra.mrb[0].mxu0 %v1921
    %v2576 = vpop.f32.mrb[0].mxu0
    %v2577 = vadd.f32 %v2534, %v2576
    %v2578 = vpop.f32.mrb[0].mxu0
    %v2579 = vadd.f32 %v2536, %v2578
    %v2580 = vpop.f32.mrb[0].mxu0
    %v2581 = vadd.f32 %v2538, %v2580
    %v2582 = vpop.f32.mrb[0].mxu0
    %v2583 = vadd.f32 %v2540, %v2582
    %2584 = vdwg.mxu0
    %2585 = vmatprep.subr.bf16.mxu0 %v2310
    %2586 = vmatpush1.bf16.msra.mxu0 %v2309
    %2587 = vmatprep.subr.bf16.mxu0 %v2314
    %2588 = vmatpush1.bf16.msra.mxu0 %v2313
    %2589 = vmatprep.subr.bf16.mxu0 %v2318
    %2590 = vmatpush1.bf16.msra.mxu0 %v2317
    %2591 = vmatprep.subr.bf16.mxu0 %v2322
    %2592 = vmatpush1.bf16.msra.mxu0 %v2321
    %2593 = vmatprep.subr.bf16.mxu0 %v2326
    %2594 = vmatpush1.bf16.msra.mxu0 %v2325
    %2595 = vmatprep.subr.bf16.mxu0 %v2330
    %2596 = vmatpush1.bf16.msra.mxu0 %v2329
    %2597 = vmatprep.subr.bf16.mxu0 %v2334
    %2598 = vmatpush1.bf16.msra.mxu0 %v2333
    %2599 = vmatprep.subr.bf16.mxu0 %v2338
    %2600 = vmatpush1.bf16.msra.mxu0 %v2337
    %2601 = vmatprep.subr.bf16.mxu0 %v2342
    %2602 = vmatpush1.bf16.msra.mxu0 %v2341
    %2603 = vmatprep.subr.bf16.mxu0 %v2346
    %2604 = vmatpush1.bf16.msra.mxu0 %v2345
    %2605 = vmatprep.subr.bf16.mxu0 %v2350
    %2606 = vmatpush1.bf16.msra.mxu0 %v2349
    %2607 = vmatprep.subr.bf16.mxu0 %v2354
    %2608 = vmatpush1.bf16.msra.mxu0 %v2353
    %2609 = vmatprep.subr.bf16.mxu0 %v2358
    %2610 = vmatpush1.bf16.msra.mxu0 %v2357
    %2611 = vmatprep.subr.bf16.mxu0 %v2362
    %2612 = vmatpush1.bf16.msra.mxu0 %v2361
    %2613 = vmatprep.subr.bf16.mxu0 %v2366
    %2614 = vmatpush1.bf16.msra.mxu0 %v2365
    %2615 = vmatprep.subr.bf16.mxu0 %v2370
    %2616 = vmatpush1.bf16.msra.mxu0 %v2369
    %2617 = vmatprep.mubr.bf16.mxu0 %v1920
    %2618 = vmatmul.mubr.bf16.gmra.mrb[0].mxu0 %v1919
    %v2619 = vpop.f32.mrb[0].mxu0
    %v2620 = vadd.f32 0.0, %v2619
    %v2621 = vpop.f32.mrb[0].mxu0
    %v2622 = vadd.f32 0.0, %v2621
    %v2623 = vpop.f32.mrb[0].mxu0
    %v2624 = vadd.f32 0.0, %v2623
    %v2625 = vpop.f32.mrb[0].mxu0
    %v2626 = vadd.f32 0.0, %v2625
    %2627 = vdwg.mxu0
    %2628 = vmatprep.subr.bf16.mxu0 %v2374
    %2629 = vmatpush1.bf16.msra.mxu0 %v2373
    %2630 = vmatprep.subr.bf16.mxu0 %v2378
    %2631 = vmatpush1.bf16.msra.mxu0 %v2377
    %2632 = vmatprep.subr.bf16.mxu0 %v2382
    %2633 = vmatpush1.bf16.msra.mxu0 %v2381
    %2634 = vmatprep.subr.bf16.mxu0 %v2386
    %2635 = vmatpush1.bf16.msra.mxu0 %v2385
    %2636 = vmatprep.subr.bf16.mxu0 %v2390
    %2637 = vmatpush1.bf16.msra.mxu0 %v2389
    %2638 = vmatprep.subr.bf16.mxu0 %v2394
    %2639 = vmatpush1.bf16.msra.mxu0 %v2393
    %2640 = vmatprep.subr.bf16.mxu0 %v2398
    %2641 = vmatpush1.bf16.msra.mxu0 %v2397
    %2642 = vmatprep.subr.bf16.mxu0 %v2402
    %2643 = vmatpush1.bf16.msra.mxu0 %v2401
    %2644 = vmatprep.subr.bf16.mxu0 0
    %2645 = vmatpush1.bf16.msra.mxu0 0
    %2646 = vmatprep.subr.bf16.mxu0 0
    %2647 = vmatpush1.bf16.msra.mxu0 0
    %2648 = vmatprep.subr.bf16.mxu0 0
    %2649 = vmatpush1.bf16.msra.mxu0 0
    %2650 = vmatprep.subr.bf16.mxu0 0
    %2651 = vmatpush1.bf16.msra.mxu0 0
    %2652 = vmatprep.subr.bf16.mxu0 0
    %2653 = vmatpush1.bf16.msra.mxu0 0
    %2654 = vmatprep.subr.bf16.mxu0 0
    %2655 = vmatpush1.bf16.msra.mxu0 0
    %2656 = vmatprep.subr.bf16.mxu0 0
    %2657 = vmatpush1.bf16.msra.mxu0 0
    %2658 = vmatprep.subr.bf16.mxu0 0
    %2659 = vmatpush1.bf16.msra.mxu0 0
    %2660 = vmatprep.mubr.bf16.mxu0 0
    %2661 = vmatmul.mubr.bf16.gmra.mrb[0].mxu0 %v1921
    %v2662 = vpop.f32.mrb[0].mxu0
    %v2663 = vadd.f32 %v2620, %v2662
    %v2664 = vpop.f32.mrb[0].mxu0
    %v2665 = vadd.f32 %v2622, %v2664
    %v2666 = vpop.f32.mrb[0].mxu0
    %v2667 = vadd.f32 %v2624, %v2666
    %v2668 = vpop.f32.mrb[0].mxu0
    %v2669 = vadd.f32 %v2626, %v2668
    %2670 = vdwg.mxu0
    %v2767 = vunpack.c.l.b16 %v1775
    %v2768 = vunpack.c.h.b16 %v1775
    %v2769 = vunpack.c.l.b16 %v1776
    %v2770 = vunpack.c.h.b16 %v1776
    %v2771 = vunpack.c.l.b16 %v1777
    %v2772 = vunpack.c.h.b16 %v1777
    %v2773 = vunpack.c.l.b16 %v1778
    %v2774 = vunpack.c.h.b16 %v1778
    %v2775 = vunpack.c.l.b16 %v1779
    %v2776 = vunpack.c.h.b16 %v1779
    %v2777 = vunpack.c.l.b16 %v1780
    %v2778 = vunpack.c.h.b16 %v1780
    %v2779 = vunpack.c.l.b16 %v1781
    %v2780 = vunpack.c.h.b16 %v1781
    %v2781 = vunpack.c.l.b16 %v1782
    %v2782 = vunpack.c.h.b16 %v1782
    %v2783 = vunpack.c.l.b16 %v1783
    %v2784 = vunpack.c.h.b16 %v1783
    %v2785 = vunpack.c.l.b16 %v1784
    %v2786 = vunpack.c.h.b16 %v1784
    %v2787 = vunpack.c.l.b16 %v1785
    %v2788 = vunpack.c.h.b16 %v1785
    %v2789 = vunpack.c.l.b16 %v1786
    %v2790 = vunpack.c.h.b16 %v1786
    %v2791 = vunpack.c.l.b16 %v1787
    %v2792 = vunpack.c.h.b16 %v1787
    %v2793 = vunpack.c.l.b16 %v1788
    %v2794 = vunpack.c.h.b16 %v1788
    %v2795 = vunpack.c.l.b16 %v1789
    %v2796 = vunpack.c.h.b16 %v1789
    %v2797 = vunpack.c.l.b16 %v1790
    %v2798 = vunpack.c.h.b16 %v1790
    %v2799 = vunpack.c.l.b16 %v1791
    %v2800 = vunpack.c.h.b16 %v1791
    %v2801 = vunpack.c.l.b16 %v1792
    %v2802 = vunpack.c.h.b16 %v1792
    %v2803 = vunpack.c.l.b16 %v1793
    %v2804 = vunpack.c.h.b16 %v1793
    %v2805 = vunpack.c.l.b16 %v1794
    %v2806 = vunpack.c.h.b16 %v1794
    %v2807 = vunpack.c.l.b16 %v1795
    %v2808 = vunpack.c.h.b16 %v1795
    %v2809 = vunpack.c.l.b16 %v1796
    %v2810 = vunpack.c.h.b16 %v1796
    %v2811 = vunpack.c.l.b16 %v1797
    %v2812 = vunpack.c.h.b16 %v1797
    %v2813 = vunpack.c.l.b16 %v1798
    %v2814 = vunpack.c.h.b16 %v1798
    %v2815 = vunpack.c.l.b16 %v1799
    %v2816 = vunpack.c.h.b16 %v1799
    %v2817 = vunpack.c.l.b16 %v1800
    %v2818 = vunpack.c.h.b16 %v1800
    %v2819 = vunpack.c.l.b16 %v1801
    %v2820 = vunpack.c.h.b16 %v1801
    %v2821 = vunpack.c.l.b16 %v1802
    %v2822 = vunpack.c.h.b16 %v1802
    %v2823 = vunpack.c.l.b16 %v1803
    %v2824 = vunpack.c.h.b16 %v1803
    %v2825 = vunpack.c.l.b16 %v1804
    %v2826 = vunpack.c.h.b16 %v1804
    %v2827 = vunpack.c.l.b16 %v1805
    %v2828 = vunpack.c.h.b16 %v1805
    %v2829 = vunpack.c.l.b16 %v1806
    %v2830 = vunpack.c.h.b16 %v1806
    %v2831 = vunpack.c.l.b16 %v1807
    %v2832 = vunpack.c.h.b16 %v1807
    %v2833 = vunpack.c.l.b16 %v1808
    %v2834 = vunpack.c.h.b16 %v1808
    %v2835 = vunpack.c.l.b16 %v1809
    %v2836 = vunpack.c.h.b16 %v1809
    %v2837 = vunpack.c.l.b16 %v1810
    %v2838 = vunpack.c.h.b16 %v1810
    %v2839 = vunpack.c.l.b16 %v1811
    %v2840 = vunpack.c.h.b16 %v1811
    %v2841 = vunpack.c.l.b16 %v1812
    %v2842 = vunpack.c.h.b16 %v1812
    %v2843 = vunpack.c.l.b16 %v1813
    %v2844 = vunpack.c.h.b16 %v1813
    %v2845 = vunpack.c.l.b16 %v1814
    %v2846 = vunpack.c.h.b16 %v1814
    %v2847 = vunpack.c.l.b16 %v1815
    %v2848 = vunpack.c.h.b16 %v1815
    %v2849 = vunpack.c.l.b16 %v1816
    %v2850 = vunpack.c.h.b16 %v1816
    %v2851 = vunpack.c.l.b16 %v1817
    %v2852 = vunpack.c.h.b16 %v1817
    %v2853 = vunpack.c.l.b16 %v1818
    %v2854 = vunpack.c.h.b16 %v1818
    %v2855 = vunpack.c.l.b16 %v1819
    %v2856 = vunpack.c.h.b16 %v1819
    %v2857 = vunpack.c.l.b16 %v1820
    %v2858 = vunpack.c.h.b16 %v1820
    %v2859 = vunpack.c.l.b16 %v1821
    %v2860 = vunpack.c.h.b16 %v1821
    %v2861 = vunpack.c.l.b16 %v1822
    %v2862 = vunpack.c.h.b16 %v1822
    %v2863 = vunpack.c.l.b16 %v1823
    %v2864 = vunpack.c.h.b16 %v1823
    %v2865 = vunpack.c.l.b16 %v1824
    %v2866 = vunpack.c.h.b16 %v1824
    %v2867 = vunpack.c.l.b16 %v1825
    %v2868 = vunpack.c.h.b16 %v1825
    %v2869 = vunpack.c.l.b16 %v1826
    %v2870 = vunpack.c.h.b16 %v1826
    %v2871 = vunpack.c.l.b16 %v1827
    %v2872 = vunpack.c.h.b16 %v1827
    %v2873 = vunpack.c.l.b16 %v1828
    %v2874 = vunpack.c.h.b16 %v1828
    %v2875 = vunpack.c.l.b16 %v1829
    %v2876 = vunpack.c.h.b16 %v1829
    %v2877 = vunpack.c.l.b16 %v1830
    %v2878 = vunpack.c.h.b16 %v1830
    %v2879 = vunpack.c.l.b16 %v1831
    %v2880 = vunpack.c.h.b16 %v1831
    %v2881 = vunpack.c.l.b16 %v1832
    %v2882 = vunpack.c.h.b16 %v1832
    %v2883 = vunpack.c.l.b16 %v1833
    %v2884 = vunpack.c.h.b16 %v1833
    %v2885 = vunpack.c.l.b16 %v1834
    %v2886 = vunpack.c.h.b16 %v1834
    %v2887 = vunpack.c.l.b16 %v1835
    %v2888 = vunpack.c.h.b16 %v1835
    %v2889 = vunpack.c.l.b16 %v1836
    %v2890 = vunpack.c.h.b16 %v1836
    %v2891 = vunpack.c.l.b16 %v1837
    %v2892 = vunpack.c.h.b16 %v1837
    %v2893 = vunpack.c.l.b16 %v1838
    %v2894 = vunpack.c.h.b16 %v1838
    %v2895 = vunpack.c.l.b16 %v1839
    %v2896 = vunpack.c.h.b16 %v1839
    %v2897 = vunpack.c.l.b16 %v1840
    %v2898 = vunpack.c.h.b16 %v1840
    %v2899 = vunpack.c.l.b16 %v1841
    %v2900 = vunpack.c.h.b16 %v1841
    %v2901 = vunpack.c.l.b16 %v1842
    %v2902 = vunpack.c.h.b16 %v1842
    %v2903 = vunpack.c.l.b16 %v1843
    %v2904 = vunpack.c.h.b16 %v1843
    %v2905 = vunpack.c.l.b16 %v1844
    %v2906 = vunpack.c.h.b16 %v1844
    %v2907 = vunpack.c.l.b16 %v1845
    %v2908 = vunpack.c.h.b16 %v1845
    %v2909 = vunpack.c.l.b16 %v1846
    %v2910 = vunpack.c.h.b16 %v1846
    %v2911 = vunpack.c.l.b16 %v1847
    %v2912 = vunpack.c.h.b16 %v1847
    %v2913 = vunpack.c.l.b16 %v1848
    %v2914 = vunpack.c.h.b16 %v1848
    %v2915 = vunpack.c.l.b16 %v1849
    %v2916 = vunpack.c.h.b16 %v1849
    %v2917 = vunpack.c.l.b16 %v1850
    %v2918 = vunpack.c.h.b16 %v1850
    %v2919 = vunpack.c.l.b16 %v1851
    %v2920 = vunpack.c.h.b16 %v1851
    %v2921 = vunpack.c.l.b16 %v1852
    %v2922 = vunpack.c.h.b16 %v1852
    %v2923 = vunpack.c.l.b16 %v1853
    %v2924 = vunpack.c.h.b16 %v1853
    %v2925 = vunpack.c.l.b16 %v1854
    %v2926 = vunpack.c.h.b16 %v1854
    %v2927 = vunpack.c.l.b16 %v1855
    %v2928 = vunpack.c.h.b16 %v1855
    %v2929 = vunpack.c.l.b16 %v1856
    %v2930 = vunpack.c.h.b16 %v1856
    %v2931 = vunpack.c.l.b16 %v1857
    %v2932 = vunpack.c.h.b16 %v1857
    %v2933 = vunpack.c.l.b16 %v1858
    %v2934 = vunpack.c.h.b16 %v1858
    %v2935 = vunpack.c.l.b16 %v1859
    %v2936 = vunpack.c.h.b16 %v1859
    %v2937 = vunpack.c.l.b16 %v1860
    %v2938 = vunpack.c.h.b16 %v1860
    %v2939 = vunpack.c.l.b16 %v1861
    %v2940 = vunpack.c.h.b16 %v1861
    %v2941 = vunpack.c.l.b16 %v1862
    %v2942 = vunpack.c.h.b16 %v1862
    %v2943 = vunpack.c.l.b16 %v1863
    %v2944 = vunpack.c.h.b16 %v1863
    %v2945 = vunpack.c.l.b16 %v1864
    %v2946 = vunpack.c.h.b16 %v1864
    %v2947 = vunpack.c.l.b16 %v1865
    %v2948 = vunpack.c.h.b16 %v1865
    %v2949 = vunpack.c.l.b16 %v1866
    %v2950 = vunpack.c.h.b16 %v1866
    %v2951 = vunpack.c.l.b16 %v1867
    %v2952 = vunpack.c.h.b16 %v1867
    %v2953 = vunpack.c.l.b16 %v1868
    %v2954 = vunpack.c.h.b16 %v1868
    %v2955 = vunpack.c.l.b16 %v1869
    %v2956 = vunpack.c.h.b16 %v1869
    %v2957 = vunpack.c.l.b16 %v1870
    %v2958 = vunpack.c.h.b16 %v1870
    %v2959 = vpack.c.b16 %v2771, %v2767
    %v2960 = vpack.c.b16 %v2772, %v2768
    %v2961 = vpack.c.b16 %v2773, %v2769
    %v2962 = vpack.c.b16 %v2774, %v2770
    %v2963 = vpack.c.b16 %v2779, %v2775
    %v2964 = vpack.c.b16 %v2780, %v2776
    %v2965 = vpack.c.b16 %v2781, %v2777
    %v2966 = vpack.c.b16 %v2782, %v2778
    %v2967 = vpack.c.b16 %v2787, %v2783
    %v2968 = vpack.c.b16 %v2788, %v2784
    %v2969 = vpack.c.b16 %v2789, %v2785
    %v2970 = vpack.c.b16 %v2790, %v2786
    %v2971 = vpack.c.b16 %v2795, %v2791
    %v2972 = vpack.c.b16 %v2796, %v2792
    %v2973 = vpack.c.b16 %v2797, %v2793
    %v2974 = vpack.c.b16 %v2798, %v2794
    %v2975 = vpack.c.b16 %v2803, %v2799
    %v2976 = vpack.c.b16 %v2804, %v2800
    %v2977 = vpack.c.b16 %v2805, %v2801
    %v2978 = vpack.c.b16 %v2806, %v2802
    %v2979 = vpack.c.b16 %v2811, %v2807
    %v2980 = vpack.c.b16 %v2812, %v2808
    %v2981 = vpack.c.b16 %v2813, %v2809
    %v2982 = vpack.c.b16 %v2814, %v2810
    %v2983 = vpack.c.b16 %v2819, %v2815
    %v2984 = vpack.c.b16 %v2820, %v2816
    %v2985 = vpack.c.b16 %v2821, %v2817
    %v2986 = vpack.c.b16 %v2822, %v2818
    %v2987 = vpack.c.b16 %v2827, %v2823
    %v2988 = vpack.c.b16 %v2828, %v2824
    %v2989 = vpack.c.b16 %v2829, %v2825
    %v2990 = vpack.c.b16 %v2830, %v2826
    %v2991 = vpack.c.b16 %v2835, %v2831
    %v2992 = vpack.c.b16 %v2836, %v2832
    %v2993 = vpack.c.b16 %v2837, %v2833
    %v2994 = vpack.c.b16 %v2838, %v2834
    %v2995 = vpack.c.b16 %v2843, %v2839
    %v2996 = vpack.c.b16 %v2844, %v2840
    %v2997 = vpack.c.b16 %v2845, %v2841
    %v2998 = vpack.c.b16 %v2846, %v2842
    %v2999 = vpack.c.b16 %v2851, %v2847
    %v3000 = vpack.c.b16 %v2852, %v2848
    %v3001 = vpack.c.b16 %v2853, %v2849
    %v3002 = vpack.c.b16 %v2854, %v2850
    %v3003 = vpack.c.b16 %v2859, %v2855
    %v3004 = vpack.c.b16 %v2860, %v2856
    %v3005 = vpack.c.b16 %v2861, %v2857
    %v3006 = vpack.c.b16 %v2862, %v2858
    %v3007 = vpack.c.b16 %v2867, %v2863
    %v3008 = vpack.c.b16 %v2868, %v2864
    %v3009 = vpack.c.b16 %v2869, %v2865
    %v3010 = vpack.c.b16 %v2870, %v2866
    %v3011 = vpack.c.b16 %v2875, %v2871
    %v3012 = vpack.c.b16 %v2876, %v2872
    %v3013 = vpack.c.b16 %v2877, %v2873
    %v3014 = vpack.c.b16 %v2878, %v2874
    %v3015 = vpack.c.b16 %v2883, %v2879
    %v3016 = vpack.c.b16 %v2884, %v2880
    %v3017 = vpack.c.b16 %v2885, %v2881
    %v3018 = vpack.c.b16 %v2886, %v2882
    %v3019 = vpack.c.b16 %v2891, %v2887
    %v3020 = vpack.c.b16 %v2892, %v2888
    %v3021 = vpack.c.b16 %v2893, %v2889
    %v3022 = vpack.c.b16 %v2894, %v2890
    %v3023 = vpack.c.b16 %v2899, %v2895
    %v3024 = vpack.c.b16 %v2900, %v2896
    %v3025 = vpack.c.b16 %v2901, %v2897
    %v3026 = vpack.c.b16 %v2902, %v2898
    %v3027 = vpack.c.b16 %v2907, %v2903
    %v3028 = vpack.c.b16 %v2908, %v2904
    %v3029 = vpack.c.b16 %v2909, %v2905
    %v3030 = vpack.c.b16 %v2910, %v2906
    %v3031 = vpack.c.b16 %v2915, %v2911
    %v3032 = vpack.c.b16 %v2916, %v2912
    %v3033 = vpack.c.b16 %v2917, %v2913
    %v3034 = vpack.c.b16 %v2918, %v2914
    %v3035 = vpack.c.b16 %v2923, %v2919
    %v3036 = vpack.c.b16 %v2924, %v2920
    %v3037 = vpack.c.b16 %v2925, %v2921
    %v3038 = vpack.c.b16 %v2926, %v2922
    %v3039 = vpack.c.b16 %v2931, %v2927
    %v3040 = vpack.c.b16 %v2932, %v2928
    %v3041 = vpack.c.b16 %v2933, %v2929
    %v3042 = vpack.c.b16 %v2934, %v2930
    %v3043 = vpack.c.b16 %v2939, %v2935
    %v3044 = vpack.c.b16 %v2940, %v2936
    %v3045 = vpack.c.b16 %v2941, %v2937
    %v3046 = vpack.c.b16 %v2942, %v2938
    %v3047 = vpack.c.b16 %v2947, %v2943
    %v3048 = vpack.c.b16 %v2948, %v2944
    %v3049 = vpack.c.b16 %v2949, %v2945
    %v3050 = vpack.c.b16 %v2950, %v2946
    %v3051 = vpack.c.b16 %v2955, %v2951
    %v3052 = vpack.c.b16 %v2956, %v2952
    %v3053 = vpack.c.b16 %v2957, %v2953
    %v3054 = vpack.c.b16 %v2958, %v2954
    %3151 = vmatprep.subr.bf16.mxu0 %v2960
    %3152 = vmatpush1.bf16.msra.mxu0 %v2959
    %3153 = vmatprep.subr.bf16.mxu0 %v2964
    %3154 = vmatpush1.bf16.msra.mxu0 %v2963
    %3155 = vmatprep.subr.bf16.mxu0 %v2968
    %3156 = vmatpush1.bf16.msra.mxu0 %v2967
    %3157 = vmatprep.subr.bf16.mxu0 %v2972
    %3158 = vmatpush1.bf16.msra.mxu0 %v2971
    %3159 = vmatprep.subr.bf16.mxu0 %v2976
    %3160 = vmatpush1.bf16.msra.mxu0 %v2975
    %3161 = vmatprep.subr.bf16.mxu0 %v2980
    %3162 = vmatpush1.bf16.msra.mxu0 %v2979
    %3163 = vmatprep.subr.bf16.mxu0 %v2984
    %3164 = vmatpush1.bf16.msra.mxu0 %v2983
    %3165 = vmatprep.subr.bf16.mxu0 %v2988
    %3166 = vmatpush1.bf16.msra.mxu0 %v2987
    %3167 = vmatprep.subr.bf16.mxu0 %v2992
    %3168 = vmatpush1.bf16.msra.mxu0 %v2991
    %3169 = vmatprep.subr.bf16.mxu0 %v2996
    %3170 = vmatpush1.bf16.msra.mxu0 %v2995
    %3171 = vmatprep.subr.bf16.mxu0 %v3000
    %3172 = vmatpush1.bf16.msra.mxu0 %v2999
    %3173 = vmatprep.subr.bf16.mxu0 %v3004
    %3174 = vmatpush1.bf16.msra.mxu0 %v3003
    %3175 = vmatprep.subr.bf16.mxu0 %v3008
    %3176 = vmatpush1.bf16.msra.mxu0 %v3007
    %3177 = vmatprep.subr.bf16.mxu0 %v3012
    %3178 = vmatpush1.bf16.msra.mxu0 %v3011
    %3179 = vmatprep.subr.bf16.mxu0 %v3016
    %3180 = vmatpush1.bf16.msra.mxu0 %v3015
    %3181 = vmatprep.subr.bf16.mxu0 %v3020
    %3182 = vmatpush1.bf16.msra.mxu0 %v3019
    %3183 = vmatprep.mubr.bf16.mxu0 %v1773
    %3184 = vmatmul.mubr.bf16.gmra.mrb[0].mxu0 %v1772
    %v3185 = vpop.f32.mrb[0].mxu0
    %v3186 = vadd.f32 %v2577, %v3185
    %v3187 = vpop.f32.mrb[0].mxu0
    %v3188 = vadd.f32 %v2579, %v3187
    %v3189 = vpop.f32.mrb[0].mxu0
    %v3190 = vadd.f32 %v2581, %v3189
    %v3191 = vpop.f32.mrb[0].mxu0
    %v3192 = vadd.f32 %v2583, %v3191
    %3193 = vdwg.mxu0
    %3194 = vmatprep.subr.bf16.mxu0 %v3024
    %3195 = vmatpush1.bf16.msra.mxu0 %v3023
    %3196 = vmatprep.subr.bf16.mxu0 %v3028
    %3197 = vmatpush1.bf16.msra.mxu0 %v3027
    %3198 = vmatprep.subr.bf16.mxu0 %v3032
    %3199 = vmatpush1.bf16.msra.mxu0 %v3031
    %3200 = vmatprep.subr.bf16.mxu0 %v3036
    %3201 = vmatpush1.bf16.msra.mxu0 %v3035
    %3202 = vmatprep.subr.bf16.mxu0 %v3040
    %3203 = vmatpush1.bf16.msra.mxu0 %v3039
    %3204 = vmatprep.subr.bf16.mxu0 %v3044
    %3205 = vmatpush1.bf16.msra.mxu0 %v3043
    %3206 = vmatprep.subr.bf16.mxu0 %v3048
    %3207 = vmatpush1.bf16.msra.mxu0 %v3047
    %3208 = vmatprep.subr.bf16.mxu0 %v3052
    %3209 = vmatpush1.bf16.msra.mxu0 %v3051
    %3210 = vmatprep.subr.bf16.mxu0 0
    %3211 = vmatpush1.bf16.msra.mxu0 0
    %3212 = vmatprep.subr.bf16.mxu0 0
    %3213 = vmatpush1.bf16.msra.mxu0 0
    %3214 = vmatprep.subr.bf16.mxu0 0
    %3215 = vmatpush1.bf16.msra.mxu0 0
    %3216 = vmatprep.subr.bf16.mxu0 0
    %3217 = vmatpush1.bf16.msra.mxu0 0
    %3218 = vmatprep.subr.bf16.mxu0 0
    %3219 = vmatpush1.bf16.msra.mxu0 0
    %3220 = vmatprep.subr.bf16.mxu0 0
    %3221 = vmatpush1.bf16.msra.mxu0 0
    %3222 = vmatprep.subr.bf16.mxu0 0
    %3223 = vmatpush1.bf16.msra.mxu0 0
    %3224 = vmatprep.subr.bf16.mxu0 0
    %3225 = vmatpush1.bf16.msra.mxu0 0
    %3226 = vmatprep.mubr.bf16.mxu0 0
    %3227 = vmatmul.mubr.bf16.gmra.mrb[0].mxu0 %v1774
    %v3228 = vpop.f32.mrb[0].mxu0
    %v3229 = vadd.f32 %v3186, %v3228
    %v3230 = vpop.f32.mrb[0].mxu0
    %v3231 = vadd.f32 %v3188, %v3230
    %v3232 = vpop.f32.mrb[0].mxu0
    %v3233 = vadd.f32 %v3190, %v3232
    %v3234 = vpop.f32.mrb[0].mxu0
    %v3235 = vadd.f32 %v3192, %v3234
    %3236 = vdwg.mxu0
    %3237 = vmatprep.subr.bf16.mxu0 %v2962
    %3238 = vmatpush1.bf16.msra.mxu0 %v2961
    %3239 = vmatprep.subr.bf16.mxu0 %v2966
    %3240 = vmatpush1.bf16.msra.mxu0 %v2965
    %3241 = vmatprep.subr.bf16.mxu0 %v2970
    %3242 = vmatpush1.bf16.msra.mxu0 %v2969
    %3243 = vmatprep.subr.bf16.mxu0 %v2974
    %3244 = vmatpush1.bf16.msra.mxu0 %v2973
    %3245 = vmatprep.subr.bf16.mxu0 %v2978
    %3246 = vmatpush1.bf16.msra.mxu0 %v2977
    %3247 = vmatprep.subr.bf16.mxu0 %v2982
    %3248 = vmatpush1.bf16.msra.mxu0 %v2981
    %3249 = vmatprep.subr.bf16.mxu0 %v2986
    %3250 = vmatpush1.bf16.msra.mxu0 %v2985
    %3251 = vmatprep.subr.bf16.mxu0 %v2990
    %3252 = vmatpush1.bf16.msra.mxu0 %v2989
    %3253 = vmatprep.subr.bf16.mxu0 %v2994
    %3254 = vmatpush1.bf16.msra.mxu0 %v2993
    %3255 = vmatprep.subr.bf16.mxu0 %v2998
    %3256 = vmatpush1.bf16.msra.mxu0 %v2997
    %3257 = vmatprep.subr.bf16.mxu0 %v3002
    %3258 = vmatpush1.bf16.msra.mxu0 %v3001
    %3259 = vmatprep.subr.bf16.mxu0 %v3006
    %3260 = vmatpush1.bf16.msra.mxu0 %v3005
    %3261 = vmatprep.subr.bf16.mxu0 %v3010
    %3262 = vmatpush1.bf16.msra.mxu0 %v3009
    %3263 = vmatprep.subr.bf16.mxu0 %v3014
    %3264 = vmatpush1.bf16.msra.mxu0 %v3013
    %3265 = vmatprep.subr.bf16.mxu0 %v3018
    %3266 = vmatpush1.bf16.msra.mxu0 %v3017
    %3267 = vmatprep.subr.bf16.mxu0 %v3022
    %3268 = vmatpush1.bf16.msra.mxu0 %v3021
    %3269 = vmatprep.mubr.bf16.mxu0 %v1773
    %3270 = vmatmul.mubr.bf16.gmra.mrb[0].mxu0 %v1772
    %v3271 = vpop.f32.mrb[0].mxu0
    %v3272 = vadd.f32 %v2663, %v3271
    %v3273 = vpop.f32.mrb[0].mxu0
    %v3274 = vadd.f32 %v2665, %v3273
    %v3275 = vpop.f32.mrb[0].mxu0
    %v3276 = vadd.f32 %v2667, %v3275
    %v3277 = vpop.f32.mrb[0].mxu0
    %v3278 = vadd.f32 %v2669, %v3277
    %3279 = vdwg.mxu0
    %3280 = vmatprep.subr.bf16.mxu0 %v3026
    %3281 = vmatpush1.bf16.msra.mxu0 %v3025
    %3282 = vmatprep.subr.bf16.mxu0 %v3030
    %3283 = vmatpush1.bf16.msra.mxu0 %v3029
    %3284 = vmatprep.subr.bf16.mxu0 %v3034
    %3285 = vmatpush1.bf16.msra.mxu0 %v3033
    %3286 = vmatprep.subr.bf16.mxu0 %v3038
    %3287 = vmatpush1.bf16.msra.mxu0 %v3037
    %3288 = vmatprep.subr.bf16.mxu0 %v3042
    %3289 = vmatpush1.bf16.msra.mxu0 %v3041
    %3290 = vmatprep.subr.bf16.mxu0 %v3046
    %3291 = vmatpush1.bf16.msra.mxu0 %v3045
    %3292 = vmatprep.subr.bf16.mxu0 %v3050
    %3293 = vmatpush1.bf16.msra.mxu0 %v3049
    %3294 = vmatprep.subr.bf16.mxu0 %v3054
    %3295 = vmatpush1.bf16.msra.mxu0 %v3053
    %3296 = vmatprep.subr.bf16.mxu0 0
    %3297 = vmatpush1.bf16.msra.mxu0 0
    %3298 = vmatprep.subr.bf16.mxu0 0
    %3299 = vmatpush1.bf16.msra.mxu0 0
    %3300 = vmatprep.subr.bf16.mxu0 0
    %3301 = vmatpush1.bf16.msra.mxu0 0
    %3302 = vmatprep.subr.bf16.mxu0 0
    %3303 = vmatpush1.bf16.msra.mxu0 0
    %3304 = vmatprep.subr.bf16.mxu0 0
    %3305 = vmatpush1.bf16.msra.mxu0 0
    %3306 = vmatprep.subr.bf16.mxu0 0
    %3307 = vmatpush1.bf16.msra.mxu0 0
    %3308 = vmatprep.subr.bf16.mxu0 0
    %3309 = vmatpush1.bf16.msra.mxu0 0
    %3310 = vmatprep.subr.bf16.mxu0 0
    %3311 = vmatpush1.bf16.msra.mxu0 0
    %3312 = vmatprep.mubr.bf16.mxu0 0
    %3313 = vmatmul.mubr.bf16.gmra.mrb[0].mxu0 %v1774
    %v3314 = vpop.f32.mrb[0].mxu0
    %v3315 = vadd.f32 %v3272, %v3314
    %v3316 = vpop.f32.mrb[0].mxu0
    %v3317 = vadd.f32 %v3274, %v3316
    %v3318 = vpop.f32.mrb[0].mxu0
    %v3319 = vadd.f32 %v3276, %v3318
    %v3320 = vpop.f32.mrb[0].mxu0
    %v3321 = vadd.f32 %v3278, %v3320
    %3322 = vdwg.mxu0
    %v3323 = vld [vmem:[#allocation2] sm:$0xfc]
    %v3324 = vld [vmem:[#allocation2 + $0x8] sm:$0xfc]
    %v3325 = vld [vmem:[#allocation2 + $0x10] sm:$0xfc]
    %v3326 = vld [vmem:[#allocation2 + $0x18] sm:$0x3]
    %v3327 = vld [vmem:[#allocation2 + $0x20] sm:$0x3]
    %v3328 = vld [vmem:[#allocation2 + $0x28] sm:$0x3]
    %v3329 = vld [vmem:[#allocation2 + $0x30] sm:$0xfc]
    %v3330 = vld [vmem:[#allocation2 + $0x38] sm:$0xfc]
    %v3331 = vld [vmem:[#allocation2 + $0x40] sm:$0xfc]
    %v3332 = vld [vmem:[#allocation2 + $0x48] sm:$0x3]
    %v3333 = vld [vmem:[#allocation2 + $0x50] sm:$0x3]
    %v3334 = vld [vmem:[#allocation2 + $0x58] sm:$0x3]
    %v3347 = vrot.slane %v3323, 2
    %v3348 = vrot.slane %v3326, 2
    %v3349 = vsel %vm184, %v3347, %v3348
    %v3350 = vrot.slane %v3324, 2
    %v3351 = vrot.slane %v3327, 2
    %v3352 = vsel %vm184, %v3350, %v3351
    %v3353 = vrot.slane %v3325, 2
    %v3354 = vrot.slane %v3328, 2
    %v3355 = vsel %vm184, %v3353, %v3354
    %v3356 = vrot.slane %v3329, 2
    %v3357 = vrot.slane %v3332, 2
    %v3358 = vsel %vm184, %v3356, %v3357
    %v3359 = vrot.slane %v3330, 2
    %v3360 = vrot.slane %v3333, 2
    %v3361 = vsel %vm184, %v3359, %v3360
    %v3362 = vrot.slane %v3331, 2
    %v3363 = vrot.slane %v3334, 2
    %v3364 = vsel %vm184, %v3362, %v3363
    %v3371 = vpack.c.bf16 %v3358, %v3349
    %v3372 = vpack.c.bf16 %v3361, %v3352
    %v3373 = vpack.c.bf16 %v3364, %v3355
    %s3374 = scalar_lea.vmem [#allocation9], 1536
    %v3375 = vld [vmem:[%s3374] sm:$0xff]
    %v3376 = vld [vmem:[%s3374 + $0x8] sm:$0xff]
    %v3377 = vld [vmem:[%s3374 + $0x10] sm:$0xff]
    %v3378 = vld [vmem:[%s3374 + $0x18] sm:$0xff]
    %v3379 = vld [vmem:[%s3374 + $0x20] sm:$0xff]
    %v3380 = vld [vmem:[%s3374 + $0x28] sm:$0xff]
    %v3381 = vld [vmem:[%s3374 + $0x30] sm:$0xff]
    %v3382 = vld [vmem:[%s3374 + $0x38] sm:$0xff]
    %v3383 = vld [vmem:[%s3374 + $0x40] sm:$0xff]
    %v3384 = vld [vmem:[%s3374 + $0x48] sm:$0xff]
    %v3385 = vld [vmem:[%s3374 + $0x50] sm:$0xff]
    %v3386 = vld [vmem:[%s3374 + $0x58] sm:$0xff]
    %v3387 = vld [vmem:[%s3374 + $0x60] sm:$0xff]
    %v3388 = vld [vmem:[%s3374 + $0x68] sm:$0xff]
    %v3389 = vld [vmem:[%s3374 + $0x70] sm:$0xff]
    %v3390 = vld [vmem:[%s3374 + $0x78] sm:$0xff]
    %v3391 = vld [vmem:[%s3374 + $0x80] sm:$0xff]
    %v3392 = vld [vmem:[%s3374 + $0x88] sm:$0xff]
    %v3393 = vld [vmem:[%s3374 + $0x90] sm:$0xff]
    %v3394 = vld [vmem:[%s3374 + $0x98] sm:$0xff]
    %v3395 = vld [vmem:[%s3374 + $0xa0] sm:$0xff]
    %v3396 = vld [vmem:[%s3374 + $0xa8] sm:$0xff]
    %v3397 = vld [vmem:[%s3374 + $0xb0] sm:$0xff]
    %v3398 = vld [vmem:[%s3374 + $0xb8] sm:$0xff]
    %v3399 = vld [vmem:[%s3374 + $0xc0] sm:$0xff]
    %v3400 = vld [vmem:[%s3374 + $0xc8] sm:$0xff]
    %v3401 = vld [vmem:[%s3374 + $0xd0] sm:$0xff]
    %v3402 = vld [vmem:[%s3374 + $0xd8] sm:$0xff]
    %v3403 = vld [vmem:[%s3374 + $0xe0] sm:$0xff]
    %v3404 = vld [vmem:[%s3374 + $0xe8] sm:$0xff]
    %v3405 = vld [vmem:[%s3374 + $0xf0] sm:$0xff]
    %v3406 = vld [vmem:[%s3374 + $0xf8] sm:$0xff]
    %v3407 = vld [vmem:[%s3374 + $0x100] sm:$0xff]
    %v3408 = vld [vmem:[%s3374 + $0x108] sm:$0xff]
    %v3409 = vld [vmem:[%s3374 + $0x110] sm:$0xff]
    %v3410 = vld [vmem:[%s3374 + $0x118] sm:$0xff]
    %v3411 = vld [vmem:[%s3374 + $0x120] sm:$0xff]
    %v3412 = vld [vmem:[%s3374 + $0x128] sm:$0xff]
    %v3413 = vld [vmem:[%s3374 + $0x130] sm:$0xff]
    %v3414 = vld [vmem:[%s3374 + $0x138] sm:$0xff]
    %v3415 = vld [vmem:[%s3374 + $0x140] sm:$0xff]
    %v3416 = vld [vmem:[%s3374 + $0x148] sm:$0xff]
    %v3417 = vld [vmem:[%s3374 + $0x150] sm:$0xff]
    %v3418 = vld [vmem:[%s3374 + $0x158] sm:$0xff]
    %v3419 = vld [vmem:[%s3374 + $0x160] sm:$0xff]
    %v3420 = vld [vmem:[%s3374 + $0x168] sm:$0xff]
    %v3421 = vld [vmem:[%s3374 + $0x170] sm:$0xff]
    %v3422 = vld [vmem:[%s3374 + $0x178] sm:$0xff]
    %v3423 = vld [vmem:[%s3374 + $0x180] sm:$0xff]
    %v3424 = vld [vmem:[%s3374 + $0x188] sm:$0xff]
    %v3425 = vld [vmem:[%s3374 + $0x190] sm:$0xff]
    %v3426 = vld [vmem:[%s3374 + $0x198] sm:$0xff]
    %v3427 = vld [vmem:[%s3374 + $0x1a0] sm:$0xff]
    %v3428 = vld [vmem:[%s3374 + $0x1a8] sm:$0xff]
    %v3429 = vld [vmem:[%s3374 + $0x1b0] sm:$0xff]
    %v3430 = vld [vmem:[%s3374 + $0x1b8] sm:$0xff]
    %v3431 = vld [vmem:[%s3374 + $0x1c0] sm:$0xff]
    %v3432 = vld [vmem:[%s3374 + $0x1c8] sm:$0xff]
    %v3433 = vld [vmem:[%s3374 + $0x1d0] sm:$0xff]
    %v3434 = vld [vmem:[%s3374 + $0x1d8] sm:$0xff]
    %v3435 = vld [vmem:[%s3374 + $0x1e0] sm:$0xff]
    %v3436 = vld [vmem:[%s3374 + $0x1e8] sm:$0xff]
    %v3437 = vld [vmem:[%s3374 + $0x1f0] sm:$0xff]
    %v3438 = vld [vmem:[%s3374 + $0x1f8] sm:$0xff]
    %v3439 = vld [vmem:[%s3374 + $0x200] sm:$0xff]
    %v3440 = vld [vmem:[%s3374 + $0x208] sm:$0xff]
    %v3441 = vld [vmem:[%s3374 + $0x210] sm:$0xff]
    %v3442 = vld [vmem:[%s3374 + $0x218] sm:$0xff]
    %v3443 = vld [vmem:[%s3374 + $0x220] sm:$0xff]
    %v3444 = vld [vmem:[%s3374 + $0x228] sm:$0xff]
    %v3445 = vld [vmem:[%s3374 + $0x230] sm:$0xff]
    %v3446 = vld [vmem:[%s3374 + $0x238] sm:$0xff]
    %v3447 = vld [vmem:[%s3374 + $0x240] sm:$0xff]
    %v3448 = vld [vmem:[%s3374 + $0x248] sm:$0xff]
    %v3449 = vld [vmem:[%s3374 + $0x250] sm:$0xff]
    %v3450 = vld [vmem:[%s3374 + $0x258] sm:$0xff]
    %v3451 = vld [vmem:[%s3374 + $0x260] sm:$0xff]
    %v3452 = vld [vmem:[%s3374 + $0x268] sm:$0xff]
    %v3453 = vld [vmem:[%s3374 + $0x270] sm:$0xff]
    %v3454 = vld [vmem:[%s3374 + $0x278] sm:$0xff]
    %v3455 = vld [vmem:[%s3374 + $0x280] sm:$0xff]
    %v3456 = vld [vmem:[%s3374 + $0x288] sm:$0xff]
    %v3457 = vld [vmem:[%s3374 + $0x290] sm:$0xff]
    %v3458 = vld [vmem:[%s3374 + $0x298] sm:$0xff]
    %v3459 = vld [vmem:[%s3374 + $0x2a0] sm:$0xff]
    %v3460 = vld [vmem:[%s3374 + $0x2a8] sm:$0xff]
    %v3461 = vld [vmem:[%s3374 + $0x2b0] sm:$0xff]
    %v3462 = vld [vmem:[%s3374 + $0x2b8] sm:$0xff]
    %v3463 = vld [vmem:[%s3374 + $0x2c0] sm:$0xff]
    %v3464 = vld [vmem:[%s3374 + $0x2c8] sm:$0xff]
    %v3465 = vld [vmem:[%s3374 + $0x2d0] sm:$0xff]
    %v3466 = vld [vmem:[%s3374 + $0x2d8] sm:$0xff]
    %v3467 = vld [vmem:[%s3374 + $0x2e0] sm:$0xff]
    %v3468 = vld [vmem:[%s3374 + $0x2e8] sm:$0xff]
    %v3469 = vld [vmem:[%s3374 + $0x2f0] sm:$0xff]
    %v3470 = vld [vmem:[%s3374 + $0x2f8] sm:$0xff]
    %v3567 = vunpack.c.l.b16 %v3375
    %v3568 = vunpack.c.h.b16 %v3375
    %v3569 = vunpack.c.l.b16 %v3376
    %v3570 = vunpack.c.h.b16 %v3376
    %v3571 = vunpack.c.l.b16 %v3377
    %v3572 = vunpack.c.h.b16 %v3377
    %v3573 = vunpack.c.l.b16 %v3378
    %v3574 = vunpack.c.h.b16 %v3378
    %v3575 = vunpack.c.l.b16 %v3379
    %v3576 = vunpack.c.h.b16 %v3379
    %v3577 = vunpack.c.l.b16 %v3380
    %v3578 = vunpack.c.h.b16 %v3380
    %v3579 = vunpack.c.l.b16 %v3381
    %v3580 = vunpack.c.h.b16 %v3381
    %v3581 = vunpack.c.l.b16 %v3382
    %v3582 = vunpack.c.h.b16 %v3382
    %v3583 = vunpack.c.l.b16 %v3383
    %v3584 = vunpack.c.h.b16 %v3383
    %v3585 = vunpack.c.l.b16 %v3384
    %v3586 = vunpack.c.h.b16 %v3384
    %v3587 = vunpack.c.l.b16 %v3385
    %v3588 = vunpack.c.h.b16 %v3385
    %v3589 = vunpack.c.l.b16 %v3386
    %v3590 = vunpack.c.h.b16 %v3386
    %v3591 = vunpack.c.l.b16 %v3387
    %v3592 = vunpack.c.h.b16 %v3387
    %v3593 = vunpack.c.l.b16 %v3388
    %v3594 = vunpack.c.h.b16 %v3388
    %v3595 = vunpack.c.l.b16 %v3389
    %v3596 = vunpack.c.h.b16 %v3389
    %v3597 = vunpack.c.l.b16 %v3390
    %v3598 = vunpack.c.h.b16 %v3390
    %v3599 = vunpack.c.l.b16 %v3391
    %v3600 = vunpack.c.h.b16 %v3391
    %v3601 = vunpack.c.l.b16 %v3392
    %v3602 = vunpack.c.h.b16 %v3392
    %v3603 = vunpack.c.l.b16 %v3393
    %v3604 = vunpack.c.h.b16 %v3393
    %v3605 = vunpack.c.l.b16 %v3394
    %v3606 = vunpack.c.h.b16 %v3394
    %v3607 = vunpack.c.l.b16 %v3395
    %v3608 = vunpack.c.h.b16 %v3395
    %v3609 = vunpack.c.l.b16 %v3396
    %v3610 = vunpack.c.h.b16 %v3396
    %v3611 = vunpack.c.l.b16 %v3397
    %v3612 = vunpack.c.h.b16 %v3397
    %v3613 = vunpack.c.l.b16 %v3398
    %v3614 = vunpack.c.h.b16 %v3398
    %v3615 = vunpack.c.l.b16 %v3399
    %v3616 = vunpack.c.h.b16 %v3399
    %v3617 = vunpack.c.l.b16 %v3400
    %v3618 = vunpack.c.h.b16 %v3400
    %v3619 = vunpack.c.l.b16 %v3401
    %v3620 = vunpack.c.h.b16 %v3401
    %v3621 = vunpack.c.l.b16 %v3402
    %v3622 = vunpack.c.h.b16 %v3402
    %v3623 = vunpack.c.l.b16 %v3403
    %v3624 = vunpack.c.h.b16 %v3403
    %v3625 = vunpack.c.l.b16 %v3404
    %v3626 = vunpack.c.h.b16 %v3404
    %v3627 = vunpack.c.l.b16 %v3405
    %v3628 = vunpack.c.h.b16 %v3405
    %v3629 = vunpack.c.l.b16 %v3406
    %v3630 = vunpack.c.h.b16 %v3406
    %v3631 = vunpack.c.l.b16 %v3407
    %v3632 = vunpack.c.h.b16 %v3407
    %v3633 = vunpack.c.l.b16 %v3408
    %v3634 = vunpack.c.h.b16 %v3408
    %v3635 = vunpack.c.l.b16 %v3409
    %v3636 = vunpack.c.h.b16 %v3409
    %v3637 = vunpack.c.l.b16 %v3410
    %v3638 = vunpack.c.h.b16 %v3410
    %v3639 = vunpack.c.l.b16 %v3411
    %v3640 = vunpack.c.h.b16 %v3411
    %v3641 = vunpack.c.l.b16 %v3412
    %v3642 = vunpack.c.h.b16 %v3412
    %v3643 = vunpack.c.l.b16 %v3413
    %v3644 = vunpack.c.h.b16 %v3413
    %v3645 = vunpack.c.l.b16 %v3414
    %v3646 = vunpack.c.h.b16 %v3414
    %v3647 = vunpack.c.l.b16 %v3415
    %v3648 = vunpack.c.h.b16 %v3415
    %v3649 = vunpack.c.l.b16 %v3416
    %v3650 = vunpack.c.h.b16 %v3416
    %v3651 = vunpack.c.l.b16 %v3417
    %v3652 = vunpack.c.h.b16 %v3417
    %v3653 = vunpack.c.l.b16 %v3418
    %v3654 = vunpack.c.h.b16 %v3418
    %v3655 = vunpack.c.l.b16 %v3419
    %v3656 = vunpack.c.h.b16 %v3419
    %v3657 = vunpack.c.l.b16 %v3420
    %v3658 = vunpack.c.h.b16 %v3420
    %v3659 = vunpack.c.l.b16 %v3421
    %v3660 = vunpack.c.h.b16 %v3421
    %v3661 = vunpack.c.l.b16 %v3422
    %v3662 = vunpack.c.h.b16 %v3422
    %v3663 = vunpack.c.l.b16 %v3423
    %v3664 = vunpack.c.h.b16 %v3423
    %v3665 = vunpack.c.l.b16 %v3424
    %v3666 = vunpack.c.h.b16 %v3424
    %v3667 = vunpack.c.l.b16 %v3425
    %v3668 = vunpack.c.h.b16 %v3425
    %v3669 = vunpack.c.l.b16 %v3426
    %v3670 = vunpack.c.h.b16 %v3426
    %v3671 = vunpack.c.l.b16 %v3427
    %v3672 = vunpack.c.h.b16 %v3427
    %v3673 = vunpack.c.l.b16 %v3428
    %v3674 = vunpack.c.h.b16 %v3428
    %v3675 = vunpack.c.l.b16 %v3429
    %v3676 = vunpack.c.h.b16 %v3429
    %v3677 = vunpack.c.l.b16 %v3430
    %v3678 = vunpack.c.h.b16 %v3430
    %v3679 = vunpack.c.l.b16 %v3431
    %v3680 = vunpack.c.h.b16 %v3431
    %v3681 = vunpack.c.l.b16 %v3432
    %v3682 = vunpack.c.h.b16 %v3432
    %v3683 = vunpack.c.l.b16 %v3433
    %v3684 = vunpack.c.h.b16 %v3433
    %v3685 = vunpack.c.l.b16 %v3434
    %v3686 = vunpack.c.h.b16 %v3434
    %v3687 = vunpack.c.l.b16 %v3435
    %v3688 = vunpack.c.h.b16 %v3435
    %v3689 = vunpack.c.l.b16 %v3436
    %v3690 = vunpack.c.h.b16 %v3436
    %v3691 = vunpack.c.l.b16 %v3437
    %v3692 = vunpack.c.h.b16 %v3437
    %v3693 = vunpack.c.l.b16 %v3438
    %v3694 = vunpack.c.h.b16 %v3438
    %v3695 = vunpack.c.l.b16 %v3439
    %v3696 = vunpack.c.h.b16 %v3439
    %v3697 = vunpack.c.l.b16 %v3440
    %v3698 = vunpack.c.h.b16 %v3440
    %v3699 = vunpack.c.l.b16 %v3441
    %v3700 = vunpack.c.h.b16 %v3441
    %v3701 = vunpack.c.l.b16 %v3442
    %v3702 = vunpack.c.h.b16 %v3442
    %v3703 = vunpack.c.l.b16 %v3443
    %v3704 = vunpack.c.h.b16 %v3443
    %v3705 = vunpack.c.l.b16 %v3444
    %v3706 = vunpack.c.h.b16 %v3444
    %v3707 = vunpack.c.l.b16 %v3445
    %v3708 = vunpack.c.h.b16 %v3445
    %v3709 = vunpack.c.l.b16 %v3446
    %v3710 = vunpack.c.h.b16 %v3446
    %v3711 = vunpack.c.l.b16 %v3447
    %v3712 = vunpack.c.h.b16 %v3447
    %v3713 = vunpack.c.l.b16 %v3448
    %v3714 = vunpack.c.h.b16 %v3448
    %v3715 = vunpack.c.l.b16 %v3449
    %v3716 = vunpack.c.h.b16 %v3449
    %v3717 = vunpack.c.l.b16 %v3450
    %v3718 = vunpack.c.h.b16 %v3450
    %v3719 = vunpack.c.l.b16 %v3451
    %v3720 = vunpack.c.h.b16 %v3451
    %v3721 = vunpack.c.l.b16 %v3452
    %v3722 = vunpack.c.h.b16 %v3452
    %v3723 = vunpack.c.l.b16 %v3453
    %v3724 = vunpack.c.h.b16 %v3453
    %v3725 = vunpack.c.l.b16 %v3454
    %v3726 = vunpack.c.h.b16 %v3454
    %v3727 = vunpack.c.l.b16 %v3455
    %v3728 = vunpack.c.h.b16 %v3455
    %v3729 = vunpack.c.l.b16 %v3456
    %v3730 = vunpack.c.h.b16 %v3456
    %v3731 = vunpack.c.l.b16 %v3457
    %v3732 = vunpack.c.h.b16 %v3457
    %v3733 = vunpack.c.l.b16 %v3458
    %v3734 = vunpack.c.h.b16 %v3458
    %v3735 = vunpack.c.l.b16 %v3459
    %v3736 = vunpack.c.h.b16 %v3459
    %v3737 = vunpack.c.l.b16 %v3460
    %v3738 = vunpack.c.h.b16 %v3460
    %v3739 = vunpack.c.l.b16 %v3461
    %v3740 = vunpack.c.h.b16 %v3461
    %v3741 = vunpack.c.l.b16 %v3462
    %v3742 = vunpack.c.h.b16 %v3462
    %v3743 = vunpack.c.l.b16 %v3463
    %v3744 = vunpack.c.h.b16 %v3463
    %v3745 = vunpack.c.l.b16 %v3464
    %v3746 = vunpack.c.h.b16 %v3464
    %v3747 = vunpack.c.l.b16 %v3465
    %v3748 = vunpack.c.h.b16 %v3465
    %v3749 = vunpack.c.l.b16 %v3466
    %v3750 = vunpack.c.h.b16 %v3466
    %v3751 = vunpack.c.l.b16 %v3467
    %v3752 = vunpack.c.h.b16 %v3467
    %v3753 = vunpack.c.l.b16 %v3468
    %v3754 = vunpack.c.h.b16 %v3468
    %v3755 = vunpack.c.l.b16 %v3469
    %v3756 = vunpack.c.h.b16 %v3469
    %v3757 = vunpack.c.l.b16 %v3470
    %v3758 = vunpack.c.h.b16 %v3470
    %v3759 = vpack.c.b16 %v3571, %v3567
    %v3760 = vpack.c.b16 %v3572, %v3568
    %v3761 = vpack.c.b16 %v3573, %v3569
    %v3762 = vpack.c.b16 %v3574, %v3570
    %v3763 = vpack.c.b16 %v3579, %v3575
    %v3764 = vpack.c.b16 %v3580, %v3576
    %v3765 = vpack.c.b16 %v3581, %v3577
    %v3766 = vpack.c.b16 %v3582, %v3578
    %v3767 = vpack.c.b16 %v3587, %v3583
    %v3768 = vpack.c.b16 %v3588, %v3584
    %v3769 = vpack.c.b16 %v3589, %v3585
    %v3770 = vpack.c.b16 %v3590, %v3586
    %v3771 = vpack.c.b16 %v3595, %v3591
    %v3772 = vpack.c.b16 %v3596, %v3592
    %v3773 = vpack.c.b16 %v3597, %v3593
    %v3774 = vpack.c.b16 %v3598, %v3594
    %v3775 = vpack.c.b16 %v3603, %v3599
    %v3776 = vpack.c.b16 %v3604, %v3600
    %v3777 = vpack.c.b16 %v3605, %v3601
    %v3778 = vpack.c.b16 %v3606, %v3602
    %v3779 = vpack.c.b16 %v3611, %v3607
    %v3780 = vpack.c.b16 %v3612, %v3608
    %v3781 = vpack.c.b16 %v3613, %v3609
    %v3782 = vpack.c.b16 %v3614, %v3610
    %v3783 = vpack.c.b16 %v3619, %v3615
    %v3784 = vpack.c.b16 %v3620, %v3616
    %v3785 = vpack.c.b16 %v3621, %v3617
    %v3786 = vpack.c.b16 %v3622, %v3618
    %v3787 = vpack.c.b16 %v3627, %v3623
    %v3788 = vpack.c.b16 %v3628, %v3624
    %v3789 = vpack.c.b16 %v3629, %v3625
    %v3790 = vpack.c.b16 %v3630, %v3626
    %v3791 = vpack.c.b16 %v3635, %v3631
    %v3792 = vpack.c.b16 %v3636, %v3632
    %v3793 = vpack.c.b16 %v3637, %v3633
    %v3794 = vpack.c.b16 %v3638, %v3634
    %v3795 = vpack.c.b16 %v3643, %v3639
    %v3796 = vpack.c.b16 %v3644, %v3640
    %v3797 = vpack.c.b16 %v3645, %v3641
    %v3798 = vpack.c.b16 %v3646, %v3642
    %v3799 = vpack.c.b16 %v3651, %v3647
    %v3800 = vpack.c.b16 %v3652, %v3648
    %v3801 = vpack.c.b16 %v3653, %v3649
    %v3802 = vpack.c.b16 %v3654, %v3650
    %v3803 = vpack.c.b16 %v3659, %v3655
    %v3804 = vpack.c.b16 %v3660, %v3656
    %v3805 = vpack.c.b16 %v3661, %v3657
    %v3806 = vpack.c.b16 %v3662, %v3658
    %v3807 = vpack.c.b16 %v3667, %v3663
    %v3808 = vpack.c.b16 %v3668, %v3664
    %v3809 = vpack.c.b16 %v3669, %v3665
    %v3810 = vpack.c.b16 %v3670, %v3666
    %v3811 = vpack.c.b16 %v3675, %v3671
    %v3812 = vpack.c.b16 %v3676, %v3672
    %v3813 = vpack.c.b16 %v3677, %v3673
    %v3814 = vpack.c.b16 %v3678, %v3674
    %v3815 = vpack.c.b16 %v3683, %v3679
    %v3816 = vpack.c.b16 %v3684, %v3680
    %v3817 = vpack.c.b16 %v3685, %v3681
    %v3818 = vpack.c.b16 %v3686, %v3682
    %v3819 = vpack.c.b16 %v3691, %v3687
    %v3820 = vpack.c.b16 %v3692, %v3688
    %v3821 = vpack.c.b16 %v3693, %v3689
    %v3822 = vpack.c.b16 %v3694, %v3690
    %v3823 = vpack.c.b16 %v3699, %v3695
    %v3824 = vpack.c.b16 %v3700, %v3696
    %v3825 = vpack.c.b16 %v3701, %v3697
    %v3826 = vpack.c.b16 %v3702, %v3698
    %v3827 = vpack.c.b16 %v3707, %v3703
    %v3828 = vpack.c.b16 %v3708, %v3704
    %v3829 = vpack.c.b16 %v3709, %v3705
    %v3830 = vpack.c.b16 %v3710, %v3706
    %v3831 = vpack.c.b16 %v3715, %v3711
    %v3832 = vpack.c.b16 %v3716, %v3712
    %v3833 = vpack.c.b16 %v3717, %v3713
    %v3834 = vpack.c.b16 %v3718, %v3714
    %v3835 = vpack.c.b16 %v3723, %v3719
    %v3836 = vpack.c.b16 %v3724, %v3720
    %v3837 = vpack.c.b16 %v3725, %v3721
    %v3838 = vpack.c.b16 %v3726, %v3722
    %v3839 = vpack.c.b16 %v3731, %v3727
    %v3840 = vpack.c.b16 %v3732, %v3728
    %v3841 = vpack.c.b16 %v3733, %v3729
    %v3842 = vpack.c.b16 %v3734, %v3730
    %v3843 = vpack.c.b16 %v3739, %v3735
    %v3844 = vpack.c.b16 %v3740, %v3736
    %v3845 = vpack.c.b16 %v3741, %v3737
    %v3846 = vpack.c.b16 %v3742, %v3738
    %v3847 = vpack.c.b16 %v3747, %v3743
    %v3848 = vpack.c.b16 %v3748, %v3744
    %v3849 = vpack.c.b16 %v3749, %v3745
    %v3850 = vpack.c.b16 %v3750, %v3746
    %v3851 = vpack.c.b16 %v3755, %v3751
    %v3852 = vpack.c.b16 %v3756, %v3752
    %v3853 = vpack.c.b16 %v3757, %v3753
    %v3854 = vpack.c.b16 %v3758, %v3754
    %3951 = vmatprep.subr.bf16.mxu0 %v3760
    %3952 = vmatpush1.bf16.msra.mxu0 %v3759
    %3953 = vmatprep.subr.bf16.mxu0 %v3764
    %3954 = vmatpush1.bf16.msra.mxu0 %v3763
    %3955 = vmatprep.subr.bf16.mxu0 %v3768
    %3956 = vmatpush1.bf16.msra.mxu0 %v3767
    %3957 = vmatprep.subr.bf16.mxu0 %v3772
    %3958 = vmatpush1.bf16.msra.mxu0 %v3771
    %3959 = vmatprep.subr.bf16.mxu0 %v3776
    %3960 = vmatpush1.bf16.msra.mxu0 %v3775
    %3961 = vmatprep.subr.bf16.mxu0 %v3780
    %3962 = vmatpush1.bf16.msra.mxu0 %v3779
    %3963 = vmatprep.subr.bf16.mxu0 %v3784
    %3964 = vmatpush1.bf16.msra.mxu0 %v3783
    %3965 = vmatprep.subr.bf16.mxu0 %v3788
    %3966 = vmatpush1.bf16.msra.mxu0 %v3787
    %3967 = vmatprep.subr.bf16.mxu0 %v3792
    %3968 = vmatpush1.bf16.msra.mxu0 %v3791
    %3969 = vmatprep.subr.bf16.mxu0 %v3796
    %3970 = vmatpush1.bf16.msra.mxu0 %v3795
    %3971 = vmatprep.subr.bf16.mxu0 %v3800
    %3972 = vmatpush1.bf16.msra.mxu0 %v3799
    %3973 = vmatprep.subr.bf16.mxu0 %v3804
    %3974 = vmatpush1.bf16.msra.mxu0 %v3803
    %3975 = vmatprep.subr.bf16.mxu0 %v3808
    %3976 = vmatpush1.bf16.msra.mxu0 %v3807
    %3977 = vmatprep.subr.bf16.mxu0 %v3812
    %3978 = vmatpush1.bf16.msra.mxu0 %v3811
    %3979 = vmatprep.subr.bf16.mxu0 %v3816
    %3980 = vmatpush1.bf16.msra.mxu0 %v3815
    %3981 = vmatprep.subr.bf16.mxu0 %v3820
    %3982 = vmatpush1.bf16.msra.mxu0 %v3819
    %3983 = vmatprep.mubr.bf16.mxu0 %v3372
    %3984 = vmatmul.mubr.bf16.gmra.mrb[0].mxu0 %v3371
    %v3985 = vpop.f32.mrb[0].mxu0
    %v3986 = vadd.f32 0.0, %v3985
    %v3987 = vpop.f32.mrb[0].mxu0
    %v3988 = vadd.f32 0.0, %v3987
    %v3989 = vpop.f32.mrb[0].mxu0
    %v3990 = vadd.f32 0.0, %v3989
    %v3991 = vpop.f32.mrb[0].mxu0
    %v3992 = vadd.f32 0.0, %v3991
    %3993 = vdwg.mxu0
    %3994 = vmatprep.subr.bf16.mxu0 %v3824
    %3995 = vmatpush1.bf16.msra.mxu0 %v3823
    %3996 = vmatprep.subr.bf16.mxu0 %v3828
    %3997 = vmatpush1.bf16.msra.mxu0 %v3827
    %3998 = vmatprep.subr.bf16.mxu0 %v3832
    %3999 = vmatpush1.bf16.msra.mxu0 %v3831
    %4000 = vmatprep.subr.bf16.mxu0 %v3836
    %4001 = vmatpush1.bf16.msra.mxu0 %v3835
    %4002 = vmatprep.subr.bf16.mxu0 %v3840
    %4003 = vmatpush1.bf16.msra.mxu0 %v3839
    %4004 = vmatprep.subr.bf16.mxu0 %v3844
    %4005 = vmatpush1.bf16.msra.mxu0 %v3843
    %4006 = vmatprep.subr.bf16.mxu0 %v3848
    %4007 = vmatpush1.bf16.msra.mxu0 %v3847
    %4008 = vmatprep.subr.bf16.mxu0 %v3852
    %4009 = vmatpush1.bf16.msra.mxu0 %v3851
    %4010 = vmatprep.subr.bf16.mxu0 0
    %4011 = vmatpush1.bf16.msra.mxu0 0
    %4012 = vmatprep.subr.bf16.mxu0 0
    %4013 = vmatpush1.bf16.msra.mxu0 0
    %4014 = vmatprep.subr.bf16.mxu0 0
    %4015 = vmatpush1.bf16.msra.mxu0 0
    %4016 = vmatprep.subr.bf16.mxu0 0
    %4017 = vmatpush1.bf16.msra.mxu0 0
    %4018 = vmatprep.subr.bf16.mxu0 0
    %4019 = vmatpush1.bf16.msra.mxu0 0
    %4020 = vmatprep.subr.bf16.mxu0 0
    %4021 = vmatpush1.bf16.msra.mxu0 0
    %4022 = vmatprep.subr.bf16.mxu0 0
    %4023 = vmatpush1.bf16.msra.mxu0 0
    %4024 = vmatprep.subr.bf16.mxu0 0
    %4025 = vmatpush1.bf16.msra.mxu0 0
    %4026 = vmatprep.mubr.bf16.mxu0 0
    %4027 = vmatmul.mubr.bf16.gmra.mrb[0].mxu0 %v3373
    %v4028 = vpop.f32.mrb[0].mxu0
    %v4029 = vadd.f32 %v3986, %v4028
    %v4030 = vpop.f32.mrb[0].mxu0
    %v4031 = vadd.f32 %v3988, %v4030
    %v4032 = vpop.f32.mrb[0].mxu0
    %v4033 = vadd.f32 %v3990, %v4032
    %v4034 = vpop.f32.mrb[0].mxu0
    %v4035 = vadd.f32 %v3992, %v4034
    %4036 = vdwg.mxu0
    %4037 = vmatprep.subr.bf16.mxu0 %v3762
    %4038 = vmatpush1.bf16.msra.mxu0 %v3761
    %4039 = vmatprep.subr.bf16.mxu0 %v3766
    %4040 = vmatpush1.bf16.msra.mxu0 %v3765
    %4041 = vmatprep.subr.bf16.mxu0 %v3770
    %4042 = vmatpush1.bf16.msra.mxu0 %v3769
    %4043 = vmatprep.subr.bf16.mxu0 %v3774
    %4044 = vmatpush1.bf16.msra.mxu0 %v3773
    %4045 = vmatprep.subr.bf16.mxu0 %v3778
    %4046 = vmatpush1.bf16.msra.mxu0 %v3777
    %4047 = vmatprep.subr.bf16.mxu0 %v3782
    %4048 = vmatpush1.bf16.msra.mxu0 %v3781
    %4049 = vmatprep.subr.bf16.mxu0 %v3786
    %4050 = vmatpush1.bf16.msra.mxu0 %v3785
    %4051 = vmatprep.subr.bf16.mxu0 %v3790
    %4052 = vmatpush1.bf16.msra.mxu0 %v3789
    %4053 = vmatprep.subr.bf16.mxu0 %v3794
    %4054 = vmatpush1.bf16.msra.mxu0 %v3793
    %4055 = vmatprep.subr.bf16.mxu0 %v3798
    %4056 = vmatpush1.bf16.msra.mxu0 %v3797
    %4057 = vmatprep.subr.bf16.mxu0 %v3802
    %4058 = vmatpush1.bf16.msra.mxu0 %v3801
    %4059 = vmatprep.subr.bf16.mxu0 %v3806
    %4060 = vmatpush1.bf16.msra.mxu0 %v3805
    %4061 = vmatprep.subr.bf16.mxu0 %v3810
    %4062 = vmatpush1.bf16.msra.mxu0 %v3809
    %4063 = vmatprep.subr.bf16.mxu0 %v3814
    %4064 = vmatpush1.bf16.msra.mxu0 %v3813
    %4065 = vmatprep.subr.bf16.mxu0 %v3818
    %4066 = vmatpush1.bf16.msra.mxu0 %v3817
    %4067 = vmatprep.subr.bf16.mxu0 %v3822
    %4068 = vmatpush1.bf16.msra.mxu0 %v3821
    %4069 = vmatprep.mubr.bf16.mxu0 %v3372
    %4070 = vmatmul.mubr.bf16.gmra.mrb[0].mxu0 %v3371
    %v4071 = vpop.f32.mrb[0].mxu0
    %v4072 = vadd.f32 0.0, %v4071
    %v4073 = vpop.f32.mrb[0].mxu0
    %v4074 = vadd.f32 0.0, %v4073
    %v4075 = vpop.f32.mrb[0].mxu0
    %v4076 = vadd.f32 0.0, %v4075
    %v4077 = vpop.f32.mrb[0].mxu0
    %v4078 = vadd.f32 0.0, %v4077
    %4079 = vdwg.mxu0
    %4080 = vmatprep.subr.bf16.mxu0 %v3826
    %4081 = vmatpush1.bf16.msra.mxu0 %v3825
    %4082 = vmatprep.subr.bf16.mxu0 %v3830
    %4083 = vmatpush1.bf16.msra.mxu0 %v3829
    %4084 = vmatprep.subr.bf16.mxu0 %v3834
    %4085 = vmatpush1.bf16.msra.mxu0 %v3833
    %4086 = vmatprep.subr.bf16.mxu0 %v3838
    %4087 = vmatpush1.bf16.msra.mxu0 %v3837
    %4088 = vmatprep.subr.bf16.mxu0 %v3842
    %4089 = vmatpush1.bf16.msra.mxu0 %v3841
    %4090 = vmatprep.subr.bf16.mxu0 %v3846
    %4091 = vmatpush1.bf16.msra.mxu0 %v3845
    %4092 = vmatprep.subr.bf16.mxu0 %v3850
    %4093 = vmatpush1.bf16.msra.mxu0 %v3849
    %4094 = vmatprep.subr.bf16.mxu0 %v3854
    %4095 = vmatpush1.bf16.msra.mxu0 %v3853
    %4096 = vmatprep.subr.bf16.mxu0 0
    %4097 = vmatpush1.bf16.msra.mxu0 0
    %4098 = vmatprep.subr.bf16.mxu0 0
    %4099 = vmatpush1.bf16.msra.mxu0 0
    %4100 = vmatprep.subr.bf16.mxu0 0
    %4101 = vmatpush1.bf16.msra.mxu0 0
    %4102 = vmatprep.subr.bf16.mxu0 0
    %4103 = vmatpush1.bf16.msra.mxu0 0
    %4104 = vmatprep.subr.bf16.mxu0 0
    %4105 = vmatpush1.bf16.msra.mxu0 0
    %4106 = vmatprep.subr.bf16.mxu0 0
    %4107 = vmatpush1.bf16.msra.mxu0 0
    %4108 = vmatprep.subr.bf16.mxu0 0
    %4109 = vmatpush1.bf16.msra.mxu0 0
    %4110 = vmatprep.subr.bf16.mxu0 0
    %4111 = vmatpush1.bf16.msra.mxu0 0
    %4112 = vmatprep.mubr.bf16.mxu0 0
    %4113 = vmatmul.mubr.bf16.gmra.mrb[0].mxu0 %v3373
    %v4114 = vpop.f32.mrb[0].mxu0
    %v4115 = vadd.f32 %v4072, %v4114
    %v4116 = vpop.f32.mrb[0].mxu0
    %v4117 = vadd.f32 %v4074, %v4116
    %v4118 = vpop.f32.mrb[0].mxu0
    %v4119 = vadd.f32 %v4076, %v4118
    %v4120 = vpop.f32.mrb[0].mxu0
    %v4121 = vadd.f32 %v4078, %v4120
    %4122 = vdwg.mxu0
    %v4123 = vadd.f32 %v3229, %v4029
    %v4124 = vadd.f32 %v3231, %v4031
    %v4125 = vadd.f32 %v3315, %v4115
    %v4126 = vadd.f32 %v3317, %v4117
    %v4127 = vadd.f32 %v3233, %v4033
    %v4128 = vadd.f32 %v3235, %v4035
    %v4129 = vadd.f32 %v3319, %v4119
    %v4130 = vadd.f32 %v3321, %v4121
    %v4131 = vld [vmem:[#allocation2] sm:$0xf8]
    %v4132 = vld [vmem:[#allocation2 + $0x8] sm:$0xf8]
    %v4133 = vld [vmem:[#allocation2 + $0x10] sm:$0xf8]
    %v4134 = vld [vmem:[#allocation2 + $0x18] sm:$0x7]
    %v4135 = vld [vmem:[#allocation2 + $0x20] sm:$0x7]
    %v4136 = vld [vmem:[#allocation2 + $0x28] sm:$0x7]
    %v4137 = vld [vmem:[#allocation2 + $0x30] sm:$0xf8]
    %v4138 = vld [vmem:[#allocation2 + $0x38] sm:$0xf8]
    %v4139 = vld [vmem:[#allocation2 + $0x40] sm:$0xf8]
    %v4140 = vld [vmem:[#allocation2 + $0x48] sm:$0x7]
    %v4141 = vld [vmem:[#allocation2 + $0x50] sm:$0x7]
    %v4142 = vld [vmem:[#allocation2 + $0x58] sm:$0x7]
    %v4155 = vrot.slane %v4131, 3
    %v4156 = vrot.slane %v4134, 3
    %v4157 = vsel %vm217, %v4155, %v4156
    %v4158 = vrot.slane %v4132, 3
    %v4159 = vrot.slane %v4135, 3
    %v4160 = vsel %vm217, %v4158, %v4159
    %v4161 = vrot.slane %v4133, 3
    %v4162 = vrot.slane %v4136, 3
    %v4163 = vsel %vm217, %v4161, %v4162
    %v4164 = vrot.slane %v4137, 3
    %v4165 = vrot.slane %v4140, 3
    %v4166 = vsel %vm217, %v4164, %v4165
    %v4167 = vrot.slane %v4138, 3
    %v4168 = vrot.slane %v4141, 3
    %v4169 = vsel %vm217, %v4167, %v4168
    %v4170 = vrot.slane %v4139, 3
    %v4171 = vrot.slane %v4142, 3
    %v4172 = vsel %vm217, %v4170, %v4171
    %v4179 = vpack.c.bf16 %v4166, %v4157
    %v4180 = vpack.c.bf16 %v4169, %v4160
    %v4181 = vpack.c.bf16 %v4172, %v4163
    %s4182 = scalar_lea.vmem [#allocation9], 2304
    %v4183 = vld [vmem:[%s4182] sm:$0xff]
    %v4184 = vld [vmem:[%s4182 + $0x8] sm:$0xff]
    %v4185 = vld [vmem:[%s4182 + $0x10] sm:$0xff]
    %v4186 = vld [vmem:[%s4182 + $0x18] sm:$0xff]
    %v4187 = vld [vmem:[%s4182 + $0x20] sm:$0xff]
    %v4188 = vld [vmem:[%s4182 + $0x28] sm:$0xff]
    %v4189 = vld [vmem:[%s4182 + $0x30] sm:$0xff]
    %v4190 = vld [vmem:[%s4182 + $0x38] sm:$0xff]
    %v4191 = vld [vmem:[%s4182 + $0x40] sm:$0xff]
    %v4192 = vld [vmem:[%s4182 + $0x48] sm:$0xff]
    %v4193 = vld [vmem:[%s4182 + $0x50] sm:$0xff]
    %v4194 = vld [vmem:[%s4182 + $0x58] sm:$0xff]
    %v4195 = vld [vmem:[%s4182 + $0x60] sm:$0xff]
    %v4196 = vld [vmem:[%s4182 + $0x68] sm:$0xff]
    %v4197 = vld [vmem:[%s4182 + $0x70] sm:$0xff]
    %v4198 = vld [vmem:[%s4182 + $0x78] sm:$0xff]
    %v4199 = vld [vmem:[%s4182 + $0x80] sm:$0xff]
    %v4200 = vld [vmem:[%s4182 + $0x88] sm:$0xff]
    %v4201 = vld [vmem:[%s4182 + $0x90] sm:$0xff]
    %v4202 = vld [vmem:[%s4182 + $0x98] sm:$0xff]
    %v4203 = vld [vmem:[%s4182 + $0xa0] sm:$0xff]
    %v4204 = vld [vmem:[%s4182 + $0xa8] sm:$0xff]
    %v4205 = vld [vmem:[%s4182 + $0xb0] sm:$0xff]
    %v4206 = vld [vmem:[%s4182 + $0xb8] sm:$0xff]
    %v4207 = vld [vmem:[%s4182 + $0xc0] sm:$0xff]
    %v4208 = vld [vmem:[%s4182 + $0xc8] sm:$0xff]
    %v4209 = vld [vmem:[%s4182 + $0xd0] sm:$0xff]
    %v4210 = vld [vmem:[%s4182 + $0xd8] sm:$0xff]
    %v4211 = vld [vmem:[%s4182 + $0xe0] sm:$0xff]
    %v4212 = vld [vmem:[%s4182 + $0xe8] sm:$0xff]
    %v4213 = vld [vmem:[%s4182 + $0xf0] sm:$0xff]
    %v4214 = vld [vmem:[%s4182 + $0xf8] sm:$0xff]
    %v4215 = vld [vmem:[%s4182 + $0x100] sm:$0xff]
    %v4216 = vld [vmem:[%s4182 + $0x108] sm:$0xff]
    %v4217 = vld [vmem:[%s4182 + $0x110] sm:$0xff]
    %v4218 = vld [vmem:[%s4182 + $0x118] sm:$0xff]
    %v4219 = vld [vmem:[%s4182 + $0x120] sm:$0xff]
    %v4220 = vld [vmem:[%s4182 + $0x128] sm:$0xff]
    %v4221 = vld [vmem:[%s4182 + $0x130] sm:$0xff]
    %v4222 = vld [vmem:[%s4182 + $0x138] sm:$0xff]
    %v4223 = vld [vmem:[%s4182 + $0x140] sm:$0xff]
    %v4224 = vld [vmem:[%s4182 + $0x148] sm:$0xff]
    %v4225 = vld [vmem:[%s4182 + $0x150] sm:$0xff]
    %v4226 = vld [vmem:[%s4182 + $0x158] sm:$0xff]
    %v4227 = vld [vmem:[%s4182 + $0x160] sm:$0xff]
    %v4228 = vld [vmem:[%s4182 + $0x168] sm:$0xff]
    %v4229 = vld [vmem:[%s4182 + $0x170] sm:$0xff]
    %v4230 = vld [vmem:[%s4182 + $0x178] sm:$0xff]
    %v4231 = vld [vmem:[%s4182 + $0x180] sm:$0xff]
    %v4232 = vld [vmem:[%s4182 + $0x188] sm:$0xff]
    %v4233 = vld [vmem:[%s4182 + $0x190] sm:$0xff]
    %v4234 = vld [vmem:[%s4182 + $0x198] sm:$0xff]
    %v4235 = vld [vmem:[%s4182 + $0x1a0] sm:$0xff]
    %v4236 = vld [vmem:[%s4182 + $0x1a8] sm:$0xff]
    %v4237 = vld [vmem:[%s4182 + $0x1b0] sm:$0xff]
    %v4238 = vld [vmem:[%s4182 + $0x1b8] sm:$0xff]
    %v4239 = vld [vmem:[%s4182 + $0x1c0] sm:$0xff]
    %v4240 = vld [vmem:[%s4182 + $0x1c8] sm:$0xff]
    %v4241 = vld [vmem:[%s4182 + $0x1d0] sm:$0xff]
    %v4242 = vld [vmem:[%s4182 + $0x1d8] sm:$0xff]
    %v4243 = vld [vmem:[%s4182 + $0x1e0] sm:$0xff]
    %v4244 = vld [vmem:[%s4182 + $0x1e8] sm:$0xff]
    %v4245 = vld [vmem:[%s4182 + $0x1f0] sm:$0xff]
    %v4246 = vld [vmem:[%s4182 + $0x1f8] sm:$0xff]
    %v4247 = vld [vmem:[%s4182 + $0x200] sm:$0xff]
    %v4248 = vld [vmem:[%s4182 + $0x208] sm:$0xff]
    %v4249 = vld [vmem:[%s4182 + $0x210] sm:$0xff]
    %v4250 = vld [vmem:[%s4182 + $0x218] sm:$0xff]
    %v4251 = vld [vmem:[%s4182 + $0x220] sm:$0xff]
    %v4252 = vld [vmem:[%s4182 + $0x228] sm:$0xff]
    %v4253 = vld [vmem:[%s4182 + $0x230] sm:$0xff]
    %v4254 = vld [vmem:[%s4182 + $0x238] sm:$0xff]
    %v4255 = vld [vmem:[%s4182 + $0x240] sm:$0xff]
    %v4256 = vld [vmem:[%s4182 + $0x248] sm:$0xff]
    %v4257 = vld [vmem:[%s4182 + $0x250] sm:$0xff]
    %v4258 = vld [vmem:[%s4182 + $0x258] sm:$0xff]
    %v4259 = vld [vmem:[%s4182 + $0x260] sm:$0xff]
    %v4260 = vld [vmem:[%s4182 + $0x268] sm:$0xff]
    %v4261 = vld [vmem:[%s4182 + $0x270] sm:$0xff]
    %v4262 = vld [vmem:[%s4182 + $0x278] sm:$0xff]
    %v4263 = vld [vmem:[%s4182 + $0x280] sm:$0xff]
    %v4264 = vld [vmem:[%s4182 + $0x288] sm:$0xff]
    %v4265 = vld [vmem:[%s4182 + $0x290] sm:$0xff]
    %v4266 = vld [vmem:[%s4182 + $0x298] sm:$0xff]
    %v4267 = vld [vmem:[%s4182 + $0x2a0] sm:$0xff]
    %v4268 = vld [vmem:[%s4182 + $0x2a8] sm:$0xff]
    %v4269 = vld [vmem:[%s4182 + $0x2b0] sm:$0xff]
    %v4270 = vld [vmem:[%s4182 + $0x2b8] sm:$0xff]
    %v4271 = vld [vmem:[%s4182 + $0x2c0] sm:$0xff]
    %v4272 = vld [vmem:[%s4182 + $0x2c8] sm:$0xff]
    %v4273 = vld [vmem:[%s4182 + $0x2d0] sm:$0xff]
    %v4274 = vld [vmem:[%s4182 + $0x2d8] sm:$0xff]
    %v4275 = vld [vmem:[%s4182 + $0x2e0] sm:$0xff]
    %v4276 = vld [vmem:[%s4182 + $0x2e8] sm:$0xff]
    %v4277 = vld [vmem:[%s4182 + $0x2f0] sm:$0xff]
    %v4278 = vld [vmem:[%s4182 + $0x2f8] sm:$0xff]
    %v4375 = vunpack.c.l.b16 %v4183
    %v4376 = vunpack.c.h.b16 %v4183
    %v4377 = vunpack.c.l.b16 %v4184
    %v4378 = vunpack.c.h.b16 %v4184
    %v4379 = vunpack.c.l.b16 %v4185
    %v4380 = vunpack.c.h.b16 %v4185
    %v4381 = vunpack.c.l.b16 %v4186
    %v4382 = vunpack.c.h.b16 %v4186
    %v4383 = vunpack.c.l.b16 %v4187
    %v4384 = vunpack.c.h.b16 %v4187
    %v4385 = vunpack.c.l.b16 %v4188
    %v4386 = vunpack.c.h.b16 %v4188
    %v4387 = vunpack.c.l.b16 %v4189
    %v4388 = vunpack.c.h.b16 %v4189
    %v4389 = vunpack.c.l.b16 %v4190
    %v4390 = vunpack.c.h.b16 %v4190
    %v4391 = vunpack.c.l.b16 %v4191
    %v4392 = vunpack.c.h.b16 %v4191
    %v4393 = vunpack.c.l.b16 %v4192
    %v4394 = vunpack.c.h.b16 %v4192
    %v4395 = vunpack.c.l.b16 %v4193
    %v4396 = vunpack.c.h.b16 %v4193
    %v4397 = vunpack.c.l.b16 %v4194
    %v4398 = vunpack.c.h.b16 %v4194
    %v4399 = vunpack.c.l.b16 %v4195
    %v4400 = vunpack.c.h.b16 %v4195
    %v4401 = vunpack.c.l.b16 %v4196
    %v4402 = vunpack.c.h.b16 %v4196
    %v4403 = vunpack.c.l.b16 %v4197
    %v4404 = vunpack.c.h.b16 %v4197
    %v4405 = vunpack.c.l.b16 %v4198
    %v4406 = vunpack.c.h.b16 %v4198
    %v4407 = vunpack.c.l.b16 %v4199
    %v4408 = vunpack.c.h.b16 %v4199
    %v4409 = vunpack.c.l.b16 %v4200
    %v4410 = vunpack.c.h.b16 %v4200
    %v4411 = vunpack.c.l.b16 %v4201
    %v4412 = vunpack.c.h.b16 %v4201
    %v4413 = vunpack.c.l.b16 %v4202
    %v4414 = vunpack.c.h.b16 %v4202
    %v4415 = vunpack.c.l.b16 %v4203
    %v4416 = vunpack.c.h.b16 %v4203
    %v4417 = vunpack.c.l.b16 %v4204
    %v4418 = vunpack.c.h.b16 %v4204
    %v4419 = vunpack.c.l.b16 %v4205
    %v4420 = vunpack.c.h.b16 %v4205
    %v4421 = vunpack.c.l.b16 %v4206
    %v4422 = vunpack.c.h.b16 %v4206
    %v4423 = vunpack.c.l.b16 %v4207
    %v4424 = vunpack.c.h.b16 %v4207
    %v4425 = vunpack.c.l.b16 %v4208
    %v4426 = vunpack.c.h.b16 %v4208
    %v4427 = vunpack.c.l.b16 %v4209
    %v4428 = vunpack.c.h.b16 %v4209
    %v4429 = vunpack.c.l.b16 %v4210
    %v4430 = vunpack.c.h.b16 %v4210
    %v4431 = vunpack.c.l.b16 %v4211
    %v4432 = vunpack.c.h.b16 %v4211
    %v4433 = vunpack.c.l.b16 %v4212
    %v4434 = vunpack.c.h.b16 %v4212
    %v4435 = vunpack.c.l.b16 %v4213
    %v4436 = vunpack.c.h.b16 %v4213
    %v4437 = vunpack.c.l.b16 %v4214
    %v4438 = vunpack.c.h.b16 %v4214
    %v4439 = vunpack.c.l.b16 %v4215
    %v4440 = vunpack.c.h.b16 %v4215
    %v4441 = vunpack.c.l.b16 %v4216
    %v4442 = vunpack.c.h.b16 %v4216
    %v4443 = vunpack.c.l.b16 %v4217
    %v4444 = vunpack.c.h.b16 %v4217
    %v4445 = vunpack.c.l.b16 %v4218
    %v4446 = vunpack.c.h.b16 %v4218
    %v4447 = vunpack.c.l.b16 %v4219
    %v4448 = vunpack.c.h.b16 %v4219
    %v4449 = vunpack.c.l.b16 %v4220
    %v4450 = vunpack.c.h.b16 %v4220
    %v4451 = vunpack.c.l.b16 %v4221
    %v4452 = vunpack.c.h.b16 %v4221
    %v4453 = vunpack.c.l.b16 %v4222
    %v4454 = vunpack.c.h.b16 %v4222
    %v4455 = vunpack.c.l.b16 %v4223
    %v4456 = vunpack.c.h.b16 %v4223
    %v4457 = vunpack.c.l.b16 %v4224
    %v4458 = vunpack.c.h.b16 %v4224
    %v4459 = vunpack.c.l.b16 %v4225
    %v4460 = vunpack.c.h.b16 %v4225
    %v4461 = vunpack.c.l.b16 %v4226
    %v4462 = vunpack.c.h.b16 %v4226
    %v4463 = vunpack.c.l.b16 %v4227
    %v4464 = vunpack.c.h.b16 %v4227
    %v4465 = vunpack.c.l.b16 %v4228
    %v4466 = vunpack.c.h.b16 %v4228
    %v4467 = vunpack.c.l.b16 %v4229
    %v4468 = vunpack.c.h.b16 %v4229
    %v4469 = vunpack.c.l.b16 %v4230
    %v4470 = vunpack.c.h.b16 %v4230
    %v4471 = vunpack.c.l.b16 %v4231
    %v4472 = vunpack.c.h.b16 %v4231
    %v4473 = vunpack.c.l.b16 %v4232
    %v4474 = vunpack.c.h.b16 %v4232
    %v4475 = vunpack.c.l.b16 %v4233
    %v4476 = vunpack.c.h.b16 %v4233
    %v4477 = vunpack.c.l.b16 %v4234
    %v4478 = vunpack.c.h.b16 %v4234
    %v4479 = vunpack.c.l.b16 %v4235
    %v4480 = vunpack.c.h.b16 %v4235
    %v4481 = vunpack.c.l.b16 %v4236
    %v4482 = vunpack.c.h.b16 %v4236
    %v4483 = vunpack.c.l.b16 %v4237
    %v4484 = vunpack.c.h.b16 %v4237
    %v4485 = vunpack.c.l.b16 %v4238
    %v4486 = vunpack.c.h.b16 %v4238
    %v4487 = vunpack.c.l.b16 %v4239
    %v4488 = vunpack.c.h.b16 %v4239
    %v4489 = vunpack.c.l.b16 %v4240
    %v4490 = vunpack.c.h.b16 %v4240
    %v4491 = vunpack.c.l.b16 %v4241
    %v4492 = vunpack.c.h.b16 %v4241
    %v4493 = vunpack.c.l.b16 %v4242
    %v4494 = vunpack.c.h.b16 %v4242
    %v4495 = vunpack.c.l.b16 %v4243
    %v4496 = vunpack.c.h.b16 %v4243
    %v4497 = vunpack.c.l.b16 %v4244
    %v4498 = vunpack.c.h.b16 %v4244
    %v4499 = vunpack.c.l.b16 %v4245
    %v4500 = vunpack.c.h.b16 %v4245
    %v4501 = vunpack.c.l.b16 %v4246
    %v4502 = vunpack.c.h.b16 %v4246
    %v4503 = vunpack.c.l.b16 %v4247
    %v4504 = vunpack.c.h.b16 %v4247
    %v4505 = vunpack.c.l.b16 %v4248
    %v4506 = vunpack.c.h.b16 %v4248
    %v4507 = vunpack.c.l.b16 %v4249
    %v4508 = vunpack.c.h.b16 %v4249
    %v4509 = vunpack.c.l.b16 %v4250
    %v4510 = vunpack.c.h.b16 %v4250
    %v4511 = vunpack.c.l.b16 %v4251
    %v4512 = vunpack.c.h.b16 %v4251
    %v4513 = vunpack.c.l.b16 %v4252
    %v4514 = vunpack.c.h.b16 %v4252
    %v4515 = vunpack.c.l.b16 %v4253
    %v4516 = vunpack.c.h.b16 %v4253
    %v4517 = vunpack.c.l.b16 %v4254
    %v4518 = vunpack.c.h.b16 %v4254
    %v4519 = vunpack.c.l.b16 %v4255
    %v4520 = vunpack.c.h.b16 %v4255
    %v4521 = vunpack.c.l.b16 %v4256
    %v4522 = vunpack.c.h.b16 %v4256
    %v4523 = vunpack.c.l.b16 %v4257
    %v4524 = vunpack.c.h.b16 %v4257
    %v4525 = vunpack.c.l.b16 %v4258
    %v4526 = vunpack.c.h.b16 %v4258
    %v4527 = vunpack.c.l.b16 %v4259
    %v4528 = vunpack.c.h.b16 %v4259
    %v4529 = vunpack.c.l.b16 %v4260
    %v4530 = vunpack.c.h.b16 %v4260
    %v4531 = vunpack.c.l.b16 %v4261
    %v4532 = vunpack.c.h.b16 %v4261
    %v4533 = vunpack.c.l.b16 %v4262
    %v4534 = vunpack.c.h.b16 %v4262
    %v4535 = vunpack.c.l.b16 %v4263
    %v4536 = vunpack.c.h.b16 %v4263
    %v4537 = vunpack.c.l.b16 %v4264
    %v4538 = vunpack.c.h.b16 %v4264
    %v4539 = vunpack.c.l.b16 %v4265
    %v4540 = vunpack.c.h.b16 %v4265
    %v4541 = vunpack.c.l.b16 %v4266
    %v4542 = vunpack.c.h.b16 %v4266
    %v4543 = vunpack.c.l.b16 %v4267
    %v4544 = vunpack.c.h.b16 %v4267
    %v4545 = vunpack.c.l.b16 %v4268
    %v4546 = vunpack.c.h.b16 %v4268
    %v4547 = vunpack.c.l.b16 %v4269
    %v4548 = vunpack.c.h.b16 %v4269
    %v4549 = vunpack.c.l.b16 %v4270
    %v4550 = vunpack.c.h.b16 %v4270
    %v4551 = vunpack.c.l.b16 %v4271
    %v4552 = vunpack.c.h.b16 %v4271
    %v4553 = vunpack.c.l.b16 %v4272
    %v4554 = vunpack.c.h.b16 %v4272
    %v4555 = vunpack.c.l.b16 %v4273
    %v4556 = vunpack.c.h.b16 %v4273
    %v4557 = vunpack.c.l.b16 %v4274
    %v4558 = vunpack.c.h.b16 %v4274
    %v4559 = vunpack.c.l.b16 %v4275
    %v4560 = vunpack.c.h.b16 %v4275
    %v4561 = vunpack.c.l.b16 %v4276
    %v4562 = vunpack.c.h.b16 %v4276
    %v4563 = vunpack.c.l.b16 %v4277
    %v4564 = vunpack.c.h.b16 %v4277
    %v4565 = vunpack.c.l.b16 %v4278
    %v4566 = vunpack.c.h.b16 %v4278
    %v4567 = vpack.c.b16 %v4379, %v4375
    %v4568 = vpack.c.b16 %v4380, %v4376
    %v4569 = vpack.c.b16 %v4381, %v4377
    %v4570 = vpack.c.b16 %v4382, %v4378
    %v4571 = vpack.c.b16 %v4387, %v4383
    %v4572 = vpack.c.b16 %v4388, %v4384
    %v4573 = vpack.c.b16 %v4389, %v4385
    %v4574 = vpack.c.b16 %v4390, %v4386
    %v4575 = vpack.c.b16 %v4395, %v4391
    %v4576 = vpack.c.b16 %v4396, %v4392
    %v4577 = vpack.c.b16 %v4397, %v4393
    %v4578 = vpack.c.b16 %v4398, %v4394
    %v4579 = vpack.c.b16 %v4403, %v4399
    %v4580 = vpack.c.b16 %v4404, %v4400
    %v4581 = vpack.c.b16 %v4405, %v4401
    %v4582 = vpack.c.b16 %v4406, %v4402
    %v4583 = vpack.c.b16 %v4411, %v4407
    %v4584 = vpack.c.b16 %v4412, %v4408
    %v4585 = vpack.c.b16 %v4413, %v4409
    %v4586 = vpack.c.b16 %v4414, %v4410
    %v4587 = vpack.c.b16 %v4419, %v4415
    %v4588 = vpack.c.b16 %v4420, %v4416
    %v4589 = vpack.c.b16 %v4421, %v4417
    %v4590 = vpack.c.b16 %v4422, %v4418
    %v4591 = vpack.c.b16 %v4427, %v4423
    %v4592 = vpack.c.b16 %v4428, %v4424
    %v4593 = vpack.c.b16 %v4429, %v4425
    %v4594 = vpack.c.b16 %v4430, %v4426
    %v4595 = vpack.c.b16 %v4435, %v4431
    %v4596 = vpack.c.b16 %v4436, %v4432
    %v4597 = vpack.c.b16 %v4437, %v4433
    %v4598 = vpack.c.b16 %v4438, %v4434
    %v4599 = vpack.c.b16 %v4443, %v4439
    %v4600 = vpack.c.b16 %v4444, %v4440
    %v4601 = vpack.c.b16 %v4445, %v4441
    %v4602 = vpack.c.b16 %v4446, %v4442
    %v4603 = vpack.c.b16 %v4451, %v4447
    %v4604 = vpack.c.b16 %v4452, %v4448
    %v4605 = vpack.c.b16 %v4453, %v4449
    %v4606 = vpack.c.b16 %v4454, %v4450
    %v4607 = vpack.c.b16 %v4459, %v4455
    %v4608 = vpack.c.b16 %v4460, %v4456
    %v4609 = vpack.c.b16 %v4461, %v4457
    %v4610 = vpack.c.b16 %v4462, %v4458
    %v4611 = vpack.c.b16 %v4467, %v4463
    %v4612 = vpack.c.b16 %v4468, %v4464
    %v4613 = vpack.c.b16 %v4469, %v4465
    %v4614 = vpack.c.b16 %v4470, %v4466
    %v4615 = vpack.c.b16 %v4475, %v4471
    %v4616 = vpack.c.b16 %v4476, %v4472
    %v4617 = vpack.c.b16 %v4477, %v4473
    %v4618 = vpack.c.b16 %v4478, %v4474
    %v4619 = vpack.c.b16 %v4483, %v4479
    %v4620 = vpack.c.b16 %v4484, %v4480
    %v4621 = vpack.c.b16 %v4485, %v4481
    %v4622 = vpack.c.b16 %v4486, %v4482
    %v4623 = vpack.c.b16 %v4491, %v4487
    %v4624 = vpack.c.b16 %v4492, %v4488
    %v4625 = vpack.c.b16 %v4493, %v4489
    %v4626 = vpack.c.b16 %v4494, %v4490
    %v4627 = vpack.c.b16 %v4499, %v4495
    %v4628 = vpack.c.b16 %v4500, %v4496
    %v4629 = vpack.c.b16 %v4501, %v4497
    %v4630 = vpack.c.b16 %v4502, %v4498
    %v4631 = vpack.c.b16 %v4507, %v4503
    %v4632 = vpack.c.b16 %v4508, %v4504
    %v4633 = vpack.c.b16 %v4509, %v4505
    %v4634 = vpack.c.b16 %v4510, %v4506
    %v4635 = vpack.c.b16 %v4515, %v4511
    %v4636 = vpack.c.b16 %v4516, %v4512
    %v4637 = vpack.c.b16 %v4517, %v4513
    %v4638 = vpack.c.b16 %v4518, %v4514
    %v4639 = vpack.c.b16 %v4523, %v4519
    %v4640 = vpack.c.b16 %v4524, %v4520
    %v4641 = vpack.c.b16 %v4525, %v4521
    %v4642 = vpack.c.b16 %v4526, %v4522
    %v4643 = vpack.c.b16 %v4531, %v4527
    %v4644 = vpack.c.b16 %v4532, %v4528
    %v4645 = vpack.c.b16 %v4533, %v4529
    %v4646 = vpack.c.b16 %v4534, %v4530
    %v4647 = vpack.c.b16 %v4539, %v4535
    %v4648 = vpack.c.b16 %v4540, %v4536
    %v4649 = vpack.c.b16 %v4541, %v4537
    %v4650 = vpack.c.b16 %v4542, %v4538
    %v4651 = vpack.c.b16 %v4547, %v4543
    %v4652 = vpack.c.b16 %v4548, %v4544
    %v4653 = vpack.c.b16 %v4549, %v4545
    %v4654 = vpack.c.b16 %v4550, %v4546
    %v4655 = vpack.c.b16 %v4555, %v4551
    %v4656 = vpack.c.b16 %v4556, %v4552
    %v4657 = vpack.c.b16 %v4557, %v4553
    %v4658 = vpack.c.b16 %v4558, %v4554
    %v4659 = vpack.c.b16 %v4563, %v4559
    %v4660 = vpack.c.b16 %v4564, %v4560
    %v4661 = vpack.c.b16 %v4565, %v4561
    %v4662 = vpack.c.b16 %v4566, %v4562
    %4759 = vmatprep.subr.bf16.mxu0 %v4568
    %4760 = vmatpush1.bf16.msra.mxu0 %v4567
    %4761 = vmatprep.subr.bf16.mxu0 %v4572
    %4762 = vmatpush1.bf16.msra.mxu0 %v4571
    %4763 = vmatprep.subr.bf16.mxu0 %v4576
    %4764 = vmatpush1.bf16.msra.mxu0 %v4575
    %4765 = vmatprep.subr.bf16.mxu0 %v4580
    %4766 = vmatpush1.bf16.msra.mxu0 %v4579
    %4767 = vmatprep.subr.bf16.mxu0 %v4584
    %4768 = vmatpush1.bf16.msra.mxu0 %v4583
    %4769 = vmatprep.subr.bf16.mxu0 %v4588
    %4770 = vmatpush1.bf16.msra.mxu0 %v4587
    %4771 = vmatprep.subr.bf16.mxu0 %v4592
    %4772 = vmatpush1.bf16.msra.mxu0 %v4591
    %4773 = vmatprep.subr.bf16.mxu0 %v4596
    %4774 = vmatpush1.bf16.msra.mxu0 %v4595
    %4775 = vmatprep.subr.bf16.mxu0 %v4600
    %4776 = vmatpush1.bf16.msra.mxu0 %v4599
    %4777 = vmatprep.subr.bf16.mxu0 %v4604
    %4778 = vmatpush1.bf16.msra.mxu0 %v4603
    %4779 = vmatprep.subr.bf16.mxu0 %v4608
    %4780 = vmatpush1.bf16.msra.mxu0 %v4607
    %4781 = vmatprep.subr.bf16.mxu0 %v4612
    %4782 = vmatpush1.bf16.msra.mxu0 %v4611
    %4783 = vmatprep.subr.bf16.mxu0 %v4616
    %4784 = vmatpush1.bf16.msra.mxu0 %v4615
    %4785 = vmatprep.subr.bf16.mxu0 %v4620
    %4786 = vmatpush1.bf16.msra.mxu0 %v4619
    %4787 = vmatprep.subr.bf16.mxu0 %v4624
    %4788 = vmatpush1.bf16.msra.mxu0 %v4623
    %4789 = vmatprep.subr.bf16.mxu0 %v4628
    %4790 = vmatpush1.bf16.msra.mxu0 %v4627
    %4791 = vmatprep.mubr.bf16.mxu0 %v4180
    %4792 = vmatmul.mubr.bf16.gmra.mrb[0].mxu0 %v4179
    %v4793 = vpop.f32.mrb[0].mxu0
    %v4794 = vadd.f32 0.0, %v4793
    %v4795 = vpop.f32.mrb[0].mxu0
    %v4796 = vadd.f32 0.0, %v4795
    %v4797 = vpop.f32.mrb[0].mxu0
    %v4798 = vadd.f32 0.0, %v4797
    %v4799 = vpop.f32.mrb[0].mxu0
    %v4800 = vadd.f32 0.0, %v4799
    %4801 = vdwg.mxu0
    %4802 = vmatprep.subr.bf16.mxu0 %v4632
    %4803 = vmatpush1.bf16.msra.mxu0 %v4631
    %4804 = vmatprep.subr.bf16.mxu0 %v4636
    %4805 = vmatpush1.bf16.msra.mxu0 %v4635
    %4806 = vmatprep.subr.bf16.mxu0 %v4640
    %4807 = vmatpush1.bf16.msra.mxu0 %v4639
    %4808 = vmatprep.subr.bf16.mxu0 %v4644
    %4809 = vmatpush1.bf16.msra.mxu0 %v4643
    %4810 = vmatprep.subr.bf16.mxu0 %v4648
    %4811 = vmatpush1.bf16.msra.mxu0 %v4647
    %4812 = vmatprep.subr.bf16.mxu0 %v4652
    %4813 = vmatpush1.bf16.msra.mxu0 %v4651
    %4814 = vmatprep.subr.bf16.mxu0 %v4656
    %4815 = vmatpush1.bf16.msra.mxu0 %v4655
    %4816 = vmatprep.subr.bf16.mxu0 %v4660
    %4817 = vmatpush1.bf16.msra.mxu0 %v4659
    %4818 = vmatprep.subr.bf16.mxu0 0
    %4819 = vmatpush1.bf16.msra.mxu0 0
    %4820 = vmatprep.subr.bf16.mxu0 0
    %4821 = vmatpush1.bf16.msra.mxu0 0
    %4822 = vmatprep.subr.bf16.mxu0 0
    %4823 = vmatpush1.bf16.msra.mxu0 0
    %4824 = vmatprep.subr.bf16.mxu0 0
    %4825 = vmatpush1.bf16.msra.mxu0 0
    %4826 = vmatprep.subr.bf16.mxu0 0
    %4827 = vmatpush1.bf16.msra.mxu0 0
    %4828 = vmatprep.subr.bf16.mxu0 0
    %4829 = vmatpush1.bf16.msra.mxu0 0
    %4830 = vmatprep.subr.bf16.mxu0 0
    %4831 = vmatpush1.bf16.msra.mxu0 0
    %4832 = vmatprep.subr.bf16.mxu0 0
    %4833 = vmatpush1.bf16.msra.mxu0 0
    %4834 = vmatprep.mubr.bf16.mxu0 0
    %4835 = vmatmul.mubr.bf16.gmra.mrb[0].mxu0 %v4181
    %v4836 = vpop.f32.mrb[0].mxu0
    %v4837 = vadd.f32 %v4794, %v4836
    %v4838 = vpop.f32.mrb[0].mxu0
    %v4839 = vadd.f32 %v4796, %v4838
    %v4840 = vpop.f32.mrb[0].mxu0
    %v4841 = vadd.f32 %v4798, %v4840
    %v4842 = vpop.f32.mrb[0].mxu0
    %v4843 = vadd.f32 %v4800, %v4842
    %4844 = vdwg.mxu0
    %4845 = vmatprep.subr.bf16.mxu0 %v4570
    %4846 = vmatpush1.bf16.msra.mxu0 %v4569
    %4847 = vmatprep.subr.bf16.mxu0 %v4574
    %4848 = vmatpush1.bf16.msra.mxu0 %v4573
    %4849 = vmatprep.subr.bf16.mxu0 %v4578
    %4850 = vmatpush1.bf16.msra.mxu0 %v4577
    %4851 = vmatprep.subr.bf16.mxu0 %v4582
    %4852 = vmatpush1.bf16.msra.mxu0 %v4581
    %4853 = vmatprep.subr.bf16.mxu0 %v4586
    %4854 = vmatpush1.bf16.msra.mxu0 %v4585
    %4855 = vmatprep.subr.bf16.mxu0 %v4590
    %4856 = vmatpush1.bf16.msra.mxu0 %v4589
    %4857 = vmatprep.subr.bf16.mxu0 %v4594
    %4858 = vmatpush1.bf16.msra.mxu0 %v4593
    %4859 = vmatprep.subr.bf16.mxu0 %v4598
    %4860 = vmatpush1.bf16.msra.mxu0 %v4597
    %4861 = vmatprep.subr.bf16.mxu0 %v4602
    %4862 = vmatpush1.bf16.msra.mxu0 %v4601
    %4863 = vmatprep.subr.bf16.mxu0 %v4606
    %4864 = vmatpush1.bf16.msra.mxu0 %v4605
    %4865 = vmatprep.subr.bf16.mxu0 %v4610
    %4866 = vmatpush1.bf16.msra.mxu0 %v4609
    %4867 = vmatprep.subr.bf16.mxu0 %v4614
    %4868 = vmatpush1.bf16.msra.mxu0 %v4613
    %4869 = vmatprep.subr.bf16.mxu0 %v4618
    %4870 = vmatpush1.bf16.msra.mxu0 %v4617
    %4871 = vmatprep.subr.bf16.mxu0 %v4622
    %4872 = vmatpush1.bf16.msra.mxu0 %v4621
    %4873 = vmatprep.subr.bf16.mxu0 %v4626
    %4874 = vmatpush1.bf16.msra.mxu0 %v4625
    %4875 = vmatprep.subr.bf16.mxu0 %v4630
    %4876 = vmatpush1.bf16.msra.mxu0 %v4629
    %4877 = vmatprep.mubr.bf16.mxu0 %v4180
    %4878 = vmatmul.mubr.bf16.gmra.mrb[0].mxu0 %v4179
    %v4879 = vpop.f32.mrb[0].mxu0
    %v4880 = vadd.f32 0.0, %v4879
    %v4881 = vpop.f32.mrb[0].mxu0
    %v4882 = vadd.f32 0.0, %v4881
    %v4883 = vpop.f32.mrb[0].mxu0
    %v4884 = vadd.f32 0.0, %v4883
    %v4885 = vpop.f32.mrb[0].mxu0
    %v4886 = vadd.f32 0.0, %v4885
    %4887 = vdwg.mxu0
    %4888 = vmatprep.subr.bf16.mxu0 %v4634
    %4889 = vmatpush1.bf16.msra.mxu0 %v4633
    %4890 = vmatprep.subr.bf16.mxu0 %v4638
    %4891 = vmatpush1.bf16.msra.mxu0 %v4637
    %4892 = vmatprep.subr.bf16.mxu0 %v4642
    %4893 = vmatpush1.bf16.msra.mxu0 %v4641
    %4894 = vmatprep.subr.bf16.mxu0 %v4646
    %4895 = vmatpush1.bf16.msra.mxu0 %v4645
    %4896 = vmatprep.subr.bf16.mxu0 %v4650
    %4897 = vmatpush1.bf16.msra.mxu0 %v4649
    %4898 = vmatprep.subr.bf16.mxu0 %v4654
    %4899 = vmatpush1.bf16.msra.mxu0 %v4653
    %4900 = vmatprep.subr.bf16.mxu0 %v4658
    %4901 = vmatpush1.bf16.msra.mxu0 %v4657
    %4902 = vmatprep.subr.bf16.mxu0 %v4662
    %4903 = vmatpush1.bf16.msra.mxu0 %v4661
    %4904 = vmatprep.subr.bf16.mxu0 0
    %4905 = vmatpush1.bf16.msra.mxu0 0
    %4906 = vmatprep.subr.bf16.mxu0 0
    %4907 = vmatpush1.bf16.msra.mxu0 0
    %4908 = vmatprep.subr.bf16.mxu0 0
    %4909 = vmatpush1.bf16.msra.mxu0 0
    %4910 = vmatprep.subr.bf16.mxu0 0
    %4911 = vmatpush1.bf16.msra.mxu0 0
    %4912 = vmatprep.subr.bf16.mxu0 0
    %4913 = vmatpush1.bf16.msra.mxu0 0
    %4914 = vmatprep.subr.bf16.mxu0 0
    %4915 = vmatpush1.bf16.msra.mxu0 0
    %4916 = vmatprep.subr.bf16.mxu0 0
    %4917 = vmatpush1.bf16.msra.mxu0 0
    %4918 = vmatprep.subr.bf16.mxu0 0
    %4919 = vmatpush1.bf16.msra.mxu0 0
    %4920 = vmatprep.mubr.bf16.mxu0 0
    %4921 = vmatmul.mubr.bf16.gmra.mrb[0].mxu0 %v4181
    %v4922 = vpop.f32.mrb[0].mxu0
    %v4923 = vadd.f32 %v4880, %v4922
    %v4924 = vpop.f32.mrb[0].mxu0
    %v4925 = vadd.f32 %v4882, %v4924
    %v4926 = vpop.f32.mrb[0].mxu0
    %v4927 = vadd.f32 %v4884, %v4926
    %v4928 = vpop.f32.mrb[0].mxu0
    %v4929 = vadd.f32 %v4886, %v4928
    %4930 = vdwg.mxu0
    %v4931 = vadd.f32 %v4123, %v4837
    %v4932 = vadd.f32 %v4124, %v4839
    %v4933 = vadd.f32 %v4125, %v4923
    %v4934 = vadd.f32 %v4126, %v4925
    %v4935 = vadd.f32 %v4127, %v4841
    %v4936 = vadd.f32 %v4128, %v4843
    %v4937 = vadd.f32 %v4129, %v4927
    %v4938 = vadd.f32 %v4130, %v4929
    %v4939 = vld [vmem:[#allocation2] sm:$0xf0]
    %v4940 = vld [vmem:[#allocation2 + $0x8] sm:$0xf0]
    %v4941 = vld [vmem:[#allocation2 + $0x10] sm:$0xf0]
    %v4942 = vld [vmem:[#allocation2 + $0x18] sm:$0xf]
    %v4943 = vld [vmem:[#allocation2 + $0x20] sm:$0xf]
    %v4944 = vld [vmem:[#allocation2 + $0x28] sm:$0xf]
    %v4945 = vld [vmem:[#allocation2 + $0x30] sm:$0xf0]
    %v4946 = vld [vmem:[#allocation2 + $0x38] sm:$0xf0]
    %v4947 = vld [vmem:[#allocation2 + $0x40] sm:$0xf0]
    %v4948 = vld [vmem:[#allocation2 + $0x48] sm:$0xf]
    %v4949 = vld [vmem:[#allocation2 + $0x50] sm:$0xf]
    %v4950 = vld [vmem:[#allocation2 + $0x58] sm:$0xf]
    %v4963 = vrot.slane %v4939, 4
    %v4964 = vrot.slane %v4942, 4
    %v4965 = vsel %vm250, %v4963, %v4964
    %v4966 = vrot.slane %v4940, 4
    %v4967 = vrot.slane %v4943, 4
    %v4968 = vsel %vm250, %v4966, %v4967
    %v4969 = vrot.slane %v4941, 4
    %v4970 = vrot.slane %v4944, 4
    %v4971 = vsel %vm250, %v4969, %v4970
    %v4972 = vrot.slane %v4945, 4
    %v4973 = vrot.slane %v4948, 4
    %v4974 = vsel %vm250, %v4972, %v4973
    %v4975 = vrot.slane %v4946, 4
    %v4976 = vrot.slane %v4949, 4
    %v4977 = vsel %vm250, %v4975, %v4976
    %v4978 = vrot.slane %v4947, 4
    %v4979 = vrot.slane %v4950, 4
    %v4980 = vsel %vm250, %v4978, %v4979
    %v4987 = vpack.c.bf16 %v4974, %v4965
    %v4988 = vpack.c.bf16 %v4977, %v4968
    %v4989 = vpack.c.bf16 %v4980, %v4971
    %s4990 = scalar_lea.vmem [#allocation9], 3072
    %v4991 = vld [vmem:[%s4990] sm:$0xff]
    %v4992 = vld [vmem:[%s4990 + $0x8] sm:$0xff]
    %v4993 = vld [vmem:[%s4990 + $0x10] sm:$0xff]
    %v4994 = vld [vmem:[%s4990 + $0x18] sm:$0xff]
    %v4995 = vld [vmem:[%s4990 + $0x20] sm:$0xff]
    %v4996 = vld [vmem:[%s4990 + $0x28] sm:$0xff]
    %v4997 = vld [vmem:[%s4990 + $0x30] sm:$0xff]
    %v4998 = vld [vmem:[%s4990 + $0x38] sm:$0xff]
    %v4999 = vld [vmem:[%s4990 + $0x40] sm:$0xff]
    %v5000 = vld [vmem:[%s4990 + $0x48] sm:$0xff]
    %v5001 = vld [vmem:[%s4990 + $0x50] sm:$0xff]
    %v5002 = vld [vmem:[%s4990 + $0x58] sm:$0xff]
    %v5003 = vld [vmem:[%s4990 + $0x60] sm:$0xff]
    %v5004 = vld [vmem:[%s4990 + $0x68] sm:$0xff]
    %v5005 = vld [vmem:[%s4990 + $0x70] sm:$0xff]
    %v5006 = vld [vmem:[%s4990 + $0x78] sm:$0xff]
    %v5007 = vld [vmem:[%s4990 + $0x80] sm:$0xff]
    %v5008 = vld [vmem:[%s4990 + $0x88] sm:$0xff]
    %v5009 = vld [vmem:[%s4990 + $0x90] sm:$0xff]
    %v5010 = vld [vmem:[%s4990 + $0x98] sm:$0xff]
    %v5011 = vld [vmem:[%s4990 + $0xa0] sm:$0xff]
    %v5012 = vld [vmem:[%s4990 + $0xa8] sm:$0xff]
    %v5013 = vld [vmem:[%s4990 + $0xb0] sm:$0xff]
    %v5014 = vld [vmem:[%s4990 + $0xb8] sm:$0xff]
    %v5015 = vld [vmem:[%s4990 + $0xc0] sm:$0xff]
    %v5016 = vld [vmem:[%s4990 + $0xc8] sm:$0xff]
    %v5017 = vld [vmem:[%s4990 + $0xd0] sm:$0xff]
    %v5018 = vld [vmem:[%s4990 + $0xd8] sm:$0xff]
    %v5019 = vld [vmem:[%s4990 + $0xe0] sm:$0xff]
    %v5020 = vld [vmem:[%s4990 + $0xe8] sm:$0xff]
    %v5021 = vld [vmem:[%s4990 + $0xf0] sm:$0xff]
    %v5022 = vld [vmem:[%s4990 + $0xf8] sm:$0xff]
    %v5023 = vld [vmem:[%s4990 + $0x100] sm:$0xff]
    %v5024 = vld [vmem:[%s4990 + $0x108] sm:$0xff]
    %v5025 = vld [vmem:[%s4990 + $0x110] sm:$0xff]
    %v5026 = vld [vmem:[%s4990 + $0x118] sm:$0xff]
    %v5027 = vld [vmem:[%s4990 + $0x120] sm:$0xff]
    %v5028 = vld [vmem:[%s4990 + $0x128] sm:$0xff]
    %v5029 = vld [vmem:[%s4990 + $0x130] sm:$0xff]
    %v5030 = vld [vmem:[%s4990 + $0x138] sm:$0xff]
    %v5031 = vld [vmem:[%s4990 + $0x140] sm:$0xff]
    %v5032 = vld [vmem:[%s4990 + $0x148] sm:$0xff]
    %v5033 = vld [vmem:[%s4990 + $0x150] sm:$0xff]
    %v5034 = vld [vmem:[%s4990 + $0x158] sm:$0xff]
    %v5035 = vld [vmem:[%s4990 + $0x160] sm:$0xff]
    %v5036 = vld [vmem:[%s4990 + $0x168] sm:$0xff]
    %v5037 = vld [vmem:[%s4990 + $0x170] sm:$0xff]
    %v5038 = vld [vmem:[%s4990 + $0x178] sm:$0xff]
    %v5039 = vld [vmem:[%s4990 + $0x180] sm:$0xff]
    %v5040 = vld [vmem:[%s4990 + $0x188] sm:$0xff]
    %v5041 = vld [vmem:[%s4990 + $0x190] sm:$0xff]
    %v5042 = vld [vmem:[%s4990 + $0x198] sm:$0xff]
    %v5043 = vld [vmem:[%s4990 + $0x1a0] sm:$0xff]
    %v5044 = vld [vmem:[%s4990 + $0x1a8] sm:$0xff]
    %v5045 = vld [vmem:[%s4990 + $0x1b0] sm:$0xff]
    %v5046 = vld [vmem:[%s4990 + $0x1b8] sm:$0xff]
    %v5047 = vld [vmem:[%s4990 + $0x1c0] sm:$0xff]
    %v5048 = vld [vmem:[%s4990 + $0x1c8] sm:$0xff]
    %v5049 = vld [vmem:[%s4990 + $0x1d0] sm:$0xff]
    %v5050 = vld [vmem:[%s4990 + $0x1d8] sm:$0xff]
    %v5051 = vld [vmem:[%s4990 + $0x1e0] sm:$0xff]
    %v5052 = vld [vmem:[%s4990 + $0x1e8] sm:$0xff]
    %v5053 = vld [vmem:[%s4990 + $0x1f0] sm:$0xff]
    %v5054 = vld [vmem:[%s4990 + $0x1f8] sm:$0xff]
    %v5055 = vld [vmem:[%s4990 + $0x200] sm:$0xff]
    %v5056 = vld [vmem:[%s4990 + $0x208] sm:$0xff]
    %v5057 = vld [vmem:[%s4990 + $0x210] sm:$0xff]
    %v5058 = vld [vmem:[%s4990 + $0x218] sm:$0xff]
    %v5059 = vld [vmem:[%s4990 + $0x220] sm:$0xff]
    %v5060 = vld [vmem:[%s4990 + $0x228] sm:$0xff]
    %v5061 = vld [vmem:[%s4990 + $0x230] sm:$0xff]
    %v5062 = vld [vmem:[%s4990 + $0x238] sm:$0xff]
    %v5063 = vld [vmem:[%s4990 + $0x240] sm:$0xff]
    %v5064 = vld [vmem:[%s4990 + $0x248] sm:$0xff]
    %v5065 = vld [vmem:[%s4990 + $0x250] sm:$0xff]
    %v5066 = vld [vmem:[%s4990 + $0x258] sm:$0xff]
    %v5067 = vld [vmem:[%s4990 + $0x260] sm:$0xff]
    %v5068 = vld [vmem:[%s4990 + $0x268] sm:$0xff]
    %v5069 = vld [vmem:[%s4990 + $0x270] sm:$0xff]
    %v5070 = vld [vmem:[%s4990 + $0x278] sm:$0xff]
    %v5071 = vld [vmem:[%s4990 + $0x280] sm:$0xff]
    %v5072 = vld [vmem:[%s4990 + $0x288] sm:$0xff]
    %v5073 = vld [vmem:[%s4990 + $0x290] sm:$0xff]
    %v5074 = vld [vmem:[%s4990 + $0x298] sm:$0xff]
    %v5075 = vld [vmem:[%s4990 + $0x2a0] sm:$0xff]
    %v5076 = vld [vmem:[%s4990 + $0x2a8] sm:$0xff]
    %v5077 = vld [vmem:[%s4990 + $0x2b0] sm:$0xff]
    %v5078 = vld [vmem:[%s4990 + $0x2b8] sm:$0xff]
    %v5079 = vld [vmem:[%s4990 + $0x2c0] sm:$0xff]
    %v5080 = vld [vmem:[%s4990 + $0x2c8] sm:$0xff]
    %v5081 = vld [vmem:[%s4990 + $0x2d0] sm:$0xff]
    %v5082 = vld [vmem:[%s4990 + $0x2d8] sm:$0xff]
    %v5083 = vld [vmem:[%s4990 + $0x2e0] sm:$0xff]
    %v5084 = vld [vmem:[%s4990 + $0x2e8] sm:$0xff]
    %v5085 = vld [vmem:[%s4990 + $0x2f0] sm:$0xff]
    %v5086 = vld [vmem:[%s4990 + $0x2f8] sm:$0xff]
    %v5183 = vunpack.c.l.b16 %v4991
    %v5184 = vunpack.c.h.b16 %v4991
    %v5185 = vunpack.c.l.b16 %v4992
    %v5186 = vunpack.c.h.b16 %v4992
    %v5187 = vunpack.c.l.b16 %v4993
    %v5188 = vunpack.c.h.b16 %v4993
    %v5189 = vunpack.c.l.b16 %v4994
    %v5190 = vunpack.c.h.b16 %v4994
    %v5191 = vunpack.c.l.b16 %v4995
    %v5192 = vunpack.c.h.b16 %v4995
    %v5193 = vunpack.c.l.b16 %v4996
    %v5194 = vunpack.c.h.b16 %v4996
    %v5195 = vunpack.c.l.b16 %v4997
    %v5196 = vunpack.c.h.b16 %v4997
    %v5197 = vunpack.c.l.b16 %v4998
    %v5198 = vunpack.c.h.b16 %v4998
    %v5199 = vunpack.c.l.b16 %v4999
    %v5200 = vunpack.c.h.b16 %v4999
    %v5201 = vunpack.c.l.b16 %v5000
    %v5202 = vunpack.c.h.b16 %v5000
    %v5203 = vunpack.c.l.b16 %v5001
    %v5204 = vunpack.c.h.b16 %v5001
    %v5205 = vunpack.c.l.b16 %v5002
    %v5206 = vunpack.c.h.b16 %v5002
    %v5207 = vunpack.c.l.b16 %v5003
    %v5208 = vunpack.c.h.b16 %v5003
    %v5209 = vunpack.c.l.b16 %v5004
    %v5210 = vunpack.c.h.b16 %v5004
    %v5211 = vunpack.c.l.b16 %v5005
    %v5212 = vunpack.c.h.b16 %v5005
    %v5213 = vunpack.c.l.b16 %v5006
    %v5214 = vunpack.c.h.b16 %v5006
    %v5215 = vunpack.c.l.b16 %v5007
    %v5216 = vunpack.c.h.b16 %v5007
    %v5217 = vunpack.c.l.b16 %v5008
    %v5218 = vunpack.c.h.b16 %v5008
    %v5219 = vunpack.c.l.b16 %v5009
    %v5220 = vunpack.c.h.b16 %v5009
    %v5221 = vunpack.c.l.b16 %v5010
    %v5222 = vunpack.c.h.b16 %v5010
    %v5223 = vunpack.c.l.b16 %v5011
    %v5224 = vunpack.c.h.b16 %v5011
    %v5225 = vunpack.c.l.b16 %v5012
    %v5226 = vunpack.c.h.b16 %v5012
    %v5227 = vunpack.c.l.b16 %v5013
    %v5228 = vunpack.c.h.b16 %v5013
    %v5229 = vunpack.c.l.b16 %v5014
    %v5230 = vunpack.c.h.b16 %v5014
    %v5231 = vunpack.c.l.b16 %v5015
    %v5232 = vunpack.c.h.b16 %v5015
    %v5233 = vunpack.c.l.b16 %v5016
    %v5234 = vunpack.c.h.b16 %v5016
    %v5235 = vunpack.c.l.b16 %v5017
    %v5236 = vunpack.c.h.b16 %v5017
    %v5237 = vunpack.c.l.b16 %v5018
    %v5238 = vunpack.c.h.b16 %v5018
    %v5239 = vunpack.c.l.b16 %v5019
    %v5240 = vunpack.c.h.b16 %v5019
    %v5241 = vunpack.c.l.b16 %v5020
    %v5242 = vunpack.c.h.b16 %v5020
    %v5243 = vunpack.c.l.b16 %v5021
    %v5244 = vunpack.c.h.b16 %v5021
    %v5245 = vunpack.c.l.b16 %v5022
    %v5246 = vunpack.c.h.b16 %v5022
    %v5247 = vunpack.c.l.b16 %v5023
    %v5248 = vunpack.c.h.b16 %v5023
    %v5249 = vunpack.c.l.b16 %v5024
    %v5250 = vunpack.c.h.b16 %v5024
    %v5251 = vunpack.c.l.b16 %v5025
    %v5252 = vunpack.c.h.b16 %v5025
    %v5253 = vunpack.c.l.b16 %v5026
    %v5254 = vunpack.c.h.b16 %v5026
    %v5255 = vunpack.c.l.b16 %v5027
    %v5256 = vunpack.c.h.b16 %v5027
    %v5257 = vunpack.c.l.b16 %v5028
    %v5258 = vunpack.c.h.b16 %v5028
    %v5259 = vunpack.c.l.b16 %v5029
    %v5260 = vunpack.c.h.b16 %v5029
    %v5261 = vunpack.c.l.b16 %v5030
    %v5262 = vunpack.c.h.b16 %v5030
    %v5263 = vunpack.c.l.b16 %v5031
    %v5264 = vunpack.c.h.b16 %v5031
    %v5265 = vunpack.c.l.b16 %v5032
    %v5266 = vunpack.c.h.b16 %v5032
    %v5267 = vunpack.c.l.b16 %v5033
    %v5268 = vunpack.c.h.b16 %v5033
    %v5269 = vunpack.c.l.b16 %v5034
    %v5270 = vunpack.c.h.b16 %v5034
    %v5271 = vunpack.c.l.b16 %v5035
    %v5272 = vunpack.c.h.b16 %v5035
    %v5273 = vunpack.c.l.b16 %v5036
    %v5274 = vunpack.c.h.b16 %v5036
    %v5275 = vunpack.c.l.b16 %v5037
    %v5276 = vunpack.c.h.b16 %v5037
    %v5277 = vunpack.c.l.b16 %v5038
    %v5278 = vunpack.c.h.b16 %v5038
    %v5279 = vunpack.c.l.b16 %v5039
    %v5280 = vunpack.c.h.b16 %v5039
    %v5281 = vunpack.c.l.b16 %v5040
    %v5282 = vunpack.c.h.b16 %v5040
    %v5283 = vunpack.c.l.b16 %v5041
    %v5284 = vunpack.c.h.b16 %v5041
    %v5285 = vunpack.c.l.b16 %v5042
    %v5286 = vunpack.c.h.b16 %v5042
    %v5287 = vunpack.c.l.b16 %v5043
    %v5288 = vunpack.c.h.b16 %v5043
    %v5289 = vunpack.c.l.b16 %v5044
    %v5290 = vunpack.c.h.b16 %v5044
    %v5291 = vunpack.c.l.b16 %v5045
    %v5292 = vunpack.c.h.b16 %v5045
    %v5293 = vunpack.c.l.b16 %v5046
    %v5294 = vunpack.c.h.b16 %v5046
    %v5295 = vunpack.c.l.b16 %v5047
    %v5296 = vunpack.c.h.b16 %v5047
    %v5297 = vunpack.c.l.b16 %v5048
    %v5298 = vunpack.c.h.b16 %v5048
    %v5299 = vunpack.c.l.b16 %v5049
    %v5300 = vunpack.c.h.b16 %v5049
    %v5301 = vunpack.c.l.b16 %v5050
    %v5302 = vunpack.c.h.b16 %v5050
    %v5303 = vunpack.c.l.b16 %v5051
    %v5304 = vunpack.c.h.b16 %v5051
    %v5305 = vunpack.c.l.b16 %v5052
    %v5306 = vunpack.c.h.b16 %v5052
    %v5307 = vunpack.c.l.b16 %v5053
    %v5308 = vunpack.c.h.b16 %v5053
    %v5309 = vunpack.c.l.b16 %v5054
    %v5310 = vunpack.c.h.b16 %v5054
    %v5311 = vunpack.c.l.b16 %v5055
    %v5312 = vunpack.c.h.b16 %v5055
    %v5313 = vunpack.c.l.b16 %v5056
    %v5314 = vunpack.c.h.b16 %v5056
    %v5315 = vunpack.c.l.b16 %v5057
    %v5316 = vunpack.c.h.b16 %v5057
    %v5317 = vunpack.c.l.b16 %v5058
    %v5318 = vunpack.c.h.b16 %v5058
    %v5319 = vunpack.c.l.b16 %v5059
    %v5320 = vunpack.c.h.b16 %v5059
    %v5321 = vunpack.c.l.b16 %v5060
    %v5322 = vunpack.c.h.b16 %v5060
    %v5323 = vunpack.c.l.b16 %v5061
    %v5324 = vunpack.c.h.b16 %v5061
    %v5325 = vunpack.c.l.b16 %v5062
    %v5326 = vunpack.c.h.b16 %v5062
    %v5327 = vunpack.c.l.b16 %v5063
    %v5328 = vunpack.c.h.b16 %v5063
    %v5329 = vunpack.c.l.b16 %v5064
    %v5330 = vunpack.c.h.b16 %v5064
    %v5331 = vunpack.c.l.b16 %v5065
    %v5332 = vunpack.c.h.b16 %v5065
    %v5333 = vunpack.c.l.b16 %v5066
    %v5334 = vunpack.c.h.b16 %v5066
    %v5335 = vunpack.c.l.b16 %v5067
    %v5336 = vunpack.c.h.b16 %v5067
    %v5337 = vunpack.c.l.b16 %v5068
    %v5338 = vunpack.c.h.b16 %v5068
    %v5339 = vunpack.c.l.b16 %v5069
    %v5340 = vunpack.c.h.b16 %v5069
    %v5341 = vunpack.c.l.b16 %v5070
    %v5342 = vunpack.c.h.b16 %v5070
    %v5343 = vunpack.c.l.b16 %v5071
    %v5344 = vunpack.c.h.b16 %v5071
    %v5345 = vunpack.c.l.b16 %v5072
    %v5346 = vunpack.c.h.b16 %v5072
    %v5347 = vunpack.c.l.b16 %v5073
    %v5348 = vunpack.c.h.b16 %v5073
    %v5349 = vunpack.c.l.b16 %v5074
    %v5350 = vunpack.c.h.b16 %v5074
    %v5351 = vunpack.c.l.b16 %v5075
    %v5352 = vunpack.c.h.b16 %v5075
    %v5353 = vunpack.c.l.b16 %v5076
    %v5354 = vunpack.c.h.b16 %v5076
    %v5355 = vunpack.c.l.b16 %v5077
    %v5356 = vunpack.c.h.b16 %v5077
    %v5357 = vunpack.c.l.b16 %v5078
    %v5358 = vunpack.c.h.b16 %v5078
    %v5359 = vunpack.c.l.b16 %v5079
    %v5360 = vunpack.c.h.b16 %v5079
    %v5361 = vunpack.c.l.b16 %v5080
    %v5362 = vunpack.c.h.b16 %v5080
    %v5363 = vunpack.c.l.b16 %v5081
    %v5364 = vunpack.c.h.b16 %v5081
    %v5365 = vunpack.c.l.b16 %v5082
    %v5366 = vunpack.c.h.b16 %v5082
    %v5367 = vunpack.c.l.b16 %v5083
    %v5368 = vunpack.c.h.b16 %v5083
    %v5369 = vunpack.c.l.b16 %v5084
    %v5370 = vunpack.c.h.b16 %v5084
    %v5371 = vunpack.c.l.b16 %v5085
    %v5372 = vunpack.c.h.b16 %v5085
    %v5373 = vunpack.c.l.b16 %v5086
    %v5374 = vunpack.c.h.b16 %v5086
    %v5375 = vpack.c.b16 %v5187, %v5183
    %v5376 = vpack.c.b16 %v5188, %v5184
    %v5377 = vpack.c.b16 %v5189, %v5185
    %v5378 = vpack.c.b16 %v5190, %v5186
    %v5379 = vpack.c.b16 %v5195, %v5191
    %v5380 = vpack.c.b16 %v5196, %v5192
    %v5381 = vpack.c.b16 %v5197, %v5193
    %v5382 = vpack.c.b16 %v5198, %v5194
    %v5383 = vpack.c.b16 %v5203, %v5199
    %v5384 = vpack.c.b16 %v5204, %v5200
    %v5385 = vpack.c.b16 %v5205, %v5201
    %v5386 = vpack.c.b16 %v5206, %v5202
    %v5387 = vpack.c.b16 %v5211, %v5207
    %v5388 = vpack.c.b16 %v5212, %v5208
    %v5389 = vpack.c.b16 %v5213, %v5209
    %v5390 = vpack.c.b16 %v5214, %v5210
    %v5391 = vpack.c.b16 %v5219, %v5215
    %v5392 = vpack.c.b16 %v5220, %v5216
    %v5393 = vpack.c.b16 %v5221, %v5217
    %v5394 = vpack.c.b16 %v5222, %v5218
    %v5395 = vpack.c.b16 %v5227, %v5223
    %v5396 = vpack.c.b16 %v5228, %v5224
    %v5397 = vpack.c.b16 %v5229, %v5225
    %v5398 = vpack.c.b16 %v5230, %v5226
    %v5399 = vpack.c.b16 %v5235, %v5231
    %v5400 = vpack.c.b16 %v5236, %v5232
    %v5401 = vpack.c.b16 %v5237, %v5233
    %v5402 = vpack.c.b16 %v5238, %v5234
    %v5403 = vpack.c.b16 %v5243, %v5239
    %v5404 = vpack.c.b16 %v5244, %v5240
    %v5405 = vpack.c.b16 %v5245, %v5241
    %v5406 = vpack.c.b16 %v5246, %v5242
    %v5407 = vpack.c.b16 %v5251, %v5247
    %v5408 = vpack.c.b16 %v5252, %v5248
    %v5409 = vpack.c.b16 %v5253, %v5249
    %v5410 = vpack.c.b16 %v5254, %v5250
    %v5411 = vpack.c.b16 %v5259, %v5255
    %v5412 = vpack.c.b16 %v5260, %v5256
    %v5413 = vpack.c.b16 %v5261, %v5257
    %v5414 = vpack.c.b16 %v5262, %v5258
    %v5415 = vpack.c.b16 %v5267, %v5263
    %v5416 = vpack.c.b16 %v5268, %v5264
    %v5417 = vpack.c.b16 %v5269, %v5265
    %v5418 = vpack.c.b16 %v5270, %v5266
    %v5419 = vpack.c.b16 %v5275, %v5271
    %v5420 = vpack.c.b16 %v5276, %v5272
    %v5421 = vpack.c.b16 %v5277, %v5273
    %v5422 = vpack.c.b16 %v5278, %v5274
    %v5423 = vpack.c.b16 %v5283, %v5279
    %v5424 = vpack.c.b16 %v5284, %v5280
    %v5425 = vpack.c.b16 %v5285, %v5281
    %v5426 = vpack.c.b16 %v5286, %v5282
    %v5427 = vpack.c.b16 %v5291, %v5287
    %v5428 = vpack.c.b16 %v5292, %v5288
    %v5429 = vpack.c.b16 %v5293, %v5289
    %v5430 = vpack.c.b16 %v5294, %v5290
    %v5431 = vpack.c.b16 %v5299, %v5295
    %v5432 = vpack.c.b16 %v5300, %v5296
    %v5433 = vpack.c.b16 %v5301, %v5297
    %v5434 = vpack.c.b16 %v5302, %v5298
    %v5435 = vpack.c.b16 %v5307, %v5303
    %v5436 = vpack.c.b16 %v5308, %v5304
    %v5437 = vpack.c.b16 %v5309, %v5305
    %v5438 = vpack.c.b16 %v5310, %v5306
    %v5439 = vpack.c.b16 %v5315, %v5311
    %v5440 = vpack.c.b16 %v5316, %v5312
    %v5441 = vpack.c.b16 %v5317, %v5313
    %v5442 = vpack.c.b16 %v5318, %v5314
    %v5443 = vpack.c.b16 %v5323, %v5319
    %v5444 = vpack.c.b16 %v5324, %v5320
    %v5445 = vpack.c.b16 %v5325, %v5321
    %v5446 = vpack.c.b16 %v5326, %v5322
    %v5447 = vpack.c.b16 %v5331, %v5327
    %v5448 = vpack.c.b16 %v5332, %v5328
    %v5449 = vpack.c.b16 %v5333, %v5329
    %v5450 = vpack.c.b16 %v5334, %v5330
    %v5451 = vpack.c.b16 %v5339, %v5335
    %v5452 = vpack.c.b16 %v5340, %v5336
    %v5453 = vpack.c.b16 %v5341, %v5337
    %v5454 = vpack.c.b16 %v5342, %v5338
    %v5455 = vpack.c.b16 %v5347, %v5343
    %v5456 = vpack.c.b16 %v5348, %v5344
    %v5457 = vpack.c.b16 %v5349, %v5345
    %v5458 = vpack.c.b16 %v5350, %v5346
    %v5459 = vpack.c.b16 %v5355, %v5351
    %v5460 = vpack.c.b16 %v5356, %v5352
    %v5461 = vpack.c.b16 %v5357, %v5353
    %v5462 = vpack.c.b16 %v5358, %v5354
    %v5463 = vpack.c.b16 %v5363, %v5359
    %v5464 = vpack.c.b16 %v5364, %v5360
    %v5465 = vpack.c.b16 %v5365, %v5361
    %v5466 = vpack.c.b16 %v5366, %v5362
    %v5467 = vpack.c.b16 %v5371, %v5367
    %v5468 = vpack.c.b16 %v5372, %v5368
    %v5469 = vpack.c.b16 %v5373, %v5369
    %v5470 = vpack.c.b16 %v5374, %v5370
    %5567 = vmatprep.subr.bf16.mxu0 %v5376
    %5568 = vmatpush1.bf16.msra.mxu0 %v5375
    %5569 = vmatprep.subr.bf16.mxu0 %v5380
    %5570 = vmatpush1.bf16.msra.mxu0 %v5379
    %5571 = vmatprep.subr.bf16.mxu0 %v5384
    %5572 = vmatpush1.bf16.msra.mxu0 %v5383
    %5573 = vmatprep.subr.bf16.mxu0 %v5388
    %5574 = vmatpush1.bf16.msra.mxu0 %v5387
    %5575 = vmatprep.subr.bf16.mxu0 %v5392
    %5576 = vmatpush1.bf16.msra.mxu0 %v5391
    %5577 = vmatprep.subr.bf16.mxu0 %v5396
    %5578 = vmatpush1.bf16.msra.mxu0 %v5395
    %5579 = vmatprep.subr.bf16.mxu0 %v5400
    %5580 = vmatpush1.bf16.msra.mxu0 %v5399
    %5581 = vmatprep.subr.bf16.mxu0 %v5404
    %5582 = vmatpush1.bf16.msra.mxu0 %v5403
    %5583 = vmatprep.subr.bf16.mxu0 %v5408
    %5584 = vmatpush1.bf16.msra.mxu0 %v5407
    %5585 = vmatprep.subr.bf16.mxu0 %v5412
    %5586 = vmatpush1.bf16.msra.mxu0 %v5411
    %5587 = vmatprep.subr.bf16.mxu0 %v5416
    %5588 = vmatpush1.bf16.msra.mxu0 %v5415
    %5589 = vmatprep.subr.bf16.mxu0 %v5420
    %5590 = vmatpush1.bf16.msra.mxu0 %v5419
    %5591 = vmatprep.subr.bf16.mxu0 %v5424
    %5592 = vmatpush1.bf16.msra.mxu0 %v5423
    %5593 = vmatprep.subr.bf16.mxu0 %v5428
    %5594 = vmatpush1.bf16.msra.mxu0 %v5427
    %5595 = vmatprep.subr.bf16.mxu0 %v5432
    %5596 = vmatpush1.bf16.msra.mxu0 %v5431
    %5597 = vmatprep.subr.bf16.mxu0 %v5436
    %5598 = vmatpush1.bf16.msra.mxu0 %v5435
    %5599 = vmatprep.mubr.bf16.mxu0 %v4988
    %5600 = vmatmul.mubr.bf16.gmra.mrb[0].mxu0 %v4987
    %v5601 = vpop.f32.mrb[0].mxu0
    %v5602 = vadd.f32 0.0, %v5601
    %v5603 = vpop.f32.mrb[0].mxu0
    %v5604 = vadd.f32 0.0, %v5603
    %v5605 = vpop.f32.mrb[0].mxu0
    %v5606 = vadd.f32 0.0, %v5605
    %v5607 = vpop.f32.mrb[0].mxu0
    %v5608 = vadd.f32 0.0, %v5607
    %5609 = vdwg.mxu0
    %5610 = vmatprep.subr.bf16.mxu0 %v5440
    %5611 = vmatpush1.bf16.msra.mxu0 %v5439
    %5612 = vmatprep.subr.bf16.mxu0 %v5444
    %5613 = vmatpush1.bf16.msra.mxu0 %v5443
    %5614 = vmatprep.subr.bf16.mxu0 %v5448
    %5615 = vmatpush1.bf16.msra.mxu0 %v5447
    %5616 = vmatprep.subr.bf16.mxu0 %v5452
    %5617 = vmatpush1.bf16.msra.mxu0 %v5451
    %5618 = vmatprep.subr.bf16.mxu0 %v5456
    %5619 = vmatpush1.bf16.msra.mxu0 %v5455
    %5620 = vmatprep.subr.bf16.mxu0 %v5460
    %5621 = vmatpush1.bf16.msra.mxu0 %v5459
    %5622 = vmatprep.subr.bf16.mxu0 %v5464
    %5623 = vmatpush1.bf16.msra.mxu0 %v5463
    %5624 = vmatprep.subr.bf16.mxu0 %v5468
    %5625 = vmatpush1.bf16.msra.mxu0 %v5467
    %5626 = vmatprep.subr.bf16.mxu0 0
    %5627 = vmatpush1.bf16.msra.mxu0 0
    %5628 = vmatprep.subr.bf16.mxu0 0
    %5629 = vmatpush1.bf16.msra.mxu0 0
    %5630 = vmatprep.subr.bf16.mxu0 0
    %5631 = vmatpush1.bf16.msra.mxu0 0
    %5632 = vmatprep.subr.bf16.mxu0 0
    %5633 = vmatpush1.bf16.msra.mxu0 0
    %5634 = vmatprep.subr.bf16.mxu0 0
    %5635 = vmatpush1.bf16.msra.mxu0 0
    %5636 = vmatprep.subr.bf16.mxu0 0
    %5637 = vmatpush1.bf16.msra.mxu0 0
    %5638 = vmatprep.subr.bf16.mxu0 0
    %5639 = vmatpush1.bf16.msra.mxu0 0
    %5640 = vmatprep.subr.bf16.mxu0 0
    %5641 = vmatpush1.bf16.msra.mxu0 0
    %5642 = vmatprep.mubr.bf16.mxu0 0
    %5643 = vmatmul.mubr.bf16.gmra.mrb[0].mxu0 %v4989
    %v5644 = vpop.f32.mrb[0].mxu0
    %v5645 = vadd.f32 %v5602, %v5644
    %v5646 = vpop.f32.mrb[0].mxu0
    %v5647 = vadd.f32 %v5604, %v5646
    %v5648 = vpop.f32.mrb[0].mxu0
    %v5649 = vadd.f32 %v5606, %v5648
    %v5650 = vpop.f32.mrb[0].mxu0
    %v5651 = vadd.f32 %v5608, %v5650
    %5652 = vdwg.mxu0
    %5653 = vmatprep.subr.bf16.mxu0 %v5378
    %5654 = vmatpush1.bf16.msra.mxu0 %v5377
    %5655 = vmatprep.subr.bf16.mxu0 %v5382
    %5656 = vmatpush1.bf16.msra.mxu0 %v5381
    %5657 = vmatprep.subr.bf16.mxu0 %v5386
    %5658 = vmatpush1.bf16.msra.mxu0 %v5385
    %5659 = vmatprep.subr.bf16.mxu0 %v5390
    %5660 = vmatpush1.bf16.msra.mxu0 %v5389
    %5661 = vmatprep.subr.bf16.mxu0 %v5394
    %5662 = vmatpush1.bf16.msra.mxu0 %v5393
    %5663 = vmatprep.subr.bf16.mxu0 %v5398
    %5664 = vmatpush1.bf16.msra.mxu0 %v5397
    %5665 = vmatprep.subr.bf16.mxu0 %v5402
    %5666 = vmatpush1.bf16.msra.mxu0 %v5401
    %5667 = vmatprep.subr.bf16.mxu0 %v5406
    %5668 = vmatpush1.bf16.msra.mxu0 %v5405
    %5669 = vmatprep.subr.bf16.mxu0 %v5410
    %5670 = vmatpush1.bf16.msra.mxu0 %v5409
    %5671 = vmatprep.subr.bf16.mxu0 %v5414
    %5672 = vmatpush1.bf16.msra.mxu0 %v5413
    %5673 = vmatprep.subr.bf16.mxu0 %v5418
    %5674 = vmatpush1.bf16.msra.mxu0 %v5417
    %5675 = vmatprep.subr.bf16.mxu0 %v5422
    %5676 = vmatpush1.bf16.msra.mxu0 %v5421
    %5677 = vmatprep.subr.bf16.mxu0 %v5426
    %5678 = vmatpush1.bf16.msra.mxu0 %v5425
    %5679 = vmatprep.subr.bf16.mxu0 %v5430
    %5680 = vmatpush1.bf16.msra.mxu0 %v5429
    %5681 = vmatprep.subr.bf16.mxu0 %v5434
    %5682 = vmatpush1.bf16.msra.mxu0 %v5433
    %5683 = vmatprep.subr.bf16.mxu0 %v5438
    %5684 = vmatpush1.bf16.msra.mxu0 %v5437
    %5685 = vmatprep.mubr.bf16.mxu0 %v4988
    %5686 = vmatmul.mubr.bf16.gmra.mrb[0].mxu0 %v4987
    %v5687 = vpop.f32.mrb[0].mxu0
    %v5688 = vadd.f32 0.0, %v5687
    %v5689 = vpop.f32.mrb[0].mxu0
    %v5690 = vadd.f32 0.0, %v5689
    %v5691 = vpop.f32.mrb[0].mxu0
    %v5692 = vadd.f32 0.0, %v5691
    %v5693 = vpop.f32.mrb[0].mxu0
    %v5694 = vadd.f32 0.0, %v5693
    %5695 = vdwg.mxu0
    %5696 = vmatprep.subr.bf16.mxu0 %v5442
    %5697 = vmatpush1.bf16.msra.mxu0 %v5441
    %5698 = vmatprep.subr.bf16.mxu0 %v5446
    %5699 = vmatpush1.bf16.msra.mxu0 %v5445
    %5700 = vmatprep.subr.bf16.mxu0 %v5450
    %5701 = vmatpush1.bf16.msra.mxu0 %v5449
    %5702 = vmatprep.subr.bf16.mxu0 %v5454
    %5703 = vmatpush1.bf16.msra.mxu0 %v5453
    %5704 = vmatprep.subr.bf16.mxu0 %v5458
    %5705 = vmatpush1.bf16.msra.mxu0 %v5457
    %5706 = vmatprep.subr.bf16.mxu0 %v5462
    %5707 = vmatpush1.bf16.msra.mxu0 %v5461
    %5708 = vmatprep.subr.bf16.mxu0 %v5466
    %5709 = vmatpush1.bf16.msra.mxu0 %v5465
    %5710 = vmatprep.subr.bf16.mxu0 %v5470
    %5711 = vmatpush1.bf16.msra.mxu0 %v5469
    %5712 = vmatprep.subr.bf16.mxu0 0
    %5713 = vmatpush1.bf16.msra.mxu0 0
    %5714 = vmatprep.subr.bf16.mxu0 0
    %5715 = vmatpush1.bf16.msra.mxu0 0
    %5716 = vmatprep.subr.bf16.mxu0 0
    %5717 = vmatpush1.bf16.msra.mxu0 0
    %5718 = vmatprep.subr.bf16.mxu0 0
    %5719 = vmatpush1.bf16.msra.mxu0 0
    %5720 = vmatprep.subr.bf16.mxu0 0
    %5721 = vmatpush1.bf16.msra.mxu0 0
    %5722 = vmatprep.subr.bf16.mxu0 0
    %5723 = vmatpush1.bf16.msra.mxu0 0
    %5724 = vmatprep.subr.bf16.mxu0 0
    %5725 = vmatpush1.bf16.msra.mxu0 0
    %5726 = vmatprep.subr.bf16.mxu0 0
    %5727 = vmatpush1.bf16.msra.mxu0 0
    %5728 = vmatprep.mubr.bf16.mxu0 0
    %5729 = vmatmul.mubr.bf16.gmra.mrb[0].mxu0 %v4989
    %v5730 = vpop.f32.mrb[0].mxu0
    %v5731 = vadd.f32 %v5688, %v5730
    %v5732 = vpop.f32.mrb[0].mxu0
    %v5733 = vadd.f32 %v5690, %v5732
    %v5734 = vpop.f32.mrb[0].mxu0
    %v5735 = vadd.f32 %v5692, %v5734
    %v5736 = vpop.f32.mrb[0].mxu0
    %v5737 = vadd.f32 %v5694, %v5736
    %5738 = vdwg.mxu0
    %v5739 = vadd.f32 %v4931, %v5645
    %v5740 = vadd.f32 %v4932, %v5647
    %v5741 = vadd.f32 %v4933, %v5731
    %v5742 = vadd.f32 %v4934, %v5733
    %v5743 = vadd.f32 %v4935, %v5649
    %v5744 = vadd.f32 %v4936, %v5651
    %v5745 = vadd.f32 %v4937, %v5735
    %v5746 = vadd.f32 %v4938, %v5737
    %v5747 = vld [vmem:[#allocation10] sm:$0xf]
    %v5749 = vlaneseq
    %v5750 = vshrl.u32 %v5749, 7
    %v5751 = vsub.s32 0, %v5750
    %v5752 = vrot.slane %v5747, %v5751
    %v5753 = vlaneseq
    %v5754 = vshrl.u32 %v5753, 7
    %v5755 = vsub.s32 1, %v5754
    %v5756 = vrot.slane %v5747, %v5755
    %v5757 = vlaneseq
    %v5758 = vshrl.u32 %v5757, 7
    %v5759 = vsub.s32 2, %v5758
    %v5760 = vrot.slane %v5747, %v5759
    %v5761 = vlaneseq
    %v5762 = vshrl.u32 %v5761, 7
    %v5763 = vsub.s32 3, %v5762
    %v5764 = vrot.slane %v5747, %v5763
    %v5769 = vadd.f32 %v5739, %v5752
    %v5770 = vadd.f32 %v5740, %v5756
    %v5771 = vadd.f32 %v5741, %v5760
    %v5772 = vadd.f32 %v5742, %v5764
    %v5773 = vadd.f32 %v5743, %v5752
    %v5774 = vadd.f32 %v5744, %v5756
    %v5775 = vadd.f32 %v5745, %v5760
    %v5776 = vadd.f32 %v5746, %v5764
    %v5777 = vmax.f32 %v5769, 0.0
    %v5778 = vmax.f32 %v5770, 0.0
    %v5779 = vmax.f32 %v5771, 0.0
    %v5780 = vmax.f32 %v5772, 0.0
    %v5781 = vmax.f32 %v5773, 0.0
    %v5782 = vmax.f32 %v5774, 0.0
    %v5783 = vmax.f32 %v5775, 0.0
    %v5784 = vmax.f32 %v5776, 0.0
    %v5793 = vrot.slane %v5777, 1
    %v5794 = vrot.slane %v5778, 1
    %v5795 = vrot.slane %v5779, 1
    %v5796 = vrot.slane %v5780, 1
    %v5797 = vrot.slane %v5781, 1
    %v5798 = vrot.slane %v5782, 1
    %v5799 = vrot.slane %v5783, 1
    %v5800 = vrot.slane %v5784, 1
    %v5809 = vmax.f32 %v5777, %v5793
    %v5810 = vmax.f32 %v5778, %v5794
    %v5811 = vmax.f32 %v5779, %v5795
    %v5812 = vmax.f32 %v5780, %v5796
    %v5813 = vmax.f32 %v5781, %v5797
    %v5814 = vmax.f32 %v5782, %v5798
    %v5815 = vmax.f32 %v5783, %v5799
    %v5816 = vmax.f32 %v5784, %v5800
    %v5825 = vrot.slane %v5809, 1
    %v5826 = vrot.slane %v5810, 1
    %v5827 = vrot.slane %v5811, 1
    %v5828 = vrot.slane %v5812, 1
    %v5829 = vrot.slane %v5813, 1
    %v5830 = vrot.slane %v5814, 1
    %v5831 = vrot.slane %v5815, 1
    %v5832 = vrot.slane %v5816, 1
    %v5841 = vrot.slane %v5809, 2
    %v5842 = vrot.slane %v5810, 2
    %v5843 = vrot.slane %v5811, 2
    %v5844 = vrot.slane %v5812, 2
    %v5845 = vrot.slane %v5813, 2
    %v5846 = vrot.slane %v5814, 2
    %v5847 = vrot.slane %v5815, 2
    %v5848 = vrot.slane %v5816, 2
    %v5857 = vrot.slane %v5809, 3
    %v5858 = vrot.slane %v5810, 3
    %v5859 = vrot.slane %v5811, 3
    %v5860 = vrot.slane %v5812, 3
    %v5861 = vrot.slane %v5813, 3
    %v5862 = vrot.slane %v5814, 3
    %v5863 = vrot.slane %v5815, 3
    %v5864 = vrot.slane %v5816, 3
    %v5873 = vsel %vm1340, %v5809, %v5825
    %v5874 = vsel %vm1340, %v5810, %v5826
    %v5875 = vsel %vm1340, %v5811, %v5827
    %v5876 = vsel %vm1340, %v5812, %v5828
    %v5877 = vsel %vm1340, %v5813, %v5829
    %v5878 = vsel %vm1340, %v5814, %v5830
    %v5879 = vsel %vm1340, %v5815, %v5831
    %v5880 = vsel %vm1340, %v5816, %v5832
    %v5881 = vsel %vm1353, %v5873, %v5841
    %v5882 = vsel %vm1353, %v5874, %v5842
    %v5883 = vsel %vm1353, %v5875, %v5843
    %v5884 = vsel %vm1353, %v5876, %v5844
    %v5885 = vsel %vm1353, %v5877, %v5845
    %v5886 = vsel %vm1353, %v5878, %v5846
    %v5887 = vsel %vm1353, %v5879, %v5847
    %v5888 = vsel %vm1353, %v5880, %v5848
    %v5889 = vsel %vm1366, %v5881, %v5857
    %v5890 = vsel %vm1366, %v5882, %v5858
    %v5891 = vsel %vm1366, %v5883, %v5859
    %v5892 = vsel %vm1366, %v5884, %v5860
    %v5893 = vsel %vm1366, %v5885, %v5861
    %v5894 = vsel %vm1366, %v5886, %v5862
    %v5895 = vsel %vm1366, %v5887, %v5863
    %v5896 = vsel %vm1366, %v5888, %v5864
    %5899 = vrot.lane.b32.xlu0 %v5889, 64
    %v5900 = vpop.permute.xlu0 %5899
    %5901 = vrot.lane.b32.xlu0 %v5893, 64
    %v5902 = vpop.permute.xlu0 %5901
    %v5905 = vmax.f32 %v5889, %v5900
    %v5906 = vmax.f32 %v5893, %v5902
    %5909 = vrot.lane.b32.xlu0 %v5890, 64
    %v5910 = vpop.permute.xlu0 %5909
    %5911 = vrot.lane.b32.xlu0 %v5894, 64
    %v5912 = vpop.permute.xlu0 %5911
    %v5915 = vmax.f32 %v5890, %v5910
    %v5916 = vmax.f32 %v5894, %v5912
    %5919 = vrot.lane.b32.xlu0 %v5891, 64
    %v5920 = vpop.permute.xlu0 %5919
    %5921 = vrot.lane.b32.xlu0 %v5895, 64
    %v5922 = vpop.permute.xlu0 %5921
    %v5925 = vmax.f32 %v5891, %v5920
    %v5926 = vmax.f32 %v5895, %v5922
    %5929 = vrot.lane.b32.xlu0 %v5892, 64
    %v5930 = vpop.permute.xlu0 %5929
    %5931 = vrot.lane.b32.xlu0 %v5896, 64
    %v5932 = vpop.permute.xlu0 %5931
    %v5935 = vmax.f32 %v5892, %v5930
    %v5936 = vmax.f32 %v5896, %v5932
    %5939 = vrot.lane.b32.xlu0 %v5915, 64
    %v5940 = vpop.permute.xlu0 %5939
    %5941 = vrot.lane.b32.xlu0 %v5916, 64
    %v5942 = vpop.permute.xlu0 %5941
    %5947 = vrot.lane.b32.xlu0 %v5935, 64
    %v5948 = vpop.permute.xlu0 %5947
    %5949 = vrot.lane.b32.xlu0 %v5936, 64
    %v5950 = vpop.permute.xlu0 %5949
    %v5953 = vsel %vm1720, %v5905, %v5940
    %v5954 = vsel %vm1720, %v5906, %v5942
    %v5955 = vsel %vm1720, %v5925, %v5948
    %v5956 = vsel %vm1720, %v5926, %v5950
    %v5961 = vcombine.low %v5953, %v5955
    %v5962 = vcombine.low %v5954, %v5956
    %5965 = vst [vmem:[#allocation3] sm:$0xff] %v5961
    %5966 = vst [vmem:[#allocation3 + $0x8] sm:$0xff] %v5962
    %v5967 = vld [vmem:[#allocation3] ss:$4 sm:$0x3]
    %s5968 = scalar_lea.vmem [#allocation3], 8
    %v5969 = vld [vmem:[%s5968] ss:$4 sm:$0x3]
    %s5970 = scalar_lea.vmem [#allocation3], 1
    %v5971 = vld [vmem:[%s5970] ss:$4 sm:$0x3]
    %s5972 = scalar_lea.vmem [#allocation3], 9
    %v5973 = vld [vmem:[%s5972] ss:$4 sm:$0x3]
    %s5974 = scalar_lea.vmem [#allocation3], 2
    %v5975 = vld [vmem:[%s5974] ss:$4 sm:$0x3]
    %s5976 = scalar_lea.vmem [#allocation3], 10
    %v5977 = vld [vmem:[%s5976] ss:$4 sm:$0x3]
    %s5978 = scalar_lea.vmem [#allocation3], 3
    %v5979 = vld [vmem:[%s5978] ss:$4 sm:$0x3]
    %s5980 = scalar_lea.vmem [#allocation3], 11
    %v5981 = vld [vmem:[%s5980] ss:$4 sm:$0x3]
    %v5984 = vcombine.low %v5967, %v5969
    %v5986 = vunpack.c.l.s4 1966171168
    %v5987 = vunpack.c.0.s8 %v5986
    %v5988 = vlaneseq
    %v5989 = vshrl.u32 %v5988, 7
    %v5990 = vsub.s32 %v5987, %v5989
    %v5991 = vrot.slane %v5984, %v5990
    %v5992 = vcombine.high %v5991, %v5991
    %v5994 = vunpack.c.l.s4 1966171168
    %v5995 = vunpack.c.0.s8 %v5994
    %v5996 = vlaneseq
    %v5997 = vshrl.u32 %v5996, 7
    %v5998 = vsub.s32 %v5995, %v5997
    %v5999 = vrot.slane %v5991, %v5998
    %v6001 = vunpack.c.l.s4 1966171168
    %v6002 = vunpack.c.0.s8 %v6001
    %v6003 = vlaneseq
    %v6004 = vshrl.u32 %v6003, 7
    %v6005 = vsub.s32 %v6002, %v6004
    %v6006 = vrot.slane %v5992, %v6005
    %v6011 = vcombine.low %v5971, %v5973
    %v6013 = vunpack.c.l.s4 1966171168
    %v6014 = vunpack.c.0.s8 %v6013
    %v6015 = vlaneseq
    %v6016 = vshrl.u32 %v6015, 7
    %v6017 = vsub.s32 %v6014, %v6016
    %v6018 = vrot.slane %v6011, %v6017
    %v6019 = vcombine.high %v6018, %v6018
    %v6021 = vunpack.c.l.s4 1966171168
    %v6022 = vunpack.c.0.s8 %v6021
    %v6023 = vlaneseq
    %v6024 = vshrl.u32 %v6023, 7
    %v6025 = vsub.s32 %v6022, %v6024
    %v6026 = vrot.slane %v6018, %v6025
    %v6028 = vunpack.c.l.s4 1966171168
    %v6029 = vunpack.c.0.s8 %v6028
    %v6030 = vlaneseq
    %v6031 = vshrl.u32 %v6030, 7
    %v6032 = vsub.s32 %v6029, %v6031
    %v6033 = vrot.slane %v6019, %v6032
    %v6038 = vcombine.low %v5975, %v5977
    %v6040 = vunpack.c.l.s4 1966171168
    %v6041 = vunpack.c.0.s8 %v6040
    %v6042 = vlaneseq
    %v6043 = vshrl.u32 %v6042, 7
    %v6044 = vsub.s32 %v6041, %v6043
    %v6045 = vrot.slane %v6038, %v6044
    %v6046 = vcombine.high %v6045, %v6045
    %v6048 = vunpack.c.l.s4 1966171168
    %v6049 = vunpack.c.0.s8 %v6048
    %v6050 = vlaneseq
    %v6051 = vshrl.u32 %v6050, 7
    %v6052 = vsub.s32 %v6049, %v6051
    %v6053 = vrot.slane %v6045, %v6052
    %v6055 = vunpack.c.l.s4 1966171168
    %v6056 = vunpack.c.0.s8 %v6055
    %v6057 = vlaneseq
    %v6058 = vshrl.u32 %v6057, 7
    %v6059 = vsub.s32 %v6056, %v6058
    %v6060 = vrot.slane %v6046, %v6059
    %v6065 = vcombine.low %v5979, %v5981
    %v6067 = vunpack.c.l.s4 1966171168
    %v6068 = vunpack.c.0.s8 %v6067
    %v6069 = vlaneseq
    %v6070 = vshrl.u32 %v6069, 7
    %v6071 = vsub.s32 %v6068, %v6070
    %v6072 = vrot.slane %v6065, %v6071
    %v6073 = vcombine.high %v6072, %v6072
    %v6075 = vunpack.c.l.s4 1966171168
    %v6076 = vunpack.c.0.s8 %v6075
    %v6077 = vlaneseq
    %v6078 = vshrl.u32 %v6077, 7
    %v6079 = vsub.s32 %v6076, %v6078
    %v6080 = vrot.slane %v6072, %v6079
    %v6082 = vunpack.c.l.s4 1966171168
    %v6083 = vunpack.c.0.s8 %v6082
    %v6084 = vlaneseq
    %v6085 = vshrl.u32 %v6084, 7
    %v6086 = vsub.s32 %v6083, %v6085
    %v6087 = vrot.slane %v6073, %v6086
    %v6090 = vpack.c.bf16 %v5999, %v5999
    %v6091 = vpack.c.bf16 %v6006, %v6006
    %v6092 = vpack.c.bf16 %v6026, %v6026
    %v6093 = vpack.c.bf16 %v6033, %v6033
    %v6094 = vpack.c.bf16 %v6053, %v6053
    %v6095 = vpack.c.bf16 %v6060, %v6060
    %v6096 = vpack.c.bf16 %v6080, %v6080
    %v6097 = vpack.c.bf16 %v6087, %v6087
    %v6098 = vld [vmem:[#allocation12] sm:$0xff]
    %v6099 = vld [vmem:[#allocation12 + $0x8] sm:$0xff]
    %v6100 = vld [vmem:[#allocation12 + $0x10] sm:$0xff]
    %v6101 = vld [vmem:[#allocation12 + $0x18] sm:$0xff]
    %v6102 = vld [vmem:[#allocation12 + $0x20] sm:$0xff]
    %v6103 = vld [vmem:[#allocation12 + $0x28] sm:$0xff]
    %v6104 = vld [vmem:[#allocation12 + $0x30] sm:$0xff]
    %v6105 = vld [vmem:[#allocation12 + $0x38] sm:$0xff]
    %v6106 = vld [vmem:[#allocation12 + $0x40] sm:$0xff]
    %v6107 = vld [vmem:[#allocation12 + $0x48] sm:$0xff]
    %v6108 = vld [vmem:[#allocation12 + $0x50] sm:$0xff]
    %v6109 = vld [vmem:[#allocation12 + $0x58] sm:$0xff]
    %v6110 = vld [vmem:[#allocation12 + $0x60] sm:$0xff]
    %v6111 = vld [vmem:[#allocation12 + $0x68] sm:$0xff]
    %v6112 = vld [vmem:[#allocation12 + $0x70] sm:$0xff]
    %v6113 = vld [vmem:[#allocation12 + $0x78] sm:$0xff]
    %v6114 = vld [vmem:[#allocation12 + $0x80] sm:$0xff]
    %v6115 = vld [vmem:[#allocation12 + $0x88] sm:$0xff]
    %v6116 = vld [vmem:[#allocation12 + $0x90] sm:$0xff]
    %v6117 = vld [vmem:[#allocation12 + $0x98] sm:$0xff]
    %v6118 = vld [vmem:[#allocation12 + $0xa0] sm:$0xff]
    %v6119 = vld [vmem:[#allocation12 + $0xa8] sm:$0xff]
    %v6120 = vld [vmem:[#allocation12 + $0xb0] sm:$0xff]
    %v6121 = vld [vmem:[#allocation12 + $0xb8] sm:$0xff]
    %v6122 = vld [vmem:[#allocation12 + $0xc0] sm:$0xff]
    %v6123 = vld [vmem:[#allocation12 + $0xc8] sm:$0xff]
    %v6124 = vld [vmem:[#allocation12 + $0xd0] sm:$0xff]
    %v6125 = vld [vmem:[#allocation12 + $0xd8] sm:$0xff]
    %v6126 = vld [vmem:[#allocation12 + $0xe0] sm:$0xff]
    %v6127 = vld [vmem:[#allocation12 + $0xe8] sm:$0xff]
    %v6128 = vld [vmem:[#allocation12 + $0xf0] sm:$0xff]
    %v6129 = vld [vmem:[#allocation12 + $0xf8] sm:$0xff]
    %v6130 = vld [vmem:[#allocation12 + $0x100] sm:$0xff]
    %v6131 = vld [vmem:[#allocation12 + $0x108] sm:$0xff]
    %v6132 = vld [vmem:[#allocation12 + $0x110] sm:$0xff]
    %v6133 = vld [vmem:[#allocation12 + $0x118] sm:$0xff]
    %v6134 = vld [vmem:[#allocation12 + $0x120] sm:$0xff]
    %v6135 = vld [vmem:[#allocation12 + $0x128] sm:$0xff]
    %v6136 = vld [vmem:[#allocation12 + $0x130] sm:$0xff]
    %v6137 = vld [vmem:[#allocation12 + $0x138] sm:$0xff]
    %v6138 = vld [vmem:[#allocation12 + $0x140] sm:$0xff]
    %v6139 = vld [vmem:[#allocation12 + $0x148] sm:$0xff]
    %v6140 = vld [vmem:[#allocation12 + $0x150] sm:$0xff]
    %v6141 = vld [vmem:[#allocation12 + $0x158] sm:$0xff]
    %v6142 = vld [vmem:[#allocation12 + $0x160] sm:$0xff]
    %v6143 = vld [vmem:[#allocation12 + $0x168] sm:$0xff]
    %v6144 = vld [vmem:[#allocation12 + $0x170] sm:$0xff]
    %v6145 = vld [vmem:[#allocation12 + $0x178] sm:$0xff]
    %v6146 = vld [vmem:[#allocation12 + $0x180] sm:$0xff]
    %v6147 = vld [vmem:[#allocation12 + $0x188] sm:$0xff]
    %v6148 = vld [vmem:[#allocation12 + $0x190] sm:$0xff]
    %v6149 = vld [vmem:[#allocation12 + $0x198] sm:$0xff]
    %v6150 = vld [vmem:[#allocation12 + $0x1a0] sm:$0xff]
    %v6151 = vld [vmem:[#allocation12 + $0x1a8] sm:$0xff]
    %v6152 = vld [vmem:[#allocation12 + $0x1b0] sm:$0xff]
    %v6153 = vld [vmem:[#allocation12 + $0x1b8] sm:$0xff]
    %v6154 = vld [vmem:[#allocation12 + $0x1c0] sm:$0xff]
    %v6155 = vld [vmem:[#allocation12 + $0x1c8] sm:$0xff]
    %v6156 = vld [vmem:[#allocation12 + $0x1d0] sm:$0xff]
    %v6157 = vld [vmem:[#allocation12 + $0x1d8] sm:$0xff]
    %v6158 = vld [vmem:[#allocation12 + $0x1e0] sm:$0xff]
    %v6159 = vld [vmem:[#allocation12 + $0x1e8] sm:$0xff]
    %v6160 = vld [vmem:[#allocation12 + $0x1f0] sm:$0xff]
    %v6161 = vld [vmem:[#allocation12 + $0x1f8] sm:$0xff]
    %v6162 = vld [vmem:[#allocation12 + $0x200] sm:$0xff]
    %v6163 = vld [vmem:[#allocation12 + $0x208] sm:$0xff]
    %v6164 = vld [vmem:[#allocation12 + $0x210] sm:$0xff]
    %v6165 = vld [vmem:[#allocation12 + $0x218] sm:$0xff]
    %v6166 = vld [vmem:[#allocation12 + $0x220] sm:$0xff]
    %v6167 = vld [vmem:[#allocation12 + $0x228] sm:$0xff]
    %v6168 = vld [vmem:[#allocation12 + $0x230] sm:$0xff]
    %v6169 = vld [vmem:[#allocation12 + $0x238] sm:$0xff]
    %v6170 = vld [vmem:[#allocation12 + $0x240] sm:$0xff]
    %v6171 = vld [vmem:[#allocation12 + $0x248] sm:$0xff]
    %v6172 = vld [vmem:[#allocation12 + $0x250] sm:$0xff]
    %v6173 = vld [vmem:[#allocation12 + $0x258] sm:$0xff]
    %v6174 = vld [vmem:[#allocation12 + $0x260] sm:$0xff]
    %v6175 = vld [vmem:[#allocation12 + $0x268] sm:$0xff]
    %v6176 = vld [vmem:[#allocation12 + $0x270] sm:$0xff]
    %v6177 = vld [vmem:[#allocation12 + $0x278] sm:$0xff]
    %v6178 = vld [vmem:[#allocation12 + $0x280] sm:$0xff]
    %v6179 = vld [vmem:[#allocation12 + $0x288] sm:$0xff]
    %v6180 = vld [vmem:[#allocation12 + $0x290] sm:$0xff]
    %v6181 = vld [vmem:[#allocation12 + $0x298] sm:$0xff]
    %v6182 = vld [vmem:[#allocation12 + $0x2a0] sm:$0xff]
    %v6183 = vld [vmem:[#allocation12 + $0x2a8] sm:$0xff]
    %v6184 = vld [vmem:[#allocation12 + $0x2b0] sm:$0xff]
    %v6185 = vld [vmem:[#allocation12 + $0x2b8] sm:$0xff]
    %v6186 = vld [vmem:[#allocation12 + $0x2c0] sm:$0xff]
    %v6187 = vld [vmem:[#allocation12 + $0x2c8] sm:$0xff]
    %v6188 = vld [vmem:[#allocation12 + $0x2d0] sm:$0xff]
    %v6189 = vld [vmem:[#allocation12 + $0x2d8] sm:$0xff]
    %v6190 = vld [vmem:[#allocation12 + $0x2e0] sm:$0xff]
    %v6191 = vld [vmem:[#allocation12 + $0x2e8] sm:$0xff]
    %v6192 = vld [vmem:[#allocation12 + $0x2f0] sm:$0xff]
    %v6193 = vld [vmem:[#allocation12 + $0x2f8] sm:$0xff]
    %v6194 = vld [vmem:[#allocation12 + $0x300] sm:$0xff]
    %v6195 = vld [vmem:[#allocation12 + $0x308] sm:$0xff]
    %v6196 = vld [vmem:[#allocation12 + $0x310] sm:$0xff]
    %v6197 = vld [vmem:[#allocation12 + $0x318] sm:$0xff]
    %v6198 = vld [vmem:[#allocation12 + $0x320] sm:$0xff]
    %v6199 = vld [vmem:[#allocation12 + $0x328] sm:$0xff]
    %v6200 = vld [vmem:[#allocation12 + $0x330] sm:$0xff]
    %v6201 = vld [vmem:[#allocation12 + $0x338] sm:$0xff]
    %v6202 = vld [vmem:[#allocation12 + $0x340] sm:$0xff]
    %v6203 = vld [vmem:[#allocation12 + $0x348] sm:$0xff]
    %v6204 = vld [vmem:[#allocation12 + $0x350] sm:$0xff]
    %v6205 = vld [vmem:[#allocation12 + $0x358] sm:$0xff]
    %v6206 = vld [vmem:[#allocation12 + $0x360] sm:$0xff]
    %v6207 = vld [vmem:[#allocation12 + $0x368] sm:$0xff]
    %v6208 = vld [vmem:[#allocation12 + $0x370] sm:$0xff]
    %v6209 = vld [vmem:[#allocation12 + $0x378] sm:$0xff]
    %v6210 = vld [vmem:[#allocation12 + $0x380] sm:$0xff]
    %v6211 = vld [vmem:[#allocation12 + $0x388] sm:$0xff]
    %v6212 = vld [vmem:[#allocation12 + $0x390] sm:$0xff]
    %v6213 = vld [vmem:[#allocation12 + $0x398] sm:$0xff]
    %v6214 = vld [vmem:[#allocation12 + $0x3a0] sm:$0xff]
    %v6215 = vld [vmem:[#allocation12 + $0x3a8] sm:$0xff]
    %v6216 = vld [vmem:[#allocation12 + $0x3b0] sm:$0xff]
    %v6217 = vld [vmem:[#allocation12 + $0x3b8] sm:$0xff]
    %v6218 = vld [vmem:[#allocation12 + $0x3c0] sm:$0xff]
    %v6219 = vld [vmem:[#allocation12 + $0x3c8] sm:$0xff]
    %v6220 = vld [vmem:[#allocation12 + $0x3d0] sm:$0xff]
    %v6221 = vld [vmem:[#allocation12 + $0x3d8] sm:$0xff]
    %v6222 = vld [vmem:[#allocation12 + $0x3e0] sm:$0xff]
    %v6223 = vld [vmem:[#allocation12 + $0x3e8] sm:$0xff]
    %v6224 = vld [vmem:[#allocation12 + $0x3f0] sm:$0xff]
    %v6225 = vld [vmem:[#allocation12 + $0x3f8] sm:$0xff]
    %v6226 = vld [vmem:[#allocation12 + $0x400] sm:$0xff]
    %v6227 = vld [vmem:[#allocation12 + $0x408] sm:$0xff]
    %v6228 = vld [vmem:[#allocation12 + $0x410] sm:$0xff]
    %v6229 = vld [vmem:[#allocation12 + $0x418] sm:$0xff]
    %v6230 = vld [vmem:[#allocation12 + $0x420] sm:$0xff]
    %v6231 = vld [vmem:[#allocation12 + $0x428] sm:$0xff]
    %v6232 = vld [vmem:[#allocation12 + $0x430] sm:$0xff]
    %v6233 = vld [vmem:[#allocation12 + $0x438] sm:$0xff]
    %v6234 = vld [vmem:[#allocation12 + $0x440] sm:$0xff]
    %v6235 = vld [vmem:[#allocation12 + $0x448] sm:$0xff]
    %v6236 = vld [vmem:[#allocation12 + $0x450] sm:$0xff]
    %v6237 = vld [vmem:[#allocation12 + $0x458] sm:$0xff]
    %v6238 = vld [vmem:[#allocation12 + $0x460] sm:$0xff]
    %v6239 = vld [vmem:[#allocation12 + $0x468] sm:$0xff]
    %v6240 = vld [vmem:[#allocation12 + $0x470] sm:$0xff]
    %v6241 = vld [vmem:[#allocation12 + $0x478] sm:$0xff]
    %v6242 = vld [vmem:[#allocation12 + $0x480] sm:$0xff]
    %v6243 = vld [vmem:[#allocation12 + $0x488] sm:$0xff]
    %v6244 = vld [vmem:[#allocation12 + $0x490] sm:$0xff]
    %v6245 = vld [vmem:[#allocation12 + $0x498] sm:$0xff]
    %v6246 = vld [vmem:[#allocation12 + $0x4a0] sm:$0xff]
    %v6247 = vld [vmem:[#allocation12 + $0x4a8] sm:$0xff]
    %v6248 = vld [vmem:[#allocation12 + $0x4b0] sm:$0xff]
    %v6249 = vld [vmem:[#allocation12 + $0x4b8] sm:$0xff]
    %v6250 = vld [vmem:[#allocation12 + $0x4c0] sm:$0xff]
    %v6251 = vld [vmem:[#allocation12 + $0x4c8] sm:$0xff]
    %v6252 = vld [vmem:[#allocation12 + $0x4d0] sm:$0xff]
    %v6253 = vld [vmem:[#allocation12 + $0x4d8] sm:$0xff]
    %v6254 = vld [vmem:[#allocation12 + $0x4e0] sm:$0xff]
    %v6255 = vld [vmem:[#allocation12 + $0x4e8] sm:$0xff]
    %v6256 = vld [vmem:[#allocation12 + $0x4f0] sm:$0xff]
    %v6257 = vld [vmem:[#allocation12 + $0x4f8] sm:$0xff]
    %v6258 = vld [vmem:[#allocation12 + $0x500] sm:$0xff]
    %v6259 = vld [vmem:[#allocation12 + $0x508] sm:$0xff]
    %v6260 = vld [vmem:[#allocation12 + $0x510] sm:$0xff]
    %v6261 = vld [vmem:[#allocation12 + $0x518] sm:$0xff]
    %v6262 = vld [vmem:[#allocation12 + $0x520] sm:$0xff]
    %v6263 = vld [vmem:[#allocation12 + $0x528] sm:$0xff]
    %v6264 = vld [vmem:[#allocation12 + $0x530] sm:$0xff]
    %v6265 = vld [vmem:[#allocation12 + $0x538] sm:$0xff]
    %v6266 = vld [vmem:[#allocation12 + $0x540] sm:$0xff]
    %v6267 = vld [vmem:[#allocation12 + $0x548] sm:$0xff]
    %v6268 = vld [vmem:[#allocation12 + $0x550] sm:$0xff]
    %v6269 = vld [vmem:[#allocation12 + $0x558] sm:$0xff]
    %v6270 = vld [vmem:[#allocation12 + $0x560] sm:$0xff]
    %v6271 = vld [vmem:[#allocation12 + $0x568] sm:$0xff]
    %v6272 = vld [vmem:[#allocation12 + $0x570] sm:$0xff]
    %v6273 = vld [vmem:[#allocation12 + $0x578] sm:$0xff]
    %v6274 = vld [vmem:[#allocation12 + $0x580] sm:$0xff]
    %v6275 = vld [vmem:[#allocation12 + $0x588] sm:$0xff]
    %v6276 = vld [vmem:[#allocation12 + $0x590] sm:$0xff]
    %v6277 = vld [vmem:[#allocation12 + $0x598] sm:$0xff]
    %v6278 = vld [vmem:[#allocation12 + $0x5a0] sm:$0xff]
    %v6279 = vld [vmem:[#allocation12 + $0x5a8] sm:$0xff]
    %v6280 = vld [vmem:[#allocation12 + $0x5b0] sm:$0xff]
    %v6281 = vld [vmem:[#allocation12 + $0x5b8] sm:$0xff]
    %v6282 = vld [vmem:[#allocation12 + $0x5c0] sm:$0xff]
    %v6283 = vld [vmem:[#allocation12 + $0x5c8] sm:$0xff]
    %v6284 = vld [vmem:[#allocation12 + $0x5d0] sm:$0xff]
    %v6285 = vld [vmem:[#allocation12 + $0x5d8] sm:$0xff]
    %v6286 = vld [vmem:[#allocation12 + $0x5e0] sm:$0xff]
    %v6287 = vld [vmem:[#allocation12 + $0x5e8] sm:$0xff]
    %v6288 = vld [vmem:[#allocation12 + $0x5f0] sm:$0xff]
    %v6289 = vld [vmem:[#allocation12 + $0x5f8] sm:$0xff]
    %v6290 = vld [vmem:[#allocation12 + $0x600] sm:$0xff]
    %v6291 = vld [vmem:[#allocation12 + $0x608] sm:$0xff]
    %v6292 = vld [vmem:[#allocation12 + $0x610] sm:$0xff]
    %v6293 = vld [vmem:[#allocation12 + $0x618] sm:$0xff]
    %v6294 = vld [vmem:[#allocation12 + $0x620] sm:$0xff]
    %v6295 = vld [vmem:[#allocation12 + $0x628] sm:$0xff]
    %v6296 = vld [vmem:[#allocation12 + $0x630] sm:$0xff]
    %v6297 = vld [vmem:[#allocation12 + $0x638] sm:$0xff]
    %v6298 = vld [vmem:[#allocation12 + $0x640] sm:$0xff]
    %v6299 = vld [vmem:[#allocation12 + $0x648] sm:$0xff]
    %v6300 = vld [vmem:[#allocation12 + $0x650] sm:$0xff]
    %v6301 = vld [vmem:[#allocation12 + $0x658] sm:$0xff]
    %v6302 = vld [vmem:[#allocation12 + $0x660] sm:$0xff]
    %v6303 = vld [vmem:[#allocation12 + $0x668] sm:$0xff]
    %v6304 = vld [vmem:[#allocation12 + $0x670] sm:$0xff]
    %v6305 = vld [vmem:[#allocation12 + $0x678] sm:$0xff]
    %v6306 = vld [vmem:[#allocation12 + $0x680] sm:$0xff]
    %v6307 = vld [vmem:[#allocation12 + $0x688] sm:$0xff]
    %v6308 = vld [vmem:[#allocation12 + $0x690] sm:$0xff]
    %v6309 = vld [vmem:[#allocation12 + $0x698] sm:$0xff]
    %v6310 = vld [vmem:[#allocation12 + $0x6a0] sm:$0xff]
    %v6311 = vld [vmem:[#allocation12 + $0x6a8] sm:$0xff]
    %v6312 = vld [vmem:[#allocation12 + $0x6b0] sm:$0xff]
    %v6313 = vld [vmem:[#allocation12 + $0x6b8] sm:$0xff]
    %v6314 = vld [vmem:[#allocation12 + $0x6c0] sm:$0xff]
    %v6315 = vld [vmem:[#allocation12 + $0x6c8] sm:$0xff]
    %v6316 = vld [vmem:[#allocation12 + $0x6d0] sm:$0xff]
    %v6317 = vld [vmem:[#allocation12 + $0x6d8] sm:$0xff]
    %v6318 = vld [vmem:[#allocation12 + $0x6e0] sm:$0xff]
    %v6319 = vld [vmem:[#allocation12 + $0x6e8] sm:$0xff]
    %v6320 = vld [vmem:[#allocation12 + $0x6f0] sm:$0xff]
    %v6321 = vld [vmem:[#allocation12 + $0x6f8] sm:$0xff]
    %v6322 = vld [vmem:[#allocation12 + $0x700] sm:$0xff]
    %v6323 = vld [vmem:[#allocation12 + $0x708] sm:$0xff]
    %v6324 = vld [vmem:[#allocation12 + $0x710] sm:$0xff]
    %v6325 = vld [vmem:[#allocation12 + $0x718] sm:$0xff]
    %v6326 = vld [vmem:[#allocation12 + $0x720] sm:$0xff]
    %v6327 = vld [vmem:[#allocation12 + $0x728] sm:$0xff]
    %v6328 = vld [vmem:[#allocation12 + $0x730] sm:$0xff]
    %v6329 = vld [vmem:[#allocation12 + $0x738] sm:$0xff]
    %v6330 = vld [vmem:[#allocation12 + $0x740] sm:$0xff]
    %v6331 = vld [vmem:[#allocation12 + $0x748] sm:$0xff]
    %v6332 = vld [vmem:[#allocation12 + $0x750] sm:$0xff]
    %v6333 = vld [vmem:[#allocation12 + $0x758] sm:$0xff]
    %v6334 = vld [vmem:[#allocation12 + $0x760] sm:$0xff]
    %v6335 = vld [vmem:[#allocation12 + $0x768] sm:$0xff]
    %v6336 = vld [vmem:[#allocation12 + $0x770] sm:$0xff]
    %v6337 = vld [vmem:[#allocation12 + $0x778] sm:$0xff]
    %v6338 = vld [vmem:[#allocation12 + $0x780] sm:$0xff]
    %v6339 = vld [vmem:[#allocation12 + $0x788] sm:$0xff]
    %v6340 = vld [vmem:[#allocation12 + $0x790] sm:$0xff]
    %v6341 = vld [vmem:[#allocation12 + $0x798] sm:$0xff]
    %v6342 = vld [vmem:[#allocation12 + $0x7a0] sm:$0xff]
    %v6343 = vld [vmem:[#allocation12 + $0x7a8] sm:$0xff]
    %v6344 = vld [vmem:[#allocation12 + $0x7b0] sm:$0xff]
    %v6345 = vld [vmem:[#allocation12 + $0x7b8] sm:$0xff]
    %v6346 = vld [vmem:[#allocation12 + $0x7c0] sm:$0xff]
    %v6347 = vld [vmem:[#allocation12 + $0x7c8] sm:$0xff]
    %v6348 = vld [vmem:[#allocation12 + $0x7d0] sm:$0xff]
    %v6349 = vld [vmem:[#allocation12 + $0x7d8] sm:$0xff]
    %v6350 = vld [vmem:[#allocation12 + $0x7e0] sm:$0xff]
    %v6351 = vld [vmem:[#allocation12 + $0x7e8] sm:$0xff]
    %v6352 = vld [vmem:[#allocation12 + $0x7f0] sm:$0xff]
    %v6353 = vld [vmem:[#allocation12 + $0x7f8] sm:$0xff]
    %v6354 = vld [vmem:[#allocation13] sm:$0xf]
    %v6356 = vlaneseq
    %v6357 = vshrl.u32 %v6356, 7
    %v6358 = vsub.s32 0, %v6357
    %v6359 = vrot.slane %v6354, %v6358
    %v6360 = vlaneseq
    %v6361 = vshrl.u32 %v6360, 7
    %v6362 = vsub.s32 1, %v6361
    %v6363 = vrot.slane %v6354, %v6362
    %v6364 = vlaneseq
    %v6365 = vshrl.u32 %v6364, 7
    %v6366 = vsub.s32 2, %v6365
    %v6367 = vrot.slane %v6354, %v6366
    %v6368 = vlaneseq
    %v6369 = vshrl.u32 %v6368, 7
    %v6370 = vsub.s32 3, %v6369
    %v6371 = vrot.slane %v6354, %v6370
    %v6632 = vunpack.c.l.b16 %v6098
    %v6633 = vunpack.c.h.b16 %v6098
    %v6634 = vunpack.c.l.b16 %v6099
    %v6635 = vunpack.c.h.b16 %v6099
    %v6636 = vunpack.c.l.b16 %v6100
    %v6637 = vunpack.c.h.b16 %v6100
    %v6638 = vunpack.c.l.b16 %v6101
    %v6639 = vunpack.c.h.b16 %v6101
    %v6640 = vunpack.c.l.b16 %v6102
    %v6641 = vunpack.c.h.b16 %v6102
    %v6642 = vunpack.c.l.b16 %v6103
    %v6643 = vunpack.c.h.b16 %v6103
    %v6644 = vunpack.c.l.b16 %v6104
    %v6645 = vunpack.c.h.b16 %v6104
    %v6646 = vunpack.c.l.b16 %v6105
    %v6647 = vunpack.c.h.b16 %v6105
    %v6648 = vunpack.c.l.b16 %v6106
    %v6649 = vunpack.c.h.b16 %v6106
    %v6650 = vunpack.c.l.b16 %v6107
    %v6651 = vunpack.c.h.b16 %v6107
    %v6652 = vunpack.c.l.b16 %v6108
    %v6653 = vunpack.c.h.b16 %v6108
    %v6654 = vunpack.c.l.b16 %v6109
    %v6655 = vunpack.c.h.b16 %v6109
    %v6656 = vunpack.c.l.b16 %v6110
    %v6657 = vunpack.c.h.b16 %v6110
    %v6658 = vunpack.c.l.b16 %v6111
    %v6659 = vunpack.c.h.b16 %v6111
    %v6660 = vunpack.c.l.b16 %v6112
    %v6661 = vunpack.c.h.b16 %v6112
    %v6662 = vunpack.c.l.b16 %v6113
    %v6663 = vunpack.c.h.b16 %v6113
    %v6664 = vunpack.c.l.b16 %v6114
    %v6665 = vunpack.c.h.b16 %v6114
    %v6666 = vunpack.c.l.b16 %v6115
    %v6667 = vunpack.c.h.b16 %v6115
    %v6668 = vunpack.c.l.b16 %v6116
    %v6669 = vunpack.c.h.b16 %v6116
    %v6670 = vunpack.c.l.b16 %v6117
    %v6671 = vunpack.c.h.b16 %v6117
    %v6672 = vunpack.c.l.b16 %v6118
    %v6673 = vunpack.c.h.b16 %v6118
    %v6674 = vunpack.c.l.b16 %v6119
    %v6675 = vunpack.c.h.b16 %v6119
    %v6676 = vunpack.c.l.b16 %v6120
    %v6677 = vunpack.c.h.b16 %v6120
    %v6678 = vunpack.c.l.b16 %v6121
    %v6679 = vunpack.c.h.b16 %v6121
    %v6680 = vunpack.c.l.b16 %v6122
    %v6681 = vunpack.c.h.b16 %v6122
    %v6682 = vunpack.c.l.b16 %v6123
    %v6683 = vunpack.c.h.b16 %v6123
    %v6684 = vunpack.c.l.b16 %v6124
    %v6685 = vunpack.c.h.b16 %v6124
    %v6686 = vunpack.c.l.b16 %v6125
    %v6687 = vunpack.c.h.b16 %v6125
    %v6688 = vunpack.c.l.b16 %v6126
    %v6689 = vunpack.c.h.b16 %v6126
    %v6690 = vunpack.c.l.b16 %v6127
    %v6691 = vunpack.c.h.b16 %v6127
    %v6692 = vunpack.c.l.b16 %v6128
    %v6693 = vunpack.c.h.b16 %v6128
    %v6694 = vunpack.c.l.b16 %v6129
    %v6695 = vunpack.c.h.b16 %v6129
    %v6696 = vunpack.c.l.b16 %v6130
    %v6697 = vunpack.c.h.b16 %v6130
    %v6698 = vunpack.c.l.b16 %v6131
    %v6699 = vunpack.c.h.b16 %v6131
    %v6700 = vunpack.c.l.b16 %v6132
    %v6701 = vunpack.c.h.b16 %v6132
    %v6702 = vunpack.c.l.b16 %v6133
    %v6703 = vunpack.c.h.b16 %v6133
    %v6704 = vunpack.c.l.b16 %v6134
    %v6705 = vunpack.c.h.b16 %v6134
    %v6706 = vunpack.c.l.b16 %v6135
    %v6707 = vunpack.c.h.b16 %v6135
    %v6708 = vunpack.c.l.b16 %v6136
    %v6709 = vunpack.c.h.b16 %v6136
    %v6710 = vunpack.c.l.b16 %v6137
    %v6711 = vunpack.c.h.b16 %v6137
    %v6712 = vunpack.c.l.b16 %v6138
    %v6713 = vunpack.c.h.b16 %v6138
    %v6714 = vunpack.c.l.b16 %v6139
    %v6715 = vunpack.c.h.b16 %v6139
    %v6716 = vunpack.c.l.b16 %v6140
    %v6717 = vunpack.c.h.b16 %v6140
    %v6718 = vunpack.c.l.b16 %v6141
    %v6719 = vunpack.c.h.b16 %v6141
    %v6720 = vunpack.c.l.b16 %v6142
    %v6721 = vunpack.c.h.b16 %v6142
    %v6722 = vunpack.c.l.b16 %v6143
    %v6723 = vunpack.c.h.b16 %v6143
    %v6724 = vunpack.c.l.b16 %v6144
    %v6725 = vunpack.c.h.b16 %v6144
    %v6726 = vunpack.c.l.b16 %v6145
    %v6727 = vunpack.c.h.b16 %v6145
    %v6728 = vunpack.c.l.b16 %v6146
    %v6729 = vunpack.c.h.b16 %v6146
    %v6730 = vunpack.c.l.b16 %v6147
    %v6731 = vunpack.c.h.b16 %v6147
    %v6732 = vunpack.c.l.b16 %v6148
    %v6733 = vunpack.c.h.b16 %v6148
    %v6734 = vunpack.c.l.b16 %v6149
    %v6735 = vunpack.c.h.b16 %v6149
    %v6736 = vunpack.c.l.b16 %v6150
    %v6737 = vunpack.c.h.b16 %v6150
    %v6738 = vunpack.c.l.b16 %v6151
    %v6739 = vunpack.c.h.b16 %v6151
    %v6740 = vunpack.c.l.b16 %v6152
    %v6741 = vunpack.c.h.b16 %v6152
    %v6742 = vunpack.c.l.b16 %v6153
    %v6743 = vunpack.c.h.b16 %v6153
    %v6744 = vunpack.c.l.b16 %v6154
    %v6745 = vunpack.c.h.b16 %v6154
    %v6746 = vunpack.c.l.b16 %v6155
    %v6747 = vunpack.c.h.b16 %v6155
    %v6748 = vunpack.c.l.b16 %v6156
    %v6749 = vunpack.c.h.b16 %v6156
    %v6750 = vunpack.c.l.b16 %v6157
    %v6751 = vunpack.c.h.b16 %v6157
    %v6752 = vunpack.c.l.b16 %v6158
    %v6753 = vunpack.c.h.b16 %v6158
    %v6754 = vunpack.c.l.b16 %v6159
    %v6755 = vunpack.c.h.b16 %v6159
    %v6756 = vunpack.c.l.b16 %v6160
    %v6757 = vunpack.c.h.b16 %v6160
    %v6758 = vunpack.c.l.b16 %v6161
    %v6759 = vunpack.c.h.b16 %v6161
    %v6760 = vunpack.c.l.b16 %v6162
    %v6761 = vunpack.c.h.b16 %v6162
    %v6762 = vunpack.c.l.b16 %v6163
    %v6763 = vunpack.c.h.b16 %v6163
    %v6764 = vunpack.c.l.b16 %v6164
    %v6765 = vunpack.c.h.b16 %v6164
    %v6766 = vunpack.c.l.b16 %v6165
    %v6767 = vunpack.c.h.b16 %v6165
    %v6768 = vunpack.c.l.b16 %v6166
    %v6769 = vunpack.c.h.b16 %v6166
    %v6770 = vunpack.c.l.b16 %v6167
    %v6771 = vunpack.c.h.b16 %v6167
    %v6772 = vunpack.c.l.b16 %v6168
    %v6773 = vunpack.c.h.b16 %v6168
    %v6774 = vunpack.c.l.b16 %v6169
    %v6775 = vunpack.c.h.b16 %v6169
    %v6776 = vunpack.c.l.b16 %v6170
    %v6777 = vunpack.c.h.b16 %v6170
    %v6778 = vunpack.c.l.b16 %v6171
    %v6779 = vunpack.c.h.b16 %v6171
    %v6780 = vunpack.c.l.b16 %v6172
    %v6781 = vunpack.c.h.b16 %v6172
    %v6782 = vunpack.c.l.b16 %v6173
    %v6783 = vunpack.c.h.b16 %v6173
    %v6784 = vunpack.c.l.b16 %v6174
    %v6785 = vunpack.c.h.b16 %v6174
    %v6786 = vunpack.c.l.b16 %v6175
    %v6787 = vunpack.c.h.b16 %v6175
    %v6788 = vunpack.c.l.b16 %v6176
    %v6789 = vunpack.c.h.b16 %v6176
    %v6790 = vunpack.c.l.b16 %v6177
    %v6791 = vunpack.c.h.b16 %v6177
    %v6792 = vunpack.c.l.b16 %v6178
    %v6793 = vunpack.c.h.b16 %v6178
    %v6794 = vunpack.c.l.b16 %v6179
    %v6795 = vunpack.c.h.b16 %v6179
    %v6796 = vunpack.c.l.b16 %v6180
    %v6797 = vunpack.c.h.b16 %v6180
    %v6798 = vunpack.c.l.b16 %v6181
    %v6799 = vunpack.c.h.b16 %v6181
    %v6800 = vunpack.c.l.b16 %v6182
    %v6801 = vunpack.c.h.b16 %v6182
    %v6802 = vunpack.c.l.b16 %v6183
    %v6803 = vunpack.c.h.b16 %v6183
    %v6804 = vunpack.c.l.b16 %v6184
    %v6805 = vunpack.c.h.b16 %v6184
    %v6806 = vunpack.c.l.b16 %v6185
    %v6807 = vunpack.c.h.b16 %v6185
    %v6808 = vunpack.c.l.b16 %v6186
    %v6809 = vunpack.c.h.b16 %v6186
    %v6810 = vunpack.c.l.b16 %v6187
    %v6811 = vunpack.c.h.b16 %v6187
    %v6812 = vunpack.c.l.b16 %v6188
    %v6813 = vunpack.c.h.b16 %v6188
    %v6814 = vunpack.c.l.b16 %v6189
    %v6815 = vunpack.c.h.b16 %v6189
    %v6816 = vunpack.c.l.b16 %v6190
    %v6817 = vunpack.c.h.b16 %v6190
    %v6818 = vunpack.c.l.b16 %v6191
    %v6819 = vunpack.c.h.b16 %v6191
    %v6820 = vunpack.c.l.b16 %v6192
    %v6821 = vunpack.c.h.b16 %v6192
    %v6822 = vunpack.c.l.b16 %v6193
    %v6823 = vunpack.c.h.b16 %v6193
    %v6824 = vunpack.c.l.b16 %v6194
    %v6825 = vunpack.c.h.b16 %v6194
    %v6826 = vunpack.c.l.b16 %v6195
    %v6827 = vunpack.c.h.b16 %v6195
    %v6828 = vunpack.c.l.b16 %v6196
    %v6829 = vunpack.c.h.b16 %v6196
    %v6830 = vunpack.c.l.b16 %v6197
    %v6831 = vunpack.c.h.b16 %v6197
    %v6832 = vunpack.c.l.b16 %v6198
    %v6833 = vunpack.c.h.b16 %v6198
    %v6834 = vunpack.c.l.b16 %v6199
    %v6835 = vunpack.c.h.b16 %v6199
    %v6836 = vunpack.c.l.b16 %v6200
    %v6837 = vunpack.c.h.b16 %v6200
    %v6838 = vunpack.c.l.b16 %v6201
    %v6839 = vunpack.c.h.b16 %v6201
    %v6840 = vunpack.c.l.b16 %v6202
    %v6841 = vunpack.c.h.b16 %v6202
    %v6842 = vunpack.c.l.b16 %v6203
    %v6843 = vunpack.c.h.b16 %v6203
    %v6844 = vunpack.c.l.b16 %v6204
    %v6845 = vunpack.c.h.b16 %v6204
    %v6846 = vunpack.c.l.b16 %v6205
    %v6847 = vunpack.c.h.b16 %v6205
    %v6848 = vunpack.c.l.b16 %v6206
    %v6849 = vunpack.c.h.b16 %v6206
    %v6850 = vunpack.c.l.b16 %v6207
    %v6851 = vunpack.c.h.b16 %v6207
    %v6852 = vunpack.c.l.b16 %v6208
    %v6853 = vunpack.c.h.b16 %v6208
    %v6854 = vunpack.c.l.b16 %v6209
    %v6855 = vunpack.c.h.b16 %v6209
    %v6856 = vunpack.c.l.b16 %v6210
    %v6857 = vunpack.c.h.b16 %v6210
    %v6858 = vunpack.c.l.b16 %v6211
    %v6859 = vunpack.c.h.b16 %v6211
    %v6860 = vunpack.c.l.b16 %v6212
    %v6861 = vunpack.c.h.b16 %v6212
    %v6862 = vunpack.c.l.b16 %v6213
    %v6863 = vunpack.c.h.b16 %v6213
    %v6864 = vunpack.c.l.b16 %v6214
    %v6865 = vunpack.c.h.b16 %v6214
    %v6866 = vunpack.c.l.b16 %v6215
    %v6867 = vunpack.c.h.b16 %v6215
    %v6868 = vunpack.c.l.b16 %v6216
    %v6869 = vunpack.c.h.b16 %v6216
    %v6870 = vunpack.c.l.b16 %v6217
    %v6871 = vunpack.c.h.b16 %v6217
    %v6872 = vunpack.c.l.b16 %v6218
    %v6873 = vunpack.c.h.b16 %v6218
    %v6874 = vunpack.c.l.b16 %v6219
    %v6875 = vunpack.c.h.b16 %v6219
    %v6876 = vunpack.c.l.b16 %v6220
    %v6877 = vunpack.c.h.b16 %v6220
    %v6878 = vunpack.c.l.b16 %v6221
    %v6879 = vunpack.c.h.b16 %v6221
    %v6880 = vunpack.c.l.b16 %v6222
    %v6881 = vunpack.c.h.b16 %v6222
    %v6882 = vunpack.c.l.b16 %v6223
    %v6883 = vunpack.c.h.b16 %v6223
    %v6884 = vunpack.c.l.b16 %v6224
    %v6885 = vunpack.c.h.b16 %v6224
    %v6886 = vunpack.c.l.b16 %v6225
    %v6887 = vunpack.c.h.b16 %v6225
    %v6888 = vunpack.c.l.b16 %v6226
    %v6889 = vunpack.c.h.b16 %v6226
    %v6890 = vunpack.c.l.b16 %v6227
    %v6891 = vunpack.c.h.b16 %v6227
    %v6892 = vunpack.c.l.b16 %v6228
    %v6893 = vunpack.c.h.b16 %v6228
    %v6894 = vunpack.c.l.b16 %v6229
    %v6895 = vunpack.c.h.b16 %v6229
    %v6896 = vunpack.c.l.b16 %v6230
    %v6897 = vunpack.c.h.b16 %v6230
    %v6898 = vunpack.c.l.b16 %v6231
    %v6899 = vunpack.c.h.b16 %v6231
    %v6900 = vunpack.c.l.b16 %v6232
    %v6901 = vunpack.c.h.b16 %v6232
    %v6902 = vunpack.c.l.b16 %v6233
    %v6903 = vunpack.c.h.b16 %v6233
    %v6904 = vunpack.c.l.b16 %v6234
    %v6905 = vunpack.c.h.b16 %v6234
    %v6906 = vunpack.c.l.b16 %v6235
    %v6907 = vunpack.c.h.b16 %v6235
    %v6908 = vunpack.c.l.b16 %v6236
    %v6909 = vunpack.c.h.b16 %v6236
    %v6910 = vunpack.c.l.b16 %v6237
    %v6911 = vunpack.c.h.b16 %v6237
    %v6912 = vunpack.c.l.b16 %v6238
    %v6913 = vunpack.c.h.b16 %v6238
    %v6914 = vunpack.c.l.b16 %v6239
    %v6915 = vunpack.c.h.b16 %v6239
    %v6916 = vunpack.c.l.b16 %v6240
    %v6917 = vunpack.c.h.b16 %v6240
    %v6918 = vunpack.c.l.b16 %v6241
    %v6919 = vunpack.c.h.b16 %v6241
    %v6920 = vunpack.c.l.b16 %v6242
    %v6921 = vunpack.c.h.b16 %v6242
    %v6922 = vunpack.c.l.b16 %v6243
    %v6923 = vunpack.c.h.b16 %v6243
    %v6924 = vunpack.c.l.b16 %v6244
    %v6925 = vunpack.c.h.b16 %v6244
    %v6926 = vunpack.c.l.b16 %v6245
    %v6927 = vunpack.c.h.b16 %v6245
    %v6928 = vunpack.c.l.b16 %v6246
    %v6929 = vunpack.c.h.b16 %v6246
    %v6930 = vunpack.c.l.b16 %v6247
    %v6931 = vunpack.c.h.b16 %v6247
    %v6932 = vunpack.c.l.b16 %v6248
    %v6933 = vunpack.c.h.b16 %v6248
    %v6934 = vunpack.c.l.b16 %v6249
    %v6935 = vunpack.c.h.b16 %v6249
    %v6936 = vunpack.c.l.b16 %v6250
    %v6937 = vunpack.c.h.b16 %v6250
    %v6938 = vunpack.c.l.b16 %v6251
    %v6939 = vunpack.c.h.b16 %v6251
    %v6940 = vunpack.c.l.b16 %v6252
    %v6941 = vunpack.c.h.b16 %v6252
    %v6942 = vunpack.c.l.b16 %v6253
    %v6943 = vunpack.c.h.b16 %v6253
    %v6944 = vunpack.c.l.b16 %v6254
    %v6945 = vunpack.c.h.b16 %v6254
    %v6946 = vunpack.c.l.b16 %v6255
    %v6947 = vunpack.c.h.b16 %v6255
    %v6948 = vunpack.c.l.b16 %v6256
    %v6949 = vunpack.c.h.b16 %v6256
    %v6950 = vunpack.c.l.b16 %v6257
    %v6951 = vunpack.c.h.b16 %v6257
    %v6952 = vunpack.c.l.b16 %v6258
    %v6953 = vunpack.c.h.b16 %v6258
    %v6954 = vunpack.c.l.b16 %v6259
    %v6955 = vunpack.c.h.b16 %v6259
    %v6956 = vunpack.c.l.b16 %v6260
    %v6957 = vunpack.c.h.b16 %v6260
    %v6958 = vunpack.c.l.b16 %v6261
    %v6959 = vunpack.c.h.b16 %v6261
    %v6960 = vunpack.c.l.b16 %v6262
    %v6961 = vunpack.c.h.b16 %v6262
    %v6962 = vunpack.c.l.b16 %v6263
    %v6963 = vunpack.c.h.b16 %v6263
    %v6964 = vunpack.c.l.b16 %v6264
    %v6965 = vunpack.c.h.b16 %v6264
    %v6966 = vunpack.c.l.b16 %v6265
    %v6967 = vunpack.c.h.b16 %v6265
    %v6968 = vunpack.c.l.b16 %v6266
    %v6969 = vunpack.c.h.b16 %v6266
    %v6970 = vunpack.c.l.b16 %v6267
    %v6971 = vunpack.c.h.b16 %v6267
    %v6972 = vunpack.c.l.b16 %v6268
    %v6973 = vunpack.c.h.b16 %v6268
    %v6974 = vunpack.c.l.b16 %v6269
    %v6975 = vunpack.c.h.b16 %v6269
    %v6976 = vunpack.c.l.b16 %v6270
    %v6977 = vunpack.c.h.b16 %v6270
    %v6978 = vunpack.c.l.b16 %v6271
    %v6979 = vunpack.c.h.b16 %v6271
    %v6980 = vunpack.c.l.b16 %v6272
    %v6981 = vunpack.c.h.b16 %v6272
    %v6982 = vunpack.c.l.b16 %v6273
    %v6983 = vunpack.c.h.b16 %v6273
    %v6984 = vunpack.c.l.b16 %v6274
    %v6985 = vunpack.c.h.b16 %v6274
    %v6986 = vunpack.c.l.b16 %v6275
    %v6987 = vunpack.c.h.b16 %v6275
    %v6988 = vunpack.c.l.b16 %v6276
    %v6989 = vunpack.c.h.b16 %v6276
    %v6990 = vunpack.c.l.b16 %v6277
    %v6991 = vunpack.c.h.b16 %v6277
    %v6992 = vunpack.c.l.b16 %v6278
    %v6993 = vunpack.c.h.b16 %v6278
    %v6994 = vunpack.c.l.b16 %v6279
    %v6995 = vunpack.c.h.b16 %v6279
    %v6996 = vunpack.c.l.b16 %v6280
    %v6997 = vunpack.c.h.b16 %v6280
    %v6998 = vunpack.c.l.b16 %v6281
    %v6999 = vunpack.c.h.b16 %v6281
    %v7000 = vunpack.c.l.b16 %v6282
    %v7001 = vunpack.c.h.b16 %v6282
    %v7002 = vunpack.c.l.b16 %v6283
    %v7003 = vunpack.c.h.b16 %v6283
    %v7004 = vunpack.c.l.b16 %v6284
    %v7005 = vunpack.c.h.b16 %v6284
    %v7006 = vunpack.c.l.b16 %v6285
    %v7007 = vunpack.c.h.b16 %v6285
    %v7008 = vunpack.c.l.b16 %v6286
    %v7009 = vunpack.c.h.b16 %v6286
    %v7010 = vunpack.c.l.b16 %v6287
    %v7011 = vunpack.c.h.b16 %v6287
    %v7012 = vunpack.c.l.b16 %v6288
    %v7013 = vunpack.c.h.b16 %v6288
    %v7014 = vunpack.c.l.b16 %v6289
    %v7015 = vunpack.c.h.b16 %v6289
    %v7016 = vunpack.c.l.b16 %v6290
    %v7017 = vunpack.c.h.b16 %v6290
    %v7018 = vunpack.c.l.b16 %v6291
    %v7019 = vunpack.c.h.b16 %v6291
    %v7020 = vunpack.c.l.b16 %v6292
    %v7021 = vunpack.c.h.b16 %v6292
    %v7022 = vunpack.c.l.b16 %v6293
    %v7023 = vunpack.c.h.b16 %v6293
    %v7024 = vunpack.c.l.b16 %v6294
    %v7025 = vunpack.c.h.b16 %v6294
    %v7026 = vunpack.c.l.b16 %v6295
    %v7027 = vunpack.c.h.b16 %v6295
    %v7028 = vunpack.c.l.b16 %v6296
    %v7029 = vunpack.c.h.b16 %v6296
    %v7030 = vunpack.c.l.b16 %v6297
    %v7031 = vunpack.c.h.b16 %v6297
    %v7032 = vunpack.c.l.b16 %v6298
    %v7033 = vunpack.c.h.b16 %v6298
    %v7034 = vunpack.c.l.b16 %v6299
    %v7035 = vunpack.c.h.b16 %v6299
    %v7036 = vunpack.c.l.b16 %v6300
    %v7037 = vunpack.c.h.b16 %v6300
    %v7038 = vunpack.c.l.b16 %v6301
    %v7039 = vunpack.c.h.b16 %v6301
    %v7040 = vunpack.c.l.b16 %v6302
    %v7041 = vunpack.c.h.b16 %v6302
    %v7042 = vunpack.c.l.b16 %v6303
    %v7043 = vunpack.c.h.b16 %v6303
    %v7044 = vunpack.c.l.b16 %v6304
    %v7045 = vunpack.c.h.b16 %v6304
    %v7046 = vunpack.c.l.b16 %v6305
    %v7047 = vunpack.c.h.b16 %v6305
    %v7048 = vunpack.c.l.b16 %v6306
    %v7049 = vunpack.c.h.b16 %v6306
    %v7050 = vunpack.c.l.b16 %v6307
    %v7051 = vunpack.c.h.b16 %v6307
    %v7052 = vunpack.c.l.b16 %v6308
    %v7053 = vunpack.c.h.b16 %v6308
    %v7054 = vunpack.c.l.b16 %v6309
    %v7055 = vunpack.c.h.b16 %v6309
    %v7056 = vunpack.c.l.b16 %v6310
    %v7057 = vunpack.c.h.b16 %v6310
    %v7058 = vunpack.c.l.b16 %v6311
    %v7059 = vunpack.c.h.b16 %v6311
    %v7060 = vunpack.c.l.b16 %v6312
    %v7061 = vunpack.c.h.b16 %v6312
    %v7062 = vunpack.c.l.b16 %v6313
    %v7063 = vunpack.c.h.b16 %v6313
    %v7064 = vunpack.c.l.b16 %v6314
    %v7065 = vunpack.c.h.b16 %v6314
    %v7066 = vunpack.c.l.b16 %v6315
    %v7067 = vunpack.c.h.b16 %v6315
    %v7068 = vunpack.c.l.b16 %v6316
    %v7069 = vunpack.c.h.b16 %v6316
    %v7070 = vunpack.c.l.b16 %v6317
    %v7071 = vunpack.c.h.b16 %v6317
    %v7072 = vunpack.c.l.b16 %v6318
    %v7073 = vunpack.c.h.b16 %v6318
    %v7074 = vunpack.c.l.b16 %v6319
    %v7075 = vunpack.c.h.b16 %v6319
    %v7076 = vunpack.c.l.b16 %v6320
    %v7077 = vunpack.c.h.b16 %v6320
    %v7078 = vunpack.c.l.b16 %v6321
    %v7079 = vunpack.c.h.b16 %v6321
    %v7080 = vunpack.c.l.b16 %v6322
    %v7081 = vunpack.c.h.b16 %v6322
    %v7082 = vunpack.c.l.b16 %v6323
    %v7083 = vunpack.c.h.b16 %v6323
    %v7084 = vunpack.c.l.b16 %v6324
    %v7085 = vunpack.c.h.b16 %v6324
    %v7086 = vunpack.c.l.b16 %v6325
    %v7087 = vunpack.c.h.b16 %v6325
    %v7088 = vunpack.c.l.b16 %v6326
    %v7089 = vunpack.c.h.b16 %v6326
    %v7090 = vunpack.c.l.b16 %v6327
    %v7091 = vunpack.c.h.b16 %v6327
    %v7092 = vunpack.c.l.b16 %v6328
    %v7093 = vunpack.c.h.b16 %v6328
    %v7094 = vunpack.c.l.b16 %v6329
    %v7095 = vunpack.c.h.b16 %v6329
    %v7096 = vunpack.c.l.b16 %v6330
    %v7097 = vunpack.c.h.b16 %v6330
    %v7098 = vunpack.c.l.b16 %v6331
    %v7099 = vunpack.c.h.b16 %v6331
    %v7100 = vunpack.c.l.b16 %v6332
    %v7101 = vunpack.c.h.b16 %v6332
    %v7102 = vunpack.c.l.b16 %v6333
    %v7103 = vunpack.c.h.b16 %v6333
    %v7104 = vunpack.c.l.b16 %v6334
    %v7105 = vunpack.c.h.b16 %v6334
    %v7106 = vunpack.c.l.b16 %v6335
    %v7107 = vunpack.c.h.b16 %v6335
    %v7108 = vunpack.c.l.b16 %v6336
    %v7109 = vunpack.c.h.b16 %v6336
    %v7110 = vunpack.c.l.b16 %v6337
    %v7111 = vunpack.c.h.b16 %v6337
    %v7112 = vunpack.c.l.b16 %v6338
    %v7113 = vunpack.c.h.b16 %v6338
    %v7114 = vunpack.c.l.b16 %v6339
    %v7115 = vunpack.c.h.b16 %v6339
    %v7116 = vunpack.c.l.b16 %v6340
    %v7117 = vunpack.c.h.b16 %v6340
    %v7118 = vunpack.c.l.b16 %v6341
    %v7119 = vunpack.c.h.b16 %v6341
    %v7120 = vunpack.c.l.b16 %v6342
    %v7121 = vunpack.c.h.b16 %v6342
    %v7122 = vunpack.c.l.b16 %v6343
    %v7123 = vunpack.c.h.b16 %v6343
    %v7124 = vunpack.c.l.b16 %v6344
    %v7125 = vunpack.c.h.b16 %v6344
    %v7126 = vunpack.c.l.b16 %v6345
    %v7127 = vunpack.c.h.b16 %v6345
    %v7128 = vunpack.c.l.b16 %v6346
    %v7129 = vunpack.c.h.b16 %v6346
    %v7130 = vunpack.c.l.b16 %v6347
    %v7131 = vunpack.c.h.b16 %v6347
    %v7132 = vunpack.c.l.b16 %v6348
    %v7133 = vunpack.c.h.b16 %v6348
    %v7134 = vunpack.c.l.b16 %v6349
    %v7135 = vunpack.c.h.b16 %v6349
    %v7136 = vunpack.c.l.b16 %v6350
    %v7137 = vunpack.c.h.b16 %v6350
    %v7138 = vunpack.c.l.b16 %v6351
    %v7139 = vunpack.c.h.b16 %v6351
    %v7140 = vunpack.c.l.b16 %v6352
    %v7141 = vunpack.c.h.b16 %v6352
    %v7142 = vunpack.c.l.b16 %v6353
    %v7143 = vunpack.c.h.b16 %v6353
    %v7144 = vpack.c.b16 %v6636, %v6632
    %v7145 = vpack.c.b16 %v6637, %v6633
    %v7146 = vpack.c.b16 %v6638, %v6634
    %v7147 = vpack.c.b16 %v6639, %v6635
    %v7148 = vpack.c.b16 %v6644, %v6640
    %v7149 = vpack.c.b16 %v6645, %v6641
    %v7150 = vpack.c.b16 %v6646, %v6642
    %v7151 = vpack.c.b16 %v6647, %v6643
    %v7152 = vpack.c.b16 %v6652, %v6648
    %v7153 = vpack.c.b16 %v6653, %v6649
    %v7154 = vpack.c.b16 %v6654, %v6650
    %v7155 = vpack.c.b16 %v6655, %v6651
    %v7156 = vpack.c.b16 %v6660, %v6656
    %v7157 = vpack.c.b16 %v6661, %v6657
    %v7158 = vpack.c.b16 %v6662, %v6658
    %v7159 = vpack.c.b16 %v6663, %v6659
    %v7160 = vpack.c.b16 %v6668, %v6664
    %v7161 = vpack.c.b16 %v6669, %v6665
    %v7162 = vpack.c.b16 %v6670, %v6666
    %v7163 = vpack.c.b16 %v6671, %v6667
    %v7164 = vpack.c.b16 %v6676, %v6672
    %v7165 = vpack.c.b16 %v6677, %v6673
    %v7166 = vpack.c.b16 %v6678, %v6674
    %v7167 = vpack.c.b16 %v6679, %v6675
    %v7168 = vpack.c.b16 %v6684, %v6680
    %v7169 = vpack.c.b16 %v6685, %v6681
    %v7170 = vpack.c.b16 %v6686, %v6682
    %v7171 = vpack.c.b16 %v6687, %v6683
    %v7172 = vpack.c.b16 %v6692, %v6688
    %v7173 = vpack.c.b16 %v6693, %v6689
    %v7174 = vpack.c.b16 %v6694, %v6690
    %v7175 = vpack.c.b16 %v6695, %v6691
    %v7176 = vpack.c.b16 %v6700, %v6696
    %v7177 = vpack.c.b16 %v6701, %v6697
    %v7178 = vpack.c.b16 %v6702, %v6698
    %v7179 = vpack.c.b16 %v6703, %v6699
    %v7180 = vpack.c.b16 %v6708, %v6704
    %v7181 = vpack.c.b16 %v6709, %v6705
    %v7182 = vpack.c.b16 %v6710, %v6706
    %v7183 = vpack.c.b16 %v6711, %v6707
    %v7184 = vpack.c.b16 %v6716, %v6712
    %v7185 = vpack.c.b16 %v6717, %v6713
    %v7186 = vpack.c.b16 %v6718, %v6714
    %v7187 = vpack.c.b16 %v6719, %v6715
    %v7188 = vpack.c.b16 %v6724, %v6720
    %v7189 = vpack.c.b16 %v6725, %v6721
    %v7190 = vpack.c.b16 %v6726, %v6722
    %v7191 = vpack.c.b16 %v6727, %v6723
    %v7192 = vpack.c.b16 %v6732, %v6728
    %v7193 = vpack.c.b16 %v6733, %v6729
    %v7194 = vpack.c.b16 %v6734, %v6730
    %v7195 = vpack.c.b16 %v6735, %v6731
    %v7196 = vpack.c.b16 %v6740, %v6736
    %v7197 = vpack.c.b16 %v6741, %v6737
    %v7198 = vpack.c.b16 %v6742, %v6738
    %v7199 = vpack.c.b16 %v6743, %v6739
    %v7200 = vpack.c.b16 %v6748, %v6744
    %v7201 = vpack.c.b16 %v6749, %v6745
    %v7202 = vpack.c.b16 %v6750, %v6746
    %v7203 = vpack.c.b16 %v6751, %v6747
    %v7204 = vpack.c.b16 %v6756, %v6752
    %v7205 = vpack.c.b16 %v6757, %v6753
    %v7206 = vpack.c.b16 %v6758, %v6754
    %v7207 = vpack.c.b16 %v6759, %v6755
    %v7208 = vpack.c.b16 %v6764, %v6760
    %v7209 = vpack.c.b16 %v6765, %v6761
    %v7210 = vpack.c.b16 %v6766, %v6762
    %v7211 = vpack.c.b16 %v6767, %v6763
    %v7212 = vpack.c.b16 %v6772, %v6768
    %v7213 = vpack.c.b16 %v6773, %v6769
    %v7214 = vpack.c.b16 %v6774, %v6770
    %v7215 = vpack.c.b16 %v6775, %v6771
    %v7216 = vpack.c.b16 %v6780, %v6776
    %v7217 = vpack.c.b16 %v6781, %v6777
    %v7218 = vpack.c.b16 %v6782, %v6778
    %v7219 = vpack.c.b16 %v6783, %v6779
    %v7220 = vpack.c.b16 %v6788, %v6784
    %v7221 = vpack.c.b16 %v6789, %v6785
    %v7222 = vpack.c.b16 %v6790, %v6786
    %v7223 = vpack.c.b16 %v6791, %v6787
    %v7224 = vpack.c.b16 %v6796, %v6792
    %v7225 = vpack.c.b16 %v6797, %v6793
    %v7226 = vpack.c.b16 %v6798, %v6794
    %v7227 = vpack.c.b16 %v6799, %v6795
    %v7228 = vpack.c.b16 %v6804, %v6800
    %v7229 = vpack.c.b16 %v6805, %v6801
    %v7230 = vpack.c.b16 %v6806, %v6802
    %v7231 = vpack.c.b16 %v6807, %v6803
    %v7232 = vpack.c.b16 %v6812, %v6808
    %v7233 = vpack.c.b16 %v6813, %v6809
    %v7234 = vpack.c.b16 %v6814, %v6810
    %v7235 = vpack.c.b16 %v6815, %v6811
    %v7236 = vpack.c.b16 %v6820, %v6816
    %v7237 = vpack.c.b16 %v6821, %v6817
    %v7238 = vpack.c.b16 %v6822, %v6818
    %v7239 = vpack.c.b16 %v6823, %v6819
    %v7240 = vpack.c.b16 %v6828, %v6824
    %v7241 = vpack.c.b16 %v6829, %v6825
    %v7242 = vpack.c.b16 %v6830, %v6826
    %v7243 = vpack.c.b16 %v6831, %v6827
    %v7244 = vpack.c.b16 %v6836, %v6832
    %v7245 = vpack.c.b16 %v6837, %v6833
    %v7246 = vpack.c.b16 %v6838, %v6834
    %v7247 = vpack.c.b16 %v6839, %v6835
    %v7248 = vpack.c.b16 %v6844, %v6840
    %v7249 = vpack.c.b16 %v6845, %v6841
    %v7250 = vpack.c.b16 %v6846, %v6842
    %v7251 = vpack.c.b16 %v6847, %v6843
    %v7252 = vpack.c.b16 %v6852, %v6848
    %v7253 = vpack.c.b16 %v6853, %v6849
    %v7254 = vpack.c.b16 %v6854, %v6850
    %v7255 = vpack.c.b16 %v6855, %v6851
    %v7256 = vpack.c.b16 %v6860, %v6856
    %v7257 = vpack.c.b16 %v6861, %v6857
    %v7258 = vpack.c.b16 %v6862, %v6858
    %v7259 = vpack.c.b16 %v6863, %v6859
    %v7260 = vpack.c.b16 %v6868, %v6864
    %v7261 = vpack.c.b16 %v6869, %v6865
    %v7262 = vpack.c.b16 %v6870, %v6866
    %v7263 = vpack.c.b16 %v6871, %v6867
    %v7264 = vpack.c.b16 %v6876, %v6872
    %v7265 = vpack.c.b16 %v6877, %v6873
    %v7266 = vpack.c.b16 %v6878, %v6874
    %v7267 = vpack.c.b16 %v6879, %v6875
    %v7268 = vpack.c.b16 %v6884, %v6880
    %v7269 = vpack.c.b16 %v6885, %v6881
    %v7270 = vpack.c.b16 %v6886, %v6882
    %v7271 = vpack.c.b16 %v6887, %v6883
    %v7272 = vpack.c.b16 %v6892, %v6888
    %v7273 = vpack.c.b16 %v6893, %v6889
    %v7274 = vpack.c.b16 %v6894, %v6890
    %v7275 = vpack.c.b16 %v6895, %v6891
    %v7276 = vpack.c.b16 %v6900, %v6896
    %v7277 = vpack.c.b16 %v6901, %v6897
    %v7278 = vpack.c.b16 %v6902, %v6898
    %v7279 = vpack.c.b16 %v6903, %v6899
    %v7280 = vpack.c.b16 %v6908, %v6904
    %v7281 = vpack.c.b16 %v6909, %v6905
    %v7282 = vpack.c.b16 %v6910, %v6906
    %v7283 = vpack.c.b16 %v6911, %v6907
    %v7284 = vpack.c.b16 %v6916, %v6912
    %v7285 = vpack.c.b16 %v6917, %v6913
    %v7286 = vpack.c.b16 %v6918, %v6914
    %v7287 = vpack.c.b16 %v6919, %v6915
    %v7288 = vpack.c.b16 %v6924, %v6920
    %v7289 = vpack.c.b16 %v6925, %v6921
    %v7290 = vpack.c.b16 %v6926, %v6922
    %v7291 = vpack.c.b16 %v6927, %v6923
    %v7292 = vpack.c.b16 %v6932, %v6928
    %v7293 = vpack.c.b16 %v6933, %v6929
    %v7294 = vpack.c.b16 %v6934, %v6930
    %v7295 = vpack.c.b16 %v6935, %v6931
    %v7296 = vpack.c.b16 %v6940, %v6936
    %v7297 = vpack.c.b16 %v6941, %v6937
    %v7298 = vpack.c.b16 %v6942, %v6938
    %v7299 = vpack.c.b16 %v6943, %v6939
    %v7300 = vpack.c.b16 %v6948, %v6944
    %v7301 = vpack.c.b16 %v6949, %v6945
    %v7302 = vpack.c.b16 %v6950, %v6946
    %v7303 = vpack.c.b16 %v6951, %v6947
    %v7304 = vpack.c.b16 %v6956, %v6952
    %v7305 = vpack.c.b16 %v6957, %v6953
    %v7306 = vpack.c.b16 %v6958, %v6954
    %v7307 = vpack.c.b16 %v6959, %v6955
    %v7308 = vpack.c.b16 %v6964, %v6960
    %v7309 = vpack.c.b16 %v6965, %v6961
    %v7310 = vpack.c.b16 %v6966, %v6962
    %v7311 = vpack.c.b16 %v6967, %v6963
    %v7312 = vpack.c.b16 %v6972, %v6968
    %v7313 = vpack.c.b16 %v6973, %v6969
    %v7314 = vpack.c.b16 %v6974, %v6970
    %v7315 = vpack.c.b16 %v6975, %v6971
    %v7316 = vpack.c.b16 %v6980, %v6976
    %v7317 = vpack.c.b16 %v6981, %v6977
    %v7318 = vpack.c.b16 %v6982, %v6978
    %v7319 = vpack.c.b16 %v6983, %v6979
    %v7320 = vpack.c.b16 %v6988, %v6984
    %v7321 = vpack.c.b16 %v6989, %v6985
    %v7322 = vpack.c.b16 %v6990, %v6986
    %v7323 = vpack.c.b16 %v6991, %v6987
    %v7324 = vpack.c.b16 %v6996, %v6992
    %v7325 = vpack.c.b16 %v6997, %v6993
    %v7326 = vpack.c.b16 %v6998, %v6994
    %v7327 = vpack.c.b16 %v6999, %v6995
    %v7328 = vpack.c.b16 %v7004, %v7000
    %v7329 = vpack.c.b16 %v7005, %v7001
    %v7330 = vpack.c.b16 %v7006, %v7002
    %v7331 = vpack.c.b16 %v7007, %v7003
    %v7332 = vpack.c.b16 %v7012, %v7008
    %v7333 = vpack.c.b16 %v7013, %v7009
    %v7334 = vpack.c.b16 %v7014, %v7010
    %v7335 = vpack.c.b16 %v7015, %v7011
    %v7336 = vpack.c.b16 %v7020, %v7016
    %v7337 = vpack.c.b16 %v7021, %v7017
    %v7338 = vpack.c.b16 %v7022, %v7018
    %v7339 = vpack.c.b16 %v7023, %v7019
    %v7340 = vpack.c.b16 %v7028, %v7024
    %v7341 = vpack.c.b16 %v7029, %v7025
    %v7342 = vpack.c.b16 %v7030, %v7026
    %v7343 = vpack.c.b16 %v7031, %v7027
    %v7344 = vpack.c.b16 %v7036, %v7032
    %v7345 = vpack.c.b16 %v7037, %v7033
    %v7346 = vpack.c.b16 %v7038, %v7034
    %v7347 = vpack.c.b16 %v7039, %v7035
    %v7348 = vpack.c.b16 %v7044, %v7040
    %v7349 = vpack.c.b16 %v7045, %v7041
    %v7350 = vpack.c.b16 %v7046, %v7042
    %v7351 = vpack.c.b16 %v7047, %v7043
    %v7352 = vpack.c.b16 %v7052, %v7048
    %v7353 = vpack.c.b16 %v7053, %v7049
    %v7354 = vpack.c.b16 %v7054, %v7050
    %v7355 = vpack.c.b16 %v7055, %v7051
    %v7356 = vpack.c.b16 %v7060, %v7056
    %v7357 = vpack.c.b16 %v7061, %v7057
    %v7358 = vpack.c.b16 %v7062, %v7058
    %v7359 = vpack.c.b16 %v7063, %v7059
    %v7360 = vpack.c.b16 %v7068, %v7064
    %v7361 = vpack.c.b16 %v7069, %v7065
    %v7362 = vpack.c.b16 %v7070, %v7066
    %v7363 = vpack.c.b16 %v7071, %v7067
    %v7364 = vpack.c.b16 %v7076, %v7072
    %v7365 = vpack.c.b16 %v7077, %v7073
    %v7366 = vpack.c.b16 %v7078, %v7074
    %v7367 = vpack.c.b16 %v7079, %v7075
    %v7368 = vpack.c.b16 %v7084, %v7080
    %v7369 = vpack.c.b16 %v7085, %v7081
    %v7370 = vpack.c.b16 %v7086, %v7082
    %v7371 = vpack.c.b16 %v7087, %v7083
    %v7372 = vpack.c.b16 %v7092, %v7088
    %v7373 = vpack.c.b16 %v7093, %v7089
    %v7374 = vpack.c.b16 %v7094, %v7090
    %v7375 = vpack.c.b16 %v7095, %v7091
    %v7376 = vpack.c.b16 %v7100, %v7096
    %v7377 = vpack.c.b16 %v7101, %v7097
    %v7378 = vpack.c.b16 %v7102, %v7098
    %v7379 = vpack.c.b16 %v7103, %v7099
    %v7380 = vpack.c.b16 %v7108, %v7104
    %v7381 = vpack.c.b16 %v7109, %v7105
    %v7382 = vpack.c.b16 %v7110, %v7106
    %v7383 = vpack.c.b16 %v7111, %v7107
    %v7384 = vpack.c.b16 %v7116, %v7112
    %v7385 = vpack.c.b16 %v7117, %v7113
    %v7386 = vpack.c.b16 %v7118, %v7114
    %v7387 = vpack.c.b16 %v7119, %v7115
    %v7388 = vpack.c.b16 %v7124, %v7120
    %v7389 = vpack.c.b16 %v7125, %v7121
    %v7390 = vpack.c.b16 %v7126, %v7122
    %v7391 = vpack.c.b16 %v7127, %v7123
    %v7392 = vpack.c.b16 %v7132, %v7128
    %v7393 = vpack.c.b16 %v7133, %v7129
    %v7394 = vpack.c.b16 %v7134, %v7130
    %v7395 = vpack.c.b16 %v7135, %v7131
    %v7396 = vpack.c.b16 %v7140, %v7136
    %v7397 = vpack.c.b16 %v7141, %v7137
    %v7398 = vpack.c.b16 %v7142, %v7138
    %v7399 = vpack.c.b16 %v7143, %v7139
    %7656 = vmatprep.subr.bf16.mxu0 %v7145
    %7657 = vmatpush1.bf16.msra.mxu0 %v7144
    %7658 = vmatprep.subr.bf16.mxu0 %v7149
    %7659 = vmatpush1.bf16.msra.mxu0 %v7148
    %7660 = vmatprep.subr.bf16.mxu0 %v7153
    %7661 = vmatpush1.bf16.msra.mxu0 %v7152
    %7662 = vmatprep.subr.bf16.mxu0 %v7157
    %7663 = vmatpush1.bf16.msra.mxu0 %v7156
    %7664 = vmatprep.subr.bf16.mxu0 %v7161
    %7665 = vmatpush1.bf16.msra.mxu0 %v7160
    %7666 = vmatprep.subr.bf16.mxu0 %v7165
    %7667 = vmatpush1.bf16.msra.mxu0 %v7164
    %7668 = vmatprep.subr.bf16.mxu0 %v7169
    %7669 = vmatpush1.bf16.msra.mxu0 %v7168
    %7670 = vmatprep.subr.bf16.mxu0 %v7173
    %7671 = vmatpush1.bf16.msra.mxu0 %v7172
    %7672 = vmatprep.subr.bf16.mxu0 %v7177
    %7673 = vmatpush1.bf16.msra.mxu0 %v7176
    %7674 = vmatprep.subr.bf16.mxu0 %v7181
    %7675 = vmatpush1.bf16.msra.mxu0 %v7180
    %7676 = vmatprep.subr.bf16.mxu0 %v7185
    %7677 = vmatpush1.bf16.msra.mxu0 %v7184
    %7678 = vmatprep.subr.bf16.mxu0 %v7189
    %7679 = vmatpush1.bf16.msra.mxu0 %v7188
    %7680 = vmatprep.subr.bf16.mxu0 %v7193
    %7681 = vmatpush1.bf16.msra.mxu0 %v7192
    %7682 = vmatprep.subr.bf16.mxu0 %v7197
    %7683 = vmatpush1.bf16.msra.mxu0 %v7196
    %7684 = vmatprep.subr.bf16.mxu0 %v7201
    %7685 = vmatpush1.bf16.msra.mxu0 %v7200
    %7686 = vmatprep.subr.bf16.mxu0 %v7205
    %7687 = vmatpush1.bf16.msra.mxu0 %v7204
    %7688 = vmatprep.mubr.bf16.mxu0 %v6091
    %7689 = vmatmul.mubr.bf16.gmra.mrb[0].mxu0 %v6090
    %v7690 = vpop.f32.mrb[0].mxu0
    %v7691 = vadd.f32 %v6359, %v7690
    %v7692 = vpop.f32.mrb[0].mxu0
    %v7693 = vadd.f32 %v6363, %v7692
    %v7694 = vpop.f32.mrb[0].mxu0
    %v7695 = vpop.f32.mrb[0].mxu0
    %7696 = vdwg.mxu0
    %7697 = vmatprep.subr.bf16.mxu0 %v7209
    %7698 = vmatpush1.bf16.msra.mxu0 %v7208
    %7699 = vmatprep.subr.bf16.mxu0 %v7213
    %7700 = vmatpush1.bf16.msra.mxu0 %v7212
    %7701 = vmatprep.subr.bf16.mxu0 %v7217
    %7702 = vmatpush1.bf16.msra.mxu0 %v7216
    %7703 = vmatprep.subr.bf16.mxu0 %v7221
    %7704 = vmatpush1.bf16.msra.mxu0 %v7220
    %7705 = vmatprep.subr.bf16.mxu0 %v7225
    %7706 = vmatpush1.bf16.msra.mxu0 %v7224
    %7707 = vmatprep.subr.bf16.mxu0 %v7229
    %7708 = vmatpush1.bf16.msra.mxu0 %v7228
    %7709 = vmatprep.subr.bf16.mxu0 %v7233
    %7710 = vmatpush1.bf16.msra.mxu0 %v7232
    %7711 = vmatprep.subr.bf16.mxu0 %v7237
    %7712 = vmatpush1.bf16.msra.mxu0 %v7236
    %7713 = vmatprep.subr.bf16.mxu0 %v7241
    %7714 = vmatpush1.bf16.msra.mxu0 %v7240
    %7715 = vmatprep.subr.bf16.mxu0 %v7245
    %7716 = vmatpush1.bf16.msra.mxu0 %v7244
    %7717 = vmatprep.subr.bf16.mxu0 %v7249
    %7718 = vmatpush1.bf16.msra.mxu0 %v7248
    %7719 = vmatprep.subr.bf16.mxu0 %v7253
    %7720 = vmatpush1.bf16.msra.mxu0 %v7252
    %7721 = vmatprep.subr.bf16.mxu0 %v7257
    %7722 = vmatpush1.bf16.msra.mxu0 %v7256
    %7723 = vmatprep.subr.bf16.mxu0 %v7261
    %7724 = vmatpush1.bf16.msra.mxu0 %v7260
    %7725 = vmatprep.subr.bf16.mxu0 %v7265
    %7726 = vmatpush1.bf16.msra.mxu0 %v7264
    %7727 = vmatprep.subr.bf16.mxu0 %v7269
    %7728 = vmatpush1.bf16.msra.mxu0 %v7268
    %7729 = vmatprep.mubr.bf16.mxu0 %v6093
    %7730 = vmatmul.mubr.bf16.gmra.mrb[0].mxu0 %v6092
    %v7731 = vpop.f32.mrb[0].mxu0
    %v7732 = vadd.f32 %v7691, %v7731
    %v7733 = vpop.f32.mrb[0].mxu0
    %v7734 = vadd.f32 %v7693, %v7733
    %v7735 = vpop.f32.mrb[0].mxu0
    %v7736 = vpop.f32.mrb[0].mxu0
    %7737 = vdwg.mxu0
    %7738 = vmatprep.subr.bf16.mxu0 %v7273
    %7739 = vmatpush1.bf16.msra.mxu0 %v7272
    %7740 = vmatprep.subr.bf16.mxu0 %v7277
    %7741 = vmatpush1.bf16.msra.mxu0 %v7276
    %7742 = vmatprep.subr.bf16.mxu0 %v7281
    %7743 = vmatpush1.bf16.msra.mxu0 %v7280
    %7744 = vmatprep.subr.bf16.mxu0 %v7285
    %7745 = vmatpush1.bf16.msra.mxu0 %v7284
    %7746 = vmatprep.subr.bf16.mxu0 %v7289
    %7747 = vmatpush1.bf16.msra.mxu0 %v7288
    %7748 = vmatprep.subr.bf16.mxu0 %v7293
    %7749 = vmatpush1.bf16.msra.mxu0 %v7292
    %7750 = vmatprep.subr.bf16.mxu0 %v7297
    %7751 = vmatpush1.bf16.msra.mxu0 %v7296
    %7752 = vmatprep.subr.bf16.mxu0 %v7301
    %7753 = vmatpush1.bf16.msra.mxu0 %v7300
    %7754 = vmatprep.subr.bf16.mxu0 %v7305
    %7755 = vmatpush1.bf16.msra.mxu0 %v7304
    %7756 = vmatprep.subr.bf16.mxu0 %v7309
    %7757 = vmatpush1.bf16.msra.mxu0 %v7308
    %7758 = vmatprep.subr.bf16.mxu0 %v7313
    %7759 = vmatpush1.bf16.msra.mxu0 %v7312
    %7760 = vmatprep.subr.bf16.mxu0 %v7317
    %7761 = vmatpush1.bf16.msra.mxu0 %v7316
    %7762 = vmatprep.subr.bf16.mxu0 %v7321
    %7763 = vmatpush1.bf16.msra.mxu0 %v7320
    %7764 = vmatprep.subr.bf16.mxu0 %v7325
    %7765 = vmatpush1.bf16.msra.mxu0 %v7324
    %7766 = vmatprep.subr.bf16.mxu0 %v7329
    %7767 = vmatpush1.bf16.msra.mxu0 %v7328
    %7768 = vmatprep.subr.bf16.mxu0 %v7333
    %7769 = vmatpush1.bf16.msra.mxu0 %v7332
    %7770 = vmatprep.mubr.bf16.mxu0 %v6095
    %7771 = vmatmul.mubr.bf16.gmra.mrb[0].mxu0 %v6094
    %v7772 = vpop.f32.mrb[0].mxu0
    %v7773 = vadd.f32 %v7732, %v7772
    %v7774 = vpop.f32.mrb[0].mxu0
    %v7775 = vadd.f32 %v7734, %v7774
    %v7776 = vpop.f32.mrb[0].mxu0
    %v7777 = vpop.f32.mrb[0].mxu0
    %7778 = vdwg.mxu0
    %7779 = vmatprep.subr.bf16.mxu0 %v7337
    %7780 = vmatpush1.bf16.msra.mxu0 %v7336
    %7781 = vmatprep.subr.bf16.mxu0 %v7341
    %7782 = vmatpush1.bf16.msra.mxu0 %v7340
    %7783 = vmatprep.subr.bf16.mxu0 %v7345
    %7784 = vmatpush1.bf16.msra.mxu0 %v7344
    %7785 = vmatprep.subr.bf16.mxu0 %v7349
    %7786 = vmatpush1.bf16.msra.mxu0 %v7348
    %7787 = vmatprep.subr.bf16.mxu0 %v7353
    %7788 = vmatpush1.bf16.msra.mxu0 %v7352
    %7789 = vmatprep.subr.bf16.mxu0 %v7357
    %7790 = vmatpush1.bf16.msra.mxu0 %v7356
    %7791 = vmatprep.subr.bf16.mxu0 %v7361
    %7792 = vmatpush1.bf16.msra.mxu0 %v7360
    %7793 = vmatprep.subr.bf16.mxu0 %v7365
    %7794 = vmatpush1.bf16.msra.mxu0 %v7364
    %7795 = vmatprep.subr.bf16.mxu0 %v7369
    %7796 = vmatpush1.bf16.msra.mxu0 %v7368
    %7797 = vmatprep.subr.bf16.mxu0 %v7373
    %7798 = vmatpush1.bf16.msra.mxu0 %v7372
    %7799 = vmatprep.subr.bf16.mxu0 %v7377
    %7800 = vmatpush1.bf16.msra.mxu0 %v7376
    %7801 = vmatprep.subr.bf16.mxu0 %v7381
    %7802 = vmatpush1.bf16.msra.mxu0 %v7380
    %7803 = vmatprep.subr.bf16.mxu0 %v7385
    %7804 = vmatpush1.bf16.msra.mxu0 %v7384
    %7805 = vmatprep.subr.bf16.mxu0 %v7389
    %7806 = vmatpush1.bf16.msra.mxu0 %v7388
    %7807 = vmatprep.subr.bf16.mxu0 %v7393
    %7808 = vmatpush1.bf16.msra.mxu0 %v7392
    %7809 = vmatprep.subr.bf16.mxu0 %v7397
    %7810 = vmatpush1.bf16.msra.mxu0 %v7396
    %7811 = vmatprep.mubr.bf16.mxu0 %v6097
    %7812 = vmatmul.mubr.bf16.gmra.mrb[0].mxu0 %v6096
    %v7813 = vpop.f32.mrb[0].mxu0
    %v7814 = vadd.f32 %v7773, %v7813
    %v7815 = vpop.f32.mrb[0].mxu0
    %v7816 = vadd.f32 %v7775, %v7815
    %v7817 = vpop.f32.mrb[0].mxu0
    %v7818 = vpop.f32.mrb[0].mxu0
    %7819 = vdwg.mxu0
    %7820 = vmatprep.subr.bf16.mxu0 %v7147
    %7821 = vmatpush1.bf16.msra.mxu0 %v7146
    %7822 = vmatprep.subr.bf16.mxu0 %v7151
    %7823 = vmatpush1.bf16.msra.mxu0 %v7150
    %7824 = vmatprep.subr.bf16.mxu0 %v7155
    %7825 = vmatpush1.bf16.msra.mxu0 %v7154
    %7826 = vmatprep.subr.bf16.mxu0 %v7159
    %7827 = vmatpush1.bf16.msra.mxu0 %v7158
    %7828 = vmatprep.subr.bf16.mxu0 %v7163
    %7829 = vmatpush1.bf16.msra.mxu0 %v7162
    %7830 = vmatprep.subr.bf16.mxu0 %v7167
    %7831 = vmatpush1.bf16.msra.mxu0 %v7166
    %7832 = vmatprep.subr.bf16.mxu0 %v7171
    %7833 = vmatpush1.bf16.msra.mxu0 %v7170
    %7834 = vmatprep.subr.bf16.mxu0 %v7175
    %7835 = vmatpush1.bf16.msra.mxu0 %v7174
    %7836 = vmatprep.subr.bf16.mxu0 %v7179
    %7837 = vmatpush1.bf16.msra.mxu0 %v7178
    %7838 = vmatprep.subr.bf16.mxu0 %v7183
    %7839 = vmatpush1.bf16.msra.mxu0 %v7182
    %7840 = vmatprep.subr.bf16.mxu0 %v7187
    %7841 = vmatpush1.bf16.msra.mxu0 %v7186
    %7842 = vmatprep.subr.bf16.mxu0 %v7191
    %7843 = vmatpush1.bf16.msra.mxu0 %v7190
    %7844 = vmatprep.subr.bf16.mxu0 %v7195
    %7845 = vmatpush1.bf16.msra.mxu0 %v7194
    %7846 = vmatprep.subr.bf16.mxu0 %v7199
    %7847 = vmatpush1.bf16.msra.mxu0 %v7198
    %7848 = vmatprep.subr.bf16.mxu0 %v7203
    %7849 = vmatpush1.bf16.msra.mxu0 %v7202
    %7850 = vmatprep.subr.bf16.mxu0 %v7207
    %7851 = vmatpush1.bf16.msra.mxu0 %v7206
    %7852 = vmatprep.mubr.bf16.mxu0 %v6091
    %7853 = vmatmul.mubr.bf16.gmra.mrb[0].mxu0 %v6090
    %v7854 = vpop.f32.mrb[0].mxu0
    %v7855 = vadd.f32 %v6367, %v7854
    %v7856 = vpop.f32.mrb[0].mxu0
    %v7857 = vadd.f32 %v6371, %v7856
    %v7858 = vpop.f32.mrb[0].mxu0
    %v7859 = vpop.f32.mrb[0].mxu0
    %7860 = vdwg.mxu0
    %7861 = vmatprep.subr.bf16.mxu0 %v7211
    %7862 = vmatpush1.bf16.msra.mxu0 %v7210
    %7863 = vmatprep.subr.bf16.mxu0 %v7215
    %7864 = vmatpush1.bf16.msra.mxu0 %v7214
    %7865 = vmatprep.subr.bf16.mxu0 %v7219
    %7866 = vmatpush1.bf16.msra.mxu0 %v7218
    %7867 = vmatprep.subr.bf16.mxu0 %v7223
    %7868 = vmatpush1.bf16.msra.mxu0 %v7222
    %7869 = vmatprep.subr.bf16.mxu0 %v7227
    %7870 = vmatpush1.bf16.msra.mxu0 %v7226
    %7871 = vmatprep.subr.bf16.mxu0 %v7231
    %7872 = vmatpush1.bf16.msra.mxu0 %v7230
    %7873 = vmatprep.subr.bf16.mxu0 %v7235
    %7874 = vmatpush1.bf16.msra.mxu0 %v7234
    %7875 = vmatprep.subr.bf16.mxu0 %v7239
    %7876 = vmatpush1.bf16.msra.mxu0 %v7238
    %7877 = vmatprep.subr.bf16.mxu0 %v7243
    %7878 = vmatpush1.bf16.msra.mxu0 %v7242
    %7879 = vmatprep.subr.bf16.mxu0 %v7247
    %7880 = vmatpush1.bf16.msra.mxu0 %v7246
    %7881 = vmatprep.subr.bf16.mxu0 %v7251
    %7882 = vmatpush1.bf16.msra.mxu0 %v7250
    %7883 = vmatprep.subr.bf16.mxu0 %v7255
    %7884 = vmatpush1.bf16.msra.mxu0 %v7254
    %7885 = vmatprep.subr.bf16.mxu0 %v7259
    %7886 = vmatpush1.bf16.msra.mxu0 %v7258
    %7887 = vmatprep.subr.bf16.mxu0 %v7263
    %7888 = vmatpush1.bf16.msra.mxu0 %v7262
    %7889 = vmatprep.subr.bf16.mxu0 %v7267
    %7890 = vmatpush1.bf16.msra.mxu0 %v7266
    %7891 = vmatprep.subr.bf16.mxu0 %v7271
    %7892 = vmatpush1.bf16.msra.mxu0 %v7270
    %7893 = vmatprep.mubr.bf16.mxu0 %v6093
    %7894 = vmatmul.mubr.bf16.gmra.mrb[0].mxu0 %v6092
    %v7895 = vpop.f32.mrb[0].mxu0
    %v7896 = vadd.f32 %v7855, %v7895
    %v7897 = vpop.f32.mrb[0].mxu0
    %v7898 = vadd.f32 %v7857, %v7897
    %v7899 = vpop.f32.mrb[0].mxu0
    %v7900 = vpop.f32.mrb[0].mxu0
    %7901 = vdwg.mxu0
    %7902 = vmatprep.subr.bf16.mxu0 %v7275
    %7903 = vmatpush1.bf16.msra.mxu0 %v7274
    %7904 = vmatprep.subr.bf16.mxu0 %v7279
    %7905 = vmatpush1.bf16.msra.mxu0 %v7278
    %7906 = vmatprep.subr.bf16.mxu0 %v7283
    %7907 = vmatpush1.bf16.msra.mxu0 %v7282
    %7908 = vmatprep.subr.bf16.mxu0 %v7287
    %7909 = vmatpush1.bf16.msra.mxu0 %v7286
    %7910 = vmatprep.subr.bf16.mxu0 %v7291
    %7911 = vmatpush1.bf16.msra.mxu0 %v7290
    %7912 = vmatprep.subr.bf16.mxu0 %v7295
    %7913 = vmatpush1.bf16.msra.mxu0 %v7294
    %7914 = vmatprep.subr.bf16.mxu0 %v7299
    %7915 = vmatpush1.bf16.msra.mxu0 %v7298
    %7916 = vmatprep.subr.bf16.mxu0 %v7303
    %7917 = vmatpush1.bf16.msra.mxu0 %v7302
    %7918 = vmatprep.subr.bf16.mxu0 %v7307
    %7919 = vmatpush1.bf16.msra.mxu0 %v7306
    %7920 = vmatprep.subr.bf16.mxu0 %v7311
    %7921 = vmatpush1.bf16.msra.mxu0 %v7310
    %7922 = vmatprep.subr.bf16.mxu0 %v7315
    %7923 = vmatpush1.bf16.msra.mxu0 %v7314
    %7924 = vmatprep.subr.bf16.mxu0 %v7319
    %7925 = vmatpush1.bf16.msra.mxu0 %v7318
    %7926 = vmatprep.subr.bf16.mxu0 %v7323
    %7927 = vmatpush1.bf16.msra.mxu0 %v7322
    %7928 = vmatprep.subr.bf16.mxu0 %v7327
    %7929 = vmatpush1.bf16.msra.mxu0 %v7326
    %7930 = vmatprep.subr.bf16.mxu0 %v7331
    %7931 = vmatpush1.bf16.msra.mxu0 %v7330
    %7932 = vmatprep.subr.bf16.mxu0 %v7335
    %7933 = vmatpush1.bf16.msra.mxu0 %v7334
    %7934 = vmatprep.mubr.bf16.mxu0 %v6095
    %7935 = vmatmul.mubr.bf16.gmra.mrb[0].mxu0 %v6094
    %v7936 = vpop.f32.mrb[0].mxu0
    %v7937 = vadd.f32 %v7896, %v7936
    %v7938 = vpop.f32.mrb[0].mxu0
    %v7939 = vadd.f32 %v7898, %v7938
    %v7940 = vpop.f32.mrb[0].mxu0
    %v7941 = vpop.f32.mrb[0].mxu0
    %7942 = vdwg.mxu0
    %7943 = vmatprep.subr.bf16.mxu0 %v7339
    %7944 = vmatpush1.bf16.msra.mxu0 %v7338
    %7945 = vmatprep.subr.bf16.mxu0 %v7343
    %7946 = vmatpush1.bf16.msra.mxu0 %v7342
    %7947 = vmatprep.subr.bf16.mxu0 %v7347
    %7948 = vmatpush1.bf16.msra.mxu0 %v7346
    %7949 = vmatprep.subr.bf16.mxu0 %v7351
    %7950 = vmatpush1.bf16.msra.mxu0 %v7350
    %7951 = vmatprep.subr.bf16.mxu0 %v7355
    %7952 = vmatpush1.bf16.msra.mxu0 %v7354
    %7953 = vmatprep.subr.bf16.mxu0 %v7359
    %7954 = vmatpush1.bf16.msra.mxu0 %v7358
    %7955 = vmatprep.subr.bf16.mxu0 %v7363
    %7956 = vmatpush1.bf16.msra.mxu0 %v7362
    %7957 = vmatprep.subr.bf16.mxu0 %v7367
    %7958 = vmatpush1.bf16.msra.mxu0 %v7366
    %7959 = vmatprep.subr.bf16.mxu0 %v7371
    %7960 = vmatpush1.bf16.msra.mxu0 %v7370
    %7961 = vmatprep.subr.bf16.mxu0 %v7375
    %7962 = vmatpush1.bf16.msra.mxu0 %v7374
    %7963 = vmatprep.subr.bf16.mxu0 %v7379
    %7964 = vmatpush1.bf16.msra.mxu0 %v7378
    %7965 = vmatprep.subr.bf16.mxu0 %v7383
    %7966 = vmatpush1.bf16.msra.mxu0 %v7382
    %7967 = vmatprep.subr.bf16.mxu0 %v7387
    %7968 = vmatpush1.bf16.msra.mxu0 %v7386
    %7969 = vmatprep.subr.bf16.mxu0 %v7391
    %7970 = vmatpush1.bf16.msra.mxu0 %v7390
    %7971 = vmatprep.subr.bf16.mxu0 %v7395
    %7972 = vmatpush1.bf16.msra.mxu0 %v7394
    %7973 = vmatprep.subr.bf16.mxu0 %v7399
    %7974 = vmatpush1.bf16.msra.mxu0 %v7398
    %7975 = vmatprep.mubr.bf16.mxu0 %v6097
    %7976 = vmatmul.mubr.bf16.gmra.mrb[0].mxu0 %v6096
    %v7977 = vpop.f32.mrb[0].mxu0
    %v7978 = vadd.f32 %v7937, %v7977
    %v7979 = vpop.f32.mrb[0].mxu0
    %v7980 = vadd.f32 %v7939, %v7979
    %v7981 = vpop.f32.mrb[0].mxu0
    %v7982 = vpop.f32.mrb[0].mxu0
    %7983 = vdwg.mxu0
    %v7984 = vmax.f32 %v7814, 0.0
    %v7985 = vmax.f32 %v7816, 0.0
    %v7986 = vmax.f32 %v7978, 0.0
    %v7987 = vmax.f32 %v7980, 0.0
    %v7988 = vpack.c.bf16 %v7984, %v7984
    %v7989 = vpack.c.bf16 %v7985, %v7985
    %v7990 = vpack.c.bf16 %v7986, %v7986
    %v7991 = vpack.c.bf16 %v7987, %v7987
    %v7992 = vld [vmem:[#allocation15] sm:$0xf]
    %v7993 = vld [vmem:[#allocation15 + $0x4] sm:$0xf]
    %v7994 = vld [vmem:[#allocation15 + $0x8] sm:$0xf]
    %v7995 = vld [vmem:[#allocation15 + $0xc] sm:$0xf]
    %v7996 = vld [vmem:[#allocation15 + $0x10] sm:$0xf]
    %v7997 = vld [vmem:[#allocation15 + $0x14] sm:$0xf]
    %v7998 = vld [vmem:[#allocation15 + $0x18] sm:$0xf]
    %v7999 = vld [vmem:[#allocation15 + $0x1c] sm:$0xf]
    %v8000 = vld [vmem:[#allocation15 + $0x20] sm:$0xf]
    %v8001 = vld [vmem:[#allocation15 + $0x24] sm:$0xf]
    %v8002 = vld [vmem:[#allocation15 + $0x28] sm:$0xf]
    %v8003 = vld [vmem:[#allocation15 + $0x2c] sm:$0xf]
    %v8004 = vld [vmem:[#allocation15 + $0x30] sm:$0xf]
    %v8005 = vld [vmem:[#allocation15 + $0x34] sm:$0xf]
    %v8006 = vld [vmem:[#allocation15 + $0x38] sm:$0xf]
    %v8007 = vld [vmem:[#allocation15 + $0x3c] sm:$0xf]
    %v8008 = vld [vmem:[#allocation15 + $0x40] sm:$0xf]
    %v8009 = vld [vmem:[#allocation15 + $0x44] sm:$0xf]
    %v8010 = vld [vmem:[#allocation15 + $0x48] sm:$0xf]
    %v8011 = vld [vmem:[#allocation15 + $0x4c] sm:$0xf]
    %v8012 = vld [vmem:[#allocation15 + $0x50] sm:$0xf]
    %v8013 = vld [vmem:[#allocation15 + $0x54] sm:$0xf]
    %v8014 = vld [vmem:[#allocation15 + $0x58] sm:$0xf]
    %v8015 = vld [vmem:[#allocation15 + $0x5c] sm:$0xf]
    %v8016 = vld [vmem:[#allocation15 + $0x60] sm:$0xf]
    %v8017 = vld [vmem:[#allocation15 + $0x64] sm:$0xf]
    %v8018 = vld [vmem:[#allocation15 + $0x68] sm:$0xf]
    %v8019 = vld [vmem:[#allocation15 + $0x6c] sm:$0xf]
    %v8020 = vld [vmem:[#allocation15 + $0x70] sm:$0xf]
    %v8021 = vld [vmem:[#allocation15 + $0x74] sm:$0xf]
    %v8022 = vld [vmem:[#allocation15 + $0x78] sm:$0xf]
    %v8023 = vld [vmem:[#allocation15 + $0x7c] sm:$0xf]
    %v8024 = vld [vmem:[#allocation15 + $0x80] sm:$0xf]
    %v8025 = vld [vmem:[#allocation15 + $0x84] sm:$0xf]
    %v8026 = vld [vmem:[#allocation15 + $0x88] sm:$0xf]
    %v8027 = vld [vmem:[#allocation15 + $0x8c] sm:$0xf]
    %v8028 = vld [vmem:[#allocation15 + $0x90] sm:$0xf]
    %v8029 = vld [vmem:[#allocation15 + $0x94] sm:$0xf]
    %v8030 = vld [vmem:[#allocation15 + $0x98] sm:$0xf]
    %v8031 = vld [vmem:[#allocation15 + $0x9c] sm:$0xf]
    %v8032 = vld [vmem:[#allocation15 + $0xa0] sm:$0xf]
    %v8033 = vld [vmem:[#allocation15 + $0xa4] sm:$0xf]
    %v8034 = vld [vmem:[#allocation15 + $0xa8] sm:$0xf]
    %v8035 = vld [vmem:[#allocation15 + $0xac] sm:$0xf]
    %v8036 = vld [vmem:[#allocation15 + $0xb0] sm:$0xf]
    %v8037 = vld [vmem:[#allocation15 + $0xb4] sm:$0xf]
    %v8038 = vld [vmem:[#allocation15 + $0xb8] sm:$0xf]
    %v8039 = vld [vmem:[#allocation15 + $0xbc] sm:$0xf]
    %v8040 = vld [vmem:[#allocation15 + $0xc0] sm:$0xf]
    %v8041 = vld [vmem:[#allocation15 + $0xc4] sm:$0xf]
    %v8042 = vld [vmem:[#allocation15 + $0xc8] sm:$0xf]
    %v8043 = vld [vmem:[#allocation15 + $0xcc] sm:$0xf]
    %v8044 = vld [vmem:[#allocation15 + $0xd0] sm:$0xf]
    %v8045 = vld [vmem:[#allocation15 + $0xd4] sm:$0xf]
    %v8046 = vld [vmem:[#allocation15 + $0xd8] sm:$0xf]
    %v8047 = vld [vmem:[#allocation15 + $0xdc] sm:$0xf]
    %v8048 = vld [vmem:[#allocation15 + $0xe0] sm:$0xf]
    %v8049 = vld [vmem:[#allocation15 + $0xe4] sm:$0xf]
    %v8050 = vld [vmem:[#allocation15 + $0xe8] sm:$0xf]
    %v8051 = vld [vmem:[#allocation15 + $0xec] sm:$0xf]
    %v8052 = vld [vmem:[#allocation15 + $0xf0] sm:$0xf]
    %v8053 = vld [vmem:[#allocation15 + $0xf4] sm:$0xf]
    %v8054 = vld [vmem:[#allocation15 + $0xf8] sm:$0xf]
    %v8055 = vld [vmem:[#allocation15 + $0xfc] sm:$0xf]
    %v8056 = vld [vmem:[#allocation16] sm:$0x1]
    %v8058 = vlaneseq
    %v8059 = vshrl.u32 %v8058, 7
    %v8060 = vsub.s32 0, %v8059
    %v8061 = vrot.slane %v8056, %v8060
    %v8127 = vunpack.c.l.b16 %v7992
    %v8128 = vunpack.c.l.b16 %v7993
    %v8129 = vunpack.c.l.b16 %v7994
    %v8130 = vunpack.c.l.b16 %v7995
    %v8131 = vunpack.c.l.b16 %v7996
    %v8132 = vunpack.c.l.b16 %v7997
    %v8133 = vunpack.c.l.b16 %v7998
    %v8134 = vunpack.c.l.b16 %v7999
    %v8135 = vunpack.c.l.b16 %v8000
    %v8136 = vunpack.c.l.b16 %v8001
    %v8137 = vunpack.c.l.b16 %v8002
    %v8138 = vunpack.c.l.b16 %v8003
    %v8139 = vunpack.c.l.b16 %v8004
    %v8140 = vunpack.c.l.b16 %v8005
    %v8141 = vunpack.c.l.b16 %v8006
    %v8142 = vunpack.c.l.b16 %v8007
    %v8143 = vunpack.c.l.b16 %v8008
    %v8144 = vunpack.c.l.b16 %v8009
    %v8145 = vunpack.c.l.b16 %v8010
    %v8146 = vunpack.c.l.b16 %v8011
    %v8147 = vunpack.c.l.b16 %v8012
    %v8148 = vunpack.c.l.b16 %v8013
    %v8149 = vunpack.c.l.b16 %v8014
    %v8150 = vunpack.c.l.b16 %v8015
    %v8151 = vunpack.c.l.b16 %v8016
    %v8152 = vunpack.c.l.b16 %v8017
    %v8153 = vunpack.c.l.b16 %v8018
    %v8154 = vunpack.c.l.b16 %v8019
    %v8155 = vunpack.c.l.b16 %v8020
    %v8156 = vunpack.c.l.b16 %v8021
    %v8157 = vunpack.c.l.b16 %v8022
    %v8158 = vunpack.c.l.b16 %v8023
    %v8159 = vunpack.c.l.b16 %v8024
    %v8160 = vunpack.c.l.b16 %v8025
    %v8161 = vunpack.c.l.b16 %v8026
    %v8162 = vunpack.c.l.b16 %v8027
    %v8163 = vunpack.c.l.b16 %v8028
    %v8164 = vunpack.c.l.b16 %v8029
    %v8165 = vunpack.c.l.b16 %v8030
    %v8166 = vunpack.c.l.b16 %v8031
    %v8167 = vunpack.c.l.b16 %v8032
    %v8168 = vunpack.c.l.b16 %v8033
    %v8169 = vunpack.c.l.b16 %v8034
    %v8170 = vunpack.c.l.b16 %v8035
    %v8171 = vunpack.c.l.b16 %v8036
    %v8172 = vunpack.c.l.b16 %v8037
    %v8173 = vunpack.c.l.b16 %v8038
    %v8174 = vunpack.c.l.b16 %v8039
    %v8175 = vunpack.c.l.b16 %v8040
    %v8176 = vunpack.c.l.b16 %v8041
    %v8177 = vunpack.c.l.b16 %v8042
    %v8178 = vunpack.c.l.b16 %v8043
    %v8179 = vunpack.c.l.b16 %v8044
    %v8180 = vunpack.c.l.b16 %v8045
    %v8181 = vunpack.c.l.b16 %v8046
    %v8182 = vunpack.c.l.b16 %v8047
    %v8183 = vunpack.c.l.b16 %v8048
    %v8184 = vunpack.c.l.b16 %v8049
    %v8185 = vunpack.c.l.b16 %v8050
    %v8186 = vunpack.c.l.b16 %v8051
    %v8187 = vunpack.c.l.b16 %v8052
    %v8188 = vunpack.c.l.b16 %v8053
    %v8189 = vunpack.c.l.b16 %v8054
    %v8190 = vunpack.c.l.b16 %v8055
    %v8191 = vpack.c.b16 %v8128, %v8127
    %v8192 = vpack.c.b16 %v8130, %v8129
    %v8193 = vpack.c.b16 %v8132, %v8131
    %v8194 = vpack.c.b16 %v8134, %v8133
    %v8195 = vpack.c.b16 %v8136, %v8135
    %v8196 = vpack.c.b16 %v8138, %v8137
    %v8197 = vpack.c.b16 %v8140, %v8139
    %v8198 = vpack.c.b16 %v8142, %v8141
    %v8199 = vpack.c.b16 %v8144, %v8143
    %v8200 = vpack.c.b16 %v8146, %v8145
    %v8201 = vpack.c.b16 %v8148, %v8147
    %v8202 = vpack.c.b16 %v8150, %v8149
    %v8203 = vpack.c.b16 %v8152, %v8151
    %v8204 = vpack.c.b16 %v8154, %v8153
    %v8205 = vpack.c.b16 %v8156, %v8155
    %v8206 = vpack.c.b16 %v8158, %v8157
    %v8207 = vpack.c.b16 %v8160, %v8159
    %v8208 = vpack.c.b16 %v8162, %v8161
    %v8209 = vpack.c.b16 %v8164, %v8163
    %v8210 = vpack.c.b16 %v8166, %v8165
    %v8211 = vpack.c.b16 %v8168, %v8167
    %v8212 = vpack.c.b16 %v8170, %v8169
    %v8213 = vpack.c.b16 %v8172, %v8171
    %v8214 = vpack.c.b16 %v8174, %v8173
    %v8215 = vpack.c.b16 %v8176, %v8175
    %v8216 = vpack.c.b16 %v8178, %v8177
    %v8217 = vpack.c.b16 %v8180, %v8179
    %v8218 = vpack.c.b16 %v8182, %v8181
    %v8219 = vpack.c.b16 %v8184, %v8183
    %v8220 = vpack.c.b16 %v8186, %v8185
    %v8221 = vpack.c.b16 %v8188, %v8187
    %v8222 = vpack.c.b16 %v8190, %v8189
    %8255 = vmatprep.subr.bf16.mxu0 0
    %8256 = vmatpush1.bf16.msra.mxu0 %v8191
    %8257 = vmatprep.subr.bf16.mxu0 0
    %8258 = vmatpush1.bf16.msra.mxu0 %v8192
    %8259 = vmatprep.subr.bf16.mxu0 0
    %8260 = vmatpush1.bf16.msra.mxu0 %v8193
    %8261 = vmatprep.subr.bf16.mxu0 0
    %8262 = vmatpush1.bf16.msra.mxu0 %v8194
    %8263 = vmatprep.subr.bf16.mxu0 0
    %8264 = vmatpush1.bf16.msra.mxu0 %v8195
    %8265 = vmatprep.subr.bf16.mxu0 0
    %8266 = vmatpush1.bf16.msra.mxu0 %v8196
    %8267 = vmatprep.subr.bf16.mxu0 0
    %8268 = vmatpush1.bf16.msra.mxu0 %v8197
    %8269 = vmatprep.subr.bf16.mxu0 0
    %8270 = vmatpush1.bf16.msra.mxu0 %v8198
    %8271 = vmatprep.subr.bf16.mxu0 0
    %8272 = vmatpush1.bf16.msra.mxu0 %v8199
    %8273 = vmatprep.subr.bf16.mxu0 0
    %8274 = vmatpush1.bf16.msra.mxu0 %v8200
    %8275 = vmatprep.subr.bf16.mxu0 0
    %8276 = vmatpush1.bf16.msra.mxu0 %v8201
    %8277 = vmatprep.subr.bf16.mxu0 0
    %8278 = vmatpush1.bf16.msra.mxu0 %v8202
    %8279 = vmatprep.subr.bf16.mxu0 0
    %8280 = vmatpush1.bf16.msra.mxu0 %v8203
    %8281 = vmatprep.subr.bf16.mxu0 0
    %8282 = vmatpush1.bf16.msra.mxu0 %v8204
    %8283 = vmatprep.subr.bf16.mxu0 0
    %8284 = vmatpush1.bf16.msra.mxu0 %v8205
    %8285 = vmatprep.subr.bf16.mxu0 0
    %8286 = vmatpush1.bf16.msra.mxu0 %v8206
    %8287 = vmatprep.mubr.bf16.mxu0 %v7989
    %8288 = vmatmul.mubr.bf16.gmra.mrb[0].mxu0 %v7988
    %v8289 = vpop.f32.mrb[0].mxu0
    %v8290 = vadd.f32 %v8061, %v8289
    %v8291 = vpop.f32.mrb[0].mxu0
    %v8292 = vpop.f32.mrb[0].mxu0
    %v8293 = vpop.f32.mrb[0].mxu0
    %8294 = vdwg.mxu0
    %8295 = vmatprep.subr.bf16.mxu0 0
    %8296 = vmatpush1.bf16.msra.mxu0 %v8207
    %8297 = vmatprep.subr.bf16.mxu0 0
    %8298 = vmatpush1.bf16.msra.mxu0 %v8208
    %8299 = vmatprep.subr.bf16.mxu0 0
    %8300 = vmatpush1.bf16.msra.mxu0 %v8209
    %8301 = vmatprep.subr.bf16.mxu0 0
    %8302 = vmatpush1.bf16.msra.mxu0 %v8210
    %8303 = vmatprep.subr.bf16.mxu0 0
    %8304 = vmatpush1.bf16.msra.mxu0 %v8211
    %8305 = vmatprep.subr.bf16.mxu0 0
    %8306 = vmatpush1.bf16.msra.mxu0 %v8212
    %8307 = vmatprep.subr.bf16.mxu0 0
    %8308 = vmatpush1.bf16.msra.mxu0 %v8213
    %8309 = vmatprep.subr.bf16.mxu0 0
    %8310 = vmatpush1.bf16.msra.mxu0 %v8214
    %8311 = vmatprep.subr.bf16.mxu0 0
    %8312 = vmatpush1.bf16.msra.mxu0 %v8215
    %8313 = vmatprep.subr.bf16.mxu0 0
    %8314 = vmatpush1.bf16.msra.mxu0 %v8216
    %8315 = vmatprep.subr.bf16.mxu0 0
    %8316 = vmatpush1.bf16.msra.mxu0 %v8217
    %8317 = vmatprep.subr.bf16.mxu0 0
    %8318 = vmatpush1.bf16.msra.mxu0 %v8218
    %8319 = vmatprep.subr.bf16.mxu0 0
    %8320 = vmatpush1.bf16.msra.mxu0 %v8219
    %8321 = vmatprep.subr.bf16.mxu0 0
    %8322 = vmatpush1.bf16.msra.mxu0 %v8220
    %8323 = vmatprep.subr.bf16.mxu0 0
    %8324 = vmatpush1.bf16.msra.mxu0 %v8221
    %8325 = vmatprep.subr.bf16.mxu0 0
    %8326 = vmatpush1.bf16.msra.mxu0 %v8222
    %8327 = vmatprep.mubr.bf16.mxu0 %v7991
    %8328 = vmatmul.mubr.bf16.gmra.mrb[0].mxu0 %v7990
    %v8329 = vpop.f32.mrb[0].mxu0
    %v8330 = vadd.f32 %v8290, %v8329
    %v8331 = vpop.f32.mrb[0].mxu0
    %v8332 = vpop.f32.mrb[0].mxu0
    %v8333 = vpop.f32.mrb[0].mxu0
    %8334 = vdwg.mxu0
    %v8335 = vsel %vm1353, %v8330, -inf
    %8336 = vmax.xlane.f32.xlu0 %v8335
    %v8337 = vpop.xlane.xlu0 %8336
    %v8338 = vsub.f32 %v8330, %v8337
    %v8339 = vmul.f32 %v8338, 1.442695
    %v8340 = vpow.pop %v8339
    %v8341 = vsel %vm1353, %v8340, 0.0
    %8342 = vadd.xlane.f32.xlu0 %v8341
    %v8343 = vpop.xlane.xlu0 %8342
    %v8344 = vrcp.pop %v8343
    %v8345 = vmul.f32 %v8340, %v8344
    %8346 = vst [vmem:[#allocation18] sm:$0x3] %v8345
    // Predicated region
    $region70: #{net_forward.1} parent=1 // pred_check
      _
    $region71: #{net_forward.1} parent=1 // pred_check_branch
      %8348 = sbr.rel (0) target = $region73
    $region72: #{net_forward.1} parent=1 // pred_region
      %s8350 = ssub.s32 32, 32
      %8351 = vsyncadd [#allocation6], %s8350
      %s8353 = sshll.u32 [#allocation18], 4
      %s8354 = int_to_ptr.vmem [resolvable:$true] %s8353
      %8356 = dma.vmem_to_hbm [thread:$0]  %s8354, 32, %s9, [#allocation6]
    $region73: #{net_forward.1} parent=1 // pred_fallthru
      _
    // Predicated region
    $region74: #{net_forward.1} parent=1 // pred_check
      _
    $region75: #{net_forward.1} parent=1 // pred_check_branch
      %8358 = sbr.rel (0) target = $region77
    $region76: #{net_forward.1} parent=1 // pred_region
      %8359 = dma.done [#allocation6], 32
    $region77: #{net_forward.1} parent=1 // pred_fallthru
      _
    %8360 = vsyncpa [#allocation5], 1
    %8361 = vsyncpa [#allocation8], 1
    %8362 = vsyncpa [#allocation11], 1
    %8363 = vsyncpa [#allocation14], 1
    %8364 = vsyncpa [#allocation17], 1
    %8365 = vsyncpa [#allocation6], 1

</llo_original>
